<compile_context>
chip_gen: v6e
topology: v6e:2x2x1
jax: 0.10.0
libtpu: 0.0.40
codegen_flags: <defaults>
</compile_context>

<pallas_src>
import functools
import numpy as np

import jax
import jax.numpy as jnp
from jax import lax
from jax.experimental import pallas as pl
from jax.experimental.pallas import tpu as pltpu

# -----------------------------------------------------------------------------
# Config
# -----------------------------------------------------------------------------
LANE = 128          # MXU / vreg lane width: all matmul output dims padded to this
TM_MAX = 512        # rows per grid step
VMEM_LIMIT = 32 * 1024 * 1024

# VGG16 structure (13 conv+ReLU, 4 maxpools -> feat_stride 16), channels scaled down.
VGG_CFG = [8, 8, 'M', 12, 12, 'M', 16, 16, 16, 'M', 32, 32, 32, 'M', 32, 32, 32]
RPN_MID = 32
HIDDEN = 64
ROI_SIZE = 7
FEAT_STRIDE = 16
N_ANCHOR = 9
N_PRE_NMS = 32     # scaled down from 12000/6000
N_POST_NMS = 16    # scaled down from 600
NMS_THRESH = 0.7


def _round_up(x, m):
    return ((x + m - 1) // m) * m


# -----------------------------------------------------------------------------
# Pallas kernels
# -----------------------------------------------------------------------------
def _dense_direct_kernel(x_ref, w_ref, b_ref, o_ref, *, activation):
    """Single K-block: y = act(x @ w + b), written straight to the output tile."""
    y = jnp.dot(x_ref[...], w_ref[...], preferred_element_type=jnp.float32) + b_ref[...]
    if activation == "relu":
        y = jnp.maximum(y, 0.0)
    o_ref[...] = y.astype(o_ref.dtype)


def _dense_acc_kernel(x_ref, w_ref, b_ref, o_ref, acc_ref, *, activation):
    """K-tiled: one (TM, TK) x (TK, Np) step with f32 VMEM accumulator."""
    @pl.when(pl.program_id(1) == 0)
    def _():
        acc_ref[...] = jnp.zeros_like(acc_ref)

    acc_ref[...] += jnp.dot(x_ref[...], w_ref[...],
                            preferred_element_type=jnp.float32)

    @pl.when(pl.program_id(1) == pl.num_programs(1) - 1)
    def _():
        y = acc_ref[...] + b_ref[...]
        if activation == "relu":
            y = jnp.maximum(y, 0.0)
        o_ref[...] = y.astype(o_ref.dtype)


def pallas_dense(x, w, b, n_out, activation=None, out_dtype=jnp.float32):
    """y = act(x @ w + b)[:, :n_out].  x:[M,K]; w:[K,Np] bf16 lane-padded; b:[1,Np] f32."""
    M, K = x.shape
    Np = w.shape[1]
    x = x.astype(jnp.bfloat16)

    tm = M if M <= TM_MAX else TM_MAX
    mg = pl.cdiv(M, tm)
    # K tiling only kicks in at real-scale widths (fc1 K=25088 etc.); single block here.
    tk = 512 if (K > 2048 and K % 512 == 0) else K
    kg = K // tk

    if kg == 1:
        out = pl.pallas_call(
            functools.partial(_dense_direct_kernel, activation=activation),
            out_shape=jax.ShapeDtypeStruct((M, Np), out_dtype),
            grid=(mg,),
            in_specs=[
                pl.BlockSpec((tm, K), lambda i: (i, 0)),     # x row tile
                pl.BlockSpec((K, Np), lambda i: (0, 0)),     # weight (lane-dense N)
                pl.BlockSpec((1, Np), lambda i: (0, 0)),     # bias
            ],
            out_specs=pl.BlockSpec((tm, Np), lambda i: (i, 0)),
            compiler_params=pltpu.CompilerParams(
                dimension_semantics=("parallel",),
                vmem_limit_bytes=VMEM_LIMIT),
        )(x, w, b)
    else:
        out = pl.pallas_call(
            functools.partial(_dense_acc_kernel, activation=activation),
            out_shape=jax.ShapeDtypeStruct((M, Np), out_dtype),
            grid=(mg, kg),
            in_specs=[
                pl.BlockSpec((tm, tk), lambda i, k: (i, k)),   # x row tile
                pl.BlockSpec((tk, Np), lambda i, k: (k, 0)),   # weight K-slab
                pl.BlockSpec((1, Np), lambda i, k: (0, 0)),    # bias
            ],
            out_specs=pl.BlockSpec((tm, Np), lambda i, k: (i, 0)),
            scratch_shapes=[pltpu.VMEM((tm, Np), jnp.float32)],
            compiler_params=pltpu.CompilerParams(
                dimension_semantics=("parallel", "arbitrary"),
                vmem_limit_bytes=VMEM_LIMIT),
        )(x, w, b)
    return out[:, :n_out]


def _mlp_kernel(*refs, n_layers, relu_flags):
    """Fused chain of dense layers: h = act_l(h @ w_l + b_l); intermediates stay in VMEM."""
    x_ref = refs[0]
    o_ref = refs[-1]
    h = x_ref[...]
    for l in range(n_layers):
        w = refs[1 + 2 * l][...]
        b = refs[2 + 2 * l][...]
        y = jnp.dot(h, w, preferred_element_type=jnp.float32) + b
        if relu_flags[l]:
            y = jnp.maximum(y, 0.0)
        h = y.astype(jnp.bfloat16) if (l + 1 < n_layers) else y
    o_ref[...] = h.astype(o_ref.dtype)


def pallas_mlp(x, layers, relu_flags, n_out, out_dtype=jnp.float32):
    """Fused multi-layer dense chain in one pallas_call (sibling heads concatenated
    into the last layer's lane-padded N)."""
    M, K = x.shape
    x = x.astype(jnp.bfloat16)
    Np_last = layers[-1][0].shape[1]

    tm = M if M <= TM_MAX else TM_MAX
    mg = pl.cdiv(M, tm)

    in_specs = [pl.BlockSpec((tm, K), lambda i: (i, 0))]
    args = [x]
    for (w, b) in layers:
        kl, nl = w.shape
        in_specs.append(pl.BlockSpec((kl, nl), lambda i: (0, 0)))
        in_specs.append(pl.BlockSpec((1, nl), lambda i: (0, 0)))
        args.extend([w, b])

    out = pl.pallas_call(
        functools.partial(_mlp_kernel, n_layers=len(layers),
                          relu_flags=tuple(relu_flags)),
        out_shape=jax.ShapeDtypeStruct((M, Np_last), out_dtype),
        grid=(mg,),
        in_specs=in_specs,
        out_specs=pl.BlockSpec((tm, Np_last), lambda i: (i, 0)),
        compiler_params=pltpu.CompilerParams(
            dimension_semantics=("parallel",),
            vmem_limit_bytes=VMEM_LIMIT),
    )(*args)
    return out[:, :n_out]


# -----------------------------------------------------------------------------
# Conv / pool helpers (im2col glue in JAX, matmul in Pallas)
# -----------------------------------------------------------------------------
def _im2col_3x3(x_nhwc):
    N, H, W, Cin = x_nhwc.shape
    xp = jnp.pad(x_nhwc, ((0, 0), (1, 1), (1, 1), (0, 0)))
    patches = [xp[:, kh:kh + H, kw:kw + W, :] for kh in range(3) for kw in range(3)]
    return jnp.concatenate(patches, axis=-1).reshape(N * H * W, 9 * Cin)


def conv2d_3x3(x_nhwc, wb, n_out, relu=True):
    """3x3, stride 1, pad 1 conv via im2col + lane-dense Pallas matmul (bf16 activations)."""
    # TODO(synk): im2col still materialized in XLA; a 9-tap reduction axis inside the
    # kernel would remove the 9x activation HBM blowup at real feature sizes.
    N, H, W, _ = x_nhwc.shape
    cols = _im2col_3x3(x_nhwc)
    w, b = wb
    y = pallas_dense(cols, w, b, n_out,
                     activation="relu" if relu else None,
                     out_dtype=jnp.bfloat16)
    return y.reshape(N, H, W, n_out)


def maxpool2x2(x):
    # TODO(synk): 2x2 maxpool kept as tiny JAX glue around the Pallas conv hot path.
    N, H, W, C = x.shape
    return jnp.max(x.reshape(N, H // 2, 2, W // 2, 2, C), axis=(2, 4))


# -----------------------------------------------------------------------------
# Anchors / proposal layer
# -----------------------------------------------------------------------------
def generate_anchor_base(base_size=16, ratios=(0.5, 1, 2), anchor_scales=(8, 16, 32)):
    ab = np.zeros((len(ratios) * len(anchor_scales), 4), dtype=np.float32)
    for i, r in enumerate(ratios):
        for j, s in enumerate(anchor_scales):
            h = base_size * s * np.sqrt(r)
            w = base_size * s * np.sqrt(1.0 / r)
            idx = i * len(anchor_scales) + j
            ab[idx] = [-w / 2.0, -h / 2.0, w / 2.0, h / 2.0]
    return ab


def enumerate_shifted_anchor(anchor_base, feat_stride, height, width):
    shift_x = jnp.arange(0, width * feat_stride, feat_stride, dtype=jnp.float32)
    shift_y = jnp.arange(0, height * feat_stride, feat_stride, dtype=jnp.float32)
    sx, sy = jnp.meshgrid(shift_x, shift_y)
    shift = jnp.stack([sx.ravel(), sy.ravel(), sx.ravel(), sy.ravel()], axis=1)
    anchors = anchor_base[None, :, :] + shift[:, None, :]
    return anchors.reshape(-1, 4)


def loc2bbox(src_bbox, loc):
    src_w = src_bbox[:, 2] - src_bbox[:, 0]
    src_h = src_bbox[:, 3] - src_bbox[:, 1]
    src_cx = src_bbox[:, 0] + 0.5 * src_w
    src_cy = src_bbox[:, 1] + 0.5 * src_h
    dx, dy, dw, dh = loc[:, 0], loc[:, 1], loc[:, 2], loc[:, 3]
    cx = dx * src_w + src_cx
    cy = dy * src_h + src_cy
    w = jnp.exp(dw) * src_w
    h = jnp.exp(dh) * src_h
    return jnp.stack([cx - 0.5 * w, cy - 0.5 * h, cx + 0.5 * w, cy + 0.5 * h], axis=1)


def nms_jax(boxes, scores, thresh, max_out):
    n = boxes.shape[0]
    order = jnp.argsort(-scores)
    b = boxes[order]
    areas = (b[:, 2] - b[:, 0]) * (b[:, 3] - b[:, 1])

    def body(i, keep):
        xx1 = jnp.maximum(b[i, 0], b[:, 0])
        yy1 = jnp.maximum(b[i, 1], b[:, 1])
        xx2 = jnp.minimum(b[i, 2], b[:, 2])
        yy2 = jnp.minimum(b[i, 3], b[:, 3])
        inter = jnp.maximum(xx2 - xx1, 0.0) * jnp.maximum(yy2 - yy1, 0.0)
        iou = inter / (areas[i] + areas - inter + 1e-9)
        suppress = (iou > thresh) & (jnp.arange(n) > i) & keep[i]
        return keep & (~suppress)

    keep = lax.fori_loop(0, n, body, jnp.ones((n,), jnp.bool_))
    # TODO(synk): original pads short keep lists by random resampling; pad with top kept box.
    kept = jnp.nonzero(keep, size=max_out, fill_value=0)[0]
    return order[kept]


def proposal_layer(loc, score, anchors, img_size, scale,
                   n_pre_nms, n_post_nms, nms_thresh=0.7, min_size=16.0):
    roi = loc2bbox(anchors, loc)
    roi = jnp.stack([
        jnp.clip(roi[:, 0], 0.0, float(img_size[1])),
        jnp.clip(roi[:, 1], 0.0, float(img_size[0])),
        jnp.clip(roi[:, 2], 0.0, float(img_size[1])),
        jnp.clip(roi[:, 3], 0.0, float(img_size[0])),
    ], axis=1)
    ms = min_size * scale
    valid = ((roi[:, 2] - roi[:, 0]) >= ms) & ((roi[:, 3] - roi[:, 1]) >= ms)
    # TODO(synk): original drops too-small boxes (dynamic shape); demote via -inf score here.
    score = jnp.where(valid, score, -jnp.inf)
    # Pre-NMS top-k (ProposalCreator's n_pre_nms) bounds the O(n^2) NMS loop.
    k = min(n_pre_nms, int(score.shape[0]))
    top_scores, top_idx = lax.top_k(score, k)
    roi_top = roi[top_idx]
    keep = nms_jax(roi_top, top_scores, nms_thresh, n_post_nms)
    return roi_top[keep]


# -----------------------------------------------------------------------------
# RoI max-pool (torchvision RoIPool semantics), 7x7 output
# -----------------------------------------------------------------------------
def roi_pool_max(feat, rois_fm, roi_idx, pooled):
    # TODO(synk): data-dependent ROI gather kept as XLA glue; a PrefetchScalarGridSpec
    # Pallas kernel (per-ROI window DMA into VMEM) is the production fix at real sizes.
    N, H, W, C = feat.shape
    x1 = jnp.round(rois_fm[:, 0])
    y1 = jnp.round(rois_fm[:, 1])
    x2 = jnp.round(rois_fm[:, 2])
    y2 = jnp.round(rois_fm[:, 3])
    roi_w = jnp.maximum(x2 - x1 + 1.0, 1.0)
    roi_h = jnp.maximum(y2 - y1 + 1.0, 1.0)
    p = jnp.arange(pooled, dtype=jnp.float32)
    hstart = jnp.clip(jnp.floor(p[None, :] * roi_h[:, None] / pooled) + y1[:, None], 0, H)
    hend = jnp.clip(jnp.ceil((p[None, :] + 1.0) * roi_h[:, None] / pooled) + y1[:, None], 0, H)
    wstart = jnp.clip(jnp.floor(p[None, :] * roi_w[:, None] / pooled) + x1[:, None], 0, W)
    wend = jnp.clip(jnp.ceil((p[None, :] + 1.0) * roi_w[:, None] / pooled) + x1[:, None], 0, W)
    hg = jnp.arange(H, dtype=jnp.float32)
    wg = jnp.arange(W, dtype=jnp.float32)
    hmask = (hg[None, None, :] >= hstart[:, :, None]) & (hg[None, None, :] < hend[:, :, None])  # (R,P,H)
    wmask = (wg[None, None, :] >= wstart[:, :, None]) & (wg[None, None, :] < wend[:, :, None])  # (R,P,W)
    fsel = feat[roi_idx].astype(jnp.float32)                                                     # (R,H,W,C)
    neg = jnp.float32(-jnp.inf)
    # Reduce over W, then H (intermediates stay O(R*H*W*C), not O(R*P*P*H*W*C)).
    col_list = []
    for q in range(pooled):
        m = wmask[:, q, :]                                                       # (R,W)
        col_list.append(jnp.where(m[:, None, :, None], fsel, neg).max(axis=2))   # (R,H,C)
    colmax = jnp.stack(col_list, axis=2)                                         # (R,H,P,C)
    row_list = []
    for pp in range(pooled):
        m = hmask[:, pp, :]                                                      # (R,H)
        row_list.append(jnp.where(m[:, :, None, None], colmax, neg).max(axis=1))  # (R,P,C)
    out = jnp.stack(row_list, axis=1)                                            # (R,P,P,C)
    return jnp.where(jnp.isfinite(out), out, 0.0)


# -----------------------------------------------------------------------------
# Parameter packing (lane-dense bf16 weights, f32 biases)
# -----------------------------------------------------------------------------
def pack_dense(w, b):
    """w:(K,N) f32, b:(N,) -> (bf16 (K, Np) lane-padded, f32 (1, Np))."""
    K, N = w.shape
    Np = _round_up(N, LANE)
    wp = jnp.zeros((K, Np), jnp.bfloat16).at[:, :N].set(w.astype(jnp.bfloat16))
    bp = jnp.zeros((1, Np), jnp.float32).at[:, :N].set(b.reshape(1, N).astype(jnp.float32))
    return (wp, bp)


def init_params(key, num_classes):
    n_class = num_classes + 1
    keys = iter(jax.random.split(key, 64))

    def conv_mat(cin, cout, k=3, scale=None):
        s = scale if scale is not None else np.sqrt(2.0 / (k * k * cin))
        w = jax.random.normal(next(keys), (k, k, cin, cout), jnp.float32) * s
        return w.reshape(k * k * cin, cout), jnp.zeros((cout,), jnp.float32)

    def lin_mat(cin, cout, scale=None):
        s = scale if scale is not None else 1.0 / np.sqrt(cin)
        w = jax.random.normal(next(keys), (cin, cout), jnp.float32) * s
        return w, jnp.zeros((cout,), jnp.float32)

    params = {}
    vgg = []
    cin = 3
    for c in VGG_CFG:
        if c == 'M':
            continue
        vgg.append(pack_dense(*conv_mat(cin, c)))
        cin = c
    params['vgg'] = vgg
    c_feat = cin

    # RPN: 3x3 conv fused with the concatenated [loc | score] 1x1 heads (one pallas_call).
    params['rpn_conv'] = pack_dense(*conv_mat(c_feat, RPN_MID, 3))
    w_loc, b_loc = lin_mat(RPN_MID, N_ANCHOR * 4, scale=0.01)
    w_sc, b_sc = lin_mat(RPN_MID, N_ANCHOR * 2, scale=0.1)
    w_ls = jnp.concatenate([w_loc, w_sc], axis=1)                  # (RPN_MID, 54)
    b_ls = jnp.concatenate([b_loc, b_sc], axis=0)
    mid_p = _round_up(RPN_MID, LANE)
    w_ls_full = jnp.zeros((mid_p, w_ls.shape[1]), jnp.float32).at[:RPN_MID].set(w_ls)
    params['rpn_locscore'] = pack_dense(w_ls_full, b_ls)

    # RoI head: fc1 + fc2 + concatenated [cls_loc | score] heads (one pallas_call).
    params['fc1'] = pack_dense(*lin_mat(c_feat * ROI_SIZE * ROI_SIZE, HIDDEN))
    hid_p = _round_up(HIDDEN, LANE)
    w2, b2 = lin_mat(HIDDEN, HIDDEN)
    w2_full = jnp.zeros((hid_p, HIDDEN), jnp.float32).at[:HIDDEN].set(w2)
    params['fc2'] = pack_dense(w2_full, b2)
    w_cl, b_cl = lin_mat(HIDDEN, n_class * 4, scale=0.001)
    w_s, b_s = lin_mat(HIDDEN, n_class, scale=0.01)
    w_h = jnp.concatenate([w_cl, w_s], axis=1)                     # (HIDDEN, n_class*5)
    b_h = jnp.concatenate([b_cl, b_s], axis=0)
    w_h_full = jnp.zeros((hid_p, w_h.shape[1]), jnp.float32).at[:HIDDEN].set(w_h)
    params['headcat'] = pack_dense(w_h_full, b_h)
    return params


# -----------------------------------------------------------------------------
# Forward passes
# -----------------------------------------------------------------------------
def extractor_forward(params, x_nhwc):
    x = x_nhwc.astype(jnp.bfloat16)
    ci = 0
    for c in VGG_CFG:
        if c == 'M':
            x = maxpool2x2(x)
        else:
            x = conv2d_3x3(x, params['vgg'][ci], c, relu=True)
            ci += 1
    return x


def rpn_forward(params, feat, img_size, scale, anchor_base):
    N, H, W, C = feat.shape
    cols = _im2col_3x3(feat)                                      # (N*H*W, 9*C)
    n_ls = N_ANCHOR * 6                                           # 36 loc + 18 score
    out = pallas_mlp(cols, [params['rpn_conv'], params['rpn_locscore']],
                     relu_flags=(True, False), n_out=n_ls, out_dtype=jnp.float32)
    rpn_locs = out[:, :N_ANCHOR * 4].reshape(N, H, W, N_ANCHOR * 4).reshape(N, -1, 4)
    rpn_scores = out[:, N_ANCHOR * 4:].reshape(N, H, W, N_ANCHOR * 2).reshape(N, -1, 2)
    fg_scores = jax.nn.softmax(rpn_scores, axis=-1)[..., 1]
    anchors = enumerate_shifted_anchor(jnp.asarray(anchor_base), FEAT_STRIDE, H, W)

    rois_list, idx_list = [], []
    for i in range(N):
        roi = proposal_layer(rpn_locs[i], fg_scores[i], anchors, img_size, scale,
                             N_PRE_NMS, N_POST_NMS, NMS_THRESH)
        rois_list.append(roi)
        idx_list.append(jnp.full((roi.shape[0],), float(i), jnp.float32))
    rois = jnp.stack(rois_list, axis=0)          # (N, R, 4)
    roi_indices = jnp.stack(idx_list, axis=0)    # (N, R)
    return rpn_locs, rpn_scores, rois, roi_indices, anchors


def head_forward(params, feat, rois, roi_indices, img_size, n_class):
    N, H, W, C = feat.shape
    n, R = rois.shape[0], rois.shape[1]
    rf = rois.reshape(-1, 4)
    ridx = roi_indices.reshape(-1).astype(jnp.int32)
    # map rois from image coords to feature-map coords (VGG16RoIHead semantics)
    rois_fm = jnp.stack([
        rf[:, 0] / float(img_size[1]) * W,
        rf[:, 1] / float(img_size[0]) * H,
        rf[:, 2] / float(img_size[1]) * W,
        rf[:, 3] / float(img_size[0]) * H,
    ], axis=1)
    pool = roi_pool_max(feat, rois_fm, ridx, ROI_SIZE)               # (nR, P, P, C)
    pool = jnp.transpose(pool, (0, 3, 1, 2)).reshape(n * R, -1)      # NCHW flatten like PyTorch
    out = pallas_mlp(pool, [params['fc1'], params['fc2'], params['headcat']],
                     relu_flags=(True, True, False),
                     n_out=n_class * 5, out_dtype=jnp.float32)
    roi_cls_locs = out[:, :n_class * 4]
    roi_scores = out[:, n_class * 4:]
    return (roi_cls_locs.reshape(n, R, -1), roi_scores.reshape(n, R, -1))


def faster_rcnn_forward(params, x_nchw, num_classes, scale=1.0):
    img_size = x_nchw.shape[2:]
    x = jnp.transpose(x_nchw, (0, 2, 3, 1)).astype(jnp.float32)   # NCHW -> NHWC
    anchor_base = generate_anchor_base(base_size=16, ratios=(0.5, 1, 2),
                                       anchor_scales=(8, 16, 32))
    base_feature = extractor_forward(params, x)
    _, _, rois, roi_indices, _ = rpn_forward(params, base_feature, img_size, scale, anchor_base)
    roi_cls_locs, roi_scores = head_forward(params, base_feature, rois, roi_indices,
                                            img_size, num_classes + 1)
    return roi_cls_locs, roi_scores, rois, roi_indices


# -----------------------------------------------------------------------------
if __name__ == "__main__":
    num_classes = 3
    key = jax.random.PRNGKey(0)
    params = init_params(key, num_classes)

    x = jax.random.normal(jax.random.PRNGKey(0), (2, 3, 32, 32), jnp.float32)

    fwd = jax.jit(functools.partial(faster_rcnn_forward, num_classes=num_classes))
    roi_cls_locs, roi_scores, rois, roi_indices = fwd(params, x)
    jax.block_until_ready((roi_cls_locs, roi_scores, rois, roi_indices))

    assert roi_cls_locs.shape == (2, N_POST_NMS, (num_classes + 1) * 4)
    assert roi_scores.shape == (2, N_POST_NMS, num_classes + 1)
    assert rois.shape == (2, N_POST_NMS, 4)
    assert roi_indices.shape == (2, N_POST_NMS)
    assert bool(jnp.all(jnp.isfinite(roi_cls_locs))) and bool(jnp.all(jnp.isfinite(roi_scores)))
    print("KERNEL_OK")
</pallas_src>

<mosaic_0001>
module attributes {stable_mosaic.version = 11 : i64} {
  func.func private @main(%arg0: i32) attributes {dimension_semantics = [#tpu.dimension_semantics<core_parallel>], iteration_bounds = array<i64: 2>, tpu.core_type = #tpu.core_type<sc_scalar_subcore>, window_params = []} {
    return
  }
}

module attributes {stable_mosaic.version = 11 : i64} {
  func.func private @main(%arg0: i32) attributes {dimension_semantics = [#tpu.dimension_semantics<core_parallel>], iteration_bounds = array<i64: 2>, tpu.core_type = #tpu.core_type<sc_scalar_subcore>, window_params = []} {
    return
  }
}

module attributes {stable_mosaic.version = 11 : i64} {
  func.func @_dense_direct_kernel(%arg0: i32, %arg1: memref<512x27xbf16, #tpu.memory_space<vmem>>, %arg2: memref<27x128xbf16, #tpu.memory_space<vmem>>, %arg3: memref<1x128xf32, #tpu.memory_space<vmem>>, %arg4: memref<512x128xbf16, #tpu.memory_space<vmem>>) attributes {dimension_semantics = [#tpu.dimension_semantics<parallel>], iteration_bounds = array<i64: 4>, scalar_prefetch = 0 : i64, scratch_operands = 0 : i64, tpu.core_type = #tpu.core_type<tc>, window_params = [{transform_indices = @transform_0, window_bounds = array<i64: 512, 27>}, {pipeline_mode = #tpu.pipeline_mode<synchronous>, transform_indices = @transform_1, window_bounds = array<i64: 27, 128>}, {pipeline_mode = #tpu.pipeline_mode<synchronous>, transform_indices = @transform_2, window_bounds = array<i64: 1, 128>}, {transform_indices = @transform_3, window_bounds = array<i64: 512, 128>}]} {
    %c0 = arith.constant 0 : index
    %c0_0 = arith.constant 0 : index
    %0 = vector.load %arg1[%c0, %c0_0] : memref<512x27xbf16, #tpu.memory_space<vmem>>, vector<512x27xbf16>
    %c0_1 = arith.constant 0 : index
    %c0_2 = arith.constant 0 : index
    %1 = vector.load %arg2[%c0_1, %c0_2] : memref<27x128xbf16, #tpu.memory_space<vmem>>, vector<27x128xbf16>
    %cst = arith.constant dense<0.000000e+00> : vector<512x128xf32>
    %2 = tpu.matmul %0, %1, %cst {dimension_numbers = #tpu.dot_dimension_numbers<[1], [0], [0], [1], [0, 0, 1, 1], [], []>} : vector<512x27xbf16>, vector<27x128xbf16>, vector<512x128xf32> -> vector<512x128xf32>
    %c0_3 = arith.constant 0 : index
    %c0_4 = arith.constant 0 : index
    %3 = vector.load %arg3[%c0_3, %c0_4] : memref<1x128xf32, #tpu.memory_space<vmem>>, vector<1x128xf32>
    %4 = vector.broadcast %3 : vector<1x128xf32> to vector<512x128xf32>
    %5 = arith.addf %2, %4 : vector<512x128xf32>
    %cst_5 = arith.constant 0.000000e+00 : f32
    %6 = vector.broadcast %cst_5 : f32 to vector<512x128xf32>
    %7 = arith.maximumf %5, %6 : vector<512x128xf32>
    %8 = arith.truncf %7 : vector<512x128xf32> to vector<512x128xbf16>
    %c0_6 = arith.constant 0 : index
    %c0_7 = arith.constant 0 : index
    %9 = vector.load %arg4[%c0_6, %c0_7] : memref<512x128xbf16, #tpu.memory_space<vmem>>, vector<512x128xbf16>
    tpu.vector_store %arg4[%c0_6, %c0_7], %8 {strides = array<i32>} : memref<512x128xbf16, #tpu.memory_space<vmem>>, vector<512x128xbf16>,
    return
  }
  func.func @transform_0(%arg0: i32) -> (i32, i32) {
    %c0_i32 = arith.constant 0 : i32
    %c0_i32_0 = arith.constant 0 : i32
    return %arg0, %c0_i32 : i32, i32
  }
  func.func @transform_1(%arg0: i32) -> (i32, i32) {
    %c0_i32 = arith.constant 0 : i32
    %c0_i32_0 = arith.constant 0 : i32
    %c0_i32_1 = arith.constant 0 : i32
    return %c0_i32, %c0_i32_0 : i32, i32
  }
  func.func @transform_2(%arg0: i32) -> (i32, i32) {
    %c0_i32 = arith.constant 0 : i32
    %c0_i32_0 = arith.constant 0 : i32
    %c0_i32_1 = arith.constant 0 : i32
    return %c0_i32, %c0_i32_0 : i32, i32
  }
  func.func @transform_3(%arg0: i32) -> (i32, i32) {
    %c0_i32 = arith.constant 0 : i32
    %c0_i32_0 = arith.constant 0 : i32
    return %arg0, %c0_i32 : i32, i32
  }
}

module attributes {stable_mosaic.version = 11 : i64} {
  func.func @_dense_direct_kernel(%arg0: i32, %arg1: memref<512x72xbf16, #tpu.memory_space<vmem>>, %arg2: memref<72x128xbf16, #tpu.memory_space<vmem>>, %arg3: memref<1x128xf32, #tpu.memory_space<vmem>>, %arg4: memref<512x128xbf16, #tpu.memory_space<vmem>>) attributes {dimension_semantics = [#tpu.dimension_semantics<parallel>], iteration_bounds = array<i64: 4>, scalar_prefetch = 0 : i64, scratch_operands = 0 : i64, tpu.core_type = #tpu.core_type<tc>, window_params = [{transform_indices = @transform_0, window_bounds = array<i64: 512, 72>}, {pipeline_mode = #tpu.pipeline_mode<synchronous>, transform_indices = @transform_1, window_bounds = array<i64: 72, 128>}, {pipeline_mode = #tpu.pipeline_mode<synchronous>, transform_indices = @transform_2, window_bounds = array<i64: 1, 128>}, {transform_indices = @transform_3, window_bounds = array<i64: 512, 128>}]} {
    %c0 = arith.constant 0 : index
    %c0_0 = arith.constant 0 : index
    %0 = vector.load %arg1[%c0, %c0_0] : memref<512x72xbf16, #tpu.memory_space<vmem>>, vector<512x72xbf16>
    %c0_1 = arith.constant 0 : index
    %c0_2 = arith.constant 0 : index
    %1 = vector.load %arg2[%c0_1, %c0_2] : memref<72x128xbf16, #tpu.memory_space<vmem>>, vector<72x128xbf16>
    %cst = arith.constant dense<0.000000e+00> : vector<512x128xf32>
    %2 = tpu.matmul %0, %1, %cst {dimension_numbers = #tpu.dot_dimension_numbers<[1], [0], [0], [1], [0, 0, 1, 1], [], []>} : vector<512x72xbf16>, vector<72x128xbf16>, vector<512x128xf32> -> vector<512x128xf32>
    %c0_3 = arith.constant 0 : index
    %c0_4 = arith.constant 0 : index
    %3 = vector.load %arg3[%c0_3, %c0_4] : memref<1x128xf32, #tpu.memory_space<vmem>>, vector<1x128xf32>
    %4 = vector.broadcast %3 : vector<1x128xf32> to vector<512x128xf32>
    %5 = arith.addf %2, %4 : vector<512x128xf32>
    %cst_5 = arith.constant 0.000000e+00 : f32
    %6 = vector.broadcast %cst_5 : f32 to vector<512x128xf32>
    %7 = arith.maximumf %5, %6 : vector<512x128xf32>
    %8 = arith.truncf %7 : vector<512x128xf32> to vector<512x128xbf16>
    %c0_6 = arith.constant 0 : index
    %c0_7 = arith.constant 0 : index
    %9 = vector.load %arg4[%c0_6, %c0_7] : memref<512x128xbf16, #tpu.memory_space<vmem>>, vector<512x128xbf16>
    tpu.vector_store %arg4[%c0_6, %c0_7], %8 {strides = array<i32>} : memref<512x128xbf16, #tpu.memory_space<vmem>>, vector<512x128xbf16>,
    return
  }
  func.func @transform_0(%arg0: i32) -> (i32, i32) {
    %c0_i32 = arith.constant 0 : i32
    %c0_i32_0 = arith.constant 0 : i32
    return %arg0, %c0_i32 : i32, i32
  }
  func.func @transform_1(%arg0: i32) -> (i32, i32) {
    %c0_i32 = arith.constant 0 : i32
    %c0_i32_0 = arith.constant 0 : i32
    %c0_i32_1 = arith.constant 0 : i32
    return %c0_i32, %c0_i32_0 : i32, i32
  }
  func.func @transform_2(%arg0: i32) -> (i32, i32) {
    %c0_i32 = arith.constant 0 : i32
    %c0_i32_0 = arith.constant 0 : i32
    %c0_i32_1 = arith.constant 0 : i32
    return %c0_i32, %c0_i32_0 : i32, i32
  }
  func.func @transform_3(%arg0: i32) -> (i32, i32) {
    %c0_i32 = arith.constant 0 : i32
    %c0_i32_0 = arith.constant 0 : i32
    return %arg0, %c0_i32 : i32, i32
  }
}

module attributes {stable_mosaic.version = 11 : i64} {
  func.func @_dense_direct_kernel(%arg0: i32, %arg1: memref<512x72xbf16, #tpu.memory_space<vmem>>, %arg2: memref<72x128xbf16, #tpu.memory_space<vmem>>, %arg3: memref<1x128xf32, #tpu.memory_space<vmem>>, %arg4: memref<512x128xbf16, #tpu.memory_space<vmem>>) attributes {dimension_semantics = [#tpu.dimension_semantics<parallel>], iteration_bounds = array<i64: 1>, scalar_prefetch = 0 : i64, scratch_operands = 0 : i64, tpu.core_type = #tpu.core_type<tc>, window_params = [{transform_indices = @transform_0, window_bounds = array<i64: 512, 72>}, {pipeline_mode = #tpu.pipeline_mode<synchronous>, transform_indices = @transform_1, window_bounds = array<i64: 72, 128>}, {pipeline_mode = #tpu.pipeline_mode<synchronous>, transform_indices = @transform_2, window_bounds = array<i64: 1, 128>}, {transform_indices = @transform_3, window_bounds = array<i64: 512, 128>}]} {
    %c0 = arith.constant 0 : index
    %c0_0 = arith.constant 0 : index
    %0 = vector.load %arg1[%c0, %c0_0] : memref<512x72xbf16, #tpu.memory_space<vmem>>, vector<512x72xbf16>
    %c0_1 = arith.constant 0 : index
    %c0_2 = arith.constant 0 : index
    %1 = vector.load %arg2[%c0_1, %c0_2] : memref<72x128xbf16, #tpu.memory_space<vmem>>, vector<72x128xbf16>
    %cst = arith.constant dense<0.000000e+00> : vector<512x128xf32>
    %2 = tpu.matmul %0, %1, %cst {dimension_numbers = #tpu.dot_dimension_numbers<[1], [0], [0], [1], [0, 0, 1, 1], [], []>} : vector<512x72xbf16>, vector<72x128xbf16>, vector<512x128xf32> -> vector<512x128xf32>
    %c0_3 = arith.constant 0 : index
    %c0_4 = arith.constant 0 : index
    %3 = vector.load %arg3[%c0_3, %c0_4] : memref<1x128xf32, #tpu.memory_space<vmem>>, vector<1x128xf32>
    %4 = vector.broadcast %3 : vector<1x128xf32> to vector<512x128xf32>
    %5 = arith.addf %2, %4 : vector<512x128xf32>
    %cst_5 = arith.constant 0.000000e+00 : f32
    %6 = vector.broadcast %cst_5 : f32 to vector<512x128xf32>
    %7 = arith.maximumf %5, %6 : vector<512x128xf32>
    %8 = arith.truncf %7 : vector<512x128xf32> to vector<512x128xbf16>
    %c0_6 = arith.constant 0 : index
    %c0_7 = arith.constant 0 : index
    %9 = vector.load %arg4[%c0_6, %c0_7] : memref<512x128xbf16, #tpu.memory_space<vmem>>, vector<512x128xbf16>
    tpu.vector_store %arg4[%c0_6, %c0_7], %8 {strides = array<i32>} : memref<512x128xbf16, #tpu.memory_space<vmem>>, vector<512x128xbf16>,
    return
  }
  func.func @transform_0(%arg0: i32) -> (i32, i32) {
    %c0_i32 = arith.constant 0 : i32
    %c0_i32_0 = arith.constant 0 : i32
    return %arg0, %c0_i32 : i32, i32
  }
  func.func @transform_1(%arg0: i32) -> (i32, i32) {
    %c0_i32 = arith.constant 0 : i32
    %c0_i32_0 = arith.constant 0 : i32
    %c0_i32_1 = arith.constant 0 : i32
    return %c0_i32, %c0_i32_0 : i32, i32
  }
  func.func @transform_2(%arg0: i32) -> (i32, i32) {
    %c0_i32 = arith.constant 0 : i32
    %c0_i32_0 = arith.constant 0 : i32
    %c0_i32_1 = arith.constant 0 : i32
    return %c0_i32, %c0_i32_0 : i32, i32
  }
  func.func @transform_3(%arg0: i32) -> (i32, i32) {
    %c0_i32 = arith.constant 0 : i32
    %c0_i32_0 = arith.constant 0 : i32
    return %arg0, %c0_i32 : i32, i32
  }
}

module attributes {stable_mosaic.version = 11 : i64} {
  func.func @_dense_direct_kernel(%arg0: i32, %arg1: memref<512x108xbf16, #tpu.memory_space<vmem>>, %arg2: memref<108x128xbf16, #tpu.memory_space<vmem>>, %arg3: memref<1x128xf32, #tpu.memory_space<vmem>>, %arg4: memref<512x128xbf16, #tpu.memory_space<vmem>>) attributes {dimension_semantics = [#tpu.dimension_semantics<parallel>], iteration_bounds = array<i64: 1>, scalar_prefetch = 0 : i64, scratch_operands = 0 : i64, tpu.core_type = #tpu.core_type<tc>, window_params = [{transform_indices = @transform_0, window_bounds = array<i64: 512, 108>}, {pipeline_mode = #tpu.pipeline_mode<synchronous>, transform_indices = @transform_1, window_bounds = array<i64: 108, 128>}, {pipeline_mode = #tpu.pipeline_mode<synchronous>, transform_indices = @transform_2, window_bounds = array<i64: 1, 128>}, {transform_indices = @transform_3, window_bounds = array<i64: 512, 128>}]} {
    %c0 = arith.constant 0 : index
    %c0_0 = arith.constant 0 : index
    %0 = vector.load %arg1[%c0, %c0_0] : memref<512x108xbf16, #tpu.memory_space<vmem>>, vector<512x108xbf16>
    %c0_1 = arith.constant 0 : index
    %c0_2 = arith.constant 0 : index
    %1 = vector.load %arg2[%c0_1, %c0_2] : memref<108x128xbf16, #tpu.memory_space<vmem>>, vector<108x128xbf16>
    %cst = arith.constant dense<0.000000e+00> : vector<512x128xf32>
    %2 = tpu.matmul %0, %1, %cst {dimension_numbers = #tpu.dot_dimension_numbers<[1], [0], [0], [1], [0, 0, 1, 1], [], []>} : vector<512x108xbf16>, vector<108x128xbf16>, vector<512x128xf32> -> vector<512x128xf32>
    %c0_3 = arith.constant 0 : index
    %c0_4 = arith.constant 0 : index
    %3 = vector.load %arg3[%c0_3, %c0_4] : memref<1x128xf32, #tpu.memory_space<vmem>>, vector<1x128xf32>
    %4 = vector.broadcast %3 : vector<1x128xf32> to vector<512x128xf32>
    %5 = arith.addf %2, %4 : vector<512x128xf32>
    %cst_5 = arith.constant 0.000000e+00 : f32
    %6 = vector.broadcast %cst_5 : f32 to vector<512x128xf32>
    %7 = arith.maximumf %5, %6 : vector<512x128xf32>
    %8 = arith.truncf %7 : vector<512x128xf32> to vector<512x128xbf16>
    %c0_6 = arith.constant 0 : index
    %c0_7 = arith.constant 0 : index
    %9 = vector.load %arg4[%c0_6, %c0_7] : memref<512x128xbf16, #tpu.memory_space<vmem>>, vector<512x128xbf16>
    tpu.vector_store %arg4[%c0_6, %c0_7], %8 {strides = array<i32>} : memref<512x128xbf16, #tpu.memory_space<vmem>>, vector<512x128xbf16>,
    return
  }
  func.func @transform_0(%arg0: i32) -> (i32, i32) {
    %c0_i32 = arith.constant 0 : i32
    %c0_i32_0 = arith.constant 0 : i32
    return %arg0, %c0_i32 : i32, i32
  }
  func.func @transform_1(%arg0: i32) -> (i32, i32) {
    %c0_i32 = arith.constant 0 : i32
    %c0_i32_0 = arith.constant 0 : i32
    %c0_i32_1 = arith.constant 0 : i32
    return %c0_i32, %c0_i32_0 : i32, i32
  }
  func.func @transform_2(%arg0: i32) -> (i32, i32) {
    %c0_i32 = arith.constant 0 : i32
    %c0_i32_0 = arith.constant 0 : i32
    %c0_i32_1 = arith.constant 0 : i32
    return %c0_i32, %c0_i32_0 : i32, i32
  }
  func.func @transform_3(%arg0: i32) -> (i32, i32) {
    %c0_i32 = arith.constant 0 : i32
    %c0_i32_0 = arith.constant 0 : i32
    return %arg0, %c0_i32 : i32, i32
  }
}

module attributes {stable_mosaic.version = 11 : i64} {
  func.func @_dense_direct_kernel(%arg0: i32, %arg1: memref<128x108xbf16, #tpu.memory_space<vmem>>, %arg2: memref<108x128xbf16, #tpu.memory_space<vmem>>, %arg3: memref<1x128xf32, #tpu.memory_space<vmem>>, %arg4: memref<128x128xbf16, #tpu.memory_space<vmem>>) attributes {dimension_semantics = [#tpu.dimension_semantics<parallel>], iteration_bounds = array<i64: 1>, scalar_prefetch = 0 : i64, scratch_operands = 0 : i64, tpu.core_type = #tpu.core_type<tc>, window_params = [{transform_indices = @transform_0, window_bounds = array<i64: 128, 108>}, {pipeline_mode = #tpu.pipeline_mode<synchronous>, transform_indices = @transform_1, window_bounds = array<i64: 108, 128>}, {pipeline_mode = #tpu.pipeline_mode<synchronous>, transform_indices = @transform_2, window_bounds = array<i64: 1, 128>}, {transform_indices = @transform_3, window_bounds = array<i64: 128, 128>}]} {
    %c0 = arith.constant 0 : index
    %c0_0 = arith.constant 0 : index
    %0 = vector.load %arg1[%c0, %c0_0] : memref<128x108xbf16, #tpu.memory_space<vmem>>, vector<128x108xbf16>
    %c0_1 = arith.constant 0 : index
    %c0_2 = arith.constant 0 : index
    %1 = vector.load %arg2[%c0_1, %c0_2] : memref<108x128xbf16, #tpu.memory_space<vmem>>, vector<108x128xbf16>
    %cst = arith.constant dense<0.000000e+00> : vector<128x128xf32>
    %2 = tpu.matmul %0, %1, %cst {dimension_numbers = #tpu.dot_dimension_numbers<[1], [0], [0], [1], [0, 0, 1, 1], [], []>} : vector<128x108xbf16>, vector<108x128xbf16>, vector<128x128xf32> -> vector<128x128xf32>
    %c0_3 = arith.constant 0 : index
    %c0_4 = arith.constant 0 : index
    %3 = vector.load %arg3[%c0_3, %c0_4] : memref<1x128xf32, #tpu.memory_space<vmem>>, vector<1x128xf32>
    %4 = vector.broadcast %3 : vector<1x128xf32> to vector<128x128xf32>
    %5 = arith.addf %2, %4 : vector<128x128xf32>
    %cst_5 = arith.constant 0.000000e+00 : f32
    %6 = vector.broadcast %cst_5 : f32 to vector<128x128xf32>
    %7 = arith.maximumf %5, %6 : vector<128x128xf32>
    %8 = arith.truncf %7 : vector<128x128xf32> to vector<128x128xbf16>
    %c0_6 = arith.constant 0 : index
    %c0_7 = arith.constant 0 : index
    %9 = vector.load %arg4[%c0_6, %c0_7] : memref<128x128xbf16, #tpu.memory_space<vmem>>, vector<128x128xbf16>
    tpu.vector_store %arg4[%c0_6, %c0_7], %8 {strides = array<i32>} : memref<128x128xbf16, #tpu.memory_space<vmem>>, vector<128x128xbf16>,
    return
  }
  func.func @transform_0(%arg0: i32) -> (i32, i32) {
    %c0_i32 = arith.constant 0 : i32
    %c0_i32_0 = arith.constant 0 : i32
    return %arg0, %c0_i32 : i32, i32
  }
  func.func @transform_1(%arg0: i32) -> (i32, i32) {
    %c0_i32 = arith.constant 0 : i32
    %c0_i32_0 = arith.constant 0 : i32
    %c0_i32_1 = arith.constant 0 : i32
    return %c0_i32, %c0_i32_0 : i32, i32
  }
  func.func @transform_2(%arg0: i32) -> (i32, i32) {
    %c0_i32 = arith.constant 0 : i32
    %c0_i32_0 = arith.constant 0 : i32
    %c0_i32_1 = arith.constant 0 : i32
    return %c0_i32, %c0_i32_0 : i32, i32
  }
  func.func @transform_3(%arg0: i32) -> (i32, i32) {
    %c0_i32 = arith.constant 0 : i32
    %c0_i32_0 = arith.constant 0 : i32
    return %arg0, %c0_i32 : i32, i32
  }
}

module attributes {stable_mosaic.version = 11 : i64} {
  func.func @_dense_direct_kernel(%arg0: i32, %arg1: memref<128x144xbf16, #tpu.memory_space<vmem>>, %arg2: memref<144x128xbf16, #tpu.memory_space<vmem>>, %arg3: memref<1x128xf32, #tpu.memory_space<vmem>>, %arg4: memref<128x128xbf16, #tpu.memory_space<vmem>>) attributes {dimension_semantics = [#tpu.dimension_semantics<parallel>], iteration_bounds = array<i64: 1>, scalar_prefetch = 0 : i64, scratch_operands = 0 : i64, tpu.core_type = #tpu.core_type<tc>, window_params = [{transform_indices = @transform_0, window_bounds = array<i64: 128, 144>}, {pipeline_mode = #tpu.pipeline_mode<synchronous>, transform_indices = @transform_1, window_bounds = array<i64: 144, 128>}, {pipeline_mode = #tpu.pipeline_mode<synchronous>, transform_indices = @transform_2, window_bounds = array<i64: 1, 128>}, {transform_indices = @transform_3, window_bounds = array<i64: 128, 128>}]} {
    %c0 = arith.constant 0 : index
    %c0_0 = arith.constant 0 : index
    %0 = vector.load %arg1[%c0, %c0_0] : memref<128x144xbf16, #tpu.memory_space<vmem>>, vector<128x144xbf16>
    %c0_1 = arith.constant 0 : index
    %c0_2 = arith.constant 0 : index
    %1 = vector.load %arg2[%c0_1, %c0_2] : memref<144x128xbf16, #tpu.memory_space<vmem>>, vector<144x128xbf16>
    %cst = arith.constant dense<0.000000e+00> : vector<128x128xf32>
    %2 = tpu.matmul %0, %1, %cst {dimension_numbers = #tpu.dot_dimension_numbers<[1], [0], [0], [1], [0, 0, 1, 1], [], []>} : vector<128x144xbf16>, vector<144x128xbf16>, vector<128x128xf32> -> vector<128x128xf32>
    %c0_3 = arith.constant 0 : index
    %c0_4 = arith.constant 0 : index
    %3 = vector.load %arg3[%c0_3, %c0_4] : memref<1x128xf32, #tpu.memory_space<vmem>>, vector<1x128xf32>
    %4 = vector.broadcast %3 : vector<1x128xf32> to vector<128x128xf32>
    %5 = arith.addf %2, %4 : vector<128x128xf32>
    %cst_5 = arith.constant 0.000000e+00 : f32
    %6 = vector.broadcast %cst_5 : f32 to vector<128x128xf32>
    %7 = arith.maximumf %5, %6 : vector<128x128xf32>
    %8 = arith.truncf %7 : vector<128x128xf32> to vector<128x128xbf16>
    %c0_6 = arith.constant 0 : index
    %c0_7 = arith.constant 0 : index
    %9 = vector.load %arg4[%c0_6, %c0_7] : memref<128x128xbf16, #tpu.memory_space<vmem>>, vector<128x128xbf16>
    tpu.vector_store %arg4[%c0_6, %c0_7], %8 {strides = array<i32>} : memref<128x128xbf16, #tpu.memory_space<vmem>>, vector<128x128xbf16>,
    return
  }
  func.func @transform_0(%arg0: i32) -> (i32, i32) {
    %c0_i32 = arith.constant 0 : i32
    %c0_i32_0 = arith.constant 0 : i32
    return %arg0, %c0_i32 : i32, i32
  }
  func.func @transform_1(%arg0: i32) -> (i32, i32) {
    %c0_i32 = arith.constant 0 : i32
    %c0_i32_0 = arith.constant 0 : i32
    %c0_i32_1 = arith.constant 0 : i32
    return %c0_i32, %c0_i32_0 : i32, i32
  }
  func.func @transform_2(%arg0: i32) -> (i32, i32) {
    %c0_i32 = arith.constant 0 : i32
    %c0_i32_0 = arith.constant 0 : i32
    %c0_i32_1 = arith.constant 0 : i32
    return %c0_i32, %c0_i32_0 : i32, i32
  }
  func.func @transform_3(%arg0: i32) -> (i32, i32) {
    %c0_i32 = arith.constant 0 : i32
    %c0_i32_0 = arith.constant 0 : i32
    return %arg0, %c0_i32 : i32, i32
  }
}

module attributes {stable_mosaic.version = 11 : i64} {
  func.func @_dense_direct_kernel(%arg0: i32, %arg1: memref<32x144xbf16, #tpu.memory_space<vmem>>, %arg2: memref<144x128xbf16, #tpu.memory_space<vmem>>, %arg3: memref<1x128xf32, #tpu.memory_space<vmem>>, %arg4: memref<32x128xbf16, #tpu.memory_space<vmem>>) attributes {dimension_semantics = [#tpu.dimension_semantics<parallel>], iteration_bounds = array<i64: 1>, scalar_prefetch = 0 : i64, scratch_operands = 0 : i64, tpu.core_type = #tpu.core_type<tc>, window_params = [{transform_indices = @transform_0, window_bounds = array<i64: 32, 144>}, {pipeline_mode = #tpu.pipeline_mode<synchronous>, transform_indices = @transform_1, window_bounds = array<i64: 144, 128>}, {pipeline_mode = #tpu.pipeline_mode<synchronous>, transform_indices = @transform_2, window_bounds = array<i64: 1, 128>}, {transform_indices = @transform_3, window_bounds = array<i64: 32, 128>}]} {
    %c0 = arith.constant 0 : index
    %c0_0 = arith.constant 0 : index
    %0 = vector.load %arg1[%c0, %c0_0] : memref<32x144xbf16, #tpu.memory_space<vmem>>, vector<32x144xbf16>
    %c0_1 = arith.constant 0 : index
    %c0_2 = arith.constant 0 : index
    %1 = vector.load %arg2[%c0_1, %c0_2] : memref<144x128xbf16, #tpu.memory_space<vmem>>, vector<144x128xbf16>
    %cst = arith.constant dense<0.000000e+00> : vector<32x128xf32>
    %2 = tpu.matmul %0, %1, %cst {dimension_numbers = #tpu.dot_dimension_numbers<[1], [0], [0], [1], [0, 0, 1, 1], [], []>} : vector<32x144xbf16>, vector<144x128xbf16>, vector<32x128xf32> -> vector<32x128xf32>
    %c0_3 = arith.constant 0 : index
    %c0_4 = arith.constant 0 : index
    %3 = vector.load %arg3[%c0_3, %c0_4] : memref<1x128xf32, #tpu.memory_space<vmem>>, vector<1x128xf32>
    %4 = vector.broadcast %3 : vector<1x128xf32> to vector<32x128xf32>
    %5 = arith.addf %2, %4 : vector<32x128xf32>
    %cst_5 = arith.constant 0.000000e+00 : f32
    %6 = vector.broadcast %cst_5 : f32 to vector<32x128xf32>
    %7 = arith.maximumf %5, %6 : vector<32x128xf32>
    %8 = arith.truncf %7 : vector<32x128xf32> to vector<32x128xbf16>
    %c0_6 = arith.constant 0 : index
    %c0_7 = arith.constant 0 : index
    %9 = vector.load %arg4[%c0_6, %c0_7] : memref<32x128xbf16, #tpu.memory_space<vmem>>, vector<32x128xbf16>
    tpu.vector_store %arg4[%c0_6, %c0_7], %8 {strides = array<i32>} : memref<32x128xbf16, #tpu.memory_space<vmem>>, vector<32x128xbf16>,
    return
  }
  func.func @transform_0(%arg0: i32) -> (i32, i32) {
    %c0_i32 = arith.constant 0 : i32
    %c0_i32_0 = arith.constant 0 : i32
    return %arg0, %c0_i32 : i32, i32
  }
  func.func @transform_1(%arg0: i32) -> (i32, i32) {
    %c0_i32 = arith.constant 0 : i32
    %c0_i32_0 = arith.constant 0 : i32
    %c0_i32_1 = arith.constant 0 : i32
    return %c0_i32, %c0_i32_0 : i32, i32
  }
  func.func @transform_2(%arg0: i32) -> (i32, i32) {
    %c0_i32 = arith.constant 0 : i32
    %c0_i32_0 = arith.constant 0 : i32
    %c0_i32_1 = arith.constant 0 : i32
    return %c0_i32, %c0_i32_0 : i32, i32
  }
  func.func @transform_3(%arg0: i32) -> (i32, i32) {
    %c0_i32 = arith.constant 0 : i32
    %c0_i32_0 = arith.constant 0 : i32
    return %arg0, %c0_i32 : i32, i32
  }
}

module attributes {stable_mosaic.version = 11 : i64} {
  func.func @_dense_direct_kernel(%arg0: i32, %arg1: memref<32x288xbf16, #tpu.memory_space<vmem>>, %arg2: memref<288x128xbf16, #tpu.memory_space<vmem>>, %arg3: memref<1x128xf32, #tpu.memory_space<vmem>>, %arg4: memref<32x128xbf16, #tpu.memory_space<vmem>>) attributes {dimension_semantics = [#tpu.dimension_semantics<parallel>], iteration_bounds = array<i64: 1>, scalar_prefetch = 0 : i64, scratch_operands = 0 : i64, tpu.core_type = #tpu.core_type<tc>, window_params = [{transform_indices = @transform_0, window_bounds = array<i64: 32, 288>}, {pipeline_mode = #tpu.pipeline_mode<synchronous>, transform_indices = @transform_1, window_bounds = array<i64: 288, 128>}, {pipeline_mode = #tpu.pipeline_mode<synchronous>, transform_indices = @transform_2, window_bounds = array<i64: 1, 128>}, {transform_indices = @transform_3, window_bounds = array<i64: 32, 128>}]} {
    %c0 = arith.constant 0 : index
    %c0_0 = arith.constant 0 : index
    %0 = vector.load %arg1[%c0, %c0_0] : memref<32x288xbf16, #tpu.memory_space<vmem>>, vector<32x288xbf16>
    %c0_1 = arith.constant 0 : index
    %c0_2 = arith.constant 0 : index
    %1 = vector.load %arg2[%c0_1, %c0_2] : memref<288x128xbf16, #tpu.memory_space<vmem>>, vector<288x128xbf16>
    %cst = arith.constant dense<0.000000e+00> : vector<32x128xf32>
    %2 = tpu.matmul %0, %1, %cst {dimension_numbers = #tpu.dot_dimension_numbers<[1], [0], [0], [1], [0, 0, 1, 1], [], []>} : vector<32x288xbf16>, vector<288x128xbf16>, vector<32x128xf32> -> vector<32x128xf32>
    %c0_3 = arith.constant 0 : index
    %c0_4 = arith.constant 0 : index
    %3 = vector.load %arg3[%c0_3, %c0_4] : memref<1x128xf32, #tpu.memory_space<vmem>>, vector<1x128xf32>
    %4 = vector.broadcast %3 : vector<1x128xf32> to vector<32x128xf32>
    %5 = arith.addf %2, %4 : vector<32x128xf32>
    %cst_5 = arith.constant 0.000000e+00 : f32
    %6 = vector.broadcast %cst_5 : f32 to vector<32x128xf32>
    %7 = arith.maximumf %5, %6 : vector<32x128xf32>
    %8 = arith.truncf %7 : vector<32x128xf32> to vector<32x128xbf16>
    %c0_6 = arith.constant 0 : index
    %c0_7 = arith.constant 0 : index
    %9 = vector.load %arg4[%c0_6, %c0_7] : memref<32x128xbf16, #tpu.memory_space<vmem>>, vector<32x128xbf16>
    tpu.vector_store %arg4[%c0_6, %c0_7], %8 {strides = array<i32>} : memref<32x128xbf16, #tpu.memory_space<vmem>>, vector<32x128xbf16>,
    return
  }
  func.func @transform_0(%arg0: i32) -> (i32, i32) {
    %c0_i32 = arith.constant 0 : i32
    %c0_i32_0 = arith.constant 0 : i32
    return %arg0, %c0_i32 : i32, i32
  }
  func.func @transform_1(%arg0: i32) -> (i32, i32) {
    %c0_i32 = arith.constant 0 : i32
    %c0_i32_0 = arith.constant 0 : i32
    %c0_i32_1 = arith.constant 0 : i32
    return %c0_i32, %c0_i32_0 : i32, i32
  }
  func.func @transform_2(%arg0: i32) -> (i32, i32) {
    %c0_i32 = arith.constant 0 : i32
    %c0_i32_0 = arith.constant 0 : i32
    %c0_i32_1 = arith.constant 0 : i32
    return %c0_i32, %c0_i32_0 : i32, i32
  }
  func.func @transform_3(%arg0: i32) -> (i32, i32) {
    %c0_i32 = arith.constant 0 : i32
    %c0_i32_0 = arith.constant 0 : i32
    return %arg0, %c0_i32 : i32, i32
  }
}

module attributes {stable_mosaic.version = 11 : i64} {
  func.func @_dense_direct_kernel(%arg0: i32, %arg1: memref<8x288xbf16, #tpu.memory_space<vmem>>, %arg2: memref<288x128xbf16, #tpu.memory_space<vmem>>, %arg3: memref<1x128xf32, #tpu.memory_space<vmem>>, %arg4: memref<8x128xbf16, #tpu.memory_space<vmem>>) attributes {dimension_semantics = [#tpu.dimension_semantics<parallel>], iteration_bounds = array<i64: 1>, scalar_prefetch = 0 : i64, scratch_operands = 0 : i64, tpu.core_type = #tpu.core_type<tc>, window_params = [{transform_indices = @transform_0, window_bounds = array<i64: 8, 288>}, {pipeline_mode = #tpu.pipeline_mode<synchronous>, transform_indices = @transform_1, window_bounds = array<i64: 288, 128>}, {pipeline_mode = #tpu.pipeline_mode<synchronous>, transform_indices = @transform_2, window_bounds = array<i64: 1, 128>}, {transform_indices = @transform_3, window_bounds = array<i64: 8, 128>}]} {
    %c0 = arith.constant 0 : index
    %c0_0 = arith.constant 0 : index
    %0 = vector.load %arg1[%c0, %c0_0] : memref<8x288xbf16, #tpu.memory_space<vmem>>, vector<8x288xbf16>
    %c0_1 = arith.constant 0 : index
    %c0_2 = arith.constant 0 : index
    %1 = vector.load %arg2[%c0_1, %c0_2] : memref<288x128xbf16, #tpu.memory_space<vmem>>, vector<288x128xbf16>
    %cst = arith.constant dense<0.000000e+00> : vector<8x128xf32>
    %2 = tpu.matmul %0, %1, %cst {dimension_numbers = #tpu.dot_dimension_numbers<[1], [0], [0], [1], [0, 0, 1, 1], [], []>} : vector<8x288xbf16>, vector<288x128xbf16>, vector<8x128xf32> -> vector<8x128xf32>
    %c0_3 = arith.constant 0 : index
    %c0_4 = arith.constant 0 : index
    %3 = vector.load %arg3[%c0_3, %c0_4] : memref<1x128xf32, #tpu.memory_space<vmem>>, vector<1x128xf32>
    %4 = vector.broadcast %3 : vector<1x128xf32> to vector<8x128xf32>
    %5 = arith.addf %2, %4 : vector<8x128xf32>
    %cst_5 = arith.constant 0.000000e+00 : f32
    %6 = vector.broadcast %cst_5 : f32 to vector<8x128xf32>
    %7 = arith.maximumf %5, %6 : vector<8x128xf32>
    %8 = arith.truncf %7 : vector<8x128xf32> to vector<8x128xbf16>
    %c0_6 = arith.constant 0 : index
    %c0_7 = arith.constant 0 : index
    %9 = vector.load %arg4[%c0_6, %c0_7] : memref<8x128xbf16, #tpu.memory_space<vmem>>, vector<8x128xbf16>
    tpu.vector_store %arg4[%c0_6, %c0_7], %8 {strides = array<i32>} : memref<8x128xbf16, #tpu.memory_space<vmem>>, vector<8x128xbf16>,
    return
  }
  func.func @transform_0(%arg0: i32) -> (i32, i32) {
    %c0_i32 = arith.constant 0 : i32
    %c0_i32_0 = arith.constant 0 : i32
    return %arg0, %c0_i32 : i32, i32
  }
  func.func @transform_1(%arg0: i32) -> (i32, i32) {
    %c0_i32 = arith.constant 0 : i32
    %c0_i32_0 = arith.constant 0 : i32
    %c0_i32_1 = arith.constant 0 : i32
    return %c0_i32, %c0_i32_0 : i32, i32
  }
  func.func @transform_2(%arg0: i32) -> (i32, i32) {
    %c0_i32 = arith.constant 0 : i32
    %c0_i32_0 = arith.constant 0 : i32
    %c0_i32_1 = arith.constant 0 : i32
    return %c0_i32, %c0_i32_0 : i32, i32
  }
  func.func @transform_3(%arg0: i32) -> (i32, i32) {
    %c0_i32 = arith.constant 0 : i32
    %c0_i32_0 = arith.constant 0 : i32
    return %arg0, %c0_i32 : i32, i32
  }
}

module attributes {stable_mosaic.version = 11 : i64} {
  func.func @_mlp_kernel(%arg0: i32, %arg1: memref<8x288xbf16, #tpu.memory_space<vmem>>, %arg2: memref<288x128xbf16, #tpu.memory_space<vmem>>, %arg3: memref<1x128xf32, #tpu.memory_space<vmem>>, %arg4: memref<128x128xbf16, #tpu.memory_space<vmem>>, %arg5: memref<1x128xf32, #tpu.memory_space<vmem>>, %arg6: memref<8x128xf32, #tpu.memory_space<vmem>>) attributes {dimension_semantics = [#tpu.dimension_semantics<parallel>], iteration_bounds = array<i64: 1>, scalar_prefetch = 0 : i64, scratch_operands = 0 : i64, tpu.core_type = #tpu.core_type<tc>, window_params = [{transform_indices = @transform_0, window_bounds = array<i64: 8, 288>}, {pipeline_mode = #tpu.pipeline_mode<synchronous>, transform_indices = @transform_1, window_bounds = array<i64: 288, 128>}, {pipeline_mode = #tpu.pipeline_mode<synchronous>, transform_indices = @transform_2, window_bounds = array<i64: 1, 128>}, {pipeline_mode = #tpu.pipeline_mode<synchronous>, transform_indices = @transform_3, window_bounds = array<i64: 128, 128>}, {pipeline_mode = #tpu.pipeline_mode<synchronous>, transform_indices = @transform_4, window_bounds = array<i64: 1, 128>}, {transform_indices = @transform_5, window_bounds = array<i64: 8, 128>}]} {
    %c0 = arith.constant 0 : index
    %c0_0 = arith.constant 0 : index
    %0 = vector.load %arg1[%c0, %c0_0] : memref<8x288xbf16, #tpu.memory_space<vmem>>, vector<8x288xbf16>
    %c0_1 = arith.constant 0 : index
    %c0_2 = arith.constant 0 : index
    %1 = vector.load %arg2[%c0_1, %c0_2] : memref<288x128xbf16, #tpu.memory_space<vmem>>, vector<288x128xbf16>
    %c0_3 = arith.constant 0 : index
    %c0_4 = arith.constant 0 : index
    %2 = vector.load %arg3[%c0_3, %c0_4] : memref<1x128xf32, #tpu.memory_space<vmem>>, vector<1x128xf32>
    %cst = arith.constant dense<0.000000e+00> : vector<8x128xf32>
    %3 = tpu.matmul %0, %1, %cst {dimension_numbers = #tpu.dot_dimension_numbers<[1], [0], [0], [1], [0, 0, 1, 1], [], []>} : vector<8x288xbf16>, vector<288x128xbf16>, vector<8x128xf32> -> vector<8x128xf32>
    %4 = vector.broadcast %2 : vector<1x128xf32> to vector<8x128xf32>
    %5 = arith.addf %3, %4 : vector<8x128xf32>
    %cst_5 = arith.constant 0.000000e+00 : f32
    %6 = vector.broadcast %cst_5 : f32 to vector<8x128xf32>
    %7 = arith.maximumf %5, %6 : vector<8x128xf32>
    %8 = arith.truncf %7 : vector<8x128xf32> to vector<8x128xbf16>
    %c0_6 = arith.constant 0 : index
    %c0_7 = arith.constant 0 : index
    %9 = vector.load %arg4[%c0_6, %c0_7] : memref<128x128xbf16, #tpu.memory_space<vmem>>, vector<128x128xbf16>
    %c0_8 = arith.constant 0 : index
    %c0_9 = arith.constant 0 : index
    %10 = vector.load %arg5[%c0_8, %c0_9] : memref<1x128xf32, #tpu.memory_space<vmem>>, vector<1x128xf32>
    %cst_10 = arith.constant dense<0.000000e+00> : vector<8x128xf32>
    %11 = tpu.matmul %8, %9, %cst_10 {dimension_numbers = #tpu.dot_dimension_numbers<[1], [0], [0], [1], [0, 0, 1, 1], [], []>} : vector<8x128xbf16>, vector<128x128xbf16>, vector<8x128xf32> -> vector<8x128xf32>
    %12 = vector.broadcast %10 : vector<1x128xf32> to vector<8x128xf32>
    %13 = arith.addf %11, %12 : vector<8x128xf32>
    %c0_11 = arith.constant 0 : index
    %c0_12 = arith.constant 0 : index
    %14 = vector.load %arg6[%c0_11, %c0_12] : memref<8x128xf32, #tpu.memory_space<vmem>>, vector<8x128xf32>
    tpu.vector_store %arg6[%c0_11, %c0_12], %13 {strides = array<i32>} : memref<8x128xf32, #tpu.memory_space<vmem>>, vector<8x128xf32>,
    return
  }
  func.func @transform_0(%arg0: i32) -> (i32, i32) {
    %c0_i32 = arith.constant 0 : i32
    %c0_i32_0 = arith.constant 0 : i32
    return %arg0, %c0_i32 : i32, i32
  }
  func.func @transform_1(%arg0: i32) -> (i32, i32) {
    %c0_i32 = arith.constant 0 : i32
    %c0_i32_0 = arith.constant 0 : i32
    %c0_i32_1 = arith.constant 0 : i32
    return %c0_i32, %c0_i32_0 : i32, i32
  }
  func.func @transform_2(%arg0: i32) -> (i32, i32) {
    %c0_i32 = arith.constant 0 : i32
    %c0_i32_0 = arith.constant 0 : i32
    %c0_i32_1 = arith.constant 0 : i32
    return %c0_i32, %c0_i32_0 : i32, i32
  }
  func.func @transform_3(%arg0: i32) -> (i32, i32) {
    %c0_i32 = arith.constant 0 : i32
    %c0_i32_0 = arith.constant 0 : i32
    %c0_i32_1 = arith.constant 0 : i32
    return %c0_i32, %c0_i32_0 : i32, i32
  }
  func.func @transform_4(%arg0: i32) -> (i32, i32) {
    %c0_i32 = arith.constant 0 : i32
    %c0_i32_0 = arith.constant 0 : i32
    %c0_i32_1 = arith.constant 0 : i32
    return %c0_i32, %c0_i32_0 : i32, i32
  }
  func.func @transform_5(%arg0: i32) -> (i32, i32) {
    %c0_i32 = arith.constant 0 : i32
    %c0_i32_0 = arith.constant 0 : i32
    return %arg0, %c0_i32 : i32, i32
  }
}

module attributes {stable_mosaic.version = 11 : i64} {
  func.func @_mlp_kernel(%arg0: i32, %arg1: memref<32x1568xbf16, #tpu.memory_space<vmem>>, %arg2: memref<1568x128xbf16, #tpu.memory_space<vmem>>, %arg3: memref<1x128xf32, #tpu.memory_space<vmem>>, %arg4: memref<128x128xbf16, #tpu.memory_space<vmem>>, %arg5: memref<1x128xf32, #tpu.memory_space<vmem>>, %arg6: memref<128x128xbf16, #tpu.memory_space<vmem>>, %arg7: memref<1x128xf32, #tpu.memory_space<vmem>>, %arg8: memref<32x128xf32, #tpu.memory_space<vmem>>) attributes {dimension_semantics = [#tpu.dimension_semantics<parallel>], iteration_bounds = array<i64: 1>, scalar_prefetch = 0 : i64, scratch_operands = 0 : i64, tpu.core_type = #tpu.core_type<tc>, window_params = [{transform_indices = @transform_0, window_bounds = array<i64: 32, 1568>}, {pipeline_mode = #tpu.pipeline_mode<synchronous>, transform_indices = @transform_1, window_bounds = array<i64: 1568, 128>}, {pipeline_mode = #tpu.pipeline_mode<synchronous>, transform_indices = @transform_2, window_bounds = array<i64: 1, 128>}, {pipeline_mode = #tpu.pipeline_mode<synchronous>, transform_indices = @transform_3, window_bounds = array<i64: 128, 128>}, {pipeline_mode = #tpu.pipeline_mode<synchronous>, transform_indices = @transform_4, window_bounds = array<i64: 1, 128>}, {pipeline_mode = #tpu.pipeline_mode<synchronous>, transform_indices = @transform_5, window_bounds = array<i64: 128, 128>}, {pipeline_mode = #tpu.pipeline_mode<synchronous>, transform_indices = @transform_6, window_bounds = array<i64: 1, 128>}, {transform_indices = @transform_7, window_bounds = array<i64: 32, 128>}]} {
    %c0 = arith.constant 0 : index
    %c0_0 = arith.constant 0 : index
    %0 = vector.load %arg1[%c0, %c0_0] : memref<32x1568xbf16, #tpu.memory_space<vmem>>, vector<32x1568xbf16>
    %c0_1 = arith.constant 0 : index
    %c0_2 = arith.constant 0 : index
    %1 = vector.load %arg2[%c0_1, %c0_2] : memref<1568x128xbf16, #tpu.memory_space<vmem>>, vector<1568x128xbf16>
    %c0_3 = arith.constant 0 : index
    %c0_4 = arith.constant 0 : index
    %2 = vector.load %arg3[%c0_3, %c0_4] : memref<1x128xf32, #tpu.memory_space<vmem>>, vector<1x128xf32>
    %cst = arith.constant dense<0.000000e+00> : vector<32x128xf32>
    %3 = tpu.matmul %0, %1, %cst {dimension_numbers = #tpu.dot_dimension_numbers<[1], [0], [0], [1], [0, 0, 1, 1], [], []>} : vector<32x1568xbf16>, vector<1568x128xbf16>, vector<32x128xf32> -> vector<32x128xf32>
    %4 = vector.broadcast %2 : vector<1x128xf32> to vector<32x128xf32>
    %5 = arith.addf %3, %4 : vector<32x128xf32>
    %cst_5 = arith.constant 0.000000e+00 : f32
    %6 = vector.broadcast %cst_5 : f32 to vector<32x128xf32>
    %7 = arith.maximumf %5, %6 : vector<32x128xf32>
    %8 = arith.truncf %7 : vector<32x128xf32> to vector<32x128xbf16>
    %c0_6 = arith.constant 0 : index
    %c0_7 = arith.constant 0 : index
    %9 = vector.load %arg4[%c0_6, %c0_7] : memref<128x128xbf16, #tpu.memory_space<vmem>>, vector<128x128xbf16>
    %c0_8 = arith.constant 0 : index
    %c0_9 = arith.constant 0 : index
    %10 = vector.load %arg5[%c0_8, %c0_9] : memref<1x128xf32, #tpu.memory_space<vmem>>, vector<1x128xf32>
    %cst_10 = arith.constant dense<0.000000e+00> : vector<32x128xf32>
    %11 = tpu.matmul %8, %9, %cst_10 {dimension_numbers = #tpu.dot_dimension_numbers<[1], [0], [0], [1], [0, 0, 1, 1], [], []>} : vector<32x128xbf16>, vector<128x128xbf16>, vector<32x128xf32> -> vector<32x128xf32>
    %12 = vector.broadcast %10 : vector<1x128xf32> to vector<32x128xf32>
    %13 = arith.addf %11, %12 : vector<32x128xf32>
    %cst_11 = arith.constant 0.000000e+00 : f32
    %14 = vector.broadcast %cst_11 : f32 to vector<32x128xf32>
    %15 = arith.maximumf %13, %14 : vector<32x128xf32>
    %16 = arith.truncf %15 : vector<32x128xf32> to vector<32x128xbf16>
    %c0_12 = arith.constant 0 : index
    %c0_13 = arith.constant 0 : index
    %17 = vector.load %arg6[%c0_12, %c0_13] : memref<128x128xbf16, #tpu.memory_space<vmem>>, vector<128x128xbf16>
    %c0_14 = arith.constant 0 : index
    %c0_15 = arith.constant 0 : index
    %18 = vector.load %arg7[%c0_14, %c0_15] : memref<1x128xf32, #tpu.memory_space<vmem>>, vector<1x128xf32>
    %cst_16 = arith.constant dense<0.000000e+00> : vector<32x128xf32>
    %19 = tpu.matmul %16, %17, %cst_16 {dimension_numbers = #tpu.dot_dimension_numbers<[1], [0], [0], [1], [0, 0, 1, 1], [], []>} : vector<32x128xbf16>, vector<128x128xbf16>, vector<32x128xf32> -> vector<32x128xf32>
    %20 = vector.broadcast %18 : vector<1x128xf32> to vector<32x128xf32>
    %21 = arith.addf %19, %20 : vector<32x128xf32>
    %c0_17 = arith.constant 0 : index
    %c0_18 = arith.constant 0 : index
    %22 = vector.load %arg8[%c0_17, %c0_18] : memref<32x128xf32, #tpu.memory_space<vmem>>, vector<32x128xf32>
    tpu.vector_store %arg8[%c0_17, %c0_18], %21 {strides = array<i32>} : memref<32x128xf32, #tpu.memory_space<vmem>>, vector<32x128xf32>,
    return
  }
  func.func @transform_0(%arg0: i32) -> (i32, i32) {
    %c0_i32 = arith.constant 0 : i32
    %c0_i32_0 = arith.constant 0 : i32
    return %arg0, %c0_i32 : i32, i32
  }
  func.func @transform_1(%arg0: i32) -> (i32, i32) {
    %c0_i32 = arith.constant 0 : i32
    %c0_i32_0 = arith.constant 0 : i32
    %c0_i32_1 = arith.constant 0 : i32
    return %c0_i32, %c0_i32_0 : i32, i32
  }
  func.func @transform_2(%arg0: i32) -> (i32, i32) {
    %c0_i32 = arith.constant 0 : i32
    %c0_i32_0 = arith.constant 0 : i32
    %c0_i32_1 = arith.constant 0 : i32
    return %c0_i32, %c0_i32_0 : i32, i32
  }
  func.func @transform_3(%arg0: i32) -> (i32, i32) {
    %c0_i32 = arith.constant 0 : i32
    %c0_i32_0 = arith.constant 0 : i32
    %c0_i32_1 = arith.constant 0 : i32
    return %c0_i32, %c0_i32_0 : i32, i32
  }
  func.func @transform_4(%arg0: i32) -> (i32, i32) {
    %c0_i32 = arith.constant 0 : i32
    %c0_i32_0 = arith.constant 0 : i32
    %c0_i32_1 = arith.constant 0 : i32
    return %c0_i32, %c0_i32_0 : i32, i32
  }
  func.func @transform_5(%arg0: i32) -> (i32, i32) {
    %c0_i32 = arith.constant 0 : i32
    %c0_i32_0 = arith.constant 0 : i32
    %c0_i32_1 = arith.constant 0 : i32
    return %c0_i32, %c0_i32_0 : i32, i32
  }
  func.func @transform_6(%arg0: i32) -> (i32, i32) {
    %c0_i32 = arith.constant 0 : i32
    %c0_i32_0 = arith.constant 0 : i32
    %c0_i32_1 = arith.constant 0 : i32
    return %c0_i32, %c0_i32_0 : i32, i32
  }
  func.func @transform_7(%arg0: i32) -> (i32, i32) {
    %c0_i32 = arith.constant 0 : i32
    %c0_i32_0 = arith.constant 0 : i32
    return %arg0, %c0_i32 : i32, i32
  }
}

</mosaic_0001>

<llo_original>
// kernel: faster_rcnn_forward.15
$region0: #{faster_rcnn_forward.15}
  #allocation0 [shape = 'u32[]', space=smem, size = 0x4, offset = 0x4, fixed_abs, tag = 'smem constant byte address 0x4 - core index']
  #allocation1 [shape = 'u32[144,128]{1,0:T(1,128)}', space=vmem, size = 0x12000, scoped, tag = 'internal scratch']
  %s0 = inlined_call_operand.vmem [shape: bf16[2048,27], index: 0, kind: input, shape index: {}]
  %s1 = inlined_call_operand.vmem [shape: bf16[27,128], index: 1, kind: input, shape index: {}]
  %s2 = inlined_call_operand.vmem [shape: f32[1,128], index: 2, kind: input, shape index: {}]
  %s3 = inlined_call_operand.vmem [shape: bf16[2048,128], index: 3, kind: output, shape index: {}]
  %s4 = sld [smem:[#allocation0]]
  $region45: #{faster_rcnn_forward.15} parent=0
    _
  %s6 = ssub.s32 1, %s4
  %s7 = scalar_select 0, %s6, %s4
  loop: start=0, step=1, limit=6
  $region2: #{faster_rcnn_forward.15} parent=0 // loop_pre_header
    _
  $region3: #{faster_rcnn_forward.15} parent=0 // loop_header
    %s9 = sphi 0, %s13
    %p10 = scmp.ge.s32.totalorder %s9, 6
    %s19 = sphi 0, %s21
    %s22 = sphi 0, %s19
    %s23 = sphi 0, %s22
    %s39 = sphi 0, %s23
    %s43 = sphi 0, %s43
    %s45 = sphi 0, %s43
    %s46 = sphi 0, %s45
    %s60 = sphi 0, %s46
    %s64 = sphi 0, %s64
    %s66 = sphi 0, %s64
    %s67 = sphi 0, %s66
    %s81 = sphi 0, %s67
    %s87 = sphi 0, %s89
    %s90 = sphi 0, %s87
    %s91 = sphi 0, %s90
    %s107 = sphi 0, %s91
  $region4: #{faster_rcnn_forward.15} parent=0 // loop_header_branch
    %12 = sbr.rel (%p10) target = $region8
  $region5: #{faster_rcnn_forward.15} parent=0 // loop_body
    %s14 = ssub.s32 %s9, 1
    %s15 = ssub.s32 %s9, 2
    %s16 = sadd.s32 %s9, 1
    %s17 = ssub.s32 %s9, %s16
    %p18 = scmp.eq.s32.totalorder %s17, 0
    %s20 = sadd.s32 %s19, 1
    %s21 = scalar_select %p18, %s19, %s20
    %p24 = pneg %p18
    %p25 = scmp.eq.s32.totalorder %s9, 3
    %p26 = por %p24, %p25
    %p27 = scmp.ne.s32.totalorder %s19, %s22
    %p28 = scmp.eq.s32.totalorder %s9, 0
    %p29 = por %p27, %p28
    %p30 = scmp.ne.s32.totalorder %s19, %s22
    %p31 = scmp.eq.s32.totalorder %s14, 3
    %p32 = por %p30, %p31
    %p33 = scmp.ne.s32.totalorder %s22, %s23
    %p34 = scmp.eq.s32.totalorder %s14, 0
    %p35 = por %p33, %p34
    %p36 = scmp.ne.s32.totalorder %s22, %s23
    %p37 = scmp.eq.s32.totalorder %s15, 3
    %p38 = por %p36, %p37
    %p40 = scmp.ne.s32.totalorder %s23, %s39
    %p41 = scmp.eq.s32.totalorder %s15, 0
    %p42 = por %p40, %p41
    %s44 = sadd.s32 %s43, 1
    %p47 = scmp.eq.s32.totalorder %s9, 3
    %p48 = scmp.ne.s32.totalorder %s43, %s45
    %p49 = scmp.eq.s32.totalorder %s9, 0
    %p50 = por %p48, %p49
    %p51 = scmp.ne.s32.totalorder %s43, %s45
    %p52 = scmp.eq.s32.totalorder %s14, 3
    %p53 = por %p51, %p52
    %p54 = scmp.ne.s32.totalorder %s45, %s46
    %p55 = scmp.eq.s32.totalorder %s14, 0
    %p56 = por %p54, %p55
    %p57 = scmp.ne.s32.totalorder %s45, %s46
    %p58 = scmp.eq.s32.totalorder %s15, 3
    %p59 = por %p57, %p58
    %p61 = scmp.ne.s32.totalorder %s46, %s60
    %p62 = scmp.eq.s32.totalorder %s15, 0
    %p63 = por %p61, %p62
    %s65 = sadd.s32 %s64, 1
    %p68 = scmp.eq.s32.totalorder %s9, 3
    %p69 = scmp.ne.s32.totalorder %s64, %s66
    %p70 = scmp.eq.s32.totalorder %s9, 0
    %p71 = por %p69, %p70
    %p72 = scmp.ne.s32.totalorder %s64, %s66
    %p73 = scmp.eq.s32.totalorder %s14, 3
    %p74 = por %p72, %p73
    %p75 = scmp.ne.s32.totalorder %s66, %s67
    %p76 = scmp.eq.s32.totalorder %s14, 0
    %p77 = por %p75, %p76
    %p78 = scmp.ne.s32.totalorder %s66, %s67
    %p79 = scmp.eq.s32.totalorder %s15, 3
    %p80 = por %p78, %p79
    %p82 = scmp.ne.s32.totalorder %s67, %s81
    %p83 = scmp.eq.s32.totalorder %s15, 0
    %p84 = por %p82, %p83
    %s85 = ssub.s32 %s9, %s16
    %p86 = scmp.eq.s32.totalorder %s85, 0
    %s88 = sadd.s32 %s87, 1
    %s89 = scalar_select %p86, %s87, %s88
    %p92 = pneg %p86
    %p93 = scmp.eq.s32.totalorder %s9, 3
    %p94 = por %p92, %p93
    %p95 = scmp.ne.s32.totalorder %s87, %s90
    %p96 = scmp.eq.s32.totalorder %s9, 0
    %p97 = por %p95, %p96
    %p98 = scmp.ne.s32.totalorder %s87, %s90
    %p99 = scmp.eq.s32.totalorder %s14, 3
    %p100 = por %p98, %p99
    %p101 = scmp.ne.s32.totalorder %s90, %s91
    %p102 = scmp.eq.s32.totalorder %s14, 0
    %p103 = por %p101, %p102
    %p104 = scmp.ne.s32.totalorder %s90, %s91
    %p105 = scmp.eq.s32.totalorder %s15, 3
    %p106 = por %p104, %p105
    %p108 = scmp.ne.s32.totalorder %s91, %s107
    %p109 = scmp.eq.s32.totalorder %s15, 0
    %p110 = por %p108, %p109
    %p111 = scmp.le.s32.totalorder 1, %s9
    %p112 = scmp.lt.s32.totalorder %s9, 5
    %p113 = pnand %p111, %p112
    %p114 = pneg %p113
    // Predicated region
    $region9: #{faster_rcnn_forward.15} parent=5 // pred_check
      _
    $region10: #{faster_rcnn_forward.15} parent=5 // pred_check_branch
      %116 = sbr.rel (%p113) target = $region12
    $region11: #{faster_rcnn_forward.15} parent=5 // pred_region
      %s117 = ssub.s32 %s9, 1
      // Predicated region
      $region13: #{faster_rcnn_forward.15} parent=11 // pred_check
        %p118 = pneg %p56
      $region14: #{faster_rcnn_forward.15} parent=11 // pred_check_branch
        %120 = sbr.rel (%p118) target = $region16
      $region15: #{faster_rcnn_forward.15} parent=11 // pred_region
        _
      $region16: #{faster_rcnn_forward.15} parent=11 // pred_fallthru
        _
      // Predicated region
      $region17: #{faster_rcnn_forward.15} parent=11 // pred_check
        %p121 = pneg %p77
      $region18: #{faster_rcnn_forward.15} parent=11 // pred_check_branch
        %123 = sbr.rel (%p121) target = $region20
      $region19: #{faster_rcnn_forward.15} parent=11 // pred_region
        _
      $region20: #{faster_rcnn_forward.15} parent=11 // pred_fallthru
        _
    $region12: #{faster_rcnn_forward.15} parent=5 // pred_fallthru
      _
    %p124 = scmp.lt.s32.totalorder %s9, 4
    // Predicated region
    $region21: #{faster_rcnn_forward.15} parent=5 // pred_check
      %p125 = pneg %p124
    $region22: #{faster_rcnn_forward.15} parent=5 // pred_check_branch
      %127 = sbr.rel (%p125) target = $region24
    $region23: #{faster_rcnn_forward.15} parent=5 // pred_region
      // Predicated region
      $region25: #{faster_rcnn_forward.15} parent=23 // pred_check
        %p128 = pneg %p29
      $region26: #{faster_rcnn_forward.15} parent=23 // pred_check_branch
        %130 = sbr.rel (%p128) target = $region28
      $region27: #{faster_rcnn_forward.15} parent=23 // pred_region
        %s131 = smul.u32 64, %s9
        %p132 = scmp.lt.s32.totalorder %s131, 255
        %s133 = scalar_select %p132, %s131, 255
        %s134 = smul.addr %s133, 4
        %s135 = scalar_lea.vmem %s0, %s134
        %s136 = smul.u32 64, %s9
      $region28: #{faster_rcnn_forward.15} parent=23 // pred_fallthru
        _
    $region24: #{faster_rcnn_forward.15} parent=5 // pred_fallthru
      _
    %p137 = scmp.le.s32.totalorder 1, %s9
    %p138 = scmp.lt.s32.totalorder %s9, 5
    %p139 = pnand %p137, %p138
    %p140 = pneg %p139
    // Predicated region
    $region29: #{faster_rcnn_forward.15} parent=5 // pred_check
      _
    $region30: #{faster_rcnn_forward.15} parent=5 // pred_check_branch
      %142 = sbr.rel (%p139) target = $region32
    $region31: #{faster_rcnn_forward.15} parent=5 // pred_region
      %s143 = ssub.s32 %s9, 1
      %s144 = smul.u32 64, %s14
      %p145 = scmp.lt.s32.totalorder %s144, 255
      %s146 = scalar_select %p145, %s144, 255
      %s147 = smul.addr %s146, 4
      %s148 = scalar_lea.vmem %s0, %s147
      %p149 = pneg %p35
      %p150 = pneg %p32
      %p151 = pneg %p56
      %p152 = pneg %p53
      %p153 = pneg %p77
      %p154 = pneg %p74
      %p155 = pneg %p103
      %p156 = pneg %p100
      %s157 = smul.u32 64, %s14
      %p158 = scmp.lt.s32.totalorder %s157, 255
      %s159 = scalar_select %p158, %s157, 255
      %s160 = smul.addr %s159, 4
      %s161 = scalar_lea.vmem %s3, %s160
      %s162 = smul.u32 64, %s14
      %p163 = scmp.lt.s32.totalorder %s162, 255
      %s164 = scalar_select %p163, %s162, 255
      %s165 = smul.addr %s164, 4
      %s166 = scalar_lea.vmem %s0, %s165
      %s167 = smul.u32 64, %s14
      %s168 = smul.u32 64, %s14
      %p169 = scmp.lt.s32.totalorder %s168, 255
      %s170 = scalar_select %p169, %s168, 255
      %s171 = smul.addr %s170, 4
      %s172 = scalar_lea.vmem %s3, %s171
      %s173 = smul.u32 64, %s14
      %v175 = vld [vmem:[%s166] sm:$0xf]
      %v176 = vld [vmem:[%s166 + $0x4] sm:$0xf]
      %v177 = vld [vmem:[%s166 + $0x8] sm:$0xf]
      %v178 = vld [vmem:[%s166 + $0xc] sm:$0xf]
      %v179 = vld [vmem:[%s166 + $0x10] sm:$0xf]
      %v180 = vld [vmem:[%s166 + $0x14] sm:$0xf]
      %v181 = vld [vmem:[%s166 + $0x18] sm:$0xf]
      %v182 = vld [vmem:[%s166 + $0x1c] sm:$0xf]
      %v183 = vld [vmem:[%s166 + $0x20] sm:$0xf]
      %v184 = vld [vmem:[%s166 + $0x24] sm:$0xf]
      %v185 = vld [vmem:[%s166 + $0x28] sm:$0xf]
      %v186 = vld [vmem:[%s166 + $0x2c] sm:$0xf]
      %v187 = vld [vmem:[%s166 + $0x30] sm:$0xf]
      %v188 = vld [vmem:[%s166 + $0x34] sm:$0xf]
      %v189 = vld [vmem:[%s166 + $0x38] sm:$0xf]
      %v190 = vld [vmem:[%s166 + $0x3c] sm:$0xf]
      %v191 = vld [vmem:[%s166 + $0x40] sm:$0xf]
      %v192 = vld [vmem:[%s166 + $0x44] sm:$0xf]
      %v193 = vld [vmem:[%s166 + $0x48] sm:$0xf]
      %v194 = vld [vmem:[%s166 + $0x4c] sm:$0xf]
      %v195 = vld [vmem:[%s166 + $0x50] sm:$0xf]
      %v196 = vld [vmem:[%s166 + $0x54] sm:$0xf]
      %v197 = vld [vmem:[%s166 + $0x58] sm:$0xf]
      %v198 = vld [vmem:[%s166 + $0x5c] sm:$0xf]
      %v199 = vld [vmem:[%s166 + $0x60] sm:$0xf]
      %v200 = vld [vmem:[%s166 + $0x64] sm:$0xf]
      %v201 = vld [vmem:[%s166 + $0x68] sm:$0xf]
      %v202 = vld [vmem:[%s166 + $0x6c] sm:$0xf]
      %v203 = vld [vmem:[%s166 + $0x70] sm:$0xf]
      %v204 = vld [vmem:[%s166 + $0x74] sm:$0xf]
      %v205 = vld [vmem:[%s166 + $0x78] sm:$0xf]
      %v206 = vld [vmem:[%s166 + $0x7c] sm:$0xf]
      %v207 = vld [vmem:[%s166 + $0x80] sm:$0xf]
      %v208 = vld [vmem:[%s166 + $0x84] sm:$0xf]
      %v209 = vld [vmem:[%s166 + $0x88] sm:$0xf]
      %v210 = vld [vmem:[%s166 + $0x8c] sm:$0xf]
      %v211 = vld [vmem:[%s166 + $0x90] sm:$0xf]
      %v212 = vld [vmem:[%s166 + $0x94] sm:$0xf]
      %v213 = vld [vmem:[%s166 + $0x98] sm:$0xf]
      %v214 = vld [vmem:[%s166 + $0x9c] sm:$0xf]
      %v215 = vld [vmem:[%s166 + $0xa0] sm:$0xf]
      %v216 = vld [vmem:[%s166 + $0xa4] sm:$0xf]
      %v217 = vld [vmem:[%s166 + $0xa8] sm:$0xf]
      %v218 = vld [vmem:[%s166 + $0xac] sm:$0xf]
      %v219 = vld [vmem:[%s166 + $0xb0] sm:$0xf]
      %v220 = vld [vmem:[%s166 + $0xb4] sm:$0xf]
      %v221 = vld [vmem:[%s166 + $0xb8] sm:$0xf]
      %v222 = vld [vmem:[%s166 + $0xbc] sm:$0xf]
      %v223 = vld [vmem:[%s166 + $0xc0] sm:$0xf]
      %v224 = vld [vmem:[%s166 + $0xc4] sm:$0xf]
      %v225 = vld [vmem:[%s166 + $0xc8] sm:$0xf]
      %v226 = vld [vmem:[%s166 + $0xcc] sm:$0xf]
      %v227 = vld [vmem:[%s166 + $0xd0] sm:$0xf]
      %v228 = vld [vmem:[%s166 + $0xd4] sm:$0xf]
      %v229 = vld [vmem:[%s166 + $0xd8] sm:$0xf]
      %v230 = vld [vmem:[%s166 + $0xdc] sm:$0xf]
      %v231 = vld [vmem:[%s166 + $0xe0] sm:$0xf]
      %v232 = vld [vmem:[%s166 + $0xe4] sm:$0xf]
      %v233 = vld [vmem:[%s166 + $0xe8] sm:$0xf]
      %v234 = vld [vmem:[%s166 + $0xec] sm:$0xf]
      %v235 = vld [vmem:[%s166 + $0xf0] sm:$0xf]
      %v236 = vld [vmem:[%s166 + $0xf4] sm:$0xf]
      %v237 = vld [vmem:[%s166 + $0xf8] sm:$0xf]
      %v238 = vld [vmem:[%s166 + $0xfc] sm:$0xf]
      %v239 = vld [vmem:[%s1] sm:$0xf]
      %v240 = vld [vmem:[%s1 + $0x4] sm:$0xf]
      %v241 = vld [vmem:[%s1 + $0x8] sm:$0xf]
      %v242 = vld [vmem:[%s1 + $0xc] sm:$0x3]
      %v243 = vld [vmem:[%s2] sm:$0x1]
      %v245 = vlaneseq
      %v246 = vshrl.u32 %v245, 7
      %v247 = vsub.s32 0, %v246
      %v248 = vrot.slane %v243, %v247
      %v314 = vunpack.c.l.b16 %v175
      %v315 = vunpack.c.l.b16 %v176
      %v316 = vunpack.c.l.b16 %v177
      %v317 = vunpack.c.l.b16 %v178
      %v318 = vunpack.c.l.b16 %v179
      %v319 = vunpack.c.l.b16 %v180
      %v320 = vunpack.c.l.b16 %v181
      %v321 = vunpack.c.l.b16 %v182
      %v322 = vunpack.c.l.b16 %v183
      %v323 = vunpack.c.l.b16 %v184
      %v324 = vunpack.c.l.b16 %v185
      %v325 = vunpack.c.l.b16 %v186
      %v326 = vunpack.c.l.b16 %v187
      %v327 = vunpack.c.l.b16 %v188
      %v328 = vunpack.c.l.b16 %v189
      %v329 = vunpack.c.l.b16 %v190
      %v330 = vunpack.c.l.b16 %v191
      %v331 = vunpack.c.l.b16 %v192
      %v332 = vunpack.c.l.b16 %v193
      %v333 = vunpack.c.l.b16 %v194
      %v334 = vunpack.c.l.b16 %v195
      %v335 = vunpack.c.l.b16 %v196
      %v336 = vunpack.c.l.b16 %v197
      %v337 = vunpack.c.l.b16 %v198
      %v338 = vunpack.c.l.b16 %v199
      %v339 = vunpack.c.l.b16 %v200
      %v340 = vunpack.c.l.b16 %v201
      %v341 = vunpack.c.l.b16 %v202
      %v342 = vunpack.c.l.b16 %v203
      %v343 = vunpack.c.l.b16 %v204
      %v344 = vunpack.c.l.b16 %v205
      %v345 = vunpack.c.l.b16 %v206
      %v346 = vunpack.c.l.b16 %v207
      %v347 = vunpack.c.l.b16 %v208
      %v348 = vunpack.c.l.b16 %v209
      %v349 = vunpack.c.l.b16 %v210
      %v350 = vunpack.c.l.b16 %v211
      %v351 = vunpack.c.l.b16 %v212
      %v352 = vunpack.c.l.b16 %v213
      %v353 = vunpack.c.l.b16 %v214
      %v354 = vunpack.c.l.b16 %v215
      %v355 = vunpack.c.l.b16 %v216
      %v356 = vunpack.c.l.b16 %v217
      %v357 = vunpack.c.l.b16 %v218
      %v358 = vunpack.c.l.b16 %v219
      %v359 = vunpack.c.l.b16 %v220
      %v360 = vunpack.c.l.b16 %v221
      %v361 = vunpack.c.l.b16 %v222
      %v362 = vunpack.c.l.b16 %v223
      %v363 = vunpack.c.l.b16 %v224
      %v364 = vunpack.c.l.b16 %v225
      %v365 = vunpack.c.l.b16 %v226
      %v366 = vunpack.c.l.b16 %v227
      %v367 = vunpack.c.l.b16 %v228
      %v368 = vunpack.c.l.b16 %v229
      %v369 = vunpack.c.l.b16 %v230
      %v370 = vunpack.c.l.b16 %v231
      %v371 = vunpack.c.l.b16 %v232
      %v372 = vunpack.c.l.b16 %v233
      %v373 = vunpack.c.l.b16 %v234
      %v374 = vunpack.c.l.b16 %v235
      %v375 = vunpack.c.l.b16 %v236
      %v376 = vunpack.c.l.b16 %v237
      %v377 = vunpack.c.l.b16 %v238
      %v378 = vpack.c.b16 %v315, %v314
      %v379 = vpack.c.b16 %v317, %v316
      %v380 = vpack.c.b16 %v319, %v318
      %v381 = vpack.c.b16 %v321, %v320
      %v382 = vpack.c.b16 %v323, %v322
      %v383 = vpack.c.b16 %v325, %v324
      %v384 = vpack.c.b16 %v327, %v326
      %v385 = vpack.c.b16 %v329, %v328
      %v386 = vpack.c.b16 %v331, %v330
      %v387 = vpack.c.b16 %v333, %v332
      %v388 = vpack.c.b16 %v335, %v334
      %v389 = vpack.c.b16 %v337, %v336
      %v390 = vpack.c.b16 %v339, %v338
      %v391 = vpack.c.b16 %v341, %v340
      %v392 = vpack.c.b16 %v343, %v342
      %v393 = vpack.c.b16 %v345, %v344
      %v394 = vpack.c.b16 %v347, %v346
      %v395 = vpack.c.b16 %v349, %v348
      %v396 = vpack.c.b16 %v351, %v350
      %v397 = vpack.c.b16 %v353, %v352
      %v398 = vpack.c.b16 %v355, %v354
      %v399 = vpack.c.b16 %v357, %v356
      %v400 = vpack.c.b16 %v359, %v358
      %v401 = vpack.c.b16 %v361, %v360
      %v402 = vpack.c.b16 %v363, %v362
      %v403 = vpack.c.b16 %v365, %v364
      %v404 = vpack.c.b16 %v367, %v366
      %v405 = vpack.c.b16 %v369, %v368
      %v406 = vpack.c.b16 %v371, %v370
      %v407 = vpack.c.b16 %v373, %v372
      %v408 = vpack.c.b16 %v375, %v374
      %v409 = vpack.c.b16 %v377, %v376
      %v414 = vunpack.c.l.b16 %v239
      %v415 = vunpack.c.l.b16 %v240
      %v416 = vunpack.c.l.b16 %v241
      %v417 = vunpack.c.l.b16 %v242
      %v418 = vpack.c.b16 %v415, %v414
      %v419 = vpack.c.b16 %v417, %v416
      %vm421 = vcmask 220160
      %v423 = vsel %vm421, %v378, 0
      %v426 = vsel %vm421, %v379, 0
      %v429 = vsel %vm421, %v380, 0
      %v432 = vsel %vm421, %v381, 0
      %v435 = vsel %vm421, %v382, 0
      %v438 = vsel %vm421, %v383, 0
      %v441 = vsel %vm421, %v384, 0
      %v444 = vsel %vm421, %v385, 0
      %v447 = vsel %vm421, %v386, 0
      %v450 = vsel %vm421, %v387, 0
      %v453 = vsel %vm421, %v388, 0
      %v456 = vsel %vm421, %v389, 0
      %v459 = vsel %vm421, %v390, 0
      %v462 = vsel %vm421, %v391, 0
      %v465 = vsel %vm421, %v392, 0
      %v468 = vsel %vm421, %v393, 0
      %v471 = vsel %vm421, %v394, 0
      %v474 = vsel %vm421, %v395, 0
      %v477 = vsel %vm421, %v396, 0
      %v480 = vsel %vm421, %v397, 0
      %v483 = vsel %vm421, %v398, 0
      %v486 = vsel %vm421, %v399, 0
      %v489 = vsel %vm421, %v400, 0
      %v492 = vsel %vm421, %v401, 0
      %v495 = vsel %vm421, %v402, 0
      %v498 = vsel %vm421, %v403, 0
      %v501 = vsel %vm421, %v404, 0
      %v504 = vsel %vm421, %v405, 0
      %v507 = vsel %vm421, %v406, 0
      %v510 = vsel %vm421, %v407, 0
      %v513 = vsel %vm421, %v408, 0
      %v516 = vsel %vm421, %v409, 0
      %vm518 = vcmask 1044480
      %vm519 = vcmask 1045504
      %v520 = vsel %vm518, 4294967295, 65535
      %v521 = vsel %vm519, %v520, 0
      %v523 = vand.u32 %v419, %v521
      %525 = vmatprep.subr.bf16.mxu0 0
      %526 = vmatpush1.bf16.msra.mxu0 0
      %527 = vmatprep.subr.bf16.mxu0 0
      %528 = vmatpush1.bf16.msra.mxu0 0
      %529 = vmatprep.subr.bf16.mxu0 0
      %530 = vmatpush1.bf16.msra.mxu0 0
      %531 = vmatprep.subr.bf16.mxu0 0
      %532 = vmatpush1.bf16.msra.mxu0 0
      %533 = vmatprep.subr.bf16.mxu0 0
      %534 = vmatpush1.bf16.msra.mxu0 0
      %535 = vmatprep.subr.bf16.mxu0 0
      %536 = vmatpush1.bf16.msra.mxu0 0
      %537 = vmatprep.subr.bf16.mxu0 0
      %538 = vmatpush1.bf16.msra.mxu0 %v523
      %539 = vmatprep.subr.bf16.mxu0 0
      %540 = vmatpush1.bf16.msra.mxu0 %v418
      %541 = vmatprep.subr.bf16.mxu0 0
      %542 = vmatpush2.bf16.msra.mxu0 0
      %543 = vmatprep.subr.bf16.mxu0 0
      %544 = vmatpush2.bf16.msra.mxu0 0
      %545 = vmatprep.subr.bf16.mxu0 0
      %546 = vmatpush2.bf16.msra.mxu0 0
      %547 = vmatprep.subr.bf16.mxu0 0
      %548 = vmatpush2.bf16.msra.mxu0 0
      %549 = vmatprep.subr.bf16.mxu0 0
      %550 = vmatpush2.bf16.msra.mxu0 0
      %551 = vmatprep.subr.bf16.mxu0 0
      %552 = vmatpush2.bf16.msra.mxu0 0
      %553 = vmatprep.subr.bf16.mxu0 0
      %554 = vmatpush2.bf16.msra.mxu0 0
      %555 = vmatprep.subr.bf16.mxu0 0
      %556 = vmatpush2.bf16.msra.mxu0 0
      %557 = vmatprep.mubr.bf16.mxu0 0
      %558 = vmatmul.mubr.bf16.gmra.mxu0 %v423
      %v559 = vpop.f32.mrf.mxu0
      %v560 = vadd.f32 %v248, %v559
      %v561 = vpop.f32.mrf.mxu0
      %v562 = vpop.f32.mrf.mxu0
      %v563 = vadd.f32 %v248, %v562
      %v564 = vpop.f32.mrf.mxu0
      %565 = vmatprep.mubr.bf16.mxu0 0
      %566 = vmatmul.mubr.bf16.gmra.mxu0 %v426
      %v567 = vpop.f32.mrf.mxu0
      %v568 = vadd.f32 %v248, %v567
      %v569 = vpop.f32.mrf.mxu0
      %v570 = vpop.f32.mrf.mxu0
      %v571 = vadd.f32 %v248, %v570
      %v572 = vpop.f32.mrf.mxu0
      %573 = vmatprep.mubr.bf16.mxu0 0
      %574 = vmatmul.mubr.bf16.gmra.mxu0 %v429
      %v575 = vpop.f32.mrf.mxu0
      %v576 = vadd.f32 %v248, %v575
      %v577 = vpop.f32.mrf.mxu0
      %v578 = vpop.f32.mrf.mxu0
      %v579 = vadd.f32 %v248, %v578
      %v580 = vpop.f32.mrf.mxu0
      %581 = vmatprep.mubr.bf16.mxu0 0
      %582 = vmatmul.mubr.bf16.gmra.mxu0 %v432
      %v583 = vpop.f32.mrf.mxu0
      %v584 = vadd.f32 %v248, %v583
      %v585 = vpop.f32.mrf.mxu0
      %v586 = vpop.f32.mrf.mxu0
      %v587 = vadd.f32 %v248, %v586
      %v588 = vpop.f32.mrf.mxu0
      %589 = vmatprep.mubr.bf16.mxu0 0
      %590 = vmatmul.mubr.bf16.gmra.mxu0 %v435
      %v591 = vpop.f32.mrf.mxu0
      %v592 = vadd.f32 %v248, %v591
      %v593 = vpop.f32.mrf.mxu0
      %v594 = vpop.f32.mrf.mxu0
      %v595 = vadd.f32 %v248, %v594
      %v596 = vpop.f32.mrf.mxu0
      %597 = vmatprep.mubr.bf16.mxu0 0
      %598 = vmatmul.mubr.bf16.gmra.mxu0 %v438
      %v599 = vpop.f32.mrf.mxu0
      %v600 = vadd.f32 %v248, %v599
      %v601 = vpop.f32.mrf.mxu0
      %v602 = vpop.f32.mrf.mxu0
      %v603 = vadd.f32 %v248, %v602
      %v604 = vpop.f32.mrf.mxu0
      %605 = vmatprep.mubr.bf16.mxu0 0
      %606 = vmatmul.mubr.bf16.gmra.mxu0 %v441
      %v607 = vpop.f32.mrf.mxu0
      %v608 = vadd.f32 %v248, %v607
      %v609 = vpop.f32.mrf.mxu0
      %v610 = vpop.f32.mrf.mxu0
      %v611 = vadd.f32 %v248, %v610
      %v612 = vpop.f32.mrf.mxu0
      %613 = vmatprep.mubr.bf16.mxu0 0
      %614 = vmatmul.mubr.bf16.gmra.mxu0 %v444
      %v615 = vpop.f32.mrf.mxu0
      %v616 = vadd.f32 %v248, %v615
      %v617 = vpop.f32.mrf.mxu0
      %v618 = vpop.f32.mrf.mxu0
      %v619 = vadd.f32 %v248, %v618
      %v620 = vpop.f32.mrf.mxu0
      %621 = vmatprep.mubr.bf16.mxu0 0
      %622 = vmatmul.mubr.bf16.gmra.mxu0 %v447
      %v623 = vpop.f32.mrf.mxu0
      %v624 = vadd.f32 %v248, %v623
      %v625 = vpop.f32.mrf.mxu0
      %v626 = vpop.f32.mrf.mxu0
      %v627 = vadd.f32 %v248, %v626
      %v628 = vpop.f32.mrf.mxu0
      %629 = vmatprep.mubr.bf16.mxu0 0
      %630 = vmatmul.mubr.bf16.gmra.mxu0 %v450
      %v631 = vpop.f32.mrf.mxu0
      %v632 = vadd.f32 %v248, %v631
      %v633 = vpop.f32.mrf.mxu0
      %v634 = vpop.f32.mrf.mxu0
      %v635 = vadd.f32 %v248, %v634
      %v636 = vpop.f32.mrf.mxu0
      %637 = vmatprep.mubr.bf16.mxu0 0
      %638 = vmatmul.mubr.bf16.gmra.mxu0 %v453
      %v639 = vpop.f32.mrf.mxu0
      %v640 = vadd.f32 %v248, %v639
      %v641 = vpop.f32.mrf.mxu0
      %v642 = vpop.f32.mrf.mxu0
      %v643 = vadd.f32 %v248, %v642
      %v644 = vpop.f32.mrf.mxu0
      %645 = vmatprep.mubr.bf16.mxu0 0
      %646 = vmatmul.mubr.bf16.gmra.mxu0 %v456
      %v647 = vpop.f32.mrf.mxu0
      %v648 = vadd.f32 %v248, %v647
      %v649 = vpop.f32.mrf.mxu0
      %v650 = vpop.f32.mrf.mxu0
      %v651 = vadd.f32 %v248, %v650
      %v652 = vpop.f32.mrf.mxu0
      %653 = vmatprep.mubr.bf16.mxu0 0
      %654 = vmatmul.mubr.bf16.gmra.mxu0 %v459
      %v655 = vpop.f32.mrf.mxu0
      %v656 = vadd.f32 %v248, %v655
      %v657 = vpop.f32.mrf.mxu0
      %v658 = vpop.f32.mrf.mxu0
      %v659 = vadd.f32 %v248, %v658
      %v660 = vpop.f32.mrf.mxu0
      %661 = vmatprep.mubr.bf16.mxu0 0
      %662 = vmatmul.mubr.bf16.gmra.mxu0 %v462
      %v663 = vpop.f32.mrf.mxu0
      %v664 = vadd.f32 %v248, %v663
      %v665 = vpop.f32.mrf.mxu0
      %v666 = vpop.f32.mrf.mxu0
      %v667 = vadd.f32 %v248, %v666
      %v668 = vpop.f32.mrf.mxu0
      %669 = vmatprep.mubr.bf16.mxu0 0
      %670 = vmatmul.mubr.bf16.gmra.mxu0 %v465
      %v671 = vpop.f32.mrf.mxu0
      %v672 = vadd.f32 %v248, %v671
      %v673 = vpop.f32.mrf.mxu0
      %v674 = vpop.f32.mrf.mxu0
      %v675 = vadd.f32 %v248, %v674
      %v676 = vpop.f32.mrf.mxu0
      %677 = vmatprep.mubr.bf16.mxu0 0
      %678 = vmatmul.mubr.bf16.gmra.mxu0 %v468
      %v679 = vpop.f32.mrf.mxu0
      %v680 = vadd.f32 %v248, %v679
      %v681 = vpop.f32.mrf.mxu0
      %v682 = vpop.f32.mrf.mxu0
      %v683 = vadd.f32 %v248, %v682
      %v684 = vpop.f32.mrf.mxu0
      %685 = vmatprep.mubr.bf16.mxu0 0
      %686 = vmatmul.mubr.bf16.gmra.mxu0 %v471
      %v687 = vpop.f32.mrf.mxu0
      %v688 = vadd.f32 %v248, %v687
      %v689 = vpop.f32.mrf.mxu0
      %v690 = vpop.f32.mrf.mxu0
      %v691 = vadd.f32 %v248, %v690
      %v692 = vpop.f32.mrf.mxu0
      %693 = vmatprep.mubr.bf16.mxu0 0
      %694 = vmatmul.mubr.bf16.gmra.mxu0 %v474
      %v695 = vpop.f32.mrf.mxu0
      %v696 = vadd.f32 %v248, %v695
      %v697 = vpop.f32.mrf.mxu0
      %v698 = vpop.f32.mrf.mxu0
      %v699 = vadd.f32 %v248, %v698
      %v700 = vpop.f32.mrf.mxu0
      %701 = vmatprep.mubr.bf16.mxu0 0
      %702 = vmatmul.mubr.bf16.gmra.mxu0 %v477
      %v703 = vpop.f32.mrf.mxu0
      %v704 = vadd.f32 %v248, %v703
      %v705 = vpop.f32.mrf.mxu0
      %v706 = vpop.f32.mrf.mxu0
      %v707 = vadd.f32 %v248, %v706
      %v708 = vpop.f32.mrf.mxu0
      %709 = vmatprep.mubr.bf16.mxu0 0
      %710 = vmatmul.mubr.bf16.gmra.mxu0 %v480
      %v711 = vpop.f32.mrf.mxu0
      %v712 = vadd.f32 %v248, %v711
      %v713 = vpop.f32.mrf.mxu0
      %v714 = vpop.f32.mrf.mxu0
      %v715 = vadd.f32 %v248, %v714
      %v716 = vpop.f32.mrf.mxu0
      %717 = vmatprep.mubr.bf16.mxu0 0
      %718 = vmatmul.mubr.bf16.gmra.mxu0 %v483
      %v719 = vpop.f32.mrf.mxu0
      %v720 = vadd.f32 %v248, %v719
      %v721 = vpop.f32.mrf.mxu0
      %v722 = vpop.f32.mrf.mxu0
      %v723 = vadd.f32 %v248, %v722
      %v724 = vpop.f32.mrf.mxu0
      %725 = vmatprep.mubr.bf16.mxu0 0
      %726 = vmatmul.mubr.bf16.gmra.mxu0 %v486
      %v727 = vpop.f32.mrf.mxu0
      %v728 = vadd.f32 %v248, %v727
      %v729 = vpop.f32.mrf.mxu0
      %v730 = vpop.f32.mrf.mxu0
      %v731 = vadd.f32 %v248, %v730
      %v732 = vpop.f32.mrf.mxu0
      %733 = vmatprep.mubr.bf16.mxu0 0
      %734 = vmatmul.mubr.bf16.gmra.mxu0 %v489
      %v735 = vpop.f32.mrf.mxu0
      %v736 = vadd.f32 %v248, %v735
      %v737 = vpop.f32.mrf.mxu0
      %v738 = vpop.f32.mrf.mxu0
      %v739 = vadd.f32 %v248, %v738
      %v740 = vpop.f32.mrf.mxu0
      %741 = vmatprep.mubr.bf16.mxu0 0
      %742 = vmatmul.mubr.bf16.gmra.mxu0 %v492
      %v743 = vpop.f32.mrf.mxu0
      %v744 = vadd.f32 %v248, %v743
      %v745 = vpop.f32.mrf.mxu0
      %v746 = vpop.f32.mrf.mxu0
      %v747 = vadd.f32 %v248, %v746
      %v748 = vpop.f32.mrf.mxu0
      %749 = vmatprep.mubr.bf16.mxu0 0
      %750 = vmatmul.mubr.bf16.gmra.mxu0 %v495
      %v751 = vpop.f32.mrf.mxu0
      %v752 = vadd.f32 %v248, %v751
      %v753 = vpop.f32.mrf.mxu0
      %v754 = vpop.f32.mrf.mxu0
      %v755 = vadd.f32 %v248, %v754
      %v756 = vpop.f32.mrf.mxu0
      %757 = vmatprep.mubr.bf16.mxu0 0
      %758 = vmatmul.mubr.bf16.gmra.mxu0 %v498
      %v759 = vpop.f32.mrf.mxu0
      %v760 = vadd.f32 %v248, %v759
      %v761 = vpop.f32.mrf.mxu0
      %v762 = vpop.f32.mrf.mxu0
      %v763 = vadd.f32 %v248, %v762
      %v764 = vpop.f32.mrf.mxu0
      %765 = vmatprep.mubr.bf16.mxu0 0
      %766 = vmatmul.mubr.bf16.gmra.mxu0 %v501
      %v767 = vpop.f32.mrf.mxu0
      %v768 = vadd.f32 %v248, %v767
      %v769 = vpop.f32.mrf.mxu0
      %v770 = vpop.f32.mrf.mxu0
      %v771 = vadd.f32 %v248, %v770
      %v772 = vpop.f32.mrf.mxu0
      %773 = vmatprep.mubr.bf16.mxu0 0
      %774 = vmatmul.mubr.bf16.gmra.mxu0 %v504
      %v775 = vpop.f32.mrf.mxu0
      %v776 = vadd.f32 %v248, %v775
      %v777 = vpop.f32.mrf.mxu0
      %v778 = vpop.f32.mrf.mxu0
      %v779 = vadd.f32 %v248, %v778
      %v780 = vpop.f32.mrf.mxu0
      %781 = vmatprep.mubr.bf16.mxu0 0
      %782 = vmatmul.mubr.bf16.gmra.mxu0 %v507
      %v783 = vpop.f32.mrf.mxu0
      %v784 = vadd.f32 %v248, %v783
      %v785 = vpop.f32.mrf.mxu0
      %v786 = vpop.f32.mrf.mxu0
      %v787 = vadd.f32 %v248, %v786
      %v788 = vpop.f32.mrf.mxu0
      %789 = vmatprep.mubr.bf16.mxu0 0
      %790 = vmatmul.mubr.bf16.gmra.mxu0 %v510
      %v791 = vpop.f32.mrf.mxu0
      %v792 = vadd.f32 %v248, %v791
      %v793 = vpop.f32.mrf.mxu0
      %v794 = vpop.f32.mrf.mxu0
      %v795 = vadd.f32 %v248, %v794
      %v796 = vpop.f32.mrf.mxu0
      %797 = vmatprep.mubr.bf16.mxu0 0
      %798 = vmatmul.mubr.bf16.gmra.mxu0 %v513
      %v799 = vpop.f32.mrf.mxu0
      %v800 = vadd.f32 %v248, %v799
      %v801 = vpop.f32.mrf.mxu0
      %v802 = vpop.f32.mrf.mxu0
      %v803 = vadd.f32 %v248, %v802
      %v804 = vpop.f32.mrf.mxu0
      %805 = vmatprep.mubr.bf16.mxu0 0
      %806 = vmatmul.mubr.bf16.gmra.mxu0 %v516
      %v807 = vpop.f32.mrf.mxu0
      %v808 = vadd.f32 %v248, %v807
      %v809 = vpop.f32.mrf.mxu0
      %v810 = vpop.f32.mrf.mxu0
      %v811 = vadd.f32 %v248, %v810
      %v812 = vpop.f32.mrf.mxu0
      %813 = vdwg.mxu0
      %v814 = vmax.f32 %v560, 0.0
      %v815 = vmax.f32 %v563, 0.0
      %v816 = vmax.f32 %v568, 0.0
      %v817 = vmax.f32 %v571, 0.0
      %v818 = vmax.f32 %v576, 0.0
      %v819 = vmax.f32 %v579, 0.0
      %v820 = vmax.f32 %v584, 0.0
      %v821 = vmax.f32 %v587, 0.0
      %v822 = vmax.f32 %v592, 0.0
      %v823 = vmax.f32 %v595, 0.0
      %v824 = vmax.f32 %v600, 0.0
      %v825 = vmax.f32 %v603, 0.0
      %v826 = vmax.f32 %v608, 0.0
      %v827 = vmax.f32 %v611, 0.0
      %v828 = vmax.f32 %v616, 0.0
      %v829 = vmax.f32 %v619, 0.0
      %v830 = vmax.f32 %v624, 0.0
      %v831 = vmax.f32 %v627, 0.0
      %v832 = vmax.f32 %v632, 0.0
      %v833 = vmax.f32 %v635, 0.0
      %v834 = vmax.f32 %v640, 0.0
      %v835 = vmax.f32 %v643, 0.0
      %v836 = vmax.f32 %v648, 0.0
      %v837 = vmax.f32 %v651, 0.0
      %v838 = vmax.f32 %v656, 0.0
      %v839 = vmax.f32 %v659, 0.0
      %v840 = vmax.f32 %v664, 0.0
      %v841 = vmax.f32 %v667, 0.0
      %v842 = vmax.f32 %v672, 0.0
      %v843 = vmax.f32 %v675, 0.0
      %v844 = vmax.f32 %v680, 0.0
      %v845 = vmax.f32 %v683, 0.0
      %v846 = vmax.f32 %v688, 0.0
      %v847 = vmax.f32 %v691, 0.0
      %v848 = vmax.f32 %v696, 0.0
      %v849 = vmax.f32 %v699, 0.0
      %v850 = vmax.f32 %v704, 0.0
      %v851 = vmax.f32 %v707, 0.0
      %v852 = vmax.f32 %v712, 0.0
      %v853 = vmax.f32 %v715, 0.0
      %v854 = vmax.f32 %v720, 0.0
      %v855 = vmax.f32 %v723, 0.0
      %v856 = vmax.f32 %v728, 0.0
      %v857 = vmax.f32 %v731, 0.0
      %v858 = vmax.f32 %v736, 0.0
      %v859 = vmax.f32 %v739, 0.0
      %v860 = vmax.f32 %v744, 0.0
      %v861 = vmax.f32 %v747, 0.0
      %v862 = vmax.f32 %v752, 0.0
      %v863 = vmax.f32 %v755, 0.0
      %v864 = vmax.f32 %v760, 0.0
      %v865 = vmax.f32 %v763, 0.0
      %v866 = vmax.f32 %v768, 0.0
      %v867 = vmax.f32 %v771, 0.0
      %v868 = vmax.f32 %v776, 0.0
      %v869 = vmax.f32 %v779, 0.0
      %v870 = vmax.f32 %v784, 0.0
      %v871 = vmax.f32 %v787, 0.0
      %v872 = vmax.f32 %v792, 0.0
      %v873 = vmax.f32 %v795, 0.0
      %v874 = vmax.f32 %v800, 0.0
      %v875 = vmax.f32 %v803, 0.0
      %v876 = vmax.f32 %v808, 0.0
      %v877 = vmax.f32 %v811, 0.0
      %v878 = vpack.c.bf16 %v815, %v814
      %v879 = vpack.c.bf16 %v817, %v816
      %v880 = vpack.c.bf16 %v819, %v818
      %v881 = vpack.c.bf16 %v821, %v820
      %v882 = vpack.c.bf16 %v823, %v822
      %v883 = vpack.c.bf16 %v825, %v824
      %v884 = vpack.c.bf16 %v827, %v826
      %v885 = vpack.c.bf16 %v829, %v828
      %v886 = vpack.c.bf16 %v831, %v830
      %v887 = vpack.c.bf16 %v833, %v832
      %v888 = vpack.c.bf16 %v835, %v834
      %v889 = vpack.c.bf16 %v837, %v836
      %v890 = vpack.c.bf16 %v839, %v838
      %v891 = vpack.c.bf16 %v841, %v840
      %v892 = vpack.c.bf16 %v843, %v842
      %v893 = vpack.c.bf16 %v845, %v844
      %v894 = vpack.c.bf16 %v847, %v846
      %v895 = vpack.c.bf16 %v849, %v848
      %v896 = vpack.c.bf16 %v851, %v850
      %v897 = vpack.c.bf16 %v853, %v852
      %v898 = vpack.c.bf16 %v855, %v854
      %v899 = vpack.c.bf16 %v857, %v856
      %v900 = vpack.c.bf16 %v859, %v858
      %v901 = vpack.c.bf16 %v861, %v860
      %v902 = vpack.c.bf16 %v863, %v862
      %v903 = vpack.c.bf16 %v865, %v864
      %v904 = vpack.c.bf16 %v867, %v866
      %v905 = vpack.c.bf16 %v869, %v868
      %v906 = vpack.c.bf16 %v871, %v870
      %v907 = vpack.c.bf16 %v873, %v872
      %v908 = vpack.c.bf16 %v875, %v874
      %v909 = vpack.c.bf16 %v877, %v876
      %v942 = vunpack.c.l.b16 %v878
      %v943 = vunpack.c.h.b16 %v878
      %v944 = vunpack.c.l.b16 %v879
      %v945 = vunpack.c.h.b16 %v879
      %v946 = vunpack.c.l.b16 %v880
      %v947 = vunpack.c.h.b16 %v880
      %v948 = vunpack.c.l.b16 %v881
      %v949 = vunpack.c.h.b16 %v881
      %v950 = vunpack.c.l.b16 %v882
      %v951 = vunpack.c.h.b16 %v882
      %v952 = vunpack.c.l.b16 %v883
      %v953 = vunpack.c.h.b16 %v883
      %v954 = vunpack.c.l.b16 %v884
      %v955 = vunpack.c.h.b16 %v884
      %v956 = vunpack.c.l.b16 %v885
      %v957 = vunpack.c.h.b16 %v885
      %v958 = vunpack.c.l.b16 %v886
      %v959 = vunpack.c.h.b16 %v886
      %v960 = vunpack.c.l.b16 %v887
      %v961 = vunpack.c.h.b16 %v887
      %v962 = vunpack.c.l.b16 %v888
      %v963 = vunpack.c.h.b16 %v888
      %v964 = vunpack.c.l.b16 %v889
      %v965 = vunpack.c.h.b16 %v889
      %v966 = vunpack.c.l.b16 %v890
      %v967 = vunpack.c.h.b16 %v890
      %v968 = vunpack.c.l.b16 %v891
      %v969 = vunpack.c.h.b16 %v891
      %v970 = vunpack.c.l.b16 %v892
      %v971 = vunpack.c.h.b16 %v892
      %v972 = vunpack.c.l.b16 %v893
      %v973 = vunpack.c.h.b16 %v893
      %v974 = vunpack.c.l.b16 %v894
      %v975 = vunpack.c.h.b16 %v894
      %v976 = vunpack.c.l.b16 %v895
      %v977 = vunpack.c.h.b16 %v895
      %v978 = vunpack.c.l.b16 %v896
      %v979 = vunpack.c.h.b16 %v896
      %v980 = vunpack.c.l.b16 %v897
      %v981 = vunpack.c.h.b16 %v897
      %v982 = vunpack.c.l.b16 %v898
      %v983 = vunpack.c.h.b16 %v898
      %v984 = vunpack.c.l.b16 %v899
      %v985 = vunpack.c.h.b16 %v899
      %v986 = vunpack.c.l.b16 %v900
      %v987 = vunpack.c.h.b16 %v900
      %v988 = vunpack.c.l.b16 %v901
      %v989 = vunpack.c.h.b16 %v901
      %v990 = vunpack.c.l.b16 %v902
      %v991 = vunpack.c.h.b16 %v902
      %v992 = vunpack.c.l.b16 %v903
      %v993 = vunpack.c.h.b16 %v903
      %v994 = vunpack.c.l.b16 %v904
      %v995 = vunpack.c.h.b16 %v904
      %v996 = vunpack.c.l.b16 %v905
      %v997 = vunpack.c.h.b16 %v905
      %v998 = vunpack.c.l.b16 %v906
      %v999 = vunpack.c.h.b16 %v906
      %v1000 = vunpack.c.l.b16 %v907
      %v1001 = vunpack.c.h.b16 %v907
      %v1002 = vunpack.c.l.b16 %v908
      %v1003 = vunpack.c.h.b16 %v908
      %v1004 = vunpack.c.l.b16 %v909
      %v1005 = vunpack.c.h.b16 %v909
      %v1006 = vpack.c.b16 %v942, %v942
      %v1007 = vpack.c.b16 %v943, %v943
      %v1008 = vpack.c.b16 %v944, %v944
      %v1009 = vpack.c.b16 %v945, %v945
      %v1010 = vpack.c.b16 %v946, %v946
      %v1011 = vpack.c.b16 %v947, %v947
      %v1012 = vpack.c.b16 %v948, %v948
      %v1013 = vpack.c.b16 %v949, %v949
      %v1014 = vpack.c.b16 %v950, %v950
      %v1015 = vpack.c.b16 %v951, %v951
      %v1016 = vpack.c.b16 %v952, %v952
      %v1017 = vpack.c.b16 %v953, %v953
      %v1018 = vpack.c.b16 %v954, %v954
      %v1019 = vpack.c.b16 %v955, %v955
      %v1020 = vpack.c.b16 %v956, %v956
      %v1021 = vpack.c.b16 %v957, %v957
      %v1022 = vpack.c.b16 %v958, %v958
      %v1023 = vpack.c.b16 %v959, %v959
      %v1024 = vpack.c.b16 %v960, %v960
      %v1025 = vpack.c.b16 %v961, %v961
      %v1026 = vpack.c.b16 %v962, %v962
      %v1027 = vpack.c.b16 %v963, %v963
      %v1028 = vpack.c.b16 %v964, %v964
      %v1029 = vpack.c.b16 %v965, %v965
      %v1030 = vpack.c.b16 %v966, %v966
      %v1031 = vpack.c.b16 %v967, %v967
      %v1032 = vpack.c.b16 %v968, %v968
      %v1033 = vpack.c.b16 %v969, %v969
      %v1034 = vpack.c.b16 %v970, %v970
      %v1035 = vpack.c.b16 %v971, %v971
      %v1036 = vpack.c.b16 %v972, %v972
      %v1037 = vpack.c.b16 %v973, %v973
      %v1038 = vpack.c.b16 %v974, %v974
      %v1039 = vpack.c.b16 %v975, %v975
      %v1040 = vpack.c.b16 %v976, %v976
      %v1041 = vpack.c.b16 %v977, %v977
      %v1042 = vpack.c.b16 %v978, %v978
      %v1043 = vpack.c.b16 %v979, %v979
      %v1044 = vpack.c.b16 %v980, %v980
      %v1045 = vpack.c.b16 %v981, %v981
      %v1046 = vpack.c.b16 %v982, %v982
      %v1047 = vpack.c.b16 %v983, %v983
      %v1048 = vpack.c.b16 %v984, %v984
      %v1049 = vpack.c.b16 %v985, %v985
      %v1050 = vpack.c.b16 %v986, %v986
      %v1051 = vpack.c.b16 %v987, %v987
      %v1052 = vpack.c.b16 %v988, %v988
      %v1053 = vpack.c.b16 %v989, %v989
      %v1054 = vpack.c.b16 %v990, %v990
      %v1055 = vpack.c.b16 %v991, %v991
      %v1056 = vpack.c.b16 %v992, %v992
      %v1057 = vpack.c.b16 %v993, %v993
      %v1058 = vpack.c.b16 %v994, %v994
      %v1059 = vpack.c.b16 %v995, %v995
      %v1060 = vpack.c.b16 %v996, %v996
      %v1061 = vpack.c.b16 %v997, %v997
      %v1062 = vpack.c.b16 %v998, %v998
      %v1063 = vpack.c.b16 %v999, %v999
      %v1064 = vpack.c.b16 %v1000, %v1000
      %v1065 = vpack.c.b16 %v1001, %v1001
      %v1066 = vpack.c.b16 %v1002, %v1002
      %v1067 = vpack.c.b16 %v1003, %v1003
      %v1068 = vpack.c.b16 %v1004, %v1004
      %v1069 = vpack.c.b16 %v1005, %v1005
      %1134 = vst [vmem:[%s172] sm:$0xf] %v1006
      %1135 = vst [vmem:[%s172 + $0x4] sm:$0xf] %v1007
      %1136 = vst [vmem:[%s172 + $0x8] sm:$0xf] %v1008
      %1137 = vst [vmem:[%s172 + $0xc] sm:$0xf] %v1009
      %1138 = vst [vmem:[%s172 + $0x10] sm:$0xf] %v1010
      %1139 = vst [vmem:[%s172 + $0x14] sm:$0xf] %v1011
      %1140 = vst [vmem:[%s172 + $0x18] sm:$0xf] %v1012
      %1141 = vst [vmem:[%s172 + $0x1c] sm:$0xf] %v1013
      %1142 = vst [vmem:[%s172 + $0x20] sm:$0xf] %v1014
      %1143 = vst [vmem:[%s172 + $0x24] sm:$0xf] %v1015
      %1144 = vst [vmem:[%s172 + $0x28] sm:$0xf] %v1016
      %1145 = vst [vmem:[%s172 + $0x2c] sm:$0xf] %v1017
      %1146 = vst [vmem:[%s172 + $0x30] sm:$0xf] %v1018
      %1147 = vst [vmem:[%s172 + $0x34] sm:$0xf] %v1019
      %1148 = vst [vmem:[%s172 + $0x38] sm:$0xf] %v1020
      %1149 = vst [vmem:[%s172 + $0x3c] sm:$0xf] %v1021
      %1150 = vst [vmem:[%s172 + $0x40] sm:$0xf] %v1022
      %1151 = vst [vmem:[%s172 + $0x44] sm:$0xf] %v1023
      %1152 = vst [vmem:[%s172 + $0x48] sm:$0xf] %v1024
      %1153 = vst [vmem:[%s172 + $0x4c] sm:$0xf] %v1025
      %1154 = vst [vmem:[%s172 + $0x50] sm:$0xf] %v1026
      %1155 = vst [vmem:[%s172 + $0x54] sm:$0xf] %v1027
      %1156 = vst [vmem:[%s172 + $0x58] sm:$0xf] %v1028
      %1157 = vst [vmem:[%s172 + $0x5c] sm:$0xf] %v1029
      %1158 = vst [vmem:[%s172 + $0x60] sm:$0xf] %v1030
      %1159 = vst [vmem:[%s172 + $0x64] sm:$0xf] %v1031
      %1160 = vst [vmem:[%s172 + $0x68] sm:$0xf] %v1032
      %1161 = vst [vmem:[%s172 + $0x6c] sm:$0xf] %v1033
      %1162 = vst [vmem:[%s172 + $0x70] sm:$0xf] %v1034
      %1163 = vst [vmem:[%s172 + $0x74] sm:$0xf] %v1035
      %1164 = vst [vmem:[%s172 + $0x78] sm:$0xf] %v1036
      %1165 = vst [vmem:[%s172 + $0x7c] sm:$0xf] %v1037
      %1166 = vst [vmem:[%s172 + $0x80] sm:$0xf] %v1038
      %1167 = vst [vmem:[%s172 + $0x84] sm:$0xf] %v1039
      %1168 = vst [vmem:[%s172 + $0x88] sm:$0xf] %v1040
      %1169 = vst [vmem:[%s172 + $0x8c] sm:$0xf] %v1041
      %1170 = vst [vmem:[%s172 + $0x90] sm:$0xf] %v1042
      %1171 = vst [vmem:[%s172 + $0x94] sm:$0xf] %v1043
      %1172 = vst [vmem:[%s172 + $0x98] sm:$0xf] %v1044
      %1173 = vst [vmem:[%s172 + $0x9c] sm:$0xf] %v1045
      %1174 = vst [vmem:[%s172 + $0xa0] sm:$0xf] %v1046
      %1175 = vst [vmem:[%s172 + $0xa4] sm:$0xf] %v1047
      %1176 = vst [vmem:[%s172 + $0xa8] sm:$0xf] %v1048
      %1177 = vst [vmem:[%s172 + $0xac] sm:$0xf] %v1049
      %1178 = vst [vmem:[%s172 + $0xb0] sm:$0xf] %v1050
      %1179 = vst [vmem:[%s172 + $0xb4] sm:$0xf] %v1051
      %1180 = vst [vmem:[%s172 + $0xb8] sm:$0xf] %v1052
      %1181 = vst [vmem:[%s172 + $0xbc] sm:$0xf] %v1053
      %1182 = vst [vmem:[%s172 + $0xc0] sm:$0xf] %v1054
      %1183 = vst [vmem:[%s172 + $0xc4] sm:$0xf] %v1055
      %1184 = vst [vmem:[%s172 + $0xc8] sm:$0xf] %v1056
      %1185 = vst [vmem:[%s172 + $0xcc] sm:$0xf] %v1057
      %1186 = vst [vmem:[%s172 + $0xd0] sm:$0xf] %v1058
      %1187 = vst [vmem:[%s172 + $0xd4] sm:$0xf] %v1059
      %1188 = vst [vmem:[%s172 + $0xd8] sm:$0xf] %v1060
      %1189 = vst [vmem:[%s172 + $0xdc] sm:$0xf] %v1061
      %1190 = vst [vmem:[%s172 + $0xe0] sm:$0xf] %v1062
      %1191 = vst [vmem:[%s172 + $0xe4] sm:$0xf] %v1063
      %1192 = vst [vmem:[%s172 + $0xe8] sm:$0xf] %v1064
      %1193 = vst [vmem:[%s172 + $0xec] sm:$0xf] %v1065
      %1194 = vst [vmem:[%s172 + $0xf0] sm:$0xf] %v1066
      %1195 = vst [vmem:[%s172 + $0xf4] sm:$0xf] %v1067
      %1196 = vst [vmem:[%s172 + $0xf8] sm:$0xf] %v1068
      %1197 = vst [vmem:[%s172 + $0xfc] sm:$0xf] %v1069
      %s1198 = smul.u32 64, %s14
      %p1199 = scmp.lt.s32.totalorder %s1198, 255
      %s1200 = scalar_select %p1199, %s1198, 255
      %s1201 = smul.addr %s1200, 4
      %s1202 = scalar_lea.vmem %s3, %s1201
      // Predicated region
      $region33: #{faster_rcnn_forward.15} parent=31 // pred_check
        %p1203 = pneg %p100
      $region34: #{faster_rcnn_forward.15} parent=31 // pred_check_branch
        %1205 = sbr.rel (%p1203) target = $region36
      $region35: #{faster_rcnn_forward.15} parent=31 // pred_region
        %s1206 = smul.u32 64, %s14
      $region36: #{faster_rcnn_forward.15} parent=31 // pred_fallthru
        _
    $region32: #{faster_rcnn_forward.15} parent=5 // pred_fallthru
      _
    %p1207 = scmp.le.s32.totalorder 2, %s9
    // Predicated region
    $region37: #{faster_rcnn_forward.15} parent=5 // pred_check
      %p1208 = pneg %p1207
    $region38: #{faster_rcnn_forward.15} parent=5 // pred_check_branch
      %1210 = sbr.rel (%p1208) target = $region40
    $region39: #{faster_rcnn_forward.15} parent=5 // pred_region
      %s1211 = ssub.s32 %s9, 2
      // Predicated region
      $region41: #{faster_rcnn_forward.15} parent=39 // pred_check
        %p1212 = pneg %p106
      $region42: #{faster_rcnn_forward.15} parent=39 // pred_check_branch
        %1214 = sbr.rel (%p1212) target = $region44
      $region43: #{faster_rcnn_forward.15} parent=39 // pred_region
        %s1215 = smul.u32 64, %s15
        %p1216 = scmp.lt.s32.totalorder %s1215, 255
        %s1217 = scalar_select %p1216, %s1215, 255
        %s1218 = smul.addr %s1217, 4
        %s1219 = scalar_lea.vmem %s3, %s1218
      $region44: #{faster_rcnn_forward.15} parent=39 // pred_fallthru
        _
    $region40: #{faster_rcnn_forward.15} parent=5 // pred_fallthru
      _
  $region6: #{faster_rcnn_forward.15} parent=0 // loop_footer
    %s13 = sadd.s32 1, %s9
  $region7: #{faster_rcnn_forward.15} parent=0 // loop_footer_branch
    %8 = sbr.rel target = $region3
  $region8: #{faster_rcnn_forward.15} parent=0 // loop_exit
    _

// kernel: faster_rcnn_forward.16
$region0: #{faster_rcnn_forward.16}
  #allocation0 [shape = 'u32[]', space=smem, size = 0x4, offset = 0x4, fixed_abs, tag = 'smem constant byte address 0x4 - core index']
  #allocation1 [shape = 'u32[144,128]{1,0:T(1,128)}', space=vmem, size = 0x12000, scoped, tag = 'internal scratch']
  %s0 = inlined_call_operand.vmem [shape: bf16[2048,72], index: 0, kind: input, shape index: {}]
  %s1 = inlined_call_operand.vmem [shape: bf16[72,128], index: 1, kind: input, shape index: {}]
  %s2 = inlined_call_operand.vmem [shape: f32[1,128], index: 2, kind: input, shape index: {}]
  %s3 = inlined_call_operand.vmem [shape: bf16[2048,128], index: 3, kind: output, shape index: {}]
  %s4 = sld [smem:[#allocation0]]
  $region45: #{faster_rcnn_forward.16} parent=0
    _
  %s6 = ssub.s32 1, %s4
  %s7 = scalar_select 0, %s6, %s4
  loop: start=0, step=1, limit=6
  $region2: #{faster_rcnn_forward.16} parent=0 // loop_pre_header
    _
  $region3: #{faster_rcnn_forward.16} parent=0 // loop_header
    %s9 = sphi 0, %s13
    %p10 = scmp.ge.s32.totalorder %s9, 6
    %s19 = sphi 0, %s21
    %s22 = sphi 0, %s19
    %s23 = sphi 0, %s22
    %s39 = sphi 0, %s23
    %s43 = sphi 0, %s43
    %s45 = sphi 0, %s43
    %s46 = sphi 0, %s45
    %s60 = sphi 0, %s46
    %s64 = sphi 0, %s64
    %s66 = sphi 0, %s64
    %s67 = sphi 0, %s66
    %s81 = sphi 0, %s67
    %s87 = sphi 0, %s89
    %s90 = sphi 0, %s87
    %s91 = sphi 0, %s90
    %s107 = sphi 0, %s91
  $region4: #{faster_rcnn_forward.16} parent=0 // loop_header_branch
    %12 = sbr.rel (%p10) target = $region8
  $region5: #{faster_rcnn_forward.16} parent=0 // loop_body
    %s14 = ssub.s32 %s9, 1
    %s15 = ssub.s32 %s9, 2
    %s16 = sadd.s32 %s9, 1
    %s17 = ssub.s32 %s9, %s16
    %p18 = scmp.eq.s32.totalorder %s17, 0
    %s20 = sadd.s32 %s19, 1
    %s21 = scalar_select %p18, %s19, %s20
    %p24 = pneg %p18
    %p25 = scmp.eq.s32.totalorder %s9, 3
    %p26 = por %p24, %p25
    %p27 = scmp.ne.s32.totalorder %s19, %s22
    %p28 = scmp.eq.s32.totalorder %s9, 0
    %p29 = por %p27, %p28
    %p30 = scmp.ne.s32.totalorder %s19, %s22
    %p31 = scmp.eq.s32.totalorder %s14, 3
    %p32 = por %p30, %p31
    %p33 = scmp.ne.s32.totalorder %s22, %s23
    %p34 = scmp.eq.s32.totalorder %s14, 0
    %p35 = por %p33, %p34
    %p36 = scmp.ne.s32.totalorder %s22, %s23
    %p37 = scmp.eq.s32.totalorder %s15, 3
    %p38 = por %p36, %p37
    %p40 = scmp.ne.s32.totalorder %s23, %s39
    %p41 = scmp.eq.s32.totalorder %s15, 0
    %p42 = por %p40, %p41
    %s44 = sadd.s32 %s43, 1
    %p47 = scmp.eq.s32.totalorder %s9, 3
    %p48 = scmp.ne.s32.totalorder %s43, %s45
    %p49 = scmp.eq.s32.totalorder %s9, 0
    %p50 = por %p48, %p49
    %p51 = scmp.ne.s32.totalorder %s43, %s45
    %p52 = scmp.eq.s32.totalorder %s14, 3
    %p53 = por %p51, %p52
    %p54 = scmp.ne.s32.totalorder %s45, %s46
    %p55 = scmp.eq.s32.totalorder %s14, 0
    %p56 = por %p54, %p55
    %p57 = scmp.ne.s32.totalorder %s45, %s46
    %p58 = scmp.eq.s32.totalorder %s15, 3
    %p59 = por %p57, %p58
    %p61 = scmp.ne.s32.totalorder %s46, %s60
    %p62 = scmp.eq.s32.totalorder %s15, 0
    %p63 = por %p61, %p62
    %s65 = sadd.s32 %s64, 1
    %p68 = scmp.eq.s32.totalorder %s9, 3
    %p69 = scmp.ne.s32.totalorder %s64, %s66
    %p70 = scmp.eq.s32.totalorder %s9, 0
    %p71 = por %p69, %p70
    %p72 = scmp.ne.s32.totalorder %s64, %s66
    %p73 = scmp.eq.s32.totalorder %s14, 3
    %p74 = por %p72, %p73
    %p75 = scmp.ne.s32.totalorder %s66, %s67
    %p76 = scmp.eq.s32.totalorder %s14, 0
    %p77 = por %p75, %p76
    %p78 = scmp.ne.s32.totalorder %s66, %s67
    %p79 = scmp.eq.s32.totalorder %s15, 3
    %p80 = por %p78, %p79
    %p82 = scmp.ne.s32.totalorder %s67, %s81
    %p83 = scmp.eq.s32.totalorder %s15, 0
    %p84 = por %p82, %p83
    %s85 = ssub.s32 %s9, %s16
    %p86 = scmp.eq.s32.totalorder %s85, 0
    %s88 = sadd.s32 %s87, 1
    %s89 = scalar_select %p86, %s87, %s88
    %p92 = pneg %p86
    %p93 = scmp.eq.s32.totalorder %s9, 3
    %p94 = por %p92, %p93
    %p95 = scmp.ne.s32.totalorder %s87, %s90
    %p96 = scmp.eq.s32.totalorder %s9, 0
    %p97 = por %p95, %p96
    %p98 = scmp.ne.s32.totalorder %s87, %s90
    %p99 = scmp.eq.s32.totalorder %s14, 3
    %p100 = por %p98, %p99
    %p101 = scmp.ne.s32.totalorder %s90, %s91
    %p102 = scmp.eq.s32.totalorder %s14, 0
    %p103 = por %p101, %p102
    %p104 = scmp.ne.s32.totalorder %s90, %s91
    %p105 = scmp.eq.s32.totalorder %s15, 3
    %p106 = por %p104, %p105
    %p108 = scmp.ne.s32.totalorder %s91, %s107
    %p109 = scmp.eq.s32.totalorder %s15, 0
    %p110 = por %p108, %p109
    %p111 = scmp.le.s32.totalorder 1, %s9
    %p112 = scmp.lt.s32.totalorder %s9, 5
    %p113 = pnand %p111, %p112
    %p114 = pneg %p113
    // Predicated region
    $region9: #{faster_rcnn_forward.16} parent=5 // pred_check
      _
    $region10: #{faster_rcnn_forward.16} parent=5 // pred_check_branch
      %116 = sbr.rel (%p113) target = $region12
    $region11: #{faster_rcnn_forward.16} parent=5 // pred_region
      %s117 = ssub.s32 %s9, 1
      // Predicated region
      $region13: #{faster_rcnn_forward.16} parent=11 // pred_check
        %p118 = pneg %p56
      $region14: #{faster_rcnn_forward.16} parent=11 // pred_check_branch
        %120 = sbr.rel (%p118) target = $region16
      $region15: #{faster_rcnn_forward.16} parent=11 // pred_region
        _
      $region16: #{faster_rcnn_forward.16} parent=11 // pred_fallthru
        _
      // Predicated region
      $region17: #{faster_rcnn_forward.16} parent=11 // pred_check
        %p121 = pneg %p77
      $region18: #{faster_rcnn_forward.16} parent=11 // pred_check_branch
        %123 = sbr.rel (%p121) target = $region20
      $region19: #{faster_rcnn_forward.16} parent=11 // pred_region
        _
      $region20: #{faster_rcnn_forward.16} parent=11 // pred_fallthru
        _
    $region12: #{faster_rcnn_forward.16} parent=5 // pred_fallthru
      _
    %p124 = scmp.lt.s32.totalorder %s9, 4
    // Predicated region
    $region21: #{faster_rcnn_forward.16} parent=5 // pred_check
      %p125 = pneg %p124
    $region22: #{faster_rcnn_forward.16} parent=5 // pred_check_branch
      %127 = sbr.rel (%p125) target = $region24
    $region23: #{faster_rcnn_forward.16} parent=5 // pred_region
      // Predicated region
      $region25: #{faster_rcnn_forward.16} parent=23 // pred_check
        %p128 = pneg %p29
      $region26: #{faster_rcnn_forward.16} parent=23 // pred_check_branch
        %130 = sbr.rel (%p128) target = $region28
      $region27: #{faster_rcnn_forward.16} parent=23 // pred_region
        %s131 = smul.u32 64, %s9
        %p132 = scmp.lt.s32.totalorder %s131, 255
        %s133 = scalar_select %p132, %s131, 255
        %s134 = smul.addr %s133, 4
        %s135 = scalar_lea.vmem %s0, %s134
        %s136 = smul.u32 64, %s9
      $region28: #{faster_rcnn_forward.16} parent=23 // pred_fallthru
        _
    $region24: #{faster_rcnn_forward.16} parent=5 // pred_fallthru
      _
    %p137 = scmp.le.s32.totalorder 1, %s9
    %p138 = scmp.lt.s32.totalorder %s9, 5
    %p139 = pnand %p137, %p138
    %p140 = pneg %p139
    // Predicated region
    $region29: #{faster_rcnn_forward.16} parent=5 // pred_check
      _
    $region30: #{faster_rcnn_forward.16} parent=5 // pred_check_branch
      %142 = sbr.rel (%p139) target = $region32
    $region31: #{faster_rcnn_forward.16} parent=5 // pred_region
      %s143 = ssub.s32 %s9, 1
      %s144 = smul.u32 64, %s14
      %p145 = scmp.lt.s32.totalorder %s144, 255
      %s146 = scalar_select %p145, %s144, 255
      %s147 = smul.addr %s146, 4
      %s148 = scalar_lea.vmem %s0, %s147
      %p149 = pneg %p35
      %p150 = pneg %p32
      %p151 = pneg %p56
      %p152 = pneg %p53
      %p153 = pneg %p77
      %p154 = pneg %p74
      %p155 = pneg %p103
      %p156 = pneg %p100
      %s157 = smul.u32 64, %s14
      %p158 = scmp.lt.s32.totalorder %s157, 255
      %s159 = scalar_select %p158, %s157, 255
      %s160 = smul.addr %s159, 4
      %s161 = scalar_lea.vmem %s3, %s160
      %s162 = smul.u32 64, %s14
      %p163 = scmp.lt.s32.totalorder %s162, 255
      %s164 = scalar_select %p163, %s162, 255
      %s165 = smul.addr %s164, 4
      %s166 = scalar_lea.vmem %s0, %s165
      %s167 = smul.u32 64, %s14
      %s168 = smul.u32 64, %s14
      %p169 = scmp.lt.s32.totalorder %s168, 255
      %s170 = scalar_select %p169, %s168, 255
      %s171 = smul.addr %s170, 4
      %s172 = scalar_lea.vmem %s3, %s171
      %s173 = smul.u32 64, %s14
      %v175 = vld [vmem:[%s166] sm:$0xf]
      %v176 = vld [vmem:[%s166 + $0x4] sm:$0xf]
      %v177 = vld [vmem:[%s166 + $0x8] sm:$0xf]
      %v178 = vld [vmem:[%s166 + $0xc] sm:$0xf]
      %v179 = vld [vmem:[%s166 + $0x10] sm:$0xf]
      %v180 = vld [vmem:[%s166 + $0x14] sm:$0xf]
      %v181 = vld [vmem:[%s166 + $0x18] sm:$0xf]
      %v182 = vld [vmem:[%s166 + $0x1c] sm:$0xf]
      %v183 = vld [vmem:[%s166 + $0x20] sm:$0xf]
      %v184 = vld [vmem:[%s166 + $0x24] sm:$0xf]
      %v185 = vld [vmem:[%s166 + $0x28] sm:$0xf]
      %v186 = vld [vmem:[%s166 + $0x2c] sm:$0xf]
      %v187 = vld [vmem:[%s166 + $0x30] sm:$0xf]
      %v188 = vld [vmem:[%s166 + $0x34] sm:$0xf]
      %v189 = vld [vmem:[%s166 + $0x38] sm:$0xf]
      %v190 = vld [vmem:[%s166 + $0x3c] sm:$0xf]
      %v191 = vld [vmem:[%s166 + $0x40] sm:$0xf]
      %v192 = vld [vmem:[%s166 + $0x44] sm:$0xf]
      %v193 = vld [vmem:[%s166 + $0x48] sm:$0xf]
      %v194 = vld [vmem:[%s166 + $0x4c] sm:$0xf]
      %v195 = vld [vmem:[%s166 + $0x50] sm:$0xf]
      %v196 = vld [vmem:[%s166 + $0x54] sm:$0xf]
      %v197 = vld [vmem:[%s166 + $0x58] sm:$0xf]
      %v198 = vld [vmem:[%s166 + $0x5c] sm:$0xf]
      %v199 = vld [vmem:[%s166 + $0x60] sm:$0xf]
      %v200 = vld [vmem:[%s166 + $0x64] sm:$0xf]
      %v201 = vld [vmem:[%s166 + $0x68] sm:$0xf]
      %v202 = vld [vmem:[%s166 + $0x6c] sm:$0xf]
      %v203 = vld [vmem:[%s166 + $0x70] sm:$0xf]
      %v204 = vld [vmem:[%s166 + $0x74] sm:$0xf]
      %v205 = vld [vmem:[%s166 + $0x78] sm:$0xf]
      %v206 = vld [vmem:[%s166 + $0x7c] sm:$0xf]
      %v207 = vld [vmem:[%s166 + $0x80] sm:$0xf]
      %v208 = vld [vmem:[%s166 + $0x84] sm:$0xf]
      %v209 = vld [vmem:[%s166 + $0x88] sm:$0xf]
      %v210 = vld [vmem:[%s166 + $0x8c] sm:$0xf]
      %v211 = vld [vmem:[%s166 + $0x90] sm:$0xf]
      %v212 = vld [vmem:[%s166 + $0x94] sm:$0xf]
      %v213 = vld [vmem:[%s166 + $0x98] sm:$0xf]
      %v214 = vld [vmem:[%s166 + $0x9c] sm:$0xf]
      %v215 = vld [vmem:[%s166 + $0xa0] sm:$0xf]
      %v216 = vld [vmem:[%s166 + $0xa4] sm:$0xf]
      %v217 = vld [vmem:[%s166 + $0xa8] sm:$0xf]
      %v218 = vld [vmem:[%s166 + $0xac] sm:$0xf]
      %v219 = vld [vmem:[%s166 + $0xb0] sm:$0xf]
      %v220 = vld [vmem:[%s166 + $0xb4] sm:$0xf]
      %v221 = vld [vmem:[%s166 + $0xb8] sm:$0xf]
      %v222 = vld [vmem:[%s166 + $0xbc] sm:$0xf]
      %v223 = vld [vmem:[%s166 + $0xc0] sm:$0xf]
      %v224 = vld [vmem:[%s166 + $0xc4] sm:$0xf]
      %v225 = vld [vmem:[%s166 + $0xc8] sm:$0xf]
      %v226 = vld [vmem:[%s166 + $0xcc] sm:$0xf]
      %v227 = vld [vmem:[%s166 + $0xd0] sm:$0xf]
      %v228 = vld [vmem:[%s166 + $0xd4] sm:$0xf]
      %v229 = vld [vmem:[%s166 + $0xd8] sm:$0xf]
      %v230 = vld [vmem:[%s166 + $0xdc] sm:$0xf]
      %v231 = vld [vmem:[%s166 + $0xe0] sm:$0xf]
      %v232 = vld [vmem:[%s166 + $0xe4] sm:$0xf]
      %v233 = vld [vmem:[%s166 + $0xe8] sm:$0xf]
      %v234 = vld [vmem:[%s166 + $0xec] sm:$0xf]
      %v235 = vld [vmem:[%s166 + $0xf0] sm:$0xf]
      %v236 = vld [vmem:[%s166 + $0xf4] sm:$0xf]
      %v237 = vld [vmem:[%s166 + $0xf8] sm:$0xf]
      %v238 = vld [vmem:[%s166 + $0xfc] sm:$0xf]
      %v239 = vld [vmem:[%s1] sm:$0xf]
      %v240 = vld [vmem:[%s1 + $0x4] sm:$0xf]
      %v241 = vld [vmem:[%s1 + $0x8] sm:$0xf]
      %v242 = vld [vmem:[%s1 + $0xc] sm:$0xf]
      %v243 = vld [vmem:[%s1 + $0x10] sm:$0xf]
      %v244 = vld [vmem:[%s1 + $0x14] sm:$0xf]
      %v245 = vld [vmem:[%s1 + $0x18] sm:$0xf]
      %v246 = vld [vmem:[%s1 + $0x1c] sm:$0xf]
      %v247 = vld [vmem:[%s1 + $0x20] sm:$0xf]
      %v248 = vld [vmem:[%s2] sm:$0x1]
      %v250 = vlaneseq
      %v251 = vshrl.u32 %v250, 7
      %v252 = vsub.s32 0, %v251
      %v253 = vrot.slane %v248, %v252
      %v319 = vunpack.c.l.b16 %v175
      %v320 = vunpack.c.l.b16 %v176
      %v321 = vunpack.c.l.b16 %v177
      %v322 = vunpack.c.l.b16 %v178
      %v323 = vunpack.c.l.b16 %v179
      %v324 = vunpack.c.l.b16 %v180
      %v325 = vunpack.c.l.b16 %v181
      %v326 = vunpack.c.l.b16 %v182
      %v327 = vunpack.c.l.b16 %v183
      %v328 = vunpack.c.l.b16 %v184
      %v329 = vunpack.c.l.b16 %v185
      %v330 = vunpack.c.l.b16 %v186
      %v331 = vunpack.c.l.b16 %v187
      %v332 = vunpack.c.l.b16 %v188
      %v333 = vunpack.c.l.b16 %v189
      %v334 = vunpack.c.l.b16 %v190
      %v335 = vunpack.c.l.b16 %v191
      %v336 = vunpack.c.l.b16 %v192
      %v337 = vunpack.c.l.b16 %v193
      %v338 = vunpack.c.l.b16 %v194
      %v339 = vunpack.c.l.b16 %v195
      %v340 = vunpack.c.l.b16 %v196
      %v341 = vunpack.c.l.b16 %v197
      %v342 = vunpack.c.l.b16 %v198
      %v343 = vunpack.c.l.b16 %v199
      %v344 = vunpack.c.l.b16 %v200
      %v345 = vunpack.c.l.b16 %v201
      %v346 = vunpack.c.l.b16 %v202
      %v347 = vunpack.c.l.b16 %v203
      %v348 = vunpack.c.l.b16 %v204
      %v349 = vunpack.c.l.b16 %v205
      %v350 = vunpack.c.l.b16 %v206
      %v351 = vunpack.c.l.b16 %v207
      %v352 = vunpack.c.l.b16 %v208
      %v353 = vunpack.c.l.b16 %v209
      %v354 = vunpack.c.l.b16 %v210
      %v355 = vunpack.c.l.b16 %v211
      %v356 = vunpack.c.l.b16 %v212
      %v357 = vunpack.c.l.b16 %v213
      %v358 = vunpack.c.l.b16 %v214
      %v359 = vunpack.c.l.b16 %v215
      %v360 = vunpack.c.l.b16 %v216
      %v361 = vunpack.c.l.b16 %v217
      %v362 = vunpack.c.l.b16 %v218
      %v363 = vunpack.c.l.b16 %v219
      %v364 = vunpack.c.l.b16 %v220
      %v365 = vunpack.c.l.b16 %v221
      %v366 = vunpack.c.l.b16 %v222
      %v367 = vunpack.c.l.b16 %v223
      %v368 = vunpack.c.l.b16 %v224
      %v369 = vunpack.c.l.b16 %v225
      %v370 = vunpack.c.l.b16 %v226
      %v371 = vunpack.c.l.b16 %v227
      %v372 = vunpack.c.l.b16 %v228
      %v373 = vunpack.c.l.b16 %v229
      %v374 = vunpack.c.l.b16 %v230
      %v375 = vunpack.c.l.b16 %v231
      %v376 = vunpack.c.l.b16 %v232
      %v377 = vunpack.c.l.b16 %v233
      %v378 = vunpack.c.l.b16 %v234
      %v379 = vunpack.c.l.b16 %v235
      %v380 = vunpack.c.l.b16 %v236
      %v381 = vunpack.c.l.b16 %v237
      %v382 = vunpack.c.l.b16 %v238
      %v383 = vpack.c.b16 %v320, %v319
      %v384 = vpack.c.b16 %v322, %v321
      %v385 = vpack.c.b16 %v324, %v323
      %v386 = vpack.c.b16 %v326, %v325
      %v387 = vpack.c.b16 %v328, %v327
      %v388 = vpack.c.b16 %v330, %v329
      %v389 = vpack.c.b16 %v332, %v331
      %v390 = vpack.c.b16 %v334, %v333
      %v391 = vpack.c.b16 %v336, %v335
      %v392 = vpack.c.b16 %v338, %v337
      %v393 = vpack.c.b16 %v340, %v339
      %v394 = vpack.c.b16 %v342, %v341
      %v395 = vpack.c.b16 %v344, %v343
      %v396 = vpack.c.b16 %v346, %v345
      %v397 = vpack.c.b16 %v348, %v347
      %v398 = vpack.c.b16 %v350, %v349
      %v399 = vpack.c.b16 %v352, %v351
      %v400 = vpack.c.b16 %v354, %v353
      %v401 = vpack.c.b16 %v356, %v355
      %v402 = vpack.c.b16 %v358, %v357
      %v403 = vpack.c.b16 %v360, %v359
      %v404 = vpack.c.b16 %v362, %v361
      %v405 = vpack.c.b16 %v364, %v363
      %v406 = vpack.c.b16 %v366, %v365
      %v407 = vpack.c.b16 %v368, %v367
      %v408 = vpack.c.b16 %v370, %v369
      %v409 = vpack.c.b16 %v372, %v371
      %v410 = vpack.c.b16 %v374, %v373
      %v411 = vpack.c.b16 %v376, %v375
      %v412 = vpack.c.b16 %v378, %v377
      %v413 = vpack.c.b16 %v380, %v379
      %v414 = vpack.c.b16 %v382, %v381
      %v424 = vunpack.c.l.b16 %v239
      %v425 = vunpack.c.l.b16 %v240
      %v426 = vunpack.c.l.b16 %v241
      %v427 = vunpack.c.l.b16 %v242
      %v428 = vunpack.c.l.b16 %v243
      %v429 = vunpack.c.l.b16 %v244
      %v430 = vunpack.c.l.b16 %v245
      %v431 = vunpack.c.l.b16 %v246
      %v432 = vunpack.c.l.b16 %v247
      %v433 = vpack.c.b16 %v425, %v424
      %v434 = vpack.c.b16 %v427, %v426
      %v435 = vpack.c.b16 %v429, %v428
      %v436 = vpack.c.b16 %v431, %v430
      %v437 = vpack.c.b16 %v432, %v432
      %vm442 = vcmask 588800
      %v444 = vsel %vm442, %v383, 0
      %v447 = vsel %vm442, %v384, 0
      %v450 = vsel %vm442, %v385, 0
      %v453 = vsel %vm442, %v386, 0
      %v456 = vsel %vm442, %v387, 0
      %v459 = vsel %vm442, %v388, 0
      %v462 = vsel %vm442, %v389, 0
      %v465 = vsel %vm442, %v390, 0
      %v468 = vsel %vm442, %v391, 0
      %v471 = vsel %vm442, %v392, 0
      %v474 = vsel %vm442, %v393, 0
      %v477 = vsel %vm442, %v394, 0
      %v480 = vsel %vm442, %v395, 0
      %v483 = vsel %vm442, %v396, 0
      %v486 = vsel %vm442, %v397, 0
      %v489 = vsel %vm442, %v398, 0
      %v492 = vsel %vm442, %v399, 0
      %v495 = vsel %vm442, %v400, 0
      %v498 = vsel %vm442, %v401, 0
      %v501 = vsel %vm442, %v402, 0
      %v504 = vsel %vm442, %v403, 0
      %v507 = vsel %vm442, %v404, 0
      %v510 = vsel %vm442, %v405, 0
      %v513 = vsel %vm442, %v406, 0
      %v516 = vsel %vm442, %v407, 0
      %v519 = vsel %vm442, %v408, 0
      %v522 = vsel %vm442, %v409, 0
      %v525 = vsel %vm442, %v410, 0
      %v528 = vsel %vm442, %v411, 0
      %v531 = vsel %vm442, %v412, 0
      %v534 = vsel %vm442, %v413, 0
      %v537 = vsel %vm442, %v414, 0
      %vm539 = vcmask 1043456
      %v541 = vsel %vm539, %v437, 0
      %543 = vmatprep.subr.bf16.mxu0 0
      %544 = vmatpush1.bf16.msra.mxu0 0
      %545 = vmatprep.subr.bf16.mxu0 0
      %546 = vmatpush1.bf16.msra.mxu0 0
      %547 = vmatprep.subr.bf16.mxu0 0
      %548 = vmatpush1.bf16.msra.mxu0 0
      %549 = vmatprep.subr.bf16.mxu0 0
      %550 = vmatpush1.bf16.msra.mxu0 %v541
      %551 = vmatprep.subr.bf16.mxu0 0
      %552 = vmatpush1.bf16.msra.mxu0 %v436
      %553 = vmatprep.subr.bf16.mxu0 0
      %554 = vmatpush1.bf16.msra.mxu0 %v435
      %555 = vmatprep.subr.bf16.mxu0 0
      %556 = vmatpush1.bf16.msra.mxu0 %v434
      %557 = vmatprep.subr.bf16.mxu0 0
      %558 = vmatpush1.bf16.msra.mxu0 %v433
      %559 = vmatprep.subr.bf16.mxu0 0
      %560 = vmatpush2.bf16.msra.mxu0 0
      %561 = vmatprep.subr.bf16.mxu0 0
      %562 = vmatpush2.bf16.msra.mxu0 0
      %563 = vmatprep.subr.bf16.mxu0 0
      %564 = vmatpush2.bf16.msra.mxu0 0
      %565 = vmatprep.subr.bf16.mxu0 0
      %566 = vmatpush2.bf16.msra.mxu0 0
      %567 = vmatprep.subr.bf16.mxu0 0
      %568 = vmatpush2.bf16.msra.mxu0 0
      %569 = vmatprep.subr.bf16.mxu0 0
      %570 = vmatpush2.bf16.msra.mxu0 0
      %571 = vmatprep.subr.bf16.mxu0 0
      %572 = vmatpush2.bf16.msra.mxu0 0
      %573 = vmatprep.subr.bf16.mxu0 0
      %574 = vmatpush2.bf16.msra.mxu0 0
      %575 = vmatprep.mubr.bf16.mxu0 0
      %576 = vmatmul.mubr.bf16.gmra.mxu0 %v444
      %v577 = vpop.f32.mrf.mxu0
      %v578 = vadd.f32 %v253, %v577
      %v579 = vpop.f32.mrf.mxu0
      %v580 = vpop.f32.mrf.mxu0
      %v581 = vadd.f32 %v253, %v580
      %v582 = vpop.f32.mrf.mxu0
      %583 = vmatprep.mubr.bf16.mxu0 0
      %584 = vmatmul.mubr.bf16.gmra.mxu0 %v447
      %v585 = vpop.f32.mrf.mxu0
      %v586 = vadd.f32 %v253, %v585
      %v587 = vpop.f32.mrf.mxu0
      %v588 = vpop.f32.mrf.mxu0
      %v589 = vadd.f32 %v253, %v588
      %v590 = vpop.f32.mrf.mxu0
      %591 = vmatprep.mubr.bf16.mxu0 0
      %592 = vmatmul.mubr.bf16.gmra.mxu0 %v450
      %v593 = vpop.f32.mrf.mxu0
      %v594 = vadd.f32 %v253, %v593
      %v595 = vpop.f32.mrf.mxu0
      %v596 = vpop.f32.mrf.mxu0
      %v597 = vadd.f32 %v253, %v596
      %v598 = vpop.f32.mrf.mxu0
      %599 = vmatprep.mubr.bf16.mxu0 0
      %600 = vmatmul.mubr.bf16.gmra.mxu0 %v453
      %v601 = vpop.f32.mrf.mxu0
      %v602 = vadd.f32 %v253, %v601
      %v603 = vpop.f32.mrf.mxu0
      %v604 = vpop.f32.mrf.mxu0
      %v605 = vadd.f32 %v253, %v604
      %v606 = vpop.f32.mrf.mxu0
      %607 = vmatprep.mubr.bf16.mxu0 0
      %608 = vmatmul.mubr.bf16.gmra.mxu0 %v456
      %v609 = vpop.f32.mrf.mxu0
      %v610 = vadd.f32 %v253, %v609
      %v611 = vpop.f32.mrf.mxu0
      %v612 = vpop.f32.mrf.mxu0
      %v613 = vadd.f32 %v253, %v612
      %v614 = vpop.f32.mrf.mxu0
      %615 = vmatprep.mubr.bf16.mxu0 0
      %616 = vmatmul.mubr.bf16.gmra.mxu0 %v459
      %v617 = vpop.f32.mrf.mxu0
      %v618 = vadd.f32 %v253, %v617
      %v619 = vpop.f32.mrf.mxu0
      %v620 = vpop.f32.mrf.mxu0
      %v621 = vadd.f32 %v253, %v620
      %v622 = vpop.f32.mrf.mxu0
      %623 = vmatprep.mubr.bf16.mxu0 0
      %624 = vmatmul.mubr.bf16.gmra.mxu0 %v462
      %v625 = vpop.f32.mrf.mxu0
      %v626 = vadd.f32 %v253, %v625
      %v627 = vpop.f32.mrf.mxu0
      %v628 = vpop.f32.mrf.mxu0
      %v629 = vadd.f32 %v253, %v628
      %v630 = vpop.f32.mrf.mxu0
      %631 = vmatprep.mubr.bf16.mxu0 0
      %632 = vmatmul.mubr.bf16.gmra.mxu0 %v465
      %v633 = vpop.f32.mrf.mxu0
      %v634 = vadd.f32 %v253, %v633
      %v635 = vpop.f32.mrf.mxu0
      %v636 = vpop.f32.mrf.mxu0
      %v637 = vadd.f32 %v253, %v636
      %v638 = vpop.f32.mrf.mxu0
      %639 = vmatprep.mubr.bf16.mxu0 0
      %640 = vmatmul.mubr.bf16.gmra.mxu0 %v468
      %v641 = vpop.f32.mrf.mxu0
      %v642 = vadd.f32 %v253, %v641
      %v643 = vpop.f32.mrf.mxu0
      %v644 = vpop.f32.mrf.mxu0
      %v645 = vadd.f32 %v253, %v644
      %v646 = vpop.f32.mrf.mxu0
      %647 = vmatprep.mubr.bf16.mxu0 0
      %648 = vmatmul.mubr.bf16.gmra.mxu0 %v471
      %v649 = vpop.f32.mrf.mxu0
      %v650 = vadd.f32 %v253, %v649
      %v651 = vpop.f32.mrf.mxu0
      %v652 = vpop.f32.mrf.mxu0
      %v653 = vadd.f32 %v253, %v652
      %v654 = vpop.f32.mrf.mxu0
      %655 = vmatprep.mubr.bf16.mxu0 0
      %656 = vmatmul.mubr.bf16.gmra.mxu0 %v474
      %v657 = vpop.f32.mrf.mxu0
      %v658 = vadd.f32 %v253, %v657
      %v659 = vpop.f32.mrf.mxu0
      %v660 = vpop.f32.mrf.mxu0
      %v661 = vadd.f32 %v253, %v660
      %v662 = vpop.f32.mrf.mxu0
      %663 = vmatprep.mubr.bf16.mxu0 0
      %664 = vmatmul.mubr.bf16.gmra.mxu0 %v477
      %v665 = vpop.f32.mrf.mxu0
      %v666 = vadd.f32 %v253, %v665
      %v667 = vpop.f32.mrf.mxu0
      %v668 = vpop.f32.mrf.mxu0
      %v669 = vadd.f32 %v253, %v668
      %v670 = vpop.f32.mrf.mxu0
      %671 = vmatprep.mubr.bf16.mxu0 0
      %672 = vmatmul.mubr.bf16.gmra.mxu0 %v480
      %v673 = vpop.f32.mrf.mxu0
      %v674 = vadd.f32 %v253, %v673
      %v675 = vpop.f32.mrf.mxu0
      %v676 = vpop.f32.mrf.mxu0
      %v677 = vadd.f32 %v253, %v676
      %v678 = vpop.f32.mrf.mxu0
      %679 = vmatprep.mubr.bf16.mxu0 0
      %680 = vmatmul.mubr.bf16.gmra.mxu0 %v483
      %v681 = vpop.f32.mrf.mxu0
      %v682 = vadd.f32 %v253, %v681
      %v683 = vpop.f32.mrf.mxu0
      %v684 = vpop.f32.mrf.mxu0
      %v685 = vadd.f32 %v253, %v684
      %v686 = vpop.f32.mrf.mxu0
      %687 = vmatprep.mubr.bf16.mxu0 0
      %688 = vmatmul.mubr.bf16.gmra.mxu0 %v486
      %v689 = vpop.f32.mrf.mxu0
      %v690 = vadd.f32 %v253, %v689
      %v691 = vpop.f32.mrf.mxu0
      %v692 = vpop.f32.mrf.mxu0
      %v693 = vadd.f32 %v253, %v692
      %v694 = vpop.f32.mrf.mxu0
      %695 = vmatprep.mubr.bf16.mxu0 0
      %696 = vmatmul.mubr.bf16.gmra.mxu0 %v489
      %v697 = vpop.f32.mrf.mxu0
      %v698 = vadd.f32 %v253, %v697
      %v699 = vpop.f32.mrf.mxu0
      %v700 = vpop.f32.mrf.mxu0
      %v701 = vadd.f32 %v253, %v700
      %v702 = vpop.f32.mrf.mxu0
      %703 = vmatprep.mubr.bf16.mxu0 0
      %704 = vmatmul.mubr.bf16.gmra.mxu0 %v492
      %v705 = vpop.f32.mrf.mxu0
      %v706 = vadd.f32 %v253, %v705
      %v707 = vpop.f32.mrf.mxu0
      %v708 = vpop.f32.mrf.mxu0
      %v709 = vadd.f32 %v253, %v708
      %v710 = vpop.f32.mrf.mxu0
      %711 = vmatprep.mubr.bf16.mxu0 0
      %712 = vmatmul.mubr.bf16.gmra.mxu0 %v495
      %v713 = vpop.f32.mrf.mxu0
      %v714 = vadd.f32 %v253, %v713
      %v715 = vpop.f32.mrf.mxu0
      %v716 = vpop.f32.mrf.mxu0
      %v717 = vadd.f32 %v253, %v716
      %v718 = vpop.f32.mrf.mxu0
      %719 = vmatprep.mubr.bf16.mxu0 0
      %720 = vmatmul.mubr.bf16.gmra.mxu0 %v498
      %v721 = vpop.f32.mrf.mxu0
      %v722 = vadd.f32 %v253, %v721
      %v723 = vpop.f32.mrf.mxu0
      %v724 = vpop.f32.mrf.mxu0
      %v725 = vadd.f32 %v253, %v724
      %v726 = vpop.f32.mrf.mxu0
      %727 = vmatprep.mubr.bf16.mxu0 0
      %728 = vmatmul.mubr.bf16.gmra.mxu0 %v501
      %v729 = vpop.f32.mrf.mxu0
      %v730 = vadd.f32 %v253, %v729
      %v731 = vpop.f32.mrf.mxu0
      %v732 = vpop.f32.mrf.mxu0
      %v733 = vadd.f32 %v253, %v732
      %v734 = vpop.f32.mrf.mxu0
      %735 = vmatprep.mubr.bf16.mxu0 0
      %736 = vmatmul.mubr.bf16.gmra.mxu0 %v504
      %v737 = vpop.f32.mrf.mxu0
      %v738 = vadd.f32 %v253, %v737
      %v739 = vpop.f32.mrf.mxu0
      %v740 = vpop.f32.mrf.mxu0
      %v741 = vadd.f32 %v253, %v740
      %v742 = vpop.f32.mrf.mxu0
      %743 = vmatprep.mubr.bf16.mxu0 0
      %744 = vmatmul.mubr.bf16.gmra.mxu0 %v507
      %v745 = vpop.f32.mrf.mxu0
      %v746 = vadd.f32 %v253, %v745
      %v747 = vpop.f32.mrf.mxu0
      %v748 = vpop.f32.mrf.mxu0
      %v749 = vadd.f32 %v253, %v748
      %v750 = vpop.f32.mrf.mxu0
      %751 = vmatprep.mubr.bf16.mxu0 0
      %752 = vmatmul.mubr.bf16.gmra.mxu0 %v510
      %v753 = vpop.f32.mrf.mxu0
      %v754 = vadd.f32 %v253, %v753
      %v755 = vpop.f32.mrf.mxu0
      %v756 = vpop.f32.mrf.mxu0
      %v757 = vadd.f32 %v253, %v756
      %v758 = vpop.f32.mrf.mxu0
      %759 = vmatprep.mubr.bf16.mxu0 0
      %760 = vmatmul.mubr.bf16.gmra.mxu0 %v513
      %v761 = vpop.f32.mrf.mxu0
      %v762 = vadd.f32 %v253, %v761
      %v763 = vpop.f32.mrf.mxu0
      %v764 = vpop.f32.mrf.mxu0
      %v765 = vadd.f32 %v253, %v764
      %v766 = vpop.f32.mrf.mxu0
      %767 = vmatprep.mubr.bf16.mxu0 0
      %768 = vmatmul.mubr.bf16.gmra.mxu0 %v516
      %v769 = vpop.f32.mrf.mxu0
      %v770 = vadd.f32 %v253, %v769
      %v771 = vpop.f32.mrf.mxu0
      %v772 = vpop.f32.mrf.mxu0
      %v773 = vadd.f32 %v253, %v772
      %v774 = vpop.f32.mrf.mxu0
      %775 = vmatprep.mubr.bf16.mxu0 0
      %776 = vmatmul.mubr.bf16.gmra.mxu0 %v519
      %v777 = vpop.f32.mrf.mxu0
      %v778 = vadd.f32 %v253, %v777
      %v779 = vpop.f32.mrf.mxu0
      %v780 = vpop.f32.mrf.mxu0
      %v781 = vadd.f32 %v253, %v780
      %v782 = vpop.f32.mrf.mxu0
      %783 = vmatprep.mubr.bf16.mxu0 0
      %784 = vmatmul.mubr.bf16.gmra.mxu0 %v522
      %v785 = vpop.f32.mrf.mxu0
      %v786 = vadd.f32 %v253, %v785
      %v787 = vpop.f32.mrf.mxu0
      %v788 = vpop.f32.mrf.mxu0
      %v789 = vadd.f32 %v253, %v788
      %v790 = vpop.f32.mrf.mxu0
      %791 = vmatprep.mubr.bf16.mxu0 0
      %792 = vmatmul.mubr.bf16.gmra.mxu0 %v525
      %v793 = vpop.f32.mrf.mxu0
      %v794 = vadd.f32 %v253, %v793
      %v795 = vpop.f32.mrf.mxu0
      %v796 = vpop.f32.mrf.mxu0
      %v797 = vadd.f32 %v253, %v796
      %v798 = vpop.f32.mrf.mxu0
      %799 = vmatprep.mubr.bf16.mxu0 0
      %800 = vmatmul.mubr.bf16.gmra.mxu0 %v528
      %v801 = vpop.f32.mrf.mxu0
      %v802 = vadd.f32 %v253, %v801
      %v803 = vpop.f32.mrf.mxu0
      %v804 = vpop.f32.mrf.mxu0
      %v805 = vadd.f32 %v253, %v804
      %v806 = vpop.f32.mrf.mxu0
      %807 = vmatprep.mubr.bf16.mxu0 0
      %808 = vmatmul.mubr.bf16.gmra.mxu0 %v531
      %v809 = vpop.f32.mrf.mxu0
      %v810 = vadd.f32 %v253, %v809
      %v811 = vpop.f32.mrf.mxu0
      %v812 = vpop.f32.mrf.mxu0
      %v813 = vadd.f32 %v253, %v812
      %v814 = vpop.f32.mrf.mxu0
      %815 = vmatprep.mubr.bf16.mxu0 0
      %816 = vmatmul.mubr.bf16.gmra.mxu0 %v534
      %v817 = vpop.f32.mrf.mxu0
      %v818 = vadd.f32 %v253, %v817
      %v819 = vpop.f32.mrf.mxu0
      %v820 = vpop.f32.mrf.mxu0
      %v821 = vadd.f32 %v253, %v820
      %v822 = vpop.f32.mrf.mxu0
      %823 = vmatprep.mubr.bf16.mxu0 0
      %824 = vmatmul.mubr.bf16.gmra.mxu0 %v537
      %v825 = vpop.f32.mrf.mxu0
      %v826 = vadd.f32 %v253, %v825
      %v827 = vpop.f32.mrf.mxu0
      %v828 = vpop.f32.mrf.mxu0
      %v829 = vadd.f32 %v253, %v828
      %v830 = vpop.f32.mrf.mxu0
      %831 = vdwg.mxu0
      %v832 = vmax.f32 %v578, 0.0
      %v833 = vmax.f32 %v581, 0.0
      %v834 = vmax.f32 %v586, 0.0
      %v835 = vmax.f32 %v589, 0.0
      %v836 = vmax.f32 %v594, 0.0
      %v837 = vmax.f32 %v597, 0.0
      %v838 = vmax.f32 %v602, 0.0
      %v839 = vmax.f32 %v605, 0.0
      %v840 = vmax.f32 %v610, 0.0
      %v841 = vmax.f32 %v613, 0.0
      %v842 = vmax.f32 %v618, 0.0
      %v843 = vmax.f32 %v621, 0.0
      %v844 = vmax.f32 %v626, 0.0
      %v845 = vmax.f32 %v629, 0.0
      %v846 = vmax.f32 %v634, 0.0
      %v847 = vmax.f32 %v637, 0.0
      %v848 = vmax.f32 %v642, 0.0
      %v849 = vmax.f32 %v645, 0.0
      %v850 = vmax.f32 %v650, 0.0
      %v851 = vmax.f32 %v653, 0.0
      %v852 = vmax.f32 %v658, 0.0
      %v853 = vmax.f32 %v661, 0.0
      %v854 = vmax.f32 %v666, 0.0
      %v855 = vmax.f32 %v669, 0.0
      %v856 = vmax.f32 %v674, 0.0
      %v857 = vmax.f32 %v677, 0.0
      %v858 = vmax.f32 %v682, 0.0
      %v859 = vmax.f32 %v685, 0.0
      %v860 = vmax.f32 %v690, 0.0
      %v861 = vmax.f32 %v693, 0.0
      %v862 = vmax.f32 %v698, 0.0
      %v863 = vmax.f32 %v701, 0.0
      %v864 = vmax.f32 %v706, 0.0
      %v865 = vmax.f32 %v709, 0.0
      %v866 = vmax.f32 %v714, 0.0
      %v867 = vmax.f32 %v717, 0.0
      %v868 = vmax.f32 %v722, 0.0
      %v869 = vmax.f32 %v725, 0.0
      %v870 = vmax.f32 %v730, 0.0
      %v871 = vmax.f32 %v733, 0.0
      %v872 = vmax.f32 %v738, 0.0
      %v873 = vmax.f32 %v741, 0.0
      %v874 = vmax.f32 %v746, 0.0
      %v875 = vmax.f32 %v749, 0.0
      %v876 = vmax.f32 %v754, 0.0
      %v877 = vmax.f32 %v757, 0.0
      %v878 = vmax.f32 %v762, 0.0
      %v879 = vmax.f32 %v765, 0.0
      %v880 = vmax.f32 %v770, 0.0
      %v881 = vmax.f32 %v773, 0.0
      %v882 = vmax.f32 %v778, 0.0
      %v883 = vmax.f32 %v781, 0.0
      %v884 = vmax.f32 %v786, 0.0
      %v885 = vmax.f32 %v789, 0.0
      %v886 = vmax.f32 %v794, 0.0
      %v887 = vmax.f32 %v797, 0.0
      %v888 = vmax.f32 %v802, 0.0
      %v889 = vmax.f32 %v805, 0.0
      %v890 = vmax.f32 %v810, 0.0
      %v891 = vmax.f32 %v813, 0.0
      %v892 = vmax.f32 %v818, 0.0
      %v893 = vmax.f32 %v821, 0.0
      %v894 = vmax.f32 %v826, 0.0
      %v895 = vmax.f32 %v829, 0.0
      %v896 = vpack.c.bf16 %v833, %v832
      %v897 = vpack.c.bf16 %v835, %v834
      %v898 = vpack.c.bf16 %v837, %v836
      %v899 = vpack.c.bf16 %v839, %v838
      %v900 = vpack.c.bf16 %v841, %v840
      %v901 = vpack.c.bf16 %v843, %v842
      %v902 = vpack.c.bf16 %v845, %v844
      %v903 = vpack.c.bf16 %v847, %v846
      %v904 = vpack.c.bf16 %v849, %v848
      %v905 = vpack.c.bf16 %v851, %v850
      %v906 = vpack.c.bf16 %v853, %v852
      %v907 = vpack.c.bf16 %v855, %v854
      %v908 = vpack.c.bf16 %v857, %v856
      %v909 = vpack.c.bf16 %v859, %v858
      %v910 = vpack.c.bf16 %v861, %v860
      %v911 = vpack.c.bf16 %v863, %v862
      %v912 = vpack.c.bf16 %v865, %v864
      %v913 = vpack.c.bf16 %v867, %v866
      %v914 = vpack.c.bf16 %v869, %v868
      %v915 = vpack.c.bf16 %v871, %v870
      %v916 = vpack.c.bf16 %v873, %v872
      %v917 = vpack.c.bf16 %v875, %v874
      %v918 = vpack.c.bf16 %v877, %v876
      %v919 = vpack.c.bf16 %v879, %v878
      %v920 = vpack.c.bf16 %v881, %v880
      %v921 = vpack.c.bf16 %v883, %v882
      %v922 = vpack.c.bf16 %v885, %v884
      %v923 = vpack.c.bf16 %v887, %v886
      %v924 = vpack.c.bf16 %v889, %v888
      %v925 = vpack.c.bf16 %v891, %v890
      %v926 = vpack.c.bf16 %v893, %v892
      %v927 = vpack.c.bf16 %v895, %v894
      %v960 = vunpack.c.l.b16 %v896
      %v961 = vunpack.c.h.b16 %v896
      %v962 = vunpack.c.l.b16 %v897
      %v963 = vunpack.c.h.b16 %v897
      %v964 = vunpack.c.l.b16 %v898
      %v965 = vunpack.c.h.b16 %v898
      %v966 = vunpack.c.l.b16 %v899
      %v967 = vunpack.c.h.b16 %v899
      %v968 = vunpack.c.l.b16 %v900
      %v969 = vunpack.c.h.b16 %v900
      %v970 = vunpack.c.l.b16 %v901
      %v971 = vunpack.c.h.b16 %v901
      %v972 = vunpack.c.l.b16 %v902
      %v973 = vunpack.c.h.b16 %v902
      %v974 = vunpack.c.l.b16 %v903
      %v975 = vunpack.c.h.b16 %v903
      %v976 = vunpack.c.l.b16 %v904
      %v977 = vunpack.c.h.b16 %v904
      %v978 = vunpack.c.l.b16 %v905
      %v979 = vunpack.c.h.b16 %v905
      %v980 = vunpack.c.l.b16 %v906
      %v981 = vunpack.c.h.b16 %v906
      %v982 = vunpack.c.l.b16 %v907
      %v983 = vunpack.c.h.b16 %v907
      %v984 = vunpack.c.l.b16 %v908
      %v985 = vunpack.c.h.b16 %v908
      %v986 = vunpack.c.l.b16 %v909
      %v987 = vunpack.c.h.b16 %v909
      %v988 = vunpack.c.l.b16 %v910
      %v989 = vunpack.c.h.b16 %v910
      %v990 = vunpack.c.l.b16 %v911
      %v991 = vunpack.c.h.b16 %v911
      %v992 = vunpack.c.l.b16 %v912
      %v993 = vunpack.c.h.b16 %v912
      %v994 = vunpack.c.l.b16 %v913
      %v995 = vunpack.c.h.b16 %v913
      %v996 = vunpack.c.l.b16 %v914
      %v997 = vunpack.c.h.b16 %v914
      %v998 = vunpack.c.l.b16 %v915
      %v999 = vunpack.c.h.b16 %v915
      %v1000 = vunpack.c.l.b16 %v916
      %v1001 = vunpack.c.h.b16 %v916
      %v1002 = vunpack.c.l.b16 %v917
      %v1003 = vunpack.c.h.b16 %v917
      %v1004 = vunpack.c.l.b16 %v918
      %v1005 = vunpack.c.h.b16 %v918
      %v1006 = vunpack.c.l.b16 %v919
      %v1007 = vunpack.c.h.b16 %v919
      %v1008 = vunpack.c.l.b16 %v920
      %v1009 = vunpack.c.h.b16 %v920
      %v1010 = vunpack.c.l.b16 %v921
      %v1011 = vunpack.c.h.b16 %v921
      %v1012 = vunpack.c.l.b16 %v922
      %v1013 = vunpack.c.h.b16 %v922
      %v1014 = vunpack.c.l.b16 %v923
      %v1015 = vunpack.c.h.b16 %v923
      %v1016 = vunpack.c.l.b16 %v924
      %v1017 = vunpack.c.h.b16 %v924
      %v1018 = vunpack.c.l.b16 %v925
      %v1019 = vunpack.c.h.b16 %v925
      %v1020 = vunpack.c.l.b16 %v926
      %v1021 = vunpack.c.h.b16 %v926
      %v1022 = vunpack.c.l.b16 %v927
      %v1023 = vunpack.c.h.b16 %v927
      %v1024 = vpack.c.b16 %v960, %v960
      %v1025 = vpack.c.b16 %v961, %v961
      %v1026 = vpack.c.b16 %v962, %v962
      %v1027 = vpack.c.b16 %v963, %v963
      %v1028 = vpack.c.b16 %v964, %v964
      %v1029 = vpack.c.b16 %v965, %v965
      %v1030 = vpack.c.b16 %v966, %v966
      %v1031 = vpack.c.b16 %v967, %v967
      %v1032 = vpack.c.b16 %v968, %v968
      %v1033 = vpack.c.b16 %v969, %v969
      %v1034 = vpack.c.b16 %v970, %v970
      %v1035 = vpack.c.b16 %v971, %v971
      %v1036 = vpack.c.b16 %v972, %v972
      %v1037 = vpack.c.b16 %v973, %v973
      %v1038 = vpack.c.b16 %v974, %v974
      %v1039 = vpack.c.b16 %v975, %v975
      %v1040 = vpack.c.b16 %v976, %v976
      %v1041 = vpack.c.b16 %v977, %v977
      %v1042 = vpack.c.b16 %v978, %v978
      %v1043 = vpack.c.b16 %v979, %v979
      %v1044 = vpack.c.b16 %v980, %v980
      %v1045 = vpack.c.b16 %v981, %v981
      %v1046 = vpack.c.b16 %v982, %v982
      %v1047 = vpack.c.b16 %v983, %v983
      %v1048 = vpack.c.b16 %v984, %v984
      %v1049 = vpack.c.b16 %v985, %v985
      %v1050 = vpack.c.b16 %v986, %v986
      %v1051 = vpack.c.b16 %v987, %v987
      %v1052 = vpack.c.b16 %v988, %v988
      %v1053 = vpack.c.b16 %v989, %v989
      %v1054 = vpack.c.b16 %v990, %v990
      %v1055 = vpack.c.b16 %v991, %v991
      %v1056 = vpack.c.b16 %v992, %v992
      %v1057 = vpack.c.b16 %v993, %v993
      %v1058 = vpack.c.b16 %v994, %v994
      %v1059 = vpack.c.b16 %v995, %v995
      %v1060 = vpack.c.b16 %v996, %v996
      %v1061 = vpack.c.b16 %v997, %v997
      %v1062 = vpack.c.b16 %v998, %v998
      %v1063 = vpack.c.b16 %v999, %v999
      %v1064 = vpack.c.b16 %v1000, %v1000
      %v1065 = vpack.c.b16 %v1001, %v1001
      %v1066 = vpack.c.b16 %v1002, %v1002
      %v1067 = vpack.c.b16 %v1003, %v1003
      %v1068 = vpack.c.b16 %v1004, %v1004
      %v1069 = vpack.c.b16 %v1005, %v1005
      %v1070 = vpack.c.b16 %v1006, %v1006
      %v1071 = vpack.c.b16 %v1007, %v1007
      %v1072 = vpack.c.b16 %v1008, %v1008
      %v1073 = vpack.c.b16 %v1009, %v1009
      %v1074 = vpack.c.b16 %v1010, %v1010
      %v1075 = vpack.c.b16 %v1011, %v1011
      %v1076 = vpack.c.b16 %v1012, %v1012
      %v1077 = vpack.c.b16 %v1013, %v1013
      %v1078 = vpack.c.b16 %v1014, %v1014
      %v1079 = vpack.c.b16 %v1015, %v1015
      %v1080 = vpack.c.b16 %v1016, %v1016
      %v1081 = vpack.c.b16 %v1017, %v1017
      %v1082 = vpack.c.b16 %v1018, %v1018
      %v1083 = vpack.c.b16 %v1019, %v1019
      %v1084 = vpack.c.b16 %v1020, %v1020
      %v1085 = vpack.c.b16 %v1021, %v1021
      %v1086 = vpack.c.b16 %v1022, %v1022
      %v1087 = vpack.c.b16 %v1023, %v1023
      %1152 = vst [vmem:[%s172] sm:$0xf] %v1024
      %1153 = vst [vmem:[%s172 + $0x4] sm:$0xf] %v1025
      %1154 = vst [vmem:[%s172 + $0x8] sm:$0xf] %v1026
      %1155 = vst [vmem:[%s172 + $0xc] sm:$0xf] %v1027
      %1156 = vst [vmem:[%s172 + $0x10] sm:$0xf] %v1028
      %1157 = vst [vmem:[%s172 + $0x14] sm:$0xf] %v1029
      %1158 = vst [vmem:[%s172 + $0x18] sm:$0xf] %v1030
      %1159 = vst [vmem:[%s172 + $0x1c] sm:$0xf] %v1031
      %1160 = vst [vmem:[%s172 + $0x20] sm:$0xf] %v1032
      %1161 = vst [vmem:[%s172 + $0x24] sm:$0xf] %v1033
      %1162 = vst [vmem:[%s172 + $0x28] sm:$0xf] %v1034
      %1163 = vst [vmem:[%s172 + $0x2c] sm:$0xf] %v1035
      %1164 = vst [vmem:[%s172 + $0x30] sm:$0xf] %v1036
      %1165 = vst [vmem:[%s172 + $0x34] sm:$0xf] %v1037
      %1166 = vst [vmem:[%s172 + $0x38] sm:$0xf] %v1038
      %1167 = vst [vmem:[%s172 + $0x3c] sm:$0xf] %v1039
      %1168 = vst [vmem:[%s172 + $0x40] sm:$0xf] %v1040
      %1169 = vst [vmem:[%s172 + $0x44] sm:$0xf] %v1041
      %1170 = vst [vmem:[%s172 + $0x48] sm:$0xf] %v1042
      %1171 = vst [vmem:[%s172 + $0x4c] sm:$0xf] %v1043
      %1172 = vst [vmem:[%s172 + $0x50] sm:$0xf] %v1044
      %1173 = vst [vmem:[%s172 + $0x54] sm:$0xf] %v1045
      %1174 = vst [vmem:[%s172 + $0x58] sm:$0xf] %v1046
      %1175 = vst [vmem:[%s172 + $0x5c] sm:$0xf] %v1047
      %1176 = vst [vmem:[%s172 + $0x60] sm:$0xf] %v1048
      %1177 = vst [vmem:[%s172 + $0x64] sm:$0xf] %v1049
      %1178 = vst [vmem:[%s172 + $0x68] sm:$0xf] %v1050
      %1179 = vst [vmem:[%s172 + $0x6c] sm:$0xf] %v1051
      %1180 = vst [vmem:[%s172 + $0x70] sm:$0xf] %v1052
      %1181 = vst [vmem:[%s172 + $0x74] sm:$0xf] %v1053
      %1182 = vst [vmem:[%s172 + $0x78] sm:$0xf] %v1054
      %1183 = vst [vmem:[%s172 + $0x7c] sm:$0xf] %v1055
      %1184 = vst [vmem:[%s172 + $0x80] sm:$0xf] %v1056
      %1185 = vst [vmem:[%s172 + $0x84] sm:$0xf] %v1057
      %1186 = vst [vmem:[%s172 + $0x88] sm:$0xf] %v1058
      %1187 = vst [vmem:[%s172 + $0x8c] sm:$0xf] %v1059
      %1188 = vst [vmem:[%s172 + $0x90] sm:$0xf] %v1060
      %1189 = vst [vmem:[%s172 + $0x94] sm:$0xf] %v1061
      %1190 = vst [vmem:[%s172 + $0x98] sm:$0xf] %v1062
      %1191 = vst [vmem:[%s172 + $0x9c] sm:$0xf] %v1063
      %1192 = vst [vmem:[%s172 + $0xa0] sm:$0xf] %v1064
      %1193 = vst [vmem:[%s172 + $0xa4] sm:$0xf] %v1065
      %1194 = vst [vmem:[%s172 + $0xa8] sm:$0xf] %v1066
      %1195 = vst [vmem:[%s172 + $0xac] sm:$0xf] %v1067
      %1196 = vst [vmem:[%s172 + $0xb0] sm:$0xf] %v1068
      %1197 = vst [vmem:[%s172 + $0xb4] sm:$0xf] %v1069
      %1198 = vst [vmem:[%s172 + $0xb8] sm:$0xf] %v1070
      %1199 = vst [vmem:[%s172 + $0xbc] sm:$0xf] %v1071
      %1200 = vst [vmem:[%s172 + $0xc0] sm:$0xf] %v1072
      %1201 = vst [vmem:[%s172 + $0xc4] sm:$0xf] %v1073
      %1202 = vst [vmem:[%s172 + $0xc8] sm:$0xf] %v1074
      %1203 = vst [vmem:[%s172 + $0xcc] sm:$0xf] %v1075
      %1204 = vst [vmem:[%s172 + $0xd0] sm:$0xf] %v1076
      %1205 = vst [vmem:[%s172 + $0xd4] sm:$0xf] %v1077
      %1206 = vst [vmem:[%s172 + $0xd8] sm:$0xf] %v1078
      %1207 = vst [vmem:[%s172 + $0xdc] sm:$0xf] %v1079
      %1208 = vst [vmem:[%s172 + $0xe0] sm:$0xf] %v1080
      %1209 = vst [vmem:[%s172 + $0xe4] sm:$0xf] %v1081
      %1210 = vst [vmem:[%s172 + $0xe8] sm:$0xf] %v1082
      %1211 = vst [vmem:[%s172 + $0xec] sm:$0xf] %v1083
      %1212 = vst [vmem:[%s172 + $0xf0] sm:$0xf] %v1084
      %1213 = vst [vmem:[%s172 + $0xf4] sm:$0xf] %v1085
      %1214 = vst [vmem:[%s172 + $0xf8] sm:$0xf] %v1086
      %1215 = vst [vmem:[%s172 + $0xfc] sm:$0xf] %v1087
      %s1216 = smul.u32 64, %s14
      %p1217 = scmp.lt.s32.totalorder %s1216, 255
      %s1218 = scalar_select %p1217, %s1216, 255
      %s1219 = smul.addr %s1218, 4
      %s1220 = scalar_lea.vmem %s3, %s1219
      // Predicated region
      $region33: #{faster_rcnn_forward.16} parent=31 // pred_check
        %p1221 = pneg %p100
      $region34: #{faster_rcnn_forward.16} parent=31 // pred_check_branch
        %1223 = sbr.rel (%p1221) target = $region36
      $region35: #{faster_rcnn_forward.16} parent=31 // pred_region
        %s1224 = smul.u32 64, %s14
      $region36: #{faster_rcnn_forward.16} parent=31 // pred_fallthru
        _
    $region32: #{faster_rcnn_forward.16} parent=5 // pred_fallthru
      _
    %p1225 = scmp.le.s32.totalorder 2, %s9
    // Predicated region
    $region37: #{faster_rcnn_forward.16} parent=5 // pred_check
      %p1226 = pneg %p1225
    $region38: #{faster_rcnn_forward.16} parent=5 // pred_check_branch
      %1228 = sbr.rel (%p1226) target = $region40
    $region39: #{faster_rcnn_forward.16} parent=5 // pred_region
      %s1229 = ssub.s32 %s9, 2
      // Predicated region
      $region41: #{faster_rcnn_forward.16} parent=39 // pred_check
        %p1230 = pneg %p106
      $region42: #{faster_rcnn_forward.16} parent=39 // pred_check_branch
        %1232 = sbr.rel (%p1230) target = $region44
      $region43: #{faster_rcnn_forward.16} parent=39 // pred_region
        %s1233 = smul.u32 64, %s15
        %p1234 = scmp.lt.s32.totalorder %s1233, 255
        %s1235 = scalar_select %p1234, %s1233, 255
        %s1236 = smul.addr %s1235, 4
        %s1237 = scalar_lea.vmem %s3, %s1236
      $region44: #{faster_rcnn_forward.16} parent=39 // pred_fallthru
        _
    $region40: #{faster_rcnn_forward.16} parent=5 // pred_fallthru
      _
  $region6: #{faster_rcnn_forward.16} parent=0 // loop_footer
    %s13 = sadd.s32 1, %s9
  $region7: #{faster_rcnn_forward.16} parent=0 // loop_footer_branch
    %8 = sbr.rel target = $region3
  $region8: #{faster_rcnn_forward.16} parent=0 // loop_exit
    _

// kernel: faster_rcnn_forward.17
$region0: #{faster_rcnn_forward.17}
  #allocation0 [shape = 'u32[]', space=smem, size = 0x4, offset = 0x4, fixed_abs, tag = 'smem constant byte address 0x4 - core index']
  #allocation1 [shape = 'u32[144,128]{1,0:T(1,128)}', space=vmem, size = 0x12000, scoped, tag = 'internal scratch']
  %s0 = inlined_call_operand.vmem [shape: bf16[512,72], index: 0, kind: input, shape index: {}]
  %s1 = inlined_call_operand.vmem [shape: bf16[72,128], index: 1, kind: input, shape index: {}]
  %s2 = inlined_call_operand.vmem [shape: f32[1,128], index: 2, kind: input, shape index: {}]
  %s3 = inlined_call_operand.vmem [shape: bf16[512,128], index: 3, kind: output, shape index: {}]
  %s4 = sld [smem:[#allocation0]]
  $region22: #{faster_rcnn_forward.17} parent=0
    _
  %s6 = ssub.s32 1, %s4
  %s7 = scalar_select 0, %s6, %s4
  // Predicated region
  $region2: #{faster_rcnn_forward.17} parent=0 // pred_check
    _
  $region3: #{faster_rcnn_forward.17} parent=0 // pred_check_branch
    %9 = sbr.rel (0) target = $region5
  $region4: #{faster_rcnn_forward.17} parent=0 // pred_region
    _
  $region5: #{faster_rcnn_forward.17} parent=0 // pred_fallthru
    _
  // Predicated region
  $region6: #{faster_rcnn_forward.17} parent=0 // pred_check
    _
  $region7: #{faster_rcnn_forward.17} parent=0 // pred_check_branch
    %11 = sbr.rel (0) target = $region9
  $region8: #{faster_rcnn_forward.17} parent=0 // pred_region
    _
  $region9: #{faster_rcnn_forward.17} parent=0 // pred_fallthru
    _
  // Predicated region
  $region10: #{faster_rcnn_forward.17} parent=0 // pred_check
    _
  $region11: #{faster_rcnn_forward.17} parent=0 // pred_check_branch
    %13 = sbr.rel (0) target = $region13
  $region12: #{faster_rcnn_forward.17} parent=0 // pred_region
    _
  $region13: #{faster_rcnn_forward.17} parent=0 // pred_fallthru
    _
  %v15 = vld [vmem:[%s0] sm:$0xf]
  %v16 = vld [vmem:[%s0 + $0x4] sm:$0xf]
  %v17 = vld [vmem:[%s0 + $0x8] sm:$0xf]
  %v18 = vld [vmem:[%s0 + $0xc] sm:$0xf]
  %v19 = vld [vmem:[%s0 + $0x10] sm:$0xf]
  %v20 = vld [vmem:[%s0 + $0x14] sm:$0xf]
  %v21 = vld [vmem:[%s0 + $0x18] sm:$0xf]
  %v22 = vld [vmem:[%s0 + $0x1c] sm:$0xf]
  %v23 = vld [vmem:[%s0 + $0x20] sm:$0xf]
  %v24 = vld [vmem:[%s0 + $0x24] sm:$0xf]
  %v25 = vld [vmem:[%s0 + $0x28] sm:$0xf]
  %v26 = vld [vmem:[%s0 + $0x2c] sm:$0xf]
  %v27 = vld [vmem:[%s0 + $0x30] sm:$0xf]
  %v28 = vld [vmem:[%s0 + $0x34] sm:$0xf]
  %v29 = vld [vmem:[%s0 + $0x38] sm:$0xf]
  %v30 = vld [vmem:[%s0 + $0x3c] sm:$0xf]
  %v31 = vld [vmem:[%s0 + $0x40] sm:$0xf]
  %v32 = vld [vmem:[%s0 + $0x44] sm:$0xf]
  %v33 = vld [vmem:[%s0 + $0x48] sm:$0xf]
  %v34 = vld [vmem:[%s0 + $0x4c] sm:$0xf]
  %v35 = vld [vmem:[%s0 + $0x50] sm:$0xf]
  %v36 = vld [vmem:[%s0 + $0x54] sm:$0xf]
  %v37 = vld [vmem:[%s0 + $0x58] sm:$0xf]
  %v38 = vld [vmem:[%s0 + $0x5c] sm:$0xf]
  %v39 = vld [vmem:[%s0 + $0x60] sm:$0xf]
  %v40 = vld [vmem:[%s0 + $0x64] sm:$0xf]
  %v41 = vld [vmem:[%s0 + $0x68] sm:$0xf]
  %v42 = vld [vmem:[%s0 + $0x6c] sm:$0xf]
  %v43 = vld [vmem:[%s0 + $0x70] sm:$0xf]
  %v44 = vld [vmem:[%s0 + $0x74] sm:$0xf]
  %v45 = vld [vmem:[%s0 + $0x78] sm:$0xf]
  %v46 = vld [vmem:[%s0 + $0x7c] sm:$0xf]
  %v47 = vld [vmem:[%s0 + $0x80] sm:$0xf]
  %v48 = vld [vmem:[%s0 + $0x84] sm:$0xf]
  %v49 = vld [vmem:[%s0 + $0x88] sm:$0xf]
  %v50 = vld [vmem:[%s0 + $0x8c] sm:$0xf]
  %v51 = vld [vmem:[%s0 + $0x90] sm:$0xf]
  %v52 = vld [vmem:[%s0 + $0x94] sm:$0xf]
  %v53 = vld [vmem:[%s0 + $0x98] sm:$0xf]
  %v54 = vld [vmem:[%s0 + $0x9c] sm:$0xf]
  %v55 = vld [vmem:[%s0 + $0xa0] sm:$0xf]
  %v56 = vld [vmem:[%s0 + $0xa4] sm:$0xf]
  %v57 = vld [vmem:[%s0 + $0xa8] sm:$0xf]
  %v58 = vld [vmem:[%s0 + $0xac] sm:$0xf]
  %v59 = vld [vmem:[%s0 + $0xb0] sm:$0xf]
  %v60 = vld [vmem:[%s0 + $0xb4] sm:$0xf]
  %v61 = vld [vmem:[%s0 + $0xb8] sm:$0xf]
  %v62 = vld [vmem:[%s0 + $0xbc] sm:$0xf]
  %v63 = vld [vmem:[%s0 + $0xc0] sm:$0xf]
  %v64 = vld [vmem:[%s0 + $0xc4] sm:$0xf]
  %v65 = vld [vmem:[%s0 + $0xc8] sm:$0xf]
  %v66 = vld [vmem:[%s0 + $0xcc] sm:$0xf]
  %v67 = vld [vmem:[%s0 + $0xd0] sm:$0xf]
  %v68 = vld [vmem:[%s0 + $0xd4] sm:$0xf]
  %v69 = vld [vmem:[%s0 + $0xd8] sm:$0xf]
  %v70 = vld [vmem:[%s0 + $0xdc] sm:$0xf]
  %v71 = vld [vmem:[%s0 + $0xe0] sm:$0xf]
  %v72 = vld [vmem:[%s0 + $0xe4] sm:$0xf]
  %v73 = vld [vmem:[%s0 + $0xe8] sm:$0xf]
  %v74 = vld [vmem:[%s0 + $0xec] sm:$0xf]
  %v75 = vld [vmem:[%s0 + $0xf0] sm:$0xf]
  %v76 = vld [vmem:[%s0 + $0xf4] sm:$0xf]
  %v77 = vld [vmem:[%s0 + $0xf8] sm:$0xf]
  %v78 = vld [vmem:[%s0 + $0xfc] sm:$0xf]
  %v79 = vld [vmem:[%s1] sm:$0xf]
  %v80 = vld [vmem:[%s1 + $0x4] sm:$0xf]
  %v81 = vld [vmem:[%s1 + $0x8] sm:$0xf]
  %v82 = vld [vmem:[%s1 + $0xc] sm:$0xf]
  %v83 = vld [vmem:[%s1 + $0x10] sm:$0xf]
  %v84 = vld [vmem:[%s1 + $0x14] sm:$0xf]
  %v85 = vld [vmem:[%s1 + $0x18] sm:$0xf]
  %v86 = vld [vmem:[%s1 + $0x1c] sm:$0xf]
  %v87 = vld [vmem:[%s1 + $0x20] sm:$0xf]
  %v88 = vld [vmem:[%s2] sm:$0x1]
  %v90 = vlaneseq
  %v91 = vshrl.u32 %v90, 7
  %v92 = vsub.s32 0, %v91
  %v93 = vrot.slane %v88, %v92
  %v159 = vunpack.c.l.b16 %v15
  %v160 = vunpack.c.l.b16 %v16
  %v161 = vunpack.c.l.b16 %v17
  %v162 = vunpack.c.l.b16 %v18
  %v163 = vunpack.c.l.b16 %v19
  %v164 = vunpack.c.l.b16 %v20
  %v165 = vunpack.c.l.b16 %v21
  %v166 = vunpack.c.l.b16 %v22
  %v167 = vunpack.c.l.b16 %v23
  %v168 = vunpack.c.l.b16 %v24
  %v169 = vunpack.c.l.b16 %v25
  %v170 = vunpack.c.l.b16 %v26
  %v171 = vunpack.c.l.b16 %v27
  %v172 = vunpack.c.l.b16 %v28
  %v173 = vunpack.c.l.b16 %v29
  %v174 = vunpack.c.l.b16 %v30
  %v175 = vunpack.c.l.b16 %v31
  %v176 = vunpack.c.l.b16 %v32
  %v177 = vunpack.c.l.b16 %v33
  %v178 = vunpack.c.l.b16 %v34
  %v179 = vunpack.c.l.b16 %v35
  %v180 = vunpack.c.l.b16 %v36
  %v181 = vunpack.c.l.b16 %v37
  %v182 = vunpack.c.l.b16 %v38
  %v183 = vunpack.c.l.b16 %v39
  %v184 = vunpack.c.l.b16 %v40
  %v185 = vunpack.c.l.b16 %v41
  %v186 = vunpack.c.l.b16 %v42
  %v187 = vunpack.c.l.b16 %v43
  %v188 = vunpack.c.l.b16 %v44
  %v189 = vunpack.c.l.b16 %v45
  %v190 = vunpack.c.l.b16 %v46
  %v191 = vunpack.c.l.b16 %v47
  %v192 = vunpack.c.l.b16 %v48
  %v193 = vunpack.c.l.b16 %v49
  %v194 = vunpack.c.l.b16 %v50
  %v195 = vunpack.c.l.b16 %v51
  %v196 = vunpack.c.l.b16 %v52
  %v197 = vunpack.c.l.b16 %v53
  %v198 = vunpack.c.l.b16 %v54
  %v199 = vunpack.c.l.b16 %v55
  %v200 = vunpack.c.l.b16 %v56
  %v201 = vunpack.c.l.b16 %v57
  %v202 = vunpack.c.l.b16 %v58
  %v203 = vunpack.c.l.b16 %v59
  %v204 = vunpack.c.l.b16 %v60
  %v205 = vunpack.c.l.b16 %v61
  %v206 = vunpack.c.l.b16 %v62
  %v207 = vunpack.c.l.b16 %v63
  %v208 = vunpack.c.l.b16 %v64
  %v209 = vunpack.c.l.b16 %v65
  %v210 = vunpack.c.l.b16 %v66
  %v211 = vunpack.c.l.b16 %v67
  %v212 = vunpack.c.l.b16 %v68
  %v213 = vunpack.c.l.b16 %v69
  %v214 = vunpack.c.l.b16 %v70
  %v215 = vunpack.c.l.b16 %v71
  %v216 = vunpack.c.l.b16 %v72
  %v217 = vunpack.c.l.b16 %v73
  %v218 = vunpack.c.l.b16 %v74
  %v219 = vunpack.c.l.b16 %v75
  %v220 = vunpack.c.l.b16 %v76
  %v221 = vunpack.c.l.b16 %v77
  %v222 = vunpack.c.l.b16 %v78
  %v223 = vpack.c.b16 %v160, %v159
  %v224 = vpack.c.b16 %v162, %v161
  %v225 = vpack.c.b16 %v164, %v163
  %v226 = vpack.c.b16 %v166, %v165
  %v227 = vpack.c.b16 %v168, %v167
  %v228 = vpack.c.b16 %v170, %v169
  %v229 = vpack.c.b16 %v172, %v171
  %v230 = vpack.c.b16 %v174, %v173
  %v231 = vpack.c.b16 %v176, %v175
  %v232 = vpack.c.b16 %v178, %v177
  %v233 = vpack.c.b16 %v180, %v179
  %v234 = vpack.c.b16 %v182, %v181
  %v235 = vpack.c.b16 %v184, %v183
  %v236 = vpack.c.b16 %v186, %v185
  %v237 = vpack.c.b16 %v188, %v187
  %v238 = vpack.c.b16 %v190, %v189
  %v239 = vpack.c.b16 %v192, %v191
  %v240 = vpack.c.b16 %v194, %v193
  %v241 = vpack.c.b16 %v196, %v195
  %v242 = vpack.c.b16 %v198, %v197
  %v243 = vpack.c.b16 %v200, %v199
  %v244 = vpack.c.b16 %v202, %v201
  %v245 = vpack.c.b16 %v204, %v203
  %v246 = vpack.c.b16 %v206, %v205
  %v247 = vpack.c.b16 %v208, %v207
  %v248 = vpack.c.b16 %v210, %v209
  %v249 = vpack.c.b16 %v212, %v211
  %v250 = vpack.c.b16 %v214, %v213
  %v251 = vpack.c.b16 %v216, %v215
  %v252 = vpack.c.b16 %v218, %v217
  %v253 = vpack.c.b16 %v220, %v219
  %v254 = vpack.c.b16 %v222, %v221
  %v264 = vunpack.c.l.b16 %v79
  %v265 = vunpack.c.l.b16 %v80
  %v266 = vunpack.c.l.b16 %v81
  %v267 = vunpack.c.l.b16 %v82
  %v268 = vunpack.c.l.b16 %v83
  %v269 = vunpack.c.l.b16 %v84
  %v270 = vunpack.c.l.b16 %v85
  %v271 = vunpack.c.l.b16 %v86
  %v272 = vunpack.c.l.b16 %v87
  %v273 = vpack.c.b16 %v265, %v264
  %v274 = vpack.c.b16 %v267, %v266
  %v275 = vpack.c.b16 %v269, %v268
  %v276 = vpack.c.b16 %v271, %v270
  %v277 = vpack.c.b16 %v272, %v272
  %vm282 = vcmask 588800
  %v284 = vsel %vm282, %v223, 0
  %v287 = vsel %vm282, %v224, 0
  %v290 = vsel %vm282, %v225, 0
  %v293 = vsel %vm282, %v226, 0
  %v296 = vsel %vm282, %v227, 0
  %v299 = vsel %vm282, %v228, 0
  %v302 = vsel %vm282, %v229, 0
  %v305 = vsel %vm282, %v230, 0
  %v308 = vsel %vm282, %v231, 0
  %v311 = vsel %vm282, %v232, 0
  %v314 = vsel %vm282, %v233, 0
  %v317 = vsel %vm282, %v234, 0
  %v320 = vsel %vm282, %v235, 0
  %v323 = vsel %vm282, %v236, 0
  %v326 = vsel %vm282, %v237, 0
  %v329 = vsel %vm282, %v238, 0
  %v332 = vsel %vm282, %v239, 0
  %v335 = vsel %vm282, %v240, 0
  %v338 = vsel %vm282, %v241, 0
  %v341 = vsel %vm282, %v242, 0
  %v344 = vsel %vm282, %v243, 0
  %v347 = vsel %vm282, %v244, 0
  %v350 = vsel %vm282, %v245, 0
  %v353 = vsel %vm282, %v246, 0
  %v356 = vsel %vm282, %v247, 0
  %v359 = vsel %vm282, %v248, 0
  %v362 = vsel %vm282, %v249, 0
  %v365 = vsel %vm282, %v250, 0
  %v368 = vsel %vm282, %v251, 0
  %v371 = vsel %vm282, %v252, 0
  %v374 = vsel %vm282, %v253, 0
  %v377 = vsel %vm282, %v254, 0
  %vm379 = vcmask 1043456
  %v381 = vsel %vm379, %v277, 0
  %383 = vmatprep.subr.bf16.mxu0 0
  %384 = vmatpush1.bf16.msra.mxu0 0
  %385 = vmatprep.subr.bf16.mxu0 0
  %386 = vmatpush1.bf16.msra.mxu0 0
  %387 = vmatprep.subr.bf16.mxu0 0
  %388 = vmatpush1.bf16.msra.mxu0 0
  %389 = vmatprep.subr.bf16.mxu0 0
  %390 = vmatpush1.bf16.msra.mxu0 %v381
  %391 = vmatprep.subr.bf16.mxu0 0
  %392 = vmatpush1.bf16.msra.mxu0 %v276
  %393 = vmatprep.subr.bf16.mxu0 0
  %394 = vmatpush1.bf16.msra.mxu0 %v275
  %395 = vmatprep.subr.bf16.mxu0 0
  %396 = vmatpush1.bf16.msra.mxu0 %v274
  %397 = vmatprep.subr.bf16.mxu0 0
  %398 = vmatpush1.bf16.msra.mxu0 %v273
  %399 = vmatprep.subr.bf16.mxu0 0
  %400 = vmatpush2.bf16.msra.mxu0 0
  %401 = vmatprep.subr.bf16.mxu0 0
  %402 = vmatpush2.bf16.msra.mxu0 0
  %403 = vmatprep.subr.bf16.mxu0 0
  %404 = vmatpush2.bf16.msra.mxu0 0
  %405 = vmatprep.subr.bf16.mxu0 0
  %406 = vmatpush2.bf16.msra.mxu0 0
  %407 = vmatprep.subr.bf16.mxu0 0
  %408 = vmatpush2.bf16.msra.mxu0 0
  %409 = vmatprep.subr.bf16.mxu0 0
  %410 = vmatpush2.bf16.msra.mxu0 0
  %411 = vmatprep.subr.bf16.mxu0 0
  %412 = vmatpush2.bf16.msra.mxu0 0
  %413 = vmatprep.subr.bf16.mxu0 0
  %414 = vmatpush2.bf16.msra.mxu0 0
  %415 = vmatprep.mubr.bf16.mxu0 0
  %416 = vmatmul.mubr.bf16.gmra.mxu0 %v284
  %v417 = vpop.f32.mrf.mxu0
  %v418 = vadd.f32 %v93, %v417
  %v419 = vpop.f32.mrf.mxu0
  %v420 = vpop.f32.mrf.mxu0
  %v421 = vadd.f32 %v93, %v420
  %v422 = vpop.f32.mrf.mxu0
  %423 = vmatprep.mubr.bf16.mxu0 0
  %424 = vmatmul.mubr.bf16.gmra.mxu0 %v287
  %v425 = vpop.f32.mrf.mxu0
  %v426 = vadd.f32 %v93, %v425
  %v427 = vpop.f32.mrf.mxu0
  %v428 = vpop.f32.mrf.mxu0
  %v429 = vadd.f32 %v93, %v428
  %v430 = vpop.f32.mrf.mxu0
  %431 = vmatprep.mubr.bf16.mxu0 0
  %432 = vmatmul.mubr.bf16.gmra.mxu0 %v290
  %v433 = vpop.f32.mrf.mxu0
  %v434 = vadd.f32 %v93, %v433
  %v435 = vpop.f32.mrf.mxu0
  %v436 = vpop.f32.mrf.mxu0
  %v437 = vadd.f32 %v93, %v436
  %v438 = vpop.f32.mrf.mxu0
  %439 = vmatprep.mubr.bf16.mxu0 0
  %440 = vmatmul.mubr.bf16.gmra.mxu0 %v293
  %v441 = vpop.f32.mrf.mxu0
  %v442 = vadd.f32 %v93, %v441
  %v443 = vpop.f32.mrf.mxu0
  %v444 = vpop.f32.mrf.mxu0
  %v445 = vadd.f32 %v93, %v444
  %v446 = vpop.f32.mrf.mxu0
  %447 = vmatprep.mubr.bf16.mxu0 0
  %448 = vmatmul.mubr.bf16.gmra.mxu0 %v296
  %v449 = vpop.f32.mrf.mxu0
  %v450 = vadd.f32 %v93, %v449
  %v451 = vpop.f32.mrf.mxu0
  %v452 = vpop.f32.mrf.mxu0
  %v453 = vadd.f32 %v93, %v452
  %v454 = vpop.f32.mrf.mxu0
  %455 = vmatprep.mubr.bf16.mxu0 0
  %456 = vmatmul.mubr.bf16.gmra.mxu0 %v299
  %v457 = vpop.f32.mrf.mxu0
  %v458 = vadd.f32 %v93, %v457
  %v459 = vpop.f32.mrf.mxu0
  %v460 = vpop.f32.mrf.mxu0
  %v461 = vadd.f32 %v93, %v460
  %v462 = vpop.f32.mrf.mxu0
  %463 = vmatprep.mubr.bf16.mxu0 0
  %464 = vmatmul.mubr.bf16.gmra.mxu0 %v302
  %v465 = vpop.f32.mrf.mxu0
  %v466 = vadd.f32 %v93, %v465
  %v467 = vpop.f32.mrf.mxu0
  %v468 = vpop.f32.mrf.mxu0
  %v469 = vadd.f32 %v93, %v468
  %v470 = vpop.f32.mrf.mxu0
  %471 = vmatprep.mubr.bf16.mxu0 0
  %472 = vmatmul.mubr.bf16.gmra.mxu0 %v305
  %v473 = vpop.f32.mrf.mxu0
  %v474 = vadd.f32 %v93, %v473
  %v475 = vpop.f32.mrf.mxu0
  %v476 = vpop.f32.mrf.mxu0
  %v477 = vadd.f32 %v93, %v476
  %v478 = vpop.f32.mrf.mxu0
  %479 = vmatprep.mubr.bf16.mxu0 0
  %480 = vmatmul.mubr.bf16.gmra.mxu0 %v308
  %v481 = vpop.f32.mrf.mxu0
  %v482 = vadd.f32 %v93, %v481
  %v483 = vpop.f32.mrf.mxu0
  %v484 = vpop.f32.mrf.mxu0
  %v485 = vadd.f32 %v93, %v484
  %v486 = vpop.f32.mrf.mxu0
  %487 = vmatprep.mubr.bf16.mxu0 0
  %488 = vmatmul.mubr.bf16.gmra.mxu0 %v311
  %v489 = vpop.f32.mrf.mxu0
  %v490 = vadd.f32 %v93, %v489
  %v491 = vpop.f32.mrf.mxu0
  %v492 = vpop.f32.mrf.mxu0
  %v493 = vadd.f32 %v93, %v492
  %v494 = vpop.f32.mrf.mxu0
  %495 = vmatprep.mubr.bf16.mxu0 0
  %496 = vmatmul.mubr.bf16.gmra.mxu0 %v314
  %v497 = vpop.f32.mrf.mxu0
  %v498 = vadd.f32 %v93, %v497
  %v499 = vpop.f32.mrf.mxu0
  %v500 = vpop.f32.mrf.mxu0
  %v501 = vadd.f32 %v93, %v500
  %v502 = vpop.f32.mrf.mxu0
  %503 = vmatprep.mubr.bf16.mxu0 0
  %504 = vmatmul.mubr.bf16.gmra.mxu0 %v317
  %v505 = vpop.f32.mrf.mxu0
  %v506 = vadd.f32 %v93, %v505
  %v507 = vpop.f32.mrf.mxu0
  %v508 = vpop.f32.mrf.mxu0
  %v509 = vadd.f32 %v93, %v508
  %v510 = vpop.f32.mrf.mxu0
  %511 = vmatprep.mubr.bf16.mxu0 0
  %512 = vmatmul.mubr.bf16.gmra.mxu0 %v320
  %v513 = vpop.f32.mrf.mxu0
  %v514 = vadd.f32 %v93, %v513
  %v515 = vpop.f32.mrf.mxu0
  %v516 = vpop.f32.mrf.mxu0
  %v517 = vadd.f32 %v93, %v516
  %v518 = vpop.f32.mrf.mxu0
  %519 = vmatprep.mubr.bf16.mxu0 0
  %520 = vmatmul.mubr.bf16.gmra.mxu0 %v323
  %v521 = vpop.f32.mrf.mxu0
  %v522 = vadd.f32 %v93, %v521
  %v523 = vpop.f32.mrf.mxu0
  %v524 = vpop.f32.mrf.mxu0
  %v525 = vadd.f32 %v93, %v524
  %v526 = vpop.f32.mrf.mxu0
  %527 = vmatprep.mubr.bf16.mxu0 0
  %528 = vmatmul.mubr.bf16.gmra.mxu0 %v326
  %v529 = vpop.f32.mrf.mxu0
  %v530 = vadd.f32 %v93, %v529
  %v531 = vpop.f32.mrf.mxu0
  %v532 = vpop.f32.mrf.mxu0
  %v533 = vadd.f32 %v93, %v532
  %v534 = vpop.f32.mrf.mxu0
  %535 = vmatprep.mubr.bf16.mxu0 0
  %536 = vmatmul.mubr.bf16.gmra.mxu0 %v329
  %v537 = vpop.f32.mrf.mxu0
  %v538 = vadd.f32 %v93, %v537
  %v539 = vpop.f32.mrf.mxu0
  %v540 = vpop.f32.mrf.mxu0
  %v541 = vadd.f32 %v93, %v540
  %v542 = vpop.f32.mrf.mxu0
  %543 = vmatprep.mubr.bf16.mxu0 0
  %544 = vmatmul.mubr.bf16.gmra.mxu0 %v332
  %v545 = vpop.f32.mrf.mxu0
  %v546 = vadd.f32 %v93, %v545
  %v547 = vpop.f32.mrf.mxu0
  %v548 = vpop.f32.mrf.mxu0
  %v549 = vadd.f32 %v93, %v548
  %v550 = vpop.f32.mrf.mxu0
  %551 = vmatprep.mubr.bf16.mxu0 0
  %552 = vmatmul.mubr.bf16.gmra.mxu0 %v335
  %v553 = vpop.f32.mrf.mxu0
  %v554 = vadd.f32 %v93, %v553
  %v555 = vpop.f32.mrf.mxu0
  %v556 = vpop.f32.mrf.mxu0
  %v557 = vadd.f32 %v93, %v556
  %v558 = vpop.f32.mrf.mxu0
  %559 = vmatprep.mubr.bf16.mxu0 0
  %560 = vmatmul.mubr.bf16.gmra.mxu0 %v338
  %v561 = vpop.f32.mrf.mxu0
  %v562 = vadd.f32 %v93, %v561
  %v563 = vpop.f32.mrf.mxu0
  %v564 = vpop.f32.mrf.mxu0
  %v565 = vadd.f32 %v93, %v564
  %v566 = vpop.f32.mrf.mxu0
  %567 = vmatprep.mubr.bf16.mxu0 0
  %568 = vmatmul.mubr.bf16.gmra.mxu0 %v341
  %v569 = vpop.f32.mrf.mxu0
  %v570 = vadd.f32 %v93, %v569
  %v571 = vpop.f32.mrf.mxu0
  %v572 = vpop.f32.mrf.mxu0
  %v573 = vadd.f32 %v93, %v572
  %v574 = vpop.f32.mrf.mxu0
  %575 = vmatprep.mubr.bf16.mxu0 0
  %576 = vmatmul.mubr.bf16.gmra.mxu0 %v344
  %v577 = vpop.f32.mrf.mxu0
  %v578 = vadd.f32 %v93, %v577
  %v579 = vpop.f32.mrf.mxu0
  %v580 = vpop.f32.mrf.mxu0
  %v581 = vadd.f32 %v93, %v580
  %v582 = vpop.f32.mrf.mxu0
  %583 = vmatprep.mubr.bf16.mxu0 0
  %584 = vmatmul.mubr.bf16.gmra.mxu0 %v347
  %v585 = vpop.f32.mrf.mxu0
  %v586 = vadd.f32 %v93, %v585
  %v587 = vpop.f32.mrf.mxu0
  %v588 = vpop.f32.mrf.mxu0
  %v589 = vadd.f32 %v93, %v588
  %v590 = vpop.f32.mrf.mxu0
  %591 = vmatprep.mubr.bf16.mxu0 0
  %592 = vmatmul.mubr.bf16.gmra.mxu0 %v350
  %v593 = vpop.f32.mrf.mxu0
  %v594 = vadd.f32 %v93, %v593
  %v595 = vpop.f32.mrf.mxu0
  %v596 = vpop.f32.mrf.mxu0
  %v597 = vadd.f32 %v93, %v596
  %v598 = vpop.f32.mrf.mxu0
  %599 = vmatprep.mubr.bf16.mxu0 0
  %600 = vmatmul.mubr.bf16.gmra.mxu0 %v353
  %v601 = vpop.f32.mrf.mxu0
  %v602 = vadd.f32 %v93, %v601
  %v603 = vpop.f32.mrf.mxu0
  %v604 = vpop.f32.mrf.mxu0
  %v605 = vadd.f32 %v93, %v604
  %v606 = vpop.f32.mrf.mxu0
  %607 = vmatprep.mubr.bf16.mxu0 0
  %608 = vmatmul.mubr.bf16.gmra.mxu0 %v356
  %v609 = vpop.f32.mrf.mxu0
  %v610 = vadd.f32 %v93, %v609
  %v611 = vpop.f32.mrf.mxu0
  %v612 = vpop.f32.mrf.mxu0
  %v613 = vadd.f32 %v93, %v612
  %v614 = vpop.f32.mrf.mxu0
  %615 = vmatprep.mubr.bf16.mxu0 0
  %616 = vmatmul.mubr.bf16.gmra.mxu0 %v359
  %v617 = vpop.f32.mrf.mxu0
  %v618 = vadd.f32 %v93, %v617
  %v619 = vpop.f32.mrf.mxu0
  %v620 = vpop.f32.mrf.mxu0
  %v621 = vadd.f32 %v93, %v620
  %v622 = vpop.f32.mrf.mxu0
  %623 = vmatprep.mubr.bf16.mxu0 0
  %624 = vmatmul.mubr.bf16.gmra.mxu0 %v362
  %v625 = vpop.f32.mrf.mxu0
  %v626 = vadd.f32 %v93, %v625
  %v627 = vpop.f32.mrf.mxu0
  %v628 = vpop.f32.mrf.mxu0
  %v629 = vadd.f32 %v93, %v628
  %v630 = vpop.f32.mrf.mxu0
  %631 = vmatprep.mubr.bf16.mxu0 0
  %632 = vmatmul.mubr.bf16.gmra.mxu0 %v365
  %v633 = vpop.f32.mrf.mxu0
  %v634 = vadd.f32 %v93, %v633
  %v635 = vpop.f32.mrf.mxu0
  %v636 = vpop.f32.mrf.mxu0
  %v637 = vadd.f32 %v93, %v636
  %v638 = vpop.f32.mrf.mxu0
  %639 = vmatprep.mubr.bf16.mxu0 0
  %640 = vmatmul.mubr.bf16.gmra.mxu0 %v368
  %v641 = vpop.f32.mrf.mxu0
  %v642 = vadd.f32 %v93, %v641
  %v643 = vpop.f32.mrf.mxu0
  %v644 = vpop.f32.mrf.mxu0
  %v645 = vadd.f32 %v93, %v644
  %v646 = vpop.f32.mrf.mxu0
  %647 = vmatprep.mubr.bf16.mxu0 0
  %648 = vmatmul.mubr.bf16.gmra.mxu0 %v371
  %v649 = vpop.f32.mrf.mxu0
  %v650 = vadd.f32 %v93, %v649
  %v651 = vpop.f32.mrf.mxu0
  %v652 = vpop.f32.mrf.mxu0
  %v653 = vadd.f32 %v93, %v652
  %v654 = vpop.f32.mrf.mxu0
  %655 = vmatprep.mubr.bf16.mxu0 0
  %656 = vmatmul.mubr.bf16.gmra.mxu0 %v374
  %v657 = vpop.f32.mrf.mxu0
  %v658 = vadd.f32 %v93, %v657
  %v659 = vpop.f32.mrf.mxu0
  %v660 = vpop.f32.mrf.mxu0
  %v661 = vadd.f32 %v93, %v660
  %v662 = vpop.f32.mrf.mxu0
  %663 = vmatprep.mubr.bf16.mxu0 0
  %664 = vmatmul.mubr.bf16.gmra.mxu0 %v377
  %v665 = vpop.f32.mrf.mxu0
  %v666 = vadd.f32 %v93, %v665
  %v667 = vpop.f32.mrf.mxu0
  %v668 = vpop.f32.mrf.mxu0
  %v669 = vadd.f32 %v93, %v668
  %v670 = vpop.f32.mrf.mxu0
  %671 = vdwg.mxu0
  %v672 = vmax.f32 %v418, 0.0
  %v673 = vmax.f32 %v421, 0.0
  %v674 = vmax.f32 %v426, 0.0
  %v675 = vmax.f32 %v429, 0.0
  %v676 = vmax.f32 %v434, 0.0
  %v677 = vmax.f32 %v437, 0.0
  %v678 = vmax.f32 %v442, 0.0
  %v679 = vmax.f32 %v445, 0.0
  %v680 = vmax.f32 %v450, 0.0
  %v681 = vmax.f32 %v453, 0.0
  %v682 = vmax.f32 %v458, 0.0
  %v683 = vmax.f32 %v461, 0.0
  %v684 = vmax.f32 %v466, 0.0
  %v685 = vmax.f32 %v469, 0.0
  %v686 = vmax.f32 %v474, 0.0
  %v687 = vmax.f32 %v477, 0.0
  %v688 = vmax.f32 %v482, 0.0
  %v689 = vmax.f32 %v485, 0.0
  %v690 = vmax.f32 %v490, 0.0
  %v691 = vmax.f32 %v493, 0.0
  %v692 = vmax.f32 %v498, 0.0
  %v693 = vmax.f32 %v501, 0.0
  %v694 = vmax.f32 %v506, 0.0
  %v695 = vmax.f32 %v509, 0.0
  %v696 = vmax.f32 %v514, 0.0
  %v697 = vmax.f32 %v517, 0.0
  %v698 = vmax.f32 %v522, 0.0
  %v699 = vmax.f32 %v525, 0.0
  %v700 = vmax.f32 %v530, 0.0
  %v701 = vmax.f32 %v533, 0.0
  %v702 = vmax.f32 %v538, 0.0
  %v703 = vmax.f32 %v541, 0.0
  %v704 = vmax.f32 %v546, 0.0
  %v705 = vmax.f32 %v549, 0.0
  %v706 = vmax.f32 %v554, 0.0
  %v707 = vmax.f32 %v557, 0.0
  %v708 = vmax.f32 %v562, 0.0
  %v709 = vmax.f32 %v565, 0.0
  %v710 = vmax.f32 %v570, 0.0
  %v711 = vmax.f32 %v573, 0.0
  %v712 = vmax.f32 %v578, 0.0
  %v713 = vmax.f32 %v581, 0.0
  %v714 = vmax.f32 %v586, 0.0
  %v715 = vmax.f32 %v589, 0.0
  %v716 = vmax.f32 %v594, 0.0
  %v717 = vmax.f32 %v597, 0.0
  %v718 = vmax.f32 %v602, 0.0
  %v719 = vmax.f32 %v605, 0.0
  %v720 = vmax.f32 %v610, 0.0
  %v721 = vmax.f32 %v613, 0.0
  %v722 = vmax.f32 %v618, 0.0
  %v723 = vmax.f32 %v621, 0.0
  %v724 = vmax.f32 %v626, 0.0
  %v725 = vmax.f32 %v629, 0.0
  %v726 = vmax.f32 %v634, 0.0
  %v727 = vmax.f32 %v637, 0.0
  %v728 = vmax.f32 %v642, 0.0
  %v729 = vmax.f32 %v645, 0.0
  %v730 = vmax.f32 %v650, 0.0
  %v731 = vmax.f32 %v653, 0.0
  %v732 = vmax.f32 %v658, 0.0
  %v733 = vmax.f32 %v661, 0.0
  %v734 = vmax.f32 %v666, 0.0
  %v735 = vmax.f32 %v669, 0.0
  %v736 = vpack.c.bf16 %v673, %v672
  %v737 = vpack.c.bf16 %v675, %v674
  %v738 = vpack.c.bf16 %v677, %v676
  %v739 = vpack.c.bf16 %v679, %v678
  %v740 = vpack.c.bf16 %v681, %v680
  %v741 = vpack.c.bf16 %v683, %v682
  %v742 = vpack.c.bf16 %v685, %v684
  %v743 = vpack.c.bf16 %v687, %v686
  %v744 = vpack.c.bf16 %v689, %v688
  %v745 = vpack.c.bf16 %v691, %v690
  %v746 = vpack.c.bf16 %v693, %v692
  %v747 = vpack.c.bf16 %v695, %v694
  %v748 = vpack.c.bf16 %v697, %v696
  %v749 = vpack.c.bf16 %v699, %v698
  %v750 = vpack.c.bf16 %v701, %v700
  %v751 = vpack.c.bf16 %v703, %v702
  %v752 = vpack.c.bf16 %v705, %v704
  %v753 = vpack.c.bf16 %v707, %v706
  %v754 = vpack.c.bf16 %v709, %v708
  %v755 = vpack.c.bf16 %v711, %v710
  %v756 = vpack.c.bf16 %v713, %v712
  %v757 = vpack.c.bf16 %v715, %v714
  %v758 = vpack.c.bf16 %v717, %v716
  %v759 = vpack.c.bf16 %v719, %v718
  %v760 = vpack.c.bf16 %v721, %v720
  %v761 = vpack.c.bf16 %v723, %v722
  %v762 = vpack.c.bf16 %v725, %v724
  %v763 = vpack.c.bf16 %v727, %v726
  %v764 = vpack.c.bf16 %v729, %v728
  %v765 = vpack.c.bf16 %v731, %v730
  %v766 = vpack.c.bf16 %v733, %v732
  %v767 = vpack.c.bf16 %v735, %v734
  %v800 = vunpack.c.l.b16 %v736
  %v801 = vunpack.c.h.b16 %v736
  %v802 = vunpack.c.l.b16 %v737
  %v803 = vunpack.c.h.b16 %v737
  %v804 = vunpack.c.l.b16 %v738
  %v805 = vunpack.c.h.b16 %v738
  %v806 = vunpack.c.l.b16 %v739
  %v807 = vunpack.c.h.b16 %v739
  %v808 = vunpack.c.l.b16 %v740
  %v809 = vunpack.c.h.b16 %v740
  %v810 = vunpack.c.l.b16 %v741
  %v811 = vunpack.c.h.b16 %v741
  %v812 = vunpack.c.l.b16 %v742
  %v813 = vunpack.c.h.b16 %v742
  %v814 = vunpack.c.l.b16 %v743
  %v815 = vunpack.c.h.b16 %v743
  %v816 = vunpack.c.l.b16 %v744
  %v817 = vunpack.c.h.b16 %v744
  %v818 = vunpack.c.l.b16 %v745
  %v819 = vunpack.c.h.b16 %v745
  %v820 = vunpack.c.l.b16 %v746
  %v821 = vunpack.c.h.b16 %v746
  %v822 = vunpack.c.l.b16 %v747
  %v823 = vunpack.c.h.b16 %v747
  %v824 = vunpack.c.l.b16 %v748
  %v825 = vunpack.c.h.b16 %v748
  %v826 = vunpack.c.l.b16 %v749
  %v827 = vunpack.c.h.b16 %v749
  %v828 = vunpack.c.l.b16 %v750
  %v829 = vunpack.c.h.b16 %v750
  %v830 = vunpack.c.l.b16 %v751
  %v831 = vunpack.c.h.b16 %v751
  %v832 = vunpack.c.l.b16 %v752
  %v833 = vunpack.c.h.b16 %v752
  %v834 = vunpack.c.l.b16 %v753
  %v835 = vunpack.c.h.b16 %v753
  %v836 = vunpack.c.l.b16 %v754
  %v837 = vunpack.c.h.b16 %v754
  %v838 = vunpack.c.l.b16 %v755
  %v839 = vunpack.c.h.b16 %v755
  %v840 = vunpack.c.l.b16 %v756
  %v841 = vunpack.c.h.b16 %v756
  %v842 = vunpack.c.l.b16 %v757
  %v843 = vunpack.c.h.b16 %v757
  %v844 = vunpack.c.l.b16 %v758
  %v845 = vunpack.c.h.b16 %v758
  %v846 = vunpack.c.l.b16 %v759
  %v847 = vunpack.c.h.b16 %v759
  %v848 = vunpack.c.l.b16 %v760
  %v849 = vunpack.c.h.b16 %v760
  %v850 = vunpack.c.l.b16 %v761
  %v851 = vunpack.c.h.b16 %v761
  %v852 = vunpack.c.l.b16 %v762
  %v853 = vunpack.c.h.b16 %v762
  %v854 = vunpack.c.l.b16 %v763
  %v855 = vunpack.c.h.b16 %v763
  %v856 = vunpack.c.l.b16 %v764
  %v857 = vunpack.c.h.b16 %v764
  %v858 = vunpack.c.l.b16 %v765
  %v859 = vunpack.c.h.b16 %v765
  %v860 = vunpack.c.l.b16 %v766
  %v861 = vunpack.c.h.b16 %v766
  %v862 = vunpack.c.l.b16 %v767
  %v863 = vunpack.c.h.b16 %v767
  %v864 = vpack.c.b16 %v800, %v800
  %v865 = vpack.c.b16 %v801, %v801
  %v866 = vpack.c.b16 %v802, %v802
  %v867 = vpack.c.b16 %v803, %v803
  %v868 = vpack.c.b16 %v804, %v804
  %v869 = vpack.c.b16 %v805, %v805
  %v870 = vpack.c.b16 %v806, %v806
  %v871 = vpack.c.b16 %v807, %v807
  %v872 = vpack.c.b16 %v808, %v808
  %v873 = vpack.c.b16 %v809, %v809
  %v874 = vpack.c.b16 %v810, %v810
  %v875 = vpack.c.b16 %v811, %v811
  %v876 = vpack.c.b16 %v812, %v812
  %v877 = vpack.c.b16 %v813, %v813
  %v878 = vpack.c.b16 %v814, %v814
  %v879 = vpack.c.b16 %v815, %v815
  %v880 = vpack.c.b16 %v816, %v816
  %v881 = vpack.c.b16 %v817, %v817
  %v882 = vpack.c.b16 %v818, %v818
  %v883 = vpack.c.b16 %v819, %v819
  %v884 = vpack.c.b16 %v820, %v820
  %v885 = vpack.c.b16 %v821, %v821
  %v886 = vpack.c.b16 %v822, %v822
  %v887 = vpack.c.b16 %v823, %v823
  %v888 = vpack.c.b16 %v824, %v824
  %v889 = vpack.c.b16 %v825, %v825
  %v890 = vpack.c.b16 %v826, %v826
  %v891 = vpack.c.b16 %v827, %v827
  %v892 = vpack.c.b16 %v828, %v828
  %v893 = vpack.c.b16 %v829, %v829
  %v894 = vpack.c.b16 %v830, %v830
  %v895 = vpack.c.b16 %v831, %v831
  %v896 = vpack.c.b16 %v832, %v832
  %v897 = vpack.c.b16 %v833, %v833
  %v898 = vpack.c.b16 %v834, %v834
  %v899 = vpack.c.b16 %v835, %v835
  %v900 = vpack.c.b16 %v836, %v836
  %v901 = vpack.c.b16 %v837, %v837
  %v902 = vpack.c.b16 %v838, %v838
  %v903 = vpack.c.b16 %v839, %v839
  %v904 = vpack.c.b16 %v840, %v840
  %v905 = vpack.c.b16 %v841, %v841
  %v906 = vpack.c.b16 %v842, %v842
  %v907 = vpack.c.b16 %v843, %v843
  %v908 = vpack.c.b16 %v844, %v844
  %v909 = vpack.c.b16 %v845, %v845
  %v910 = vpack.c.b16 %v846, %v846
  %v911 = vpack.c.b16 %v847, %v847
  %v912 = vpack.c.b16 %v848, %v848
  %v913 = vpack.c.b16 %v849, %v849
  %v914 = vpack.c.b16 %v850, %v850
  %v915 = vpack.c.b16 %v851, %v851
  %v916 = vpack.c.b16 %v852, %v852
  %v917 = vpack.c.b16 %v853, %v853
  %v918 = vpack.c.b16 %v854, %v854
  %v919 = vpack.c.b16 %v855, %v855
  %v920 = vpack.c.b16 %v856, %v856
  %v921 = vpack.c.b16 %v857, %v857
  %v922 = vpack.c.b16 %v858, %v858
  %v923 = vpack.c.b16 %v859, %v859
  %v924 = vpack.c.b16 %v860, %v860
  %v925 = vpack.c.b16 %v861, %v861
  %v926 = vpack.c.b16 %v862, %v862
  %v927 = vpack.c.b16 %v863, %v863
  %992 = vst [vmem:[%s3] sm:$0xf] %v864
  %993 = vst [vmem:[%s3 + $0x4] sm:$0xf] %v865
  %994 = vst [vmem:[%s3 + $0x8] sm:$0xf] %v866
  %995 = vst [vmem:[%s3 + $0xc] sm:$0xf] %v867
  %996 = vst [vmem:[%s3 + $0x10] sm:$0xf] %v868
  %997 = vst [vmem:[%s3 + $0x14] sm:$0xf] %v869
  %998 = vst [vmem:[%s3 + $0x18] sm:$0xf] %v870
  %999 = vst [vmem:[%s3 + $0x1c] sm:$0xf] %v871
  %1000 = vst [vmem:[%s3 + $0x20] sm:$0xf] %v872
  %1001 = vst [vmem:[%s3 + $0x24] sm:$0xf] %v873
  %1002 = vst [vmem:[%s3 + $0x28] sm:$0xf] %v874
  %1003 = vst [vmem:[%s3 + $0x2c] sm:$0xf] %v875
  %1004 = vst [vmem:[%s3 + $0x30] sm:$0xf] %v876
  %1005 = vst [vmem:[%s3 + $0x34] sm:$0xf] %v877
  %1006 = vst [vmem:[%s3 + $0x38] sm:$0xf] %v878
  %1007 = vst [vmem:[%s3 + $0x3c] sm:$0xf] %v879
  %1008 = vst [vmem:[%s3 + $0x40] sm:$0xf] %v880
  %1009 = vst [vmem:[%s3 + $0x44] sm:$0xf] %v881
  %1010 = vst [vmem:[%s3 + $0x48] sm:$0xf] %v882
  %1011 = vst [vmem:[%s3 + $0x4c] sm:$0xf] %v883
  %1012 = vst [vmem:[%s3 + $0x50] sm:$0xf] %v884
  %1013 = vst [vmem:[%s3 + $0x54] sm:$0xf] %v885
  %1014 = vst [vmem:[%s3 + $0x58] sm:$0xf] %v886
  %1015 = vst [vmem:[%s3 + $0x5c] sm:$0xf] %v887
  %1016 = vst [vmem:[%s3 + $0x60] sm:$0xf] %v888
  %1017 = vst [vmem:[%s3 + $0x64] sm:$0xf] %v889
  %1018 = vst [vmem:[%s3 + $0x68] sm:$0xf] %v890
  %1019 = vst [vmem:[%s3 + $0x6c] sm:$0xf] %v891
  %1020 = vst [vmem:[%s3 + $0x70] sm:$0xf] %v892
  %1021 = vst [vmem:[%s3 + $0x74] sm:$0xf] %v893
  %1022 = vst [vmem:[%s3 + $0x78] sm:$0xf] %v894
  %1023 = vst [vmem:[%s3 + $0x7c] sm:$0xf] %v895
  %1024 = vst [vmem:[%s3 + $0x80] sm:$0xf] %v896
  %1025 = vst [vmem:[%s3 + $0x84] sm:$0xf] %v897
  %1026 = vst [vmem:[%s3 + $0x88] sm:$0xf] %v898
  %1027 = vst [vmem:[%s3 + $0x8c] sm:$0xf] %v899
  %1028 = vst [vmem:[%s3 + $0x90] sm:$0xf] %v900
  %1029 = vst [vmem:[%s3 + $0x94] sm:$0xf] %v901
  %1030 = vst [vmem:[%s3 + $0x98] sm:$0xf] %v902
  %1031 = vst [vmem:[%s3 + $0x9c] sm:$0xf] %v903
  %1032 = vst [vmem:[%s3 + $0xa0] sm:$0xf] %v904
  %1033 = vst [vmem:[%s3 + $0xa4] sm:$0xf] %v905
  %1034 = vst [vmem:[%s3 + $0xa8] sm:$0xf] %v906
  %1035 = vst [vmem:[%s3 + $0xac] sm:$0xf] %v907
  %1036 = vst [vmem:[%s3 + $0xb0] sm:$0xf] %v908
  %1037 = vst [vmem:[%s3 + $0xb4] sm:$0xf] %v909
  %1038 = vst [vmem:[%s3 + $0xb8] sm:$0xf] %v910
  %1039 = vst [vmem:[%s3 + $0xbc] sm:$0xf] %v911
  %1040 = vst [vmem:[%s3 + $0xc0] sm:$0xf] %v912
  %1041 = vst [vmem:[%s3 + $0xc4] sm:$0xf] %v913
  %1042 = vst [vmem:[%s3 + $0xc8] sm:$0xf] %v914
  %1043 = vst [vmem:[%s3 + $0xcc] sm:$0xf] %v915
  %1044 = vst [vmem:[%s3 + $0xd0] sm:$0xf] %v916
  %1045 = vst [vmem:[%s3 + $0xd4] sm:$0xf] %v917
  %1046 = vst [vmem:[%s3 + $0xd8] sm:$0xf] %v918
  %1047 = vst [vmem:[%s3 + $0xdc] sm:$0xf] %v919
  %1048 = vst [vmem:[%s3 + $0xe0] sm:$0xf] %v920
  %1049 = vst [vmem:[%s3 + $0xe4] sm:$0xf] %v921
  %1050 = vst [vmem:[%s3 + $0xe8] sm:$0xf] %v922
  %1051 = vst [vmem:[%s3 + $0xec] sm:$0xf] %v923
  %1052 = vst [vmem:[%s3 + $0xf0] sm:$0xf] %v924
  %1053 = vst [vmem:[%s3 + $0xf4] sm:$0xf] %v925
  %1054 = vst [vmem:[%s3 + $0xf8] sm:$0xf] %v926
  %1055 = vst [vmem:[%s3 + $0xfc] sm:$0xf] %v927
  // Predicated region
  $region14: #{faster_rcnn_forward.17} parent=0 // pred_check
    _
  $region15: #{faster_rcnn_forward.17} parent=0 // pred_check_branch
    %1057 = sbr.rel (0) target = $region17
  $region16: #{faster_rcnn_forward.17} parent=0 // pred_region
    _
  $region17: #{faster_rcnn_forward.17} parent=0 // pred_fallthru
    _
  // Predicated region
  $region18: #{faster_rcnn_forward.17} parent=0 // pred_check
    _
  $region19: #{faster_rcnn_forward.17} parent=0 // pred_check_branch
    %1059 = sbr.rel (0) target = $region21
  $region20: #{faster_rcnn_forward.17} parent=0 // pred_region
    _
  $region21: #{faster_rcnn_forward.17} parent=0 // pred_fallthru
    _

// kernel: faster_rcnn_forward.18
$region0: #{faster_rcnn_forward.18}
  #allocation0 [shape = 'u32[]', space=smem, size = 0x4, offset = 0x4, fixed_abs, tag = 'smem constant byte address 0x4 - core index']
  #allocation1 [shape = 'u32[144,128]{1,0:T(1,128)}', space=vmem, size = 0x12000, scoped, tag = 'internal scratch']
  %s0 = inlined_call_operand.vmem [shape: bf16[512,108], index: 0, kind: input, shape index: {}]
  %s1 = inlined_call_operand.vmem [shape: bf16[108,128], index: 1, kind: input, shape index: {}]
  %s2 = inlined_call_operand.vmem [shape: f32[1,128], index: 2, kind: input, shape index: {}]
  %s3 = inlined_call_operand.vmem [shape: bf16[512,128], index: 3, kind: output, shape index: {}]
  %s4 = sld [smem:[#allocation0]]
  $region22: #{faster_rcnn_forward.18} parent=0
    _
  %s6 = ssub.s32 1, %s4
  %s7 = scalar_select 0, %s6, %s4
  // Predicated region
  $region2: #{faster_rcnn_forward.18} parent=0 // pred_check
    _
  $region3: #{faster_rcnn_forward.18} parent=0 // pred_check_branch
    %9 = sbr.rel (0) target = $region5
  $region4: #{faster_rcnn_forward.18} parent=0 // pred_region
    _
  $region5: #{faster_rcnn_forward.18} parent=0 // pred_fallthru
    _
  // Predicated region
  $region6: #{faster_rcnn_forward.18} parent=0 // pred_check
    _
  $region7: #{faster_rcnn_forward.18} parent=0 // pred_check_branch
    %11 = sbr.rel (0) target = $region9
  $region8: #{faster_rcnn_forward.18} parent=0 // pred_region
    _
  $region9: #{faster_rcnn_forward.18} parent=0 // pred_fallthru
    _
  // Predicated region
  $region10: #{faster_rcnn_forward.18} parent=0 // pred_check
    _
  $region11: #{faster_rcnn_forward.18} parent=0 // pred_check_branch
    %13 = sbr.rel (0) target = $region13
  $region12: #{faster_rcnn_forward.18} parent=0 // pred_region
    _
  $region13: #{faster_rcnn_forward.18} parent=0 // pred_fallthru
    _
  %v15 = vld [vmem:[%s0] sm:$0xf]
  %v16 = vld [vmem:[%s0 + $0x4] sm:$0xf]
  %v17 = vld [vmem:[%s0 + $0x8] sm:$0xf]
  %v18 = vld [vmem:[%s0 + $0xc] sm:$0xf]
  %v19 = vld [vmem:[%s0 + $0x10] sm:$0xf]
  %v20 = vld [vmem:[%s0 + $0x14] sm:$0xf]
  %v21 = vld [vmem:[%s0 + $0x18] sm:$0xf]
  %v22 = vld [vmem:[%s0 + $0x1c] sm:$0xf]
  %v23 = vld [vmem:[%s0 + $0x20] sm:$0xf]
  %v24 = vld [vmem:[%s0 + $0x24] sm:$0xf]
  %v25 = vld [vmem:[%s0 + $0x28] sm:$0xf]
  %v26 = vld [vmem:[%s0 + $0x2c] sm:$0xf]
  %v27 = vld [vmem:[%s0 + $0x30] sm:$0xf]
  %v28 = vld [vmem:[%s0 + $0x34] sm:$0xf]
  %v29 = vld [vmem:[%s0 + $0x38] sm:$0xf]
  %v30 = vld [vmem:[%s0 + $0x3c] sm:$0xf]
  %v31 = vld [vmem:[%s0 + $0x40] sm:$0xf]
  %v32 = vld [vmem:[%s0 + $0x44] sm:$0xf]
  %v33 = vld [vmem:[%s0 + $0x48] sm:$0xf]
  %v34 = vld [vmem:[%s0 + $0x4c] sm:$0xf]
  %v35 = vld [vmem:[%s0 + $0x50] sm:$0xf]
  %v36 = vld [vmem:[%s0 + $0x54] sm:$0xf]
  %v37 = vld [vmem:[%s0 + $0x58] sm:$0xf]
  %v38 = vld [vmem:[%s0 + $0x5c] sm:$0xf]
  %v39 = vld [vmem:[%s0 + $0x60] sm:$0xf]
  %v40 = vld [vmem:[%s0 + $0x64] sm:$0xf]
  %v41 = vld [vmem:[%s0 + $0x68] sm:$0xf]
  %v42 = vld [vmem:[%s0 + $0x6c] sm:$0xf]
  %v43 = vld [vmem:[%s0 + $0x70] sm:$0xf]
  %v44 = vld [vmem:[%s0 + $0x74] sm:$0xf]
  %v45 = vld [vmem:[%s0 + $0x78] sm:$0xf]
  %v46 = vld [vmem:[%s0 + $0x7c] sm:$0xf]
  %v47 = vld [vmem:[%s0 + $0x80] sm:$0xf]
  %v48 = vld [vmem:[%s0 + $0x84] sm:$0xf]
  %v49 = vld [vmem:[%s0 + $0x88] sm:$0xf]
  %v50 = vld [vmem:[%s0 + $0x8c] sm:$0xf]
  %v51 = vld [vmem:[%s0 + $0x90] sm:$0xf]
  %v52 = vld [vmem:[%s0 + $0x94] sm:$0xf]
  %v53 = vld [vmem:[%s0 + $0x98] sm:$0xf]
  %v54 = vld [vmem:[%s0 + $0x9c] sm:$0xf]
  %v55 = vld [vmem:[%s0 + $0xa0] sm:$0xf]
  %v56 = vld [vmem:[%s0 + $0xa4] sm:$0xf]
  %v57 = vld [vmem:[%s0 + $0xa8] sm:$0xf]
  %v58 = vld [vmem:[%s0 + $0xac] sm:$0xf]
  %v59 = vld [vmem:[%s0 + $0xb0] sm:$0xf]
  %v60 = vld [vmem:[%s0 + $0xb4] sm:$0xf]
  %v61 = vld [vmem:[%s0 + $0xb8] sm:$0xf]
  %v62 = vld [vmem:[%s0 + $0xbc] sm:$0xf]
  %v63 = vld [vmem:[%s0 + $0xc0] sm:$0xf]
  %v64 = vld [vmem:[%s0 + $0xc4] sm:$0xf]
  %v65 = vld [vmem:[%s0 + $0xc8] sm:$0xf]
  %v66 = vld [vmem:[%s0 + $0xcc] sm:$0xf]
  %v67 = vld [vmem:[%s0 + $0xd0] sm:$0xf]
  %v68 = vld [vmem:[%s0 + $0xd4] sm:$0xf]
  %v69 = vld [vmem:[%s0 + $0xd8] sm:$0xf]
  %v70 = vld [vmem:[%s0 + $0xdc] sm:$0xf]
  %v71 = vld [vmem:[%s0 + $0xe0] sm:$0xf]
  %v72 = vld [vmem:[%s0 + $0xe4] sm:$0xf]
  %v73 = vld [vmem:[%s0 + $0xe8] sm:$0xf]
  %v74 = vld [vmem:[%s0 + $0xec] sm:$0xf]
  %v75 = vld [vmem:[%s0 + $0xf0] sm:$0xf]
  %v76 = vld [vmem:[%s0 + $0xf4] sm:$0xf]
  %v77 = vld [vmem:[%s0 + $0xf8] sm:$0xf]
  %v78 = vld [vmem:[%s0 + $0xfc] sm:$0xf]
  %v79 = vld [vmem:[%s1] sm:$0xf]
  %v80 = vld [vmem:[%s1 + $0x4] sm:$0xf]
  %v81 = vld [vmem:[%s1 + $0x8] sm:$0xf]
  %v82 = vld [vmem:[%s1 + $0xc] sm:$0xf]
  %v83 = vld [vmem:[%s1 + $0x10] sm:$0xf]
  %v84 = vld [vmem:[%s1 + $0x14] sm:$0xf]
  %v85 = vld [vmem:[%s1 + $0x18] sm:$0xf]
  %v86 = vld [vmem:[%s1 + $0x1c] sm:$0xf]
  %v87 = vld [vmem:[%s1 + $0x20] sm:$0xf]
  %v88 = vld [vmem:[%s1 + $0x24] sm:$0xf]
  %v89 = vld [vmem:[%s1 + $0x28] sm:$0xf]
  %v90 = vld [vmem:[%s1 + $0x2c] sm:$0xf]
  %v91 = vld [vmem:[%s1 + $0x30] sm:$0xf]
  %v92 = vld [vmem:[%s1 + $0x34] sm:$0x3]
  %v93 = vld [vmem:[%s2] sm:$0x1]
  %v95 = vlaneseq
  %v96 = vshrl.u32 %v95, 7
  %v97 = vsub.s32 0, %v96
  %v98 = vrot.slane %v93, %v97
  %v164 = vunpack.c.l.b16 %v15
  %v165 = vunpack.c.l.b16 %v16
  %v166 = vunpack.c.l.b16 %v17
  %v167 = vunpack.c.l.b16 %v18
  %v168 = vunpack.c.l.b16 %v19
  %v169 = vunpack.c.l.b16 %v20
  %v170 = vunpack.c.l.b16 %v21
  %v171 = vunpack.c.l.b16 %v22
  %v172 = vunpack.c.l.b16 %v23
  %v173 = vunpack.c.l.b16 %v24
  %v174 = vunpack.c.l.b16 %v25
  %v175 = vunpack.c.l.b16 %v26
  %v176 = vunpack.c.l.b16 %v27
  %v177 = vunpack.c.l.b16 %v28
  %v178 = vunpack.c.l.b16 %v29
  %v179 = vunpack.c.l.b16 %v30
  %v180 = vunpack.c.l.b16 %v31
  %v181 = vunpack.c.l.b16 %v32
  %v182 = vunpack.c.l.b16 %v33
  %v183 = vunpack.c.l.b16 %v34
  %v184 = vunpack.c.l.b16 %v35
  %v185 = vunpack.c.l.b16 %v36
  %v186 = vunpack.c.l.b16 %v37
  %v187 = vunpack.c.l.b16 %v38
  %v188 = vunpack.c.l.b16 %v39
  %v189 = vunpack.c.l.b16 %v40
  %v190 = vunpack.c.l.b16 %v41
  %v191 = vunpack.c.l.b16 %v42
  %v192 = vunpack.c.l.b16 %v43
  %v193 = vunpack.c.l.b16 %v44
  %v194 = vunpack.c.l.b16 %v45
  %v195 = vunpack.c.l.b16 %v46
  %v196 = vunpack.c.l.b16 %v47
  %v197 = vunpack.c.l.b16 %v48
  %v198 = vunpack.c.l.b16 %v49
  %v199 = vunpack.c.l.b16 %v50
  %v200 = vunpack.c.l.b16 %v51
  %v201 = vunpack.c.l.b16 %v52
  %v202 = vunpack.c.l.b16 %v53
  %v203 = vunpack.c.l.b16 %v54
  %v204 = vunpack.c.l.b16 %v55
  %v205 = vunpack.c.l.b16 %v56
  %v206 = vunpack.c.l.b16 %v57
  %v207 = vunpack.c.l.b16 %v58
  %v208 = vunpack.c.l.b16 %v59
  %v209 = vunpack.c.l.b16 %v60
  %v210 = vunpack.c.l.b16 %v61
  %v211 = vunpack.c.l.b16 %v62
  %v212 = vunpack.c.l.b16 %v63
  %v213 = vunpack.c.l.b16 %v64
  %v214 = vunpack.c.l.b16 %v65
  %v215 = vunpack.c.l.b16 %v66
  %v216 = vunpack.c.l.b16 %v67
  %v217 = vunpack.c.l.b16 %v68
  %v218 = vunpack.c.l.b16 %v69
  %v219 = vunpack.c.l.b16 %v70
  %v220 = vunpack.c.l.b16 %v71
  %v221 = vunpack.c.l.b16 %v72
  %v222 = vunpack.c.l.b16 %v73
  %v223 = vunpack.c.l.b16 %v74
  %v224 = vunpack.c.l.b16 %v75
  %v225 = vunpack.c.l.b16 %v76
  %v226 = vunpack.c.l.b16 %v77
  %v227 = vunpack.c.l.b16 %v78
  %v228 = vpack.c.b16 %v165, %v164
  %v229 = vpack.c.b16 %v167, %v166
  %v230 = vpack.c.b16 %v169, %v168
  %v231 = vpack.c.b16 %v171, %v170
  %v232 = vpack.c.b16 %v173, %v172
  %v233 = vpack.c.b16 %v175, %v174
  %v234 = vpack.c.b16 %v177, %v176
  %v235 = vpack.c.b16 %v179, %v178
  %v236 = vpack.c.b16 %v181, %v180
  %v237 = vpack.c.b16 %v183, %v182
  %v238 = vpack.c.b16 %v185, %v184
  %v239 = vpack.c.b16 %v187, %v186
  %v240 = vpack.c.b16 %v189, %v188
  %v241 = vpack.c.b16 %v191, %v190
  %v242 = vpack.c.b16 %v193, %v192
  %v243 = vpack.c.b16 %v195, %v194
  %v244 = vpack.c.b16 %v197, %v196
  %v245 = vpack.c.b16 %v199, %v198
  %v246 = vpack.c.b16 %v201, %v200
  %v247 = vpack.c.b16 %v203, %v202
  %v248 = vpack.c.b16 %v205, %v204
  %v249 = vpack.c.b16 %v207, %v206
  %v250 = vpack.c.b16 %v209, %v208
  %v251 = vpack.c.b16 %v211, %v210
  %v252 = vpack.c.b16 %v213, %v212
  %v253 = vpack.c.b16 %v215, %v214
  %v254 = vpack.c.b16 %v217, %v216
  %v255 = vpack.c.b16 %v219, %v218
  %v256 = vpack.c.b16 %v221, %v220
  %v257 = vpack.c.b16 %v223, %v222
  %v258 = vpack.c.b16 %v225, %v224
  %v259 = vpack.c.b16 %v227, %v226
  %v274 = vunpack.c.l.b16 %v79
  %v275 = vunpack.c.l.b16 %v80
  %v276 = vunpack.c.l.b16 %v81
  %v277 = vunpack.c.l.b16 %v82
  %v278 = vunpack.c.l.b16 %v83
  %v279 = vunpack.c.l.b16 %v84
  %v280 = vunpack.c.l.b16 %v85
  %v281 = vunpack.c.l.b16 %v86
  %v282 = vunpack.c.l.b16 %v87
  %v283 = vunpack.c.l.b16 %v88
  %v284 = vunpack.c.l.b16 %v89
  %v285 = vunpack.c.l.b16 %v90
  %v286 = vunpack.c.l.b16 %v91
  %v287 = vunpack.c.l.b16 %v92
  %v288 = vpack.c.b16 %v275, %v274
  %v289 = vpack.c.b16 %v277, %v276
  %v290 = vpack.c.b16 %v279, %v278
  %v291 = vpack.c.b16 %v281, %v280
  %v292 = vpack.c.b16 %v283, %v282
  %v293 = vpack.c.b16 %v285, %v284
  %v294 = vpack.c.b16 %v287, %v286
  %vm301 = vcmask 883712
  %v303 = vsel %vm301, %v228, 0
  %v306 = vsel %vm301, %v229, 0
  %v309 = vsel %vm301, %v230, 0
  %v312 = vsel %vm301, %v231, 0
  %v315 = vsel %vm301, %v232, 0
  %v318 = vsel %vm301, %v233, 0
  %v321 = vsel %vm301, %v234, 0
  %v324 = vsel %vm301, %v235, 0
  %v327 = vsel %vm301, %v236, 0
  %v330 = vsel %vm301, %v237, 0
  %v333 = vsel %vm301, %v238, 0
  %v336 = vsel %vm301, %v239, 0
  %v339 = vsel %vm301, %v240, 0
  %v342 = vsel %vm301, %v241, 0
  %v345 = vsel %vm301, %v242, 0
  %v348 = vsel %vm301, %v243, 0
  %v351 = vsel %vm301, %v244, 0
  %v354 = vsel %vm301, %v245, 0
  %v357 = vsel %vm301, %v246, 0
  %v360 = vsel %vm301, %v247, 0
  %v363 = vsel %vm301, %v248, 0
  %v366 = vsel %vm301, %v249, 0
  %v369 = vsel %vm301, %v250, 0
  %v372 = vsel %vm301, %v251, 0
  %v375 = vsel %vm301, %v252, 0
  %v378 = vsel %vm301, %v253, 0
  %v381 = vsel %vm301, %v254, 0
  %v384 = vsel %vm301, %v255, 0
  %v387 = vsel %vm301, %v256, 0
  %v390 = vsel %vm301, %v257, 0
  %v393 = vsel %vm301, %v258, 0
  %v396 = vsel %vm301, %v259, 0
  %vm398 = vcmask 1045504
  %v400 = vsel %vm398, %v294, 0
  %402 = vmatprep.subr.bf16.mxu0 0
  %403 = vmatpush1.bf16.msra.mxu0 0
  %404 = vmatprep.subr.bf16.mxu0 0
  %405 = vmatpush1.bf16.msra.mxu0 %v400
  %406 = vmatprep.subr.bf16.mxu0 0
  %407 = vmatpush1.bf16.msra.mxu0 %v293
  %408 = vmatprep.subr.bf16.mxu0 0
  %409 = vmatpush1.bf16.msra.mxu0 %v292
  %410 = vmatprep.subr.bf16.mxu0 0
  %411 = vmatpush1.bf16.msra.mxu0 %v291
  %412 = vmatprep.subr.bf16.mxu0 0
  %413 = vmatpush1.bf16.msra.mxu0 %v290
  %414 = vmatprep.subr.bf16.mxu0 0
  %415 = vmatpush1.bf16.msra.mxu0 %v289
  %416 = vmatprep.subr.bf16.mxu0 0
  %417 = vmatpush1.bf16.msra.mxu0 %v288
  %418 = vmatprep.subr.bf16.mxu0 0
  %419 = vmatpush2.bf16.msra.mxu0 0
  %420 = vmatprep.subr.bf16.mxu0 0
  %421 = vmatpush2.bf16.msra.mxu0 0
  %422 = vmatprep.subr.bf16.mxu0 0
  %423 = vmatpush2.bf16.msra.mxu0 0
  %424 = vmatprep.subr.bf16.mxu0 0
  %425 = vmatpush2.bf16.msra.mxu0 0
  %426 = vmatprep.subr.bf16.mxu0 0
  %427 = vmatpush2.bf16.msra.mxu0 0
  %428 = vmatprep.subr.bf16.mxu0 0
  %429 = vmatpush2.bf16.msra.mxu0 0
  %430 = vmatprep.subr.bf16.mxu0 0
  %431 = vmatpush2.bf16.msra.mxu0 0
  %432 = vmatprep.subr.bf16.mxu0 0
  %433 = vmatpush2.bf16.msra.mxu0 0
  %434 = vmatprep.mubr.bf16.mxu0 0
  %435 = vmatmul.mubr.bf16.gmra.mxu0 %v303
  %v436 = vpop.f32.mrf.mxu0
  %v437 = vadd.f32 %v98, %v436
  %v438 = vpop.f32.mrf.mxu0
  %v439 = vpop.f32.mrf.mxu0
  %v440 = vadd.f32 %v98, %v439
  %v441 = vpop.f32.mrf.mxu0
  %442 = vmatprep.mubr.bf16.mxu0 0
  %443 = vmatmul.mubr.bf16.gmra.mxu0 %v306
  %v444 = vpop.f32.mrf.mxu0
  %v445 = vadd.f32 %v98, %v444
  %v446 = vpop.f32.mrf.mxu0
  %v447 = vpop.f32.mrf.mxu0
  %v448 = vadd.f32 %v98, %v447
  %v449 = vpop.f32.mrf.mxu0
  %450 = vmatprep.mubr.bf16.mxu0 0
  %451 = vmatmul.mubr.bf16.gmra.mxu0 %v309
  %v452 = vpop.f32.mrf.mxu0
  %v453 = vadd.f32 %v98, %v452
  %v454 = vpop.f32.mrf.mxu0
  %v455 = vpop.f32.mrf.mxu0
  %v456 = vadd.f32 %v98, %v455
  %v457 = vpop.f32.mrf.mxu0
  %458 = vmatprep.mubr.bf16.mxu0 0
  %459 = vmatmul.mubr.bf16.gmra.mxu0 %v312
  %v460 = vpop.f32.mrf.mxu0
  %v461 = vadd.f32 %v98, %v460
  %v462 = vpop.f32.mrf.mxu0
  %v463 = vpop.f32.mrf.mxu0
  %v464 = vadd.f32 %v98, %v463
  %v465 = vpop.f32.mrf.mxu0
  %466 = vmatprep.mubr.bf16.mxu0 0
  %467 = vmatmul.mubr.bf16.gmra.mxu0 %v315
  %v468 = vpop.f32.mrf.mxu0
  %v469 = vadd.f32 %v98, %v468
  %v470 = vpop.f32.mrf.mxu0
  %v471 = vpop.f32.mrf.mxu0
  %v472 = vadd.f32 %v98, %v471
  %v473 = vpop.f32.mrf.mxu0
  %474 = vmatprep.mubr.bf16.mxu0 0
  %475 = vmatmul.mubr.bf16.gmra.mxu0 %v318
  %v476 = vpop.f32.mrf.mxu0
  %v477 = vadd.f32 %v98, %v476
  %v478 = vpop.f32.mrf.mxu0
  %v479 = vpop.f32.mrf.mxu0
  %v480 = vadd.f32 %v98, %v479
  %v481 = vpop.f32.mrf.mxu0
  %482 = vmatprep.mubr.bf16.mxu0 0
  %483 = vmatmul.mubr.bf16.gmra.mxu0 %v321
  %v484 = vpop.f32.mrf.mxu0
  %v485 = vadd.f32 %v98, %v484
  %v486 = vpop.f32.mrf.mxu0
  %v487 = vpop.f32.mrf.mxu0
  %v488 = vadd.f32 %v98, %v487
  %v489 = vpop.f32.mrf.mxu0
  %490 = vmatprep.mubr.bf16.mxu0 0
  %491 = vmatmul.mubr.bf16.gmra.mxu0 %v324
  %v492 = vpop.f32.mrf.mxu0
  %v493 = vadd.f32 %v98, %v492
  %v494 = vpop.f32.mrf.mxu0
  %v495 = vpop.f32.mrf.mxu0
  %v496 = vadd.f32 %v98, %v495
  %v497 = vpop.f32.mrf.mxu0
  %498 = vmatprep.mubr.bf16.mxu0 0
  %499 = vmatmul.mubr.bf16.gmra.mxu0 %v327
  %v500 = vpop.f32.mrf.mxu0
  %v501 = vadd.f32 %v98, %v500
  %v502 = vpop.f32.mrf.mxu0
  %v503 = vpop.f32.mrf.mxu0
  %v504 = vadd.f32 %v98, %v503
  %v505 = vpop.f32.mrf.mxu0
  %506 = vmatprep.mubr.bf16.mxu0 0
  %507 = vmatmul.mubr.bf16.gmra.mxu0 %v330
  %v508 = vpop.f32.mrf.mxu0
  %v509 = vadd.f32 %v98, %v508
  %v510 = vpop.f32.mrf.mxu0
  %v511 = vpop.f32.mrf.mxu0
  %v512 = vadd.f32 %v98, %v511
  %v513 = vpop.f32.mrf.mxu0
  %514 = vmatprep.mubr.bf16.mxu0 0
  %515 = vmatmul.mubr.bf16.gmra.mxu0 %v333
  %v516 = vpop.f32.mrf.mxu0
  %v517 = vadd.f32 %v98, %v516
  %v518 = vpop.f32.mrf.mxu0
  %v519 = vpop.f32.mrf.mxu0
  %v520 = vadd.f32 %v98, %v519
  %v521 = vpop.f32.mrf.mxu0
  %522 = vmatprep.mubr.bf16.mxu0 0
  %523 = vmatmul.mubr.bf16.gmra.mxu0 %v336
  %v524 = vpop.f32.mrf.mxu0
  %v525 = vadd.f32 %v98, %v524
  %v526 = vpop.f32.mrf.mxu0
  %v527 = vpop.f32.mrf.mxu0
  %v528 = vadd.f32 %v98, %v527
  %v529 = vpop.f32.mrf.mxu0
  %530 = vmatprep.mubr.bf16.mxu0 0
  %531 = vmatmul.mubr.bf16.gmra.mxu0 %v339
  %v532 = vpop.f32.mrf.mxu0
  %v533 = vadd.f32 %v98, %v532
  %v534 = vpop.f32.mrf.mxu0
  %v535 = vpop.f32.mrf.mxu0
  %v536 = vadd.f32 %v98, %v535
  %v537 = vpop.f32.mrf.mxu0
  %538 = vmatprep.mubr.bf16.mxu0 0
  %539 = vmatmul.mubr.bf16.gmra.mxu0 %v342
  %v540 = vpop.f32.mrf.mxu0
  %v541 = vadd.f32 %v98, %v540
  %v542 = vpop.f32.mrf.mxu0
  %v543 = vpop.f32.mrf.mxu0
  %v544 = vadd.f32 %v98, %v543
  %v545 = vpop.f32.mrf.mxu0
  %546 = vmatprep.mubr.bf16.mxu0 0
  %547 = vmatmul.mubr.bf16.gmra.mxu0 %v345
  %v548 = vpop.f32.mrf.mxu0
  %v549 = vadd.f32 %v98, %v548
  %v550 = vpop.f32.mrf.mxu0
  %v551 = vpop.f32.mrf.mxu0
  %v552 = vadd.f32 %v98, %v551
  %v553 = vpop.f32.mrf.mxu0
  %554 = vmatprep.mubr.bf16.mxu0 0
  %555 = vmatmul.mubr.bf16.gmra.mxu0 %v348
  %v556 = vpop.f32.mrf.mxu0
  %v557 = vadd.f32 %v98, %v556
  %v558 = vpop.f32.mrf.mxu0
  %v559 = vpop.f32.mrf.mxu0
  %v560 = vadd.f32 %v98, %v559
  %v561 = vpop.f32.mrf.mxu0
  %562 = vmatprep.mubr.bf16.mxu0 0
  %563 = vmatmul.mubr.bf16.gmra.mxu0 %v351
  %v564 = vpop.f32.mrf.mxu0
  %v565 = vadd.f32 %v98, %v564
  %v566 = vpop.f32.mrf.mxu0
  %v567 = vpop.f32.mrf.mxu0
  %v568 = vadd.f32 %v98, %v567
  %v569 = vpop.f32.mrf.mxu0
  %570 = vmatprep.mubr.bf16.mxu0 0
  %571 = vmatmul.mubr.bf16.gmra.mxu0 %v354
  %v572 = vpop.f32.mrf.mxu0
  %v573 = vadd.f32 %v98, %v572
  %v574 = vpop.f32.mrf.mxu0
  %v575 = vpop.f32.mrf.mxu0
  %v576 = vadd.f32 %v98, %v575
  %v577 = vpop.f32.mrf.mxu0
  %578 = vmatprep.mubr.bf16.mxu0 0
  %579 = vmatmul.mubr.bf16.gmra.mxu0 %v357
  %v580 = vpop.f32.mrf.mxu0
  %v581 = vadd.f32 %v98, %v580
  %v582 = vpop.f32.mrf.mxu0
  %v583 = vpop.f32.mrf.mxu0
  %v584 = vadd.f32 %v98, %v583
  %v585 = vpop.f32.mrf.mxu0
  %586 = vmatprep.mubr.bf16.mxu0 0
  %587 = vmatmul.mubr.bf16.gmra.mxu0 %v360
  %v588 = vpop.f32.mrf.mxu0
  %v589 = vadd.f32 %v98, %v588
  %v590 = vpop.f32.mrf.mxu0
  %v591 = vpop.f32.mrf.mxu0
  %v592 = vadd.f32 %v98, %v591
  %v593 = vpop.f32.mrf.mxu0
  %594 = vmatprep.mubr.bf16.mxu0 0
  %595 = vmatmul.mubr.bf16.gmra.mxu0 %v363
  %v596 = vpop.f32.mrf.mxu0
  %v597 = vadd.f32 %v98, %v596
  %v598 = vpop.f32.mrf.mxu0
  %v599 = vpop.f32.mrf.mxu0
  %v600 = vadd.f32 %v98, %v599
  %v601 = vpop.f32.mrf.mxu0
  %602 = vmatprep.mubr.bf16.mxu0 0
  %603 = vmatmul.mubr.bf16.gmra.mxu0 %v366
  %v604 = vpop.f32.mrf.mxu0
  %v605 = vadd.f32 %v98, %v604
  %v606 = vpop.f32.mrf.mxu0
  %v607 = vpop.f32.mrf.mxu0
  %v608 = vadd.f32 %v98, %v607
  %v609 = vpop.f32.mrf.mxu0
  %610 = vmatprep.mubr.bf16.mxu0 0
  %611 = vmatmul.mubr.bf16.gmra.mxu0 %v369
  %v612 = vpop.f32.mrf.mxu0
  %v613 = vadd.f32 %v98, %v612
  %v614 = vpop.f32.mrf.mxu0
  %v615 = vpop.f32.mrf.mxu0
  %v616 = vadd.f32 %v98, %v615
  %v617 = vpop.f32.mrf.mxu0
  %618 = vmatprep.mubr.bf16.mxu0 0
  %619 = vmatmul.mubr.bf16.gmra.mxu0 %v372
  %v620 = vpop.f32.mrf.mxu0
  %v621 = vadd.f32 %v98, %v620
  %v622 = vpop.f32.mrf.mxu0
  %v623 = vpop.f32.mrf.mxu0
  %v624 = vadd.f32 %v98, %v623
  %v625 = vpop.f32.mrf.mxu0
  %626 = vmatprep.mubr.bf16.mxu0 0
  %627 = vmatmul.mubr.bf16.gmra.mxu0 %v375
  %v628 = vpop.f32.mrf.mxu0
  %v629 = vadd.f32 %v98, %v628
  %v630 = vpop.f32.mrf.mxu0
  %v631 = vpop.f32.mrf.mxu0
  %v632 = vadd.f32 %v98, %v631
  %v633 = vpop.f32.mrf.mxu0
  %634 = vmatprep.mubr.bf16.mxu0 0
  %635 = vmatmul.mubr.bf16.gmra.mxu0 %v378
  %v636 = vpop.f32.mrf.mxu0
  %v637 = vadd.f32 %v98, %v636
  %v638 = vpop.f32.mrf.mxu0
  %v639 = vpop.f32.mrf.mxu0
  %v640 = vadd.f32 %v98, %v639
  %v641 = vpop.f32.mrf.mxu0
  %642 = vmatprep.mubr.bf16.mxu0 0
  %643 = vmatmul.mubr.bf16.gmra.mxu0 %v381
  %v644 = vpop.f32.mrf.mxu0
  %v645 = vadd.f32 %v98, %v644
  %v646 = vpop.f32.mrf.mxu0
  %v647 = vpop.f32.mrf.mxu0
  %v648 = vadd.f32 %v98, %v647
  %v649 = vpop.f32.mrf.mxu0
  %650 = vmatprep.mubr.bf16.mxu0 0
  %651 = vmatmul.mubr.bf16.gmra.mxu0 %v384
  %v652 = vpop.f32.mrf.mxu0
  %v653 = vadd.f32 %v98, %v652
  %v654 = vpop.f32.mrf.mxu0
  %v655 = vpop.f32.mrf.mxu0
  %v656 = vadd.f32 %v98, %v655
  %v657 = vpop.f32.mrf.mxu0
  %658 = vmatprep.mubr.bf16.mxu0 0
  %659 = vmatmul.mubr.bf16.gmra.mxu0 %v387
  %v660 = vpop.f32.mrf.mxu0
  %v661 = vadd.f32 %v98, %v660
  %v662 = vpop.f32.mrf.mxu0
  %v663 = vpop.f32.mrf.mxu0
  %v664 = vadd.f32 %v98, %v663
  %v665 = vpop.f32.mrf.mxu0
  %666 = vmatprep.mubr.bf16.mxu0 0
  %667 = vmatmul.mubr.bf16.gmra.mxu0 %v390
  %v668 = vpop.f32.mrf.mxu0
  %v669 = vadd.f32 %v98, %v668
  %v670 = vpop.f32.mrf.mxu0
  %v671 = vpop.f32.mrf.mxu0
  %v672 = vadd.f32 %v98, %v671
  %v673 = vpop.f32.mrf.mxu0
  %674 = vmatprep.mubr.bf16.mxu0 0
  %675 = vmatmul.mubr.bf16.gmra.mxu0 %v393
  %v676 = vpop.f32.mrf.mxu0
  %v677 = vadd.f32 %v98, %v676
  %v678 = vpop.f32.mrf.mxu0
  %v679 = vpop.f32.mrf.mxu0
  %v680 = vadd.f32 %v98, %v679
  %v681 = vpop.f32.mrf.mxu0
  %682 = vmatprep.mubr.bf16.mxu0 0
  %683 = vmatmul.mubr.bf16.gmra.mxu0 %v396
  %v684 = vpop.f32.mrf.mxu0
  %v685 = vadd.f32 %v98, %v684
  %v686 = vpop.f32.mrf.mxu0
  %v687 = vpop.f32.mrf.mxu0
  %v688 = vadd.f32 %v98, %v687
  %v689 = vpop.f32.mrf.mxu0
  %690 = vdwg.mxu0
  %v691 = vmax.f32 %v437, 0.0
  %v692 = vmax.f32 %v440, 0.0
  %v693 = vmax.f32 %v445, 0.0
  %v694 = vmax.f32 %v448, 0.0
  %v695 = vmax.f32 %v453, 0.0
  %v696 = vmax.f32 %v456, 0.0
  %v697 = vmax.f32 %v461, 0.0
  %v698 = vmax.f32 %v464, 0.0
  %v699 = vmax.f32 %v469, 0.0
  %v700 = vmax.f32 %v472, 0.0
  %v701 = vmax.f32 %v477, 0.0
  %v702 = vmax.f32 %v480, 0.0
  %v703 = vmax.f32 %v485, 0.0
  %v704 = vmax.f32 %v488, 0.0
  %v705 = vmax.f32 %v493, 0.0
  %v706 = vmax.f32 %v496, 0.0
  %v707 = vmax.f32 %v501, 0.0
  %v708 = vmax.f32 %v504, 0.0
  %v709 = vmax.f32 %v509, 0.0
  %v710 = vmax.f32 %v512, 0.0
  %v711 = vmax.f32 %v517, 0.0
  %v712 = vmax.f32 %v520, 0.0
  %v713 = vmax.f32 %v525, 0.0
  %v714 = vmax.f32 %v528, 0.0
  %v715 = vmax.f32 %v533, 0.0
  %v716 = vmax.f32 %v536, 0.0
  %v717 = vmax.f32 %v541, 0.0
  %v718 = vmax.f32 %v544, 0.0
  %v719 = vmax.f32 %v549, 0.0
  %v720 = vmax.f32 %v552, 0.0
  %v721 = vmax.f32 %v557, 0.0
  %v722 = vmax.f32 %v560, 0.0
  %v723 = vmax.f32 %v565, 0.0
  %v724 = vmax.f32 %v568, 0.0
  %v725 = vmax.f32 %v573, 0.0
  %v726 = vmax.f32 %v576, 0.0
  %v727 = vmax.f32 %v581, 0.0
  %v728 = vmax.f32 %v584, 0.0
  %v729 = vmax.f32 %v589, 0.0
  %v730 = vmax.f32 %v592, 0.0
  %v731 = vmax.f32 %v597, 0.0
  %v732 = vmax.f32 %v600, 0.0
  %v733 = vmax.f32 %v605, 0.0
  %v734 = vmax.f32 %v608, 0.0
  %v735 = vmax.f32 %v613, 0.0
  %v736 = vmax.f32 %v616, 0.0
  %v737 = vmax.f32 %v621, 0.0
  %v738 = vmax.f32 %v624, 0.0
  %v739 = vmax.f32 %v629, 0.0
  %v740 = vmax.f32 %v632, 0.0
  %v741 = vmax.f32 %v637, 0.0
  %v742 = vmax.f32 %v640, 0.0
  %v743 = vmax.f32 %v645, 0.0
  %v744 = vmax.f32 %v648, 0.0
  %v745 = vmax.f32 %v653, 0.0
  %v746 = vmax.f32 %v656, 0.0
  %v747 = vmax.f32 %v661, 0.0
  %v748 = vmax.f32 %v664, 0.0
  %v749 = vmax.f32 %v669, 0.0
  %v750 = vmax.f32 %v672, 0.0
  %v751 = vmax.f32 %v677, 0.0
  %v752 = vmax.f32 %v680, 0.0
  %v753 = vmax.f32 %v685, 0.0
  %v754 = vmax.f32 %v688, 0.0
  %v755 = vpack.c.bf16 %v692, %v691
  %v756 = vpack.c.bf16 %v694, %v693
  %v757 = vpack.c.bf16 %v696, %v695
  %v758 = vpack.c.bf16 %v698, %v697
  %v759 = vpack.c.bf16 %v700, %v699
  %v760 = vpack.c.bf16 %v702, %v701
  %v761 = vpack.c.bf16 %v704, %v703
  %v762 = vpack.c.bf16 %v706, %v705
  %v763 = vpack.c.bf16 %v708, %v707
  %v764 = vpack.c.bf16 %v710, %v709
  %v765 = vpack.c.bf16 %v712, %v711
  %v766 = vpack.c.bf16 %v714, %v713
  %v767 = vpack.c.bf16 %v716, %v715
  %v768 = vpack.c.bf16 %v718, %v717
  %v769 = vpack.c.bf16 %v720, %v719
  %v770 = vpack.c.bf16 %v722, %v721
  %v771 = vpack.c.bf16 %v724, %v723
  %v772 = vpack.c.bf16 %v726, %v725
  %v773 = vpack.c.bf16 %v728, %v727
  %v774 = vpack.c.bf16 %v730, %v729
  %v775 = vpack.c.bf16 %v732, %v731
  %v776 = vpack.c.bf16 %v734, %v733
  %v777 = vpack.c.bf16 %v736, %v735
  %v778 = vpack.c.bf16 %v738, %v737
  %v779 = vpack.c.bf16 %v740, %v739
  %v780 = vpack.c.bf16 %v742, %v741
  %v781 = vpack.c.bf16 %v744, %v743
  %v782 = vpack.c.bf16 %v746, %v745
  %v783 = vpack.c.bf16 %v748, %v747
  %v784 = vpack.c.bf16 %v750, %v749
  %v785 = vpack.c.bf16 %v752, %v751
  %v786 = vpack.c.bf16 %v754, %v753
  %v819 = vunpack.c.l.b16 %v755
  %v820 = vunpack.c.h.b16 %v755
  %v821 = vunpack.c.l.b16 %v756
  %v822 = vunpack.c.h.b16 %v756
  %v823 = vunpack.c.l.b16 %v757
  %v824 = vunpack.c.h.b16 %v757
  %v825 = vunpack.c.l.b16 %v758
  %v826 = vunpack.c.h.b16 %v758
  %v827 = vunpack.c.l.b16 %v759
  %v828 = vunpack.c.h.b16 %v759
  %v829 = vunpack.c.l.b16 %v760
  %v830 = vunpack.c.h.b16 %v760
  %v831 = vunpack.c.l.b16 %v761
  %v832 = vunpack.c.h.b16 %v761
  %v833 = vunpack.c.l.b16 %v762
  %v834 = vunpack.c.h.b16 %v762
  %v835 = vunpack.c.l.b16 %v763
  %v836 = vunpack.c.h.b16 %v763
  %v837 = vunpack.c.l.b16 %v764
  %v838 = vunpack.c.h.b16 %v764
  %v839 = vunpack.c.l.b16 %v765
  %v840 = vunpack.c.h.b16 %v765
  %v841 = vunpack.c.l.b16 %v766
  %v842 = vunpack.c.h.b16 %v766
  %v843 = vunpack.c.l.b16 %v767
  %v844 = vunpack.c.h.b16 %v767
  %v845 = vunpack.c.l.b16 %v768
  %v846 = vunpack.c.h.b16 %v768
  %v847 = vunpack.c.l.b16 %v769
  %v848 = vunpack.c.h.b16 %v769
  %v849 = vunpack.c.l.b16 %v770
  %v850 = vunpack.c.h.b16 %v770
  %v851 = vunpack.c.l.b16 %v771
  %v852 = vunpack.c.h.b16 %v771
  %v853 = vunpack.c.l.b16 %v772
  %v854 = vunpack.c.h.b16 %v772
  %v855 = vunpack.c.l.b16 %v773
  %v856 = vunpack.c.h.b16 %v773
  %v857 = vunpack.c.l.b16 %v774
  %v858 = vunpack.c.h.b16 %v774
  %v859 = vunpack.c.l.b16 %v775
  %v860 = vunpack.c.h.b16 %v775
  %v861 = vunpack.c.l.b16 %v776
  %v862 = vunpack.c.h.b16 %v776
  %v863 = vunpack.c.l.b16 %v777
  %v864 = vunpack.c.h.b16 %v777
  %v865 = vunpack.c.l.b16 %v778
  %v866 = vunpack.c.h.b16 %v778
  %v867 = vunpack.c.l.b16 %v779
  %v868 = vunpack.c.h.b16 %v779
  %v869 = vunpack.c.l.b16 %v780
  %v870 = vunpack.c.h.b16 %v780
  %v871 = vunpack.c.l.b16 %v781
  %v872 = vunpack.c.h.b16 %v781
  %v873 = vunpack.c.l.b16 %v782
  %v874 = vunpack.c.h.b16 %v782
  %v875 = vunpack.c.l.b16 %v783
  %v876 = vunpack.c.h.b16 %v783
  %v877 = vunpack.c.l.b16 %v784
  %v878 = vunpack.c.h.b16 %v784
  %v879 = vunpack.c.l.b16 %v785
  %v880 = vunpack.c.h.b16 %v785
  %v881 = vunpack.c.l.b16 %v786
  %v882 = vunpack.c.h.b16 %v786
  %v883 = vpack.c.b16 %v819, %v819
  %v884 = vpack.c.b16 %v820, %v820
  %v885 = vpack.c.b16 %v821, %v821
  %v886 = vpack.c.b16 %v822, %v822
  %v887 = vpack.c.b16 %v823, %v823
  %v888 = vpack.c.b16 %v824, %v824
  %v889 = vpack.c.b16 %v825, %v825
  %v890 = vpack.c.b16 %v826, %v826
  %v891 = vpack.c.b16 %v827, %v827
  %v892 = vpack.c.b16 %v828, %v828
  %v893 = vpack.c.b16 %v829, %v829
  %v894 = vpack.c.b16 %v830, %v830
  %v895 = vpack.c.b16 %v831, %v831
  %v896 = vpack.c.b16 %v832, %v832
  %v897 = vpack.c.b16 %v833, %v833
  %v898 = vpack.c.b16 %v834, %v834
  %v899 = vpack.c.b16 %v835, %v835
  %v900 = vpack.c.b16 %v836, %v836
  %v901 = vpack.c.b16 %v837, %v837
  %v902 = vpack.c.b16 %v838, %v838
  %v903 = vpack.c.b16 %v839, %v839
  %v904 = vpack.c.b16 %v840, %v840
  %v905 = vpack.c.b16 %v841, %v841
  %v906 = vpack.c.b16 %v842, %v842
  %v907 = vpack.c.b16 %v843, %v843
  %v908 = vpack.c.b16 %v844, %v844
  %v909 = vpack.c.b16 %v845, %v845
  %v910 = vpack.c.b16 %v846, %v846
  %v911 = vpack.c.b16 %v847, %v847
  %v912 = vpack.c.b16 %v848, %v848
  %v913 = vpack.c.b16 %v849, %v849
  %v914 = vpack.c.b16 %v850, %v850
  %v915 = vpack.c.b16 %v851, %v851
  %v916 = vpack.c.b16 %v852, %v852
  %v917 = vpack.c.b16 %v853, %v853
  %v918 = vpack.c.b16 %v854, %v854
  %v919 = vpack.c.b16 %v855, %v855
  %v920 = vpack.c.b16 %v856, %v856
  %v921 = vpack.c.b16 %v857, %v857
  %v922 = vpack.c.b16 %v858, %v858
  %v923 = vpack.c.b16 %v859, %v859
  %v924 = vpack.c.b16 %v860, %v860
  %v925 = vpack.c.b16 %v861, %v861
  %v926 = vpack.c.b16 %v862, %v862
  %v927 = vpack.c.b16 %v863, %v863
  %v928 = vpack.c.b16 %v864, %v864
  %v929 = vpack.c.b16 %v865, %v865
  %v930 = vpack.c.b16 %v866, %v866
  %v931 = vpack.c.b16 %v867, %v867
  %v932 = vpack.c.b16 %v868, %v868
  %v933 = vpack.c.b16 %v869, %v869
  %v934 = vpack.c.b16 %v870, %v870
  %v935 = vpack.c.b16 %v871, %v871
  %v936 = vpack.c.b16 %v872, %v872
  %v937 = vpack.c.b16 %v873, %v873
  %v938 = vpack.c.b16 %v874, %v874
  %v939 = vpack.c.b16 %v875, %v875
  %v940 = vpack.c.b16 %v876, %v876
  %v941 = vpack.c.b16 %v877, %v877
  %v942 = vpack.c.b16 %v878, %v878
  %v943 = vpack.c.b16 %v879, %v879
  %v944 = vpack.c.b16 %v880, %v880
  %v945 = vpack.c.b16 %v881, %v881
  %v946 = vpack.c.b16 %v882, %v882
  %1011 = vst [vmem:[%s3] sm:$0xf] %v883
  %1012 = vst [vmem:[%s3 + $0x4] sm:$0xf] %v884
  %1013 = vst [vmem:[%s3 + $0x8] sm:$0xf] %v885
  %1014 = vst [vmem:[%s3 + $0xc] sm:$0xf] %v886
  %1015 = vst [vmem:[%s3 + $0x10] sm:$0xf] %v887
  %1016 = vst [vmem:[%s3 + $0x14] sm:$0xf] %v888
  %1017 = vst [vmem:[%s3 + $0x18] sm:$0xf] %v889
  %1018 = vst [vmem:[%s3 + $0x1c] sm:$0xf] %v890
  %1019 = vst [vmem:[%s3 + $0x20] sm:$0xf] %v891
  %1020 = vst [vmem:[%s3 + $0x24] sm:$0xf] %v892
  %1021 = vst [vmem:[%s3 + $0x28] sm:$0xf] %v893
  %1022 = vst [vmem:[%s3 + $0x2c] sm:$0xf] %v894
  %1023 = vst [vmem:[%s3 + $0x30] sm:$0xf] %v895
  %1024 = vst [vmem:[%s3 + $0x34] sm:$0xf] %v896
  %1025 = vst [vmem:[%s3 + $0x38] sm:$0xf] %v897
  %1026 = vst [vmem:[%s3 + $0x3c] sm:$0xf] %v898
  %1027 = vst [vmem:[%s3 + $0x40] sm:$0xf] %v899
  %1028 = vst [vmem:[%s3 + $0x44] sm:$0xf] %v900
  %1029 = vst [vmem:[%s3 + $0x48] sm:$0xf] %v901
  %1030 = vst [vmem:[%s3 + $0x4c] sm:$0xf] %v902
  %1031 = vst [vmem:[%s3 + $0x50] sm:$0xf] %v903
  %1032 = vst [vmem:[%s3 + $0x54] sm:$0xf] %v904
  %1033 = vst [vmem:[%s3 + $0x58] sm:$0xf] %v905
  %1034 = vst [vmem:[%s3 + $0x5c] sm:$0xf] %v906
  %1035 = vst [vmem:[%s3 + $0x60] sm:$0xf] %v907
  %1036 = vst [vmem:[%s3 + $0x64] sm:$0xf] %v908
  %1037 = vst [vmem:[%s3 + $0x68] sm:$0xf] %v909
  %1038 = vst [vmem:[%s3 + $0x6c] sm:$0xf] %v910
  %1039 = vst [vmem:[%s3 + $0x70] sm:$0xf] %v911
  %1040 = vst [vmem:[%s3 + $0x74] sm:$0xf] %v912
  %1041 = vst [vmem:[%s3 + $0x78] sm:$0xf] %v913
  %1042 = vst [vmem:[%s3 + $0x7c] sm:$0xf] %v914
  %1043 = vst [vmem:[%s3 + $0x80] sm:$0xf] %v915
  %1044 = vst [vmem:[%s3 + $0x84] sm:$0xf] %v916
  %1045 = vst [vmem:[%s3 + $0x88] sm:$0xf] %v917
  %1046 = vst [vmem:[%s3 + $0x8c] sm:$0xf] %v918
  %1047 = vst [vmem:[%s3 + $0x90] sm:$0xf] %v919
  %1048 = vst [vmem:[%s3 + $0x94] sm:$0xf] %v920
  %1049 = vst [vmem:[%s3 + $0x98] sm:$0xf] %v921
  %1050 = vst [vmem:[%s3 + $0x9c] sm:$0xf] %v922
  %1051 = vst [vmem:[%s3 + $0xa0] sm:$0xf] %v923
  %1052 = vst [vmem:[%s3 + $0xa4] sm:$0xf] %v924
  %1053 = vst [vmem:[%s3 + $0xa8] sm:$0xf] %v925
  %1054 = vst [vmem:[%s3 + $0xac] sm:$0xf] %v926
  %1055 = vst [vmem:[%s3 + $0xb0] sm:$0xf] %v927
  %1056 = vst [vmem:[%s3 + $0xb4] sm:$0xf] %v928
  %1057 = vst [vmem:[%s3 + $0xb8] sm:$0xf] %v929
  %1058 = vst [vmem:[%s3 + $0xbc] sm:$0xf] %v930
  %1059 = vst [vmem:[%s3 + $0xc0] sm:$0xf] %v931
  %1060 = vst [vmem:[%s3 + $0xc4] sm:$0xf] %v932
  %1061 = vst [vmem:[%s3 + $0xc8] sm:$0xf] %v933
  %1062 = vst [vmem:[%s3 + $0xcc] sm:$0xf] %v934
  %1063 = vst [vmem:[%s3 + $0xd0] sm:$0xf] %v935
  %1064 = vst [vmem:[%s3 + $0xd4] sm:$0xf] %v936
  %1065 = vst [vmem:[%s3 + $0xd8] sm:$0xf] %v937
  %1066 = vst [vmem:[%s3 + $0xdc] sm:$0xf] %v938
  %1067 = vst [vmem:[%s3 + $0xe0] sm:$0xf] %v939
  %1068 = vst [vmem:[%s3 + $0xe4] sm:$0xf] %v940
  %1069 = vst [vmem:[%s3 + $0xe8] sm:$0xf] %v941
  %1070 = vst [vmem:[%s3 + $0xec] sm:$0xf] %v942
  %1071 = vst [vmem:[%s3 + $0xf0] sm:$0xf] %v943
  %1072 = vst [vmem:[%s3 + $0xf4] sm:$0xf] %v944
  %1073 = vst [vmem:[%s3 + $0xf8] sm:$0xf] %v945
  %1074 = vst [vmem:[%s3 + $0xfc] sm:$0xf] %v946
  // Predicated region
  $region14: #{faster_rcnn_forward.18} parent=0 // pred_check
    _
  $region15: #{faster_rcnn_forward.18} parent=0 // pred_check_branch
    %1076 = sbr.rel (0) target = $region17
  $region16: #{faster_rcnn_forward.18} parent=0 // pred_region
    _
  $region17: #{faster_rcnn_forward.18} parent=0 // pred_fallthru
    _
  // Predicated region
  $region18: #{faster_rcnn_forward.18} parent=0 // pred_check
    _
  $region19: #{faster_rcnn_forward.18} parent=0 // pred_check_branch
    %1078 = sbr.rel (0) target = $region21
  $region20: #{faster_rcnn_forward.18} parent=0 // pred_region
    _
  $region21: #{faster_rcnn_forward.18} parent=0 // pred_fallthru
    _

// kernel: faster_rcnn_forward.19
$region0: #{faster_rcnn_forward.19}
  #allocation0 [shape = 'u32[]', space=smem, size = 0x4, offset = 0x4, fixed_abs, tag = 'smem constant byte address 0x4 - core index']
  #allocation1 [shape = 'u32[144,128]{1,0:T(1,128)}', space=vmem, size = 0x12000, scoped, tag = 'internal scratch']
  %s0 = inlined_call_operand.vmem [shape: bf16[128,108], index: 0, kind: input, shape index: {}]
  %s1 = inlined_call_operand.vmem [shape: bf16[108,128], index: 1, kind: input, shape index: {}]
  %s2 = inlined_call_operand.vmem [shape: f32[1,128], index: 2, kind: input, shape index: {}]
  %s3 = inlined_call_operand.vmem [shape: bf16[128,128], index: 3, kind: output, shape index: {}]
  %s4 = sld [smem:[#allocation0]]
  $region22: #{faster_rcnn_forward.19} parent=0
    _
  %s6 = ssub.s32 1, %s4
  %s7 = scalar_select 0, %s6, %s4
  // Predicated region
  $region2: #{faster_rcnn_forward.19} parent=0 // pred_check
    _
  $region3: #{faster_rcnn_forward.19} parent=0 // pred_check_branch
    %9 = sbr.rel (0) target = $region5
  $region4: #{faster_rcnn_forward.19} parent=0 // pred_region
    _
  $region5: #{faster_rcnn_forward.19} parent=0 // pred_fallthru
    _
  // Predicated region
  $region6: #{faster_rcnn_forward.19} parent=0 // pred_check
    _
  $region7: #{faster_rcnn_forward.19} parent=0 // pred_check_branch
    %11 = sbr.rel (0) target = $region9
  $region8: #{faster_rcnn_forward.19} parent=0 // pred_region
    _
  $region9: #{faster_rcnn_forward.19} parent=0 // pred_fallthru
    _
  // Predicated region
  $region10: #{faster_rcnn_forward.19} parent=0 // pred_check
    _
  $region11: #{faster_rcnn_forward.19} parent=0 // pred_check_branch
    %13 = sbr.rel (0) target = $region13
  $region12: #{faster_rcnn_forward.19} parent=0 // pred_region
    _
  $region13: #{faster_rcnn_forward.19} parent=0 // pred_fallthru
    _
  %v15 = vld [vmem:[%s0] sm:$0xf]
  %v16 = vld [vmem:[%s0 + $0x4] sm:$0xf]
  %v17 = vld [vmem:[%s0 + $0x8] sm:$0xf]
  %v18 = vld [vmem:[%s0 + $0xc] sm:$0xf]
  %v19 = vld [vmem:[%s0 + $0x10] sm:$0xf]
  %v20 = vld [vmem:[%s0 + $0x14] sm:$0xf]
  %v21 = vld [vmem:[%s0 + $0x18] sm:$0xf]
  %v22 = vld [vmem:[%s0 + $0x1c] sm:$0xf]
  %v23 = vld [vmem:[%s0 + $0x20] sm:$0xf]
  %v24 = vld [vmem:[%s0 + $0x24] sm:$0xf]
  %v25 = vld [vmem:[%s0 + $0x28] sm:$0xf]
  %v26 = vld [vmem:[%s0 + $0x2c] sm:$0xf]
  %v27 = vld [vmem:[%s0 + $0x30] sm:$0xf]
  %v28 = vld [vmem:[%s0 + $0x34] sm:$0xf]
  %v29 = vld [vmem:[%s0 + $0x38] sm:$0xf]
  %v30 = vld [vmem:[%s0 + $0x3c] sm:$0xf]
  %v31 = vld [vmem:[%s1] sm:$0xf]
  %v32 = vld [vmem:[%s1 + $0x4] sm:$0xf]
  %v33 = vld [vmem:[%s1 + $0x8] sm:$0xf]
  %v34 = vld [vmem:[%s1 + $0xc] sm:$0xf]
  %v35 = vld [vmem:[%s1 + $0x10] sm:$0xf]
  %v36 = vld [vmem:[%s1 + $0x14] sm:$0xf]
  %v37 = vld [vmem:[%s1 + $0x18] sm:$0xf]
  %v38 = vld [vmem:[%s1 + $0x1c] sm:$0xf]
  %v39 = vld [vmem:[%s1 + $0x20] sm:$0xf]
  %v40 = vld [vmem:[%s1 + $0x24] sm:$0xf]
  %v41 = vld [vmem:[%s1 + $0x28] sm:$0xf]
  %v42 = vld [vmem:[%s1 + $0x2c] sm:$0xf]
  %v43 = vld [vmem:[%s1 + $0x30] sm:$0xf]
  %v44 = vld [vmem:[%s1 + $0x34] sm:$0x3]
  %v45 = vld [vmem:[%s2] sm:$0x1]
  %v47 = vlaneseq
  %v48 = vshrl.u32 %v47, 7
  %v49 = vsub.s32 0, %v48
  %v50 = vrot.slane %v45, %v49
  %v68 = vunpack.c.l.b16 %v15
  %v69 = vunpack.c.l.b16 %v16
  %v70 = vunpack.c.l.b16 %v17
  %v71 = vunpack.c.l.b16 %v18
  %v72 = vunpack.c.l.b16 %v19
  %v73 = vunpack.c.l.b16 %v20
  %v74 = vunpack.c.l.b16 %v21
  %v75 = vunpack.c.l.b16 %v22
  %v76 = vunpack.c.l.b16 %v23
  %v77 = vunpack.c.l.b16 %v24
  %v78 = vunpack.c.l.b16 %v25
  %v79 = vunpack.c.l.b16 %v26
  %v80 = vunpack.c.l.b16 %v27
  %v81 = vunpack.c.l.b16 %v28
  %v82 = vunpack.c.l.b16 %v29
  %v83 = vunpack.c.l.b16 %v30
  %v84 = vpack.c.b16 %v69, %v68
  %v85 = vpack.c.b16 %v71, %v70
  %v86 = vpack.c.b16 %v73, %v72
  %v87 = vpack.c.b16 %v75, %v74
  %v88 = vpack.c.b16 %v77, %v76
  %v89 = vpack.c.b16 %v79, %v78
  %v90 = vpack.c.b16 %v81, %v80
  %v91 = vpack.c.b16 %v83, %v82
  %v106 = vunpack.c.l.b16 %v31
  %v107 = vunpack.c.l.b16 %v32
  %v108 = vunpack.c.l.b16 %v33
  %v109 = vunpack.c.l.b16 %v34
  %v110 = vunpack.c.l.b16 %v35
  %v111 = vunpack.c.l.b16 %v36
  %v112 = vunpack.c.l.b16 %v37
  %v113 = vunpack.c.l.b16 %v38
  %v114 = vunpack.c.l.b16 %v39
  %v115 = vunpack.c.l.b16 %v40
  %v116 = vunpack.c.l.b16 %v41
  %v117 = vunpack.c.l.b16 %v42
  %v118 = vunpack.c.l.b16 %v43
  %v119 = vunpack.c.l.b16 %v44
  %v120 = vpack.c.b16 %v107, %v106
  %v121 = vpack.c.b16 %v109, %v108
  %v122 = vpack.c.b16 %v111, %v110
  %v123 = vpack.c.b16 %v113, %v112
  %v124 = vpack.c.b16 %v115, %v114
  %v125 = vpack.c.b16 %v117, %v116
  %v126 = vpack.c.b16 %v119, %v118
  %vm133 = vcmask 883712
  %v135 = vsel %vm133, %v84, 0
  %v138 = vsel %vm133, %v85, 0
  %v141 = vsel %vm133, %v86, 0
  %v144 = vsel %vm133, %v87, 0
  %v147 = vsel %vm133, %v88, 0
  %v150 = vsel %vm133, %v89, 0
  %v153 = vsel %vm133, %v90, 0
  %v156 = vsel %vm133, %v91, 0
  %vm158 = vcmask 1045504
  %v160 = vsel %vm158, %v126, 0
  %162 = vmatprep.subr.bf16.mxu0 0
  %163 = vmatpush1.bf16.msra.mxu0 0
  %164 = vmatprep.subr.bf16.mxu0 0
  %165 = vmatpush1.bf16.msra.mxu0 %v160
  %166 = vmatprep.subr.bf16.mxu0 0
  %167 = vmatpush1.bf16.msra.mxu0 %v125
  %168 = vmatprep.subr.bf16.mxu0 0
  %169 = vmatpush1.bf16.msra.mxu0 %v124
  %170 = vmatprep.subr.bf16.mxu0 0
  %171 = vmatpush1.bf16.msra.mxu0 %v123
  %172 = vmatprep.subr.bf16.mxu0 0
  %173 = vmatpush1.bf16.msra.mxu0 %v122
  %174 = vmatprep.subr.bf16.mxu0 0
  %175 = vmatpush1.bf16.msra.mxu0 %v121
  %176 = vmatprep.subr.bf16.mxu0 0
  %177 = vmatpush1.bf16.msra.mxu0 %v120
  %178 = vmatprep.subr.bf16.mxu0 0
  %179 = vmatpush2.bf16.msra.mxu0 0
  %180 = vmatprep.subr.bf16.mxu0 0
  %181 = vmatpush2.bf16.msra.mxu0 0
  %182 = vmatprep.subr.bf16.mxu0 0
  %183 = vmatpush2.bf16.msra.mxu0 0
  %184 = vmatprep.subr.bf16.mxu0 0
  %185 = vmatpush2.bf16.msra.mxu0 0
  %186 = vmatprep.subr.bf16.mxu0 0
  %187 = vmatpush2.bf16.msra.mxu0 0
  %188 = vmatprep.subr.bf16.mxu0 0
  %189 = vmatpush2.bf16.msra.mxu0 0
  %190 = vmatprep.subr.bf16.mxu0 0
  %191 = vmatpush2.bf16.msra.mxu0 0
  %192 = vmatprep.subr.bf16.mxu0 0
  %193 = vmatpush2.bf16.msra.mxu0 0
  %194 = vmatprep.mubr.bf16.mxu0 0
  %195 = vmatmul.mubr.bf16.gmra.mxu0 %v135
  %v196 = vpop.f32.mrf.mxu0
  %v197 = vadd.f32 %v50, %v196
  %v198 = vpop.f32.mrf.mxu0
  %v199 = vpop.f32.mrf.mxu0
  %v200 = vadd.f32 %v50, %v199
  %v201 = vpop.f32.mrf.mxu0
  %202 = vmatprep.mubr.bf16.mxu0 0
  %203 = vmatmul.mubr.bf16.gmra.mxu0 %v138
  %v204 = vpop.f32.mrf.mxu0
  %v205 = vadd.f32 %v50, %v204
  %v206 = vpop.f32.mrf.mxu0
  %v207 = vpop.f32.mrf.mxu0
  %v208 = vadd.f32 %v50, %v207
  %v209 = vpop.f32.mrf.mxu0
  %210 = vmatprep.mubr.bf16.mxu0 0
  %211 = vmatmul.mubr.bf16.gmra.mxu0 %v141
  %v212 = vpop.f32.mrf.mxu0
  %v213 = vadd.f32 %v50, %v212
  %v214 = vpop.f32.mrf.mxu0
  %v215 = vpop.f32.mrf.mxu0
  %v216 = vadd.f32 %v50, %v215
  %v217 = vpop.f32.mrf.mxu0
  %218 = vmatprep.mubr.bf16.mxu0 0
  %219 = vmatmul.mubr.bf16.gmra.mxu0 %v144
  %v220 = vpop.f32.mrf.mxu0
  %v221 = vadd.f32 %v50, %v220
  %v222 = vpop.f32.mrf.mxu0
  %v223 = vpop.f32.mrf.mxu0
  %v224 = vadd.f32 %v50, %v223
  %v225 = vpop.f32.mrf.mxu0
  %226 = vmatprep.mubr.bf16.mxu0 0
  %227 = vmatmul.mubr.bf16.gmra.mxu0 %v147
  %v228 = vpop.f32.mrf.mxu0
  %v229 = vadd.f32 %v50, %v228
  %v230 = vpop.f32.mrf.mxu0
  %v231 = vpop.f32.mrf.mxu0
  %v232 = vadd.f32 %v50, %v231
  %v233 = vpop.f32.mrf.mxu0
  %234 = vmatprep.mubr.bf16.mxu0 0
  %235 = vmatmul.mubr.bf16.gmra.mxu0 %v150
  %v236 = vpop.f32.mrf.mxu0
  %v237 = vadd.f32 %v50, %v236
  %v238 = vpop.f32.mrf.mxu0
  %v239 = vpop.f32.mrf.mxu0
  %v240 = vadd.f32 %v50, %v239
  %v241 = vpop.f32.mrf.mxu0
  %242 = vmatprep.mubr.bf16.mxu0 0
  %243 = vmatmul.mubr.bf16.gmra.mxu0 %v153
  %v244 = vpop.f32.mrf.mxu0
  %v245 = vadd.f32 %v50, %v244
  %v246 = vpop.f32.mrf.mxu0
  %v247 = vpop.f32.mrf.mxu0
  %v248 = vadd.f32 %v50, %v247
  %v249 = vpop.f32.mrf.mxu0
  %250 = vmatprep.mubr.bf16.mxu0 0
  %251 = vmatmul.mubr.bf16.gmra.mxu0 %v156
  %v252 = vpop.f32.mrf.mxu0
  %v253 = vadd.f32 %v50, %v252
  %v254 = vpop.f32.mrf.mxu0
  %v255 = vpop.f32.mrf.mxu0
  %v256 = vadd.f32 %v50, %v255
  %v257 = vpop.f32.mrf.mxu0
  %258 = vdwg.mxu0
  %v259 = vmax.f32 %v197, 0.0
  %v260 = vmax.f32 %v200, 0.0
  %v261 = vmax.f32 %v205, 0.0
  %v262 = vmax.f32 %v208, 0.0
  %v263 = vmax.f32 %v213, 0.0
  %v264 = vmax.f32 %v216, 0.0
  %v265 = vmax.f32 %v221, 0.0
  %v266 = vmax.f32 %v224, 0.0
  %v267 = vmax.f32 %v229, 0.0
  %v268 = vmax.f32 %v232, 0.0
  %v269 = vmax.f32 %v237, 0.0
  %v270 = vmax.f32 %v240, 0.0
  %v271 = vmax.f32 %v245, 0.0
  %v272 = vmax.f32 %v248, 0.0
  %v273 = vmax.f32 %v253, 0.0
  %v274 = vmax.f32 %v256, 0.0
  %v275 = vpack.c.bf16 %v260, %v259
  %v276 = vpack.c.bf16 %v262, %v261
  %v277 = vpack.c.bf16 %v264, %v263
  %v278 = vpack.c.bf16 %v266, %v265
  %v279 = vpack.c.bf16 %v268, %v267
  %v280 = vpack.c.bf16 %v270, %v269
  %v281 = vpack.c.bf16 %v272, %v271
  %v282 = vpack.c.bf16 %v274, %v273
  %v291 = vunpack.c.l.b16 %v275
  %v292 = vunpack.c.h.b16 %v275
  %v293 = vunpack.c.l.b16 %v276
  %v294 = vunpack.c.h.b16 %v276
  %v295 = vunpack.c.l.b16 %v277
  %v296 = vunpack.c.h.b16 %v277
  %v297 = vunpack.c.l.b16 %v278
  %v298 = vunpack.c.h.b16 %v278
  %v299 = vunpack.c.l.b16 %v279
  %v300 = vunpack.c.h.b16 %v279
  %v301 = vunpack.c.l.b16 %v280
  %v302 = vunpack.c.h.b16 %v280
  %v303 = vunpack.c.l.b16 %v281
  %v304 = vunpack.c.h.b16 %v281
  %v305 = vunpack.c.l.b16 %v282
  %v306 = vunpack.c.h.b16 %v282
  %v307 = vpack.c.b16 %v291, %v291
  %v308 = vpack.c.b16 %v292, %v292
  %v309 = vpack.c.b16 %v293, %v293
  %v310 = vpack.c.b16 %v294, %v294
  %v311 = vpack.c.b16 %v295, %v295
  %v312 = vpack.c.b16 %v296, %v296
  %v313 = vpack.c.b16 %v297, %v297
  %v314 = vpack.c.b16 %v298, %v298
  %v315 = vpack.c.b16 %v299, %v299
  %v316 = vpack.c.b16 %v300, %v300
  %v317 = vpack.c.b16 %v301, %v301
  %v318 = vpack.c.b16 %v302, %v302
  %v319 = vpack.c.b16 %v303, %v303
  %v320 = vpack.c.b16 %v304, %v304
  %v321 = vpack.c.b16 %v305, %v305
  %v322 = vpack.c.b16 %v306, %v306
  %339 = vst [vmem:[%s3] sm:$0xf] %v307
  %340 = vst [vmem:[%s3 + $0x4] sm:$0xf] %v308
  %341 = vst [vmem:[%s3 + $0x8] sm:$0xf] %v309
  %342 = vst [vmem:[%s3 + $0xc] sm:$0xf] %v310
  %343 = vst [vmem:[%s3 + $0x10] sm:$0xf] %v311
  %344 = vst [vmem:[%s3 + $0x14] sm:$0xf] %v312
  %345 = vst [vmem:[%s3 + $0x18] sm:$0xf] %v313
  %346 = vst [vmem:[%s3 + $0x1c] sm:$0xf] %v314
  %347 = vst [vmem:[%s3 + $0x20] sm:$0xf] %v315
  %348 = vst [vmem:[%s3 + $0x24] sm:$0xf] %v316
  %349 = vst [vmem:[%s3 + $0x28] sm:$0xf] %v317
  %350 = vst [vmem:[%s3 + $0x2c] sm:$0xf] %v318
  %351 = vst [vmem:[%s3 + $0x30] sm:$0xf] %v319
  %352 = vst [vmem:[%s3 + $0x34] sm:$0xf] %v320
  %353 = vst [vmem:[%s3 + $0x38] sm:$0xf] %v321
  %354 = vst [vmem:[%s3 + $0x3c] sm:$0xf] %v322
  // Predicated region
  $region14: #{faster_rcnn_forward.19} parent=0 // pred_check
    _
  $region15: #{faster_rcnn_forward.19} parent=0 // pred_check_branch
    %356 = sbr.rel (0) target = $region17
  $region16: #{faster_rcnn_forward.19} parent=0 // pred_region
    _
  $region17: #{faster_rcnn_forward.19} parent=0 // pred_fallthru
    _
  // Predicated region
  $region18: #{faster_rcnn_forward.19} parent=0 // pred_check
    _
  $region19: #{faster_rcnn_forward.19} parent=0 // pred_check_branch
    %358 = sbr.rel (0) target = $region21
  $region20: #{faster_rcnn_forward.19} parent=0 // pred_region
    _
  $region21: #{faster_rcnn_forward.19} parent=0 // pred_fallthru
    _

// kernel: faster_rcnn_forward.20
$region0: #{faster_rcnn_forward.20}
  #allocation0 [shape = 'u32[]', space=smem, size = 0x4, offset = 0x4, fixed_abs, tag = 'smem constant byte address 0x4 - core index']
  #allocation1 [shape = 'u32[144,128]{1,0:T(1,128)}', space=vmem, size = 0x12000, scoped, tag = 'internal scratch']
  %s0 = inlined_call_operand.vmem [shape: bf16[128,144], index: 0, kind: input, shape index: {}]
  %s1 = inlined_call_operand.vmem [shape: bf16[144,128], index: 1, kind: input, shape index: {}]
  %s2 = inlined_call_operand.vmem [shape: f32[1,128], index: 2, kind: input, shape index: {}]
  %s3 = inlined_call_operand.vmem [shape: bf16[128,128], index: 3, kind: output, shape index: {}]
  %s4 = sld [smem:[#allocation0]]
  $region22: #{faster_rcnn_forward.20} parent=0
    _
  %s6 = ssub.s32 1, %s4
  %s7 = scalar_select 0, %s6, %s4
  // Predicated region
  $region2: #{faster_rcnn_forward.20} parent=0 // pred_check
    _
  $region3: #{faster_rcnn_forward.20} parent=0 // pred_check_branch
    %9 = sbr.rel (0) target = $region5
  $region4: #{faster_rcnn_forward.20} parent=0 // pred_region
    _
  $region5: #{faster_rcnn_forward.20} parent=0 // pred_fallthru
    _
  // Predicated region
  $region6: #{faster_rcnn_forward.20} parent=0 // pred_check
    _
  $region7: #{faster_rcnn_forward.20} parent=0 // pred_check_branch
    %11 = sbr.rel (0) target = $region9
  $region8: #{faster_rcnn_forward.20} parent=0 // pred_region
    _
  $region9: #{faster_rcnn_forward.20} parent=0 // pred_fallthru
    _
  // Predicated region
  $region10: #{faster_rcnn_forward.20} parent=0 // pred_check
    _
  $region11: #{faster_rcnn_forward.20} parent=0 // pred_check_branch
    %13 = sbr.rel (0) target = $region13
  $region12: #{faster_rcnn_forward.20} parent=0 // pred_region
    _
  $region13: #{faster_rcnn_forward.20} parent=0 // pred_fallthru
    _
  %v15 = vld [vmem:[%s0] sm:$0xff]
  %v16 = vld [vmem:[%s0 + $0x8] sm:$0xff]
  %v17 = vld [vmem:[%s0 + $0x10] sm:$0xff]
  %v18 = vld [vmem:[%s0 + $0x18] sm:$0xff]
  %v19 = vld [vmem:[%s0 + $0x20] sm:$0xff]
  %v20 = vld [vmem:[%s0 + $0x28] sm:$0xff]
  %v21 = vld [vmem:[%s0 + $0x30] sm:$0xff]
  %v22 = vld [vmem:[%s0 + $0x38] sm:$0xff]
  %v23 = vld [vmem:[%s0 + $0x40] sm:$0xff]
  %v24 = vld [vmem:[%s0 + $0x48] sm:$0xff]
  %v25 = vld [vmem:[%s0 + $0x50] sm:$0xff]
  %v26 = vld [vmem:[%s0 + $0x58] sm:$0xff]
  %v27 = vld [vmem:[%s0 + $0x60] sm:$0xff]
  %v28 = vld [vmem:[%s0 + $0x68] sm:$0xff]
  %v29 = vld [vmem:[%s0 + $0x70] sm:$0xff]
  %v30 = vld [vmem:[%s0 + $0x78] sm:$0xff]
  %v31 = vld [vmem:[%s1] sm:$0xf]
  %v32 = vld [vmem:[%s1 + $0x4] sm:$0xf]
  %v33 = vld [vmem:[%s1 + $0x8] sm:$0xf]
  %v34 = vld [vmem:[%s1 + $0xc] sm:$0xf]
  %v35 = vld [vmem:[%s1 + $0x10] sm:$0xf]
  %v36 = vld [vmem:[%s1 + $0x14] sm:$0xf]
  %v37 = vld [vmem:[%s1 + $0x18] sm:$0xf]
  %v38 = vld [vmem:[%s1 + $0x1c] sm:$0xf]
  %v39 = vld [vmem:[%s1 + $0x20] sm:$0xf]
  %v40 = vld [vmem:[%s1 + $0x24] sm:$0xf]
  %v41 = vld [vmem:[%s1 + $0x28] sm:$0xf]
  %v42 = vld [vmem:[%s1 + $0x2c] sm:$0xf]
  %v43 = vld [vmem:[%s1 + $0x30] sm:$0xf]
  %v44 = vld [vmem:[%s1 + $0x34] sm:$0xf]
  %v45 = vld [vmem:[%s1 + $0x38] sm:$0xf]
  %v46 = vld [vmem:[%s1 + $0x3c] sm:$0xf]
  %v47 = vld [vmem:[%s1 + $0x40] sm:$0xf]
  %v48 = vld [vmem:[%s1 + $0x44] sm:$0xf]
  %v49 = vld [vmem:[%s2] sm:$0x1]
  %v51 = vlaneseq
  %v52 = vshrl.u32 %v51, 7
  %v53 = vsub.s32 0, %v52
  %v54 = vrot.slane %v49, %v53
  %v72 = vunpack.c.l.b16 %v15
  %v73 = vunpack.c.h.b16 %v15
  %v74 = vunpack.c.l.b16 %v16
  %v75 = vunpack.c.h.b16 %v16
  %v76 = vunpack.c.l.b16 %v17
  %v77 = vunpack.c.h.b16 %v17
  %v78 = vunpack.c.l.b16 %v18
  %v79 = vunpack.c.h.b16 %v18
  %v80 = vunpack.c.l.b16 %v19
  %v81 = vunpack.c.h.b16 %v19
  %v82 = vunpack.c.l.b16 %v20
  %v83 = vunpack.c.h.b16 %v20
  %v84 = vunpack.c.l.b16 %v21
  %v85 = vunpack.c.h.b16 %v21
  %v86 = vunpack.c.l.b16 %v22
  %v87 = vunpack.c.h.b16 %v22
  %v88 = vunpack.c.l.b16 %v23
  %v89 = vunpack.c.h.b16 %v23
  %v90 = vunpack.c.l.b16 %v24
  %v91 = vunpack.c.h.b16 %v24
  %v92 = vunpack.c.l.b16 %v25
  %v93 = vunpack.c.h.b16 %v25
  %v94 = vunpack.c.l.b16 %v26
  %v95 = vunpack.c.h.b16 %v26
  %v96 = vunpack.c.l.b16 %v27
  %v97 = vunpack.c.h.b16 %v27
  %v98 = vunpack.c.l.b16 %v28
  %v99 = vunpack.c.h.b16 %v28
  %v100 = vunpack.c.l.b16 %v29
  %v101 = vunpack.c.h.b16 %v29
  %v102 = vunpack.c.l.b16 %v30
  %v103 = vunpack.c.h.b16 %v30
  %v104 = vpack.c.b16 %v74, %v72
  %v105 = vpack.c.b16 %v75, %v73
  %v106 = vpack.c.b16 %v78, %v76
  %v107 = vpack.c.b16 %v79, %v77
  %v108 = vpack.c.b16 %v82, %v80
  %v109 = vpack.c.b16 %v83, %v81
  %v110 = vpack.c.b16 %v86, %v84
  %v111 = vpack.c.b16 %v87, %v85
  %v112 = vpack.c.b16 %v90, %v88
  %v113 = vpack.c.b16 %v91, %v89
  %v114 = vpack.c.b16 %v94, %v92
  %v115 = vpack.c.b16 %v95, %v93
  %v116 = vpack.c.b16 %v98, %v96
  %v117 = vpack.c.b16 %v99, %v97
  %v118 = vpack.c.b16 %v102, %v100
  %v119 = vpack.c.b16 %v103, %v101
  %v146 = vunpack.c.l.b16 %v31
  %v147 = vunpack.c.l.b16 %v32
  %v148 = vunpack.c.l.b16 %v33
  %v149 = vunpack.c.l.b16 %v34
  %v150 = vunpack.c.l.b16 %v35
  %v151 = vunpack.c.l.b16 %v36
  %v152 = vunpack.c.l.b16 %v37
  %v153 = vunpack.c.l.b16 %v38
  %v154 = vunpack.c.l.b16 %v39
  %v155 = vunpack.c.l.b16 %v40
  %v156 = vunpack.c.l.b16 %v41
  %v157 = vunpack.c.l.b16 %v42
  %v158 = vunpack.c.l.b16 %v43
  %v159 = vunpack.c.l.b16 %v44
  %v160 = vunpack.c.l.b16 %v45
  %v161 = vunpack.c.l.b16 %v46
  %v162 = vunpack.c.l.b16 %v47
  %v163 = vunpack.c.l.b16 %v48
  %v164 = vpack.c.b16 %v147, %v146
  %v165 = vpack.c.b16 %v149, %v148
  %v166 = vpack.c.b16 %v151, %v150
  %v167 = vpack.c.b16 %v153, %v152
  %v168 = vpack.c.b16 %v155, %v154
  %v169 = vpack.c.b16 %v157, %v156
  %v170 = vpack.c.b16 %v159, %v158
  %v171 = vpack.c.b16 %v161, %v160
  %v172 = vpack.c.b16 %v163, %v162
  %vm182 = vcmask 130048
  %v184 = vsel %vm182, %v105, 0
  %v187 = vsel %vm182, %v107, 0
  %v190 = vsel %vm182, %v109, 0
  %v193 = vsel %vm182, %v111, 0
  %v196 = vsel %vm182, %v113, 0
  %v199 = vsel %vm182, %v115, 0
  %v202 = vsel %vm182, %v117, 0
  %v205 = vsel %vm182, %v119, 0
  %207 = vmatprep.subr.bf16.mxu0 0
  %208 = vmatpush1.bf16.msra.mxu0 %v171
  %209 = vmatprep.subr.bf16.mxu0 0
  %210 = vmatpush1.bf16.msra.mxu0 %v170
  %211 = vmatprep.subr.bf16.mxu0 0
  %212 = vmatpush1.bf16.msra.mxu0 %v169
  %213 = vmatprep.subr.bf16.mxu0 0
  %214 = vmatpush1.bf16.msra.mxu0 %v168
  %215 = vmatprep.subr.bf16.mxu0 0
  %216 = vmatpush1.bf16.msra.mxu0 %v167
  %217 = vmatprep.subr.bf16.mxu0 0
  %218 = vmatpush1.bf16.msra.mxu0 %v166
  %219 = vmatprep.subr.bf16.mxu0 0
  %220 = vmatpush1.bf16.msra.mxu0 %v165
  %221 = vmatprep.subr.bf16.mxu0 0
  %222 = vmatpush1.bf16.msra.mxu0 %v164
  %223 = vmatprep.subr.bf16.mxu0 0
  %224 = vmatpush2.bf16.msra.mxu0 0
  %225 = vmatprep.subr.bf16.mxu0 0
  %226 = vmatpush2.bf16.msra.mxu0 0
  %227 = vmatprep.subr.bf16.mxu0 0
  %228 = vmatpush2.bf16.msra.mxu0 0
  %229 = vmatprep.subr.bf16.mxu0 0
  %230 = vmatpush2.bf16.msra.mxu0 0
  %231 = vmatprep.subr.bf16.mxu0 0
  %232 = vmatpush2.bf16.msra.mxu0 0
  %233 = vmatprep.subr.bf16.mxu0 0
  %234 = vmatpush2.bf16.msra.mxu0 0
  %235 = vmatprep.subr.bf16.mxu0 0
  %236 = vmatpush2.bf16.msra.mxu0 0
  %237 = vmatprep.subr.bf16.mxu0 0
  %238 = vmatpush2.bf16.msra.mxu0 %v172
  %239 = vmatprep.mubr.bf16.mxu0 %v184
  %240 = vmatmul.mubr.bf16.gmra.mxu0 %v104
  %v241 = vpop.f32.mrf.mxu0
  %v242 = vadd.f32 %v54, %v241
  %v243 = vpop.f32.mrf.mxu0
  %v244 = vpop.f32.mrf.mxu0
  %v245 = vadd.f32 %v54, %v244
  %v246 = vpop.f32.mrf.mxu0
  %247 = vmatprep.mubr.bf16.mxu0 %v187
  %248 = vmatmul.mubr.bf16.gmra.mxu0 %v106
  %v249 = vpop.f32.mrf.mxu0
  %v250 = vadd.f32 %v54, %v249
  %v251 = vpop.f32.mrf.mxu0
  %v252 = vpop.f32.mrf.mxu0
  %v253 = vadd.f32 %v54, %v252
  %v254 = vpop.f32.mrf.mxu0
  %255 = vmatprep.mubr.bf16.mxu0 %v190
  %256 = vmatmul.mubr.bf16.gmra.mxu0 %v108
  %v257 = vpop.f32.mrf.mxu0
  %v258 = vadd.f32 %v54, %v257
  %v259 = vpop.f32.mrf.mxu0
  %v260 = vpop.f32.mrf.mxu0
  %v261 = vadd.f32 %v54, %v260
  %v262 = vpop.f32.mrf.mxu0
  %263 = vmatprep.mubr.bf16.mxu0 %v193
  %264 = vmatmul.mubr.bf16.gmra.mxu0 %v110
  %v265 = vpop.f32.mrf.mxu0
  %v266 = vadd.f32 %v54, %v265
  %v267 = vpop.f32.mrf.mxu0
  %v268 = vpop.f32.mrf.mxu0
  %v269 = vadd.f32 %v54, %v268
  %v270 = vpop.f32.mrf.mxu0
  %271 = vmatprep.mubr.bf16.mxu0 %v196
  %272 = vmatmul.mubr.bf16.gmra.mxu0 %v112
  %v273 = vpop.f32.mrf.mxu0
  %v274 = vadd.f32 %v54, %v273
  %v275 = vpop.f32.mrf.mxu0
  %v276 = vpop.f32.mrf.mxu0
  %v277 = vadd.f32 %v54, %v276
  %v278 = vpop.f32.mrf.mxu0
  %279 = vmatprep.mubr.bf16.mxu0 %v199
  %280 = vmatmul.mubr.bf16.gmra.mxu0 %v114
  %v281 = vpop.f32.mrf.mxu0
  %v282 = vadd.f32 %v54, %v281
  %v283 = vpop.f32.mrf.mxu0
  %v284 = vpop.f32.mrf.mxu0
  %v285 = vadd.f32 %v54, %v284
  %v286 = vpop.f32.mrf.mxu0
  %287 = vmatprep.mubr.bf16.mxu0 %v202
  %288 = vmatmul.mubr.bf16.gmra.mxu0 %v116
  %v289 = vpop.f32.mrf.mxu0
  %v290 = vadd.f32 %v54, %v289
  %v291 = vpop.f32.mrf.mxu0
  %v292 = vpop.f32.mrf.mxu0
  %v293 = vadd.f32 %v54, %v292
  %v294 = vpop.f32.mrf.mxu0
  %295 = vmatprep.mubr.bf16.mxu0 %v205
  %296 = vmatmul.mubr.bf16.gmra.mxu0 %v118
  %v297 = vpop.f32.mrf.mxu0
  %v298 = vadd.f32 %v54, %v297
  %v299 = vpop.f32.mrf.mxu0
  %v300 = vpop.f32.mrf.mxu0
  %v301 = vadd.f32 %v54, %v300
  %v302 = vpop.f32.mrf.mxu0
  %303 = vdwg.mxu0
  %v304 = vmax.f32 %v242, 0.0
  %v305 = vmax.f32 %v245, 0.0
  %v306 = vmax.f32 %v250, 0.0
  %v307 = vmax.f32 %v253, 0.0
  %v308 = vmax.f32 %v258, 0.0
  %v309 = vmax.f32 %v261, 0.0
  %v310 = vmax.f32 %v266, 0.0
  %v311 = vmax.f32 %v269, 0.0
  %v312 = vmax.f32 %v274, 0.0
  %v313 = vmax.f32 %v277, 0.0
  %v314 = vmax.f32 %v282, 0.0
  %v315 = vmax.f32 %v285, 0.0
  %v316 = vmax.f32 %v290, 0.0
  %v317 = vmax.f32 %v293, 0.0
  %v318 = vmax.f32 %v298, 0.0
  %v319 = vmax.f32 %v301, 0.0
  %v320 = vpack.c.bf16 %v305, %v304
  %v321 = vpack.c.bf16 %v307, %v306
  %v322 = vpack.c.bf16 %v309, %v308
  %v323 = vpack.c.bf16 %v311, %v310
  %v324 = vpack.c.bf16 %v313, %v312
  %v325 = vpack.c.bf16 %v315, %v314
  %v326 = vpack.c.bf16 %v317, %v316
  %v327 = vpack.c.bf16 %v319, %v318
  %v336 = vunpack.c.l.b16 %v320
  %v337 = vunpack.c.h.b16 %v320
  %v338 = vunpack.c.l.b16 %v321
  %v339 = vunpack.c.h.b16 %v321
  %v340 = vunpack.c.l.b16 %v322
  %v341 = vunpack.c.h.b16 %v322
  %v342 = vunpack.c.l.b16 %v323
  %v343 = vunpack.c.h.b16 %v323
  %v344 = vunpack.c.l.b16 %v324
  %v345 = vunpack.c.h.b16 %v324
  %v346 = vunpack.c.l.b16 %v325
  %v347 = vunpack.c.h.b16 %v325
  %v348 = vunpack.c.l.b16 %v326
  %v349 = vunpack.c.h.b16 %v326
  %v350 = vunpack.c.l.b16 %v327
  %v351 = vunpack.c.h.b16 %v327
  %v352 = vpack.c.b16 %v336, %v336
  %v353 = vpack.c.b16 %v337, %v337
  %v354 = vpack.c.b16 %v338, %v338
  %v355 = vpack.c.b16 %v339, %v339
  %v356 = vpack.c.b16 %v340, %v340
  %v357 = vpack.c.b16 %v341, %v341
  %v358 = vpack.c.b16 %v342, %v342
  %v359 = vpack.c.b16 %v343, %v343
  %v360 = vpack.c.b16 %v344, %v344
  %v361 = vpack.c.b16 %v345, %v345
  %v362 = vpack.c.b16 %v346, %v346
  %v363 = vpack.c.b16 %v347, %v347
  %v364 = vpack.c.b16 %v348, %v348
  %v365 = vpack.c.b16 %v349, %v349
  %v366 = vpack.c.b16 %v350, %v350
  %v367 = vpack.c.b16 %v351, %v351
  %384 = vst [vmem:[%s3] sm:$0xf] %v352
  %385 = vst [vmem:[%s3 + $0x4] sm:$0xf] %v353
  %386 = vst [vmem:[%s3 + $0x8] sm:$0xf] %v354
  %387 = vst [vmem:[%s3 + $0xc] sm:$0xf] %v355
  %388 = vst [vmem:[%s3 + $0x10] sm:$0xf] %v356
  %389 = vst [vmem:[%s3 + $0x14] sm:$0xf] %v357
  %390 = vst [vmem:[%s3 + $0x18] sm:$0xf] %v358
  %391 = vst [vmem:[%s3 + $0x1c] sm:$0xf] %v359
  %392 = vst [vmem:[%s3 + $0x20] sm:$0xf] %v360
  %393 = vst [vmem:[%s3 + $0x24] sm:$0xf] %v361
  %394 = vst [vmem:[%s3 + $0x28] sm:$0xf] %v362
  %395 = vst [vmem:[%s3 + $0x2c] sm:$0xf] %v363
  %396 = vst [vmem:[%s3 + $0x30] sm:$0xf] %v364
  %397 = vst [vmem:[%s3 + $0x34] sm:$0xf] %v365
  %398 = vst [vmem:[%s3 + $0x38] sm:$0xf] %v366
  %399 = vst [vmem:[%s3 + $0x3c] sm:$0xf] %v367
  // Predicated region
  $region14: #{faster_rcnn_forward.20} parent=0 // pred_check
    _
  $region15: #{faster_rcnn_forward.20} parent=0 // pred_check_branch
    %401 = sbr.rel (0) target = $region17
  $region16: #{faster_rcnn_forward.20} parent=0 // pred_region
    _
  $region17: #{faster_rcnn_forward.20} parent=0 // pred_fallthru
    _
  // Predicated region
  $region18: #{faster_rcnn_forward.20} parent=0 // pred_check
    _
  $region19: #{faster_rcnn_forward.20} parent=0 // pred_check_branch
    %403 = sbr.rel (0) target = $region21
  $region20: #{faster_rcnn_forward.20} parent=0 // pred_region
    _
  $region21: #{faster_rcnn_forward.20} parent=0 // pred_fallthru
    _

// kernel: faster_rcnn_forward.22
$region0: #{faster_rcnn_forward.22}
  #allocation0 [shape = 'u32[]', space=smem, size = 0x4, offset = 0x4, fixed_abs, tag = 'smem constant byte address 0x4 - core index']
  #allocation1 [shape = 'u32[144,128]{1,0:T(1,128)}', space=vmem, size = 0x12000, scoped, tag = 'internal scratch']
  %s0 = inlined_call_operand.vmem [shape: bf16[32,144], index: 0, kind: input, shape index: {}]
  %s1 = inlined_call_operand.vmem [shape: bf16[144,128], index: 1, kind: input, shape index: {}]
  %s2 = inlined_call_operand.vmem [shape: f32[1,128], index: 2, kind: input, shape index: {}]
  %s3 = inlined_call_operand.vmem [shape: bf16[32,128], index: 3, kind: output, shape index: {}]
  %s4 = sld [smem:[#allocation0]]
  $region22: #{faster_rcnn_forward.22} parent=0
    _
  %s6 = ssub.s32 1, %s4
  %s7 = scalar_select 0, %s6, %s4
  // Predicated region
  $region2: #{faster_rcnn_forward.22} parent=0 // pred_check
    _
  $region3: #{faster_rcnn_forward.22} parent=0 // pred_check_branch
    %9 = sbr.rel (0) target = $region5
  $region4: #{faster_rcnn_forward.22} parent=0 // pred_region
    _
  $region5: #{faster_rcnn_forward.22} parent=0 // pred_fallthru
    _
  // Predicated region
  $region6: #{faster_rcnn_forward.22} parent=0 // pred_check
    _
  $region7: #{faster_rcnn_forward.22} parent=0 // pred_check_branch
    %11 = sbr.rel (0) target = $region9
  $region8: #{faster_rcnn_forward.22} parent=0 // pred_region
    _
  $region9: #{faster_rcnn_forward.22} parent=0 // pred_fallthru
    _
  // Predicated region
  $region10: #{faster_rcnn_forward.22} parent=0 // pred_check
    _
  $region11: #{faster_rcnn_forward.22} parent=0 // pred_check_branch
    %13 = sbr.rel (0) target = $region13
  $region12: #{faster_rcnn_forward.22} parent=0 // pred_region
    _
  $region13: #{faster_rcnn_forward.22} parent=0 // pred_fallthru
    _
  %v15 = vld [vmem:[%s0] sm:$0xff]
  %v16 = vld [vmem:[%s0 + $0x8] sm:$0xff]
  %v17 = vld [vmem:[%s0 + $0x10] sm:$0xff]
  %v18 = vld [vmem:[%s0 + $0x18] sm:$0xff]
  %v19 = vld [vmem:[%s1] sm:$0xf]
  %v20 = vld [vmem:[%s1 + $0x4] sm:$0xf]
  %v21 = vld [vmem:[%s1 + $0x8] sm:$0xf]
  %v22 = vld [vmem:[%s1 + $0xc] sm:$0xf]
  %v23 = vld [vmem:[%s1 + $0x10] sm:$0xf]
  %v24 = vld [vmem:[%s1 + $0x14] sm:$0xf]
  %v25 = vld [vmem:[%s1 + $0x18] sm:$0xf]
  %v26 = vld [vmem:[%s1 + $0x1c] sm:$0xf]
  %v27 = vld [vmem:[%s1 + $0x20] sm:$0xf]
  %v28 = vld [vmem:[%s1 + $0x24] sm:$0xf]
  %v29 = vld [vmem:[%s1 + $0x28] sm:$0xf]
  %v30 = vld [vmem:[%s1 + $0x2c] sm:$0xf]
  %v31 = vld [vmem:[%s1 + $0x30] sm:$0xf]
  %v32 = vld [vmem:[%s1 + $0x34] sm:$0xf]
  %v33 = vld [vmem:[%s1 + $0x38] sm:$0xf]
  %v34 = vld [vmem:[%s1 + $0x3c] sm:$0xf]
  %v35 = vld [vmem:[%s1 + $0x40] sm:$0xf]
  %v36 = vld [vmem:[%s1 + $0x44] sm:$0xf]
  %v37 = vld [vmem:[%s2] sm:$0x1]
  %v39 = vlaneseq
  %v40 = vshrl.u32 %v39, 7
  %v41 = vsub.s32 0, %v40
  %v42 = vrot.slane %v37, %v41
  %v48 = vunpack.c.l.b16 %v15
  %v49 = vunpack.c.h.b16 %v15
  %v50 = vunpack.c.l.b16 %v16
  %v51 = vunpack.c.h.b16 %v16
  %v52 = vunpack.c.l.b16 %v17
  %v53 = vunpack.c.h.b16 %v17
  %v54 = vunpack.c.l.b16 %v18
  %v55 = vunpack.c.h.b16 %v18
  %v56 = vpack.c.b16 %v50, %v48
  %v57 = vpack.c.b16 %v51, %v49
  %v58 = vpack.c.b16 %v54, %v52
  %v59 = vpack.c.b16 %v55, %v53
  %v80 = vunpack.c.l.b16 %v19
  %v81 = vunpack.c.l.b16 %v20
  %v82 = vunpack.c.l.b16 %v21
  %v83 = vunpack.c.l.b16 %v22
  %v84 = vunpack.c.l.b16 %v23
  %v85 = vunpack.c.l.b16 %v24
  %v86 = vunpack.c.l.b16 %v25
  %v87 = vunpack.c.l.b16 %v26
  %v88 = vunpack.c.l.b16 %v27
  %v89 = vunpack.c.l.b16 %v28
  %v90 = vunpack.c.l.b16 %v29
  %v91 = vunpack.c.l.b16 %v30
  %v92 = vunpack.c.l.b16 %v31
  %v93 = vunpack.c.l.b16 %v32
  %v94 = vunpack.c.l.b16 %v33
  %v95 = vunpack.c.l.b16 %v34
  %v96 = vunpack.c.l.b16 %v35
  %v97 = vunpack.c.l.b16 %v36
  %v98 = vpack.c.b16 %v81, %v80
  %v99 = vpack.c.b16 %v83, %v82
  %v100 = vpack.c.b16 %v85, %v84
  %v101 = vpack.c.b16 %v87, %v86
  %v102 = vpack.c.b16 %v89, %v88
  %v103 = vpack.c.b16 %v91, %v90
  %v104 = vpack.c.b16 %v93, %v92
  %v105 = vpack.c.b16 %v95, %v94
  %v106 = vpack.c.b16 %v97, %v96
  %vm116 = vcmask 130048
  %v118 = vsel %vm116, %v57, 0
  %v121 = vsel %vm116, %v59, 0
  %123 = vmatprep.subr.bf16.mxu0 0
  %124 = vmatpush1.bf16.msra.mxu0 %v105
  %125 = vmatprep.subr.bf16.mxu0 0
  %126 = vmatpush1.bf16.msra.mxu0 %v104
  %127 = vmatprep.subr.bf16.mxu0 0
  %128 = vmatpush1.bf16.msra.mxu0 %v103
  %129 = vmatprep.subr.bf16.mxu0 0
  %130 = vmatpush1.bf16.msra.mxu0 %v102
  %131 = vmatprep.subr.bf16.mxu0 0
  %132 = vmatpush1.bf16.msra.mxu0 %v101
  %133 = vmatprep.subr.bf16.mxu0 0
  %134 = vmatpush1.bf16.msra.mxu0 %v100
  %135 = vmatprep.subr.bf16.mxu0 0
  %136 = vmatpush1.bf16.msra.mxu0 %v99
  %137 = vmatprep.subr.bf16.mxu0 0
  %138 = vmatpush1.bf16.msra.mxu0 %v98
  %139 = vmatprep.subr.bf16.mxu0 0
  %140 = vmatpush2.bf16.msra.mxu0 0
  %141 = vmatprep.subr.bf16.mxu0 0
  %142 = vmatpush2.bf16.msra.mxu0 0
  %143 = vmatprep.subr.bf16.mxu0 0
  %144 = vmatpush2.bf16.msra.mxu0 0
  %145 = vmatprep.subr.bf16.mxu0 0
  %146 = vmatpush2.bf16.msra.mxu0 0
  %147 = vmatprep.subr.bf16.mxu0 0
  %148 = vmatpush2.bf16.msra.mxu0 0
  %149 = vmatprep.subr.bf16.mxu0 0
  %150 = vmatpush2.bf16.msra.mxu0 0
  %151 = vmatprep.subr.bf16.mxu0 0
  %152 = vmatpush2.bf16.msra.mxu0 0
  %153 = vmatprep.subr.bf16.mxu0 0
  %154 = vmatpush2.bf16.msra.mxu0 %v106
  %155 = vmatprep.mubr.bf16.mxu0 %v118
  %156 = vmatmul.mubr.bf16.gmra.mxu0 %v56
  %v157 = vpop.f32.mrf.mxu0
  %v158 = vadd.f32 %v42, %v157
  %v159 = vpop.f32.mrf.mxu0
  %v160 = vpop.f32.mrf.mxu0
  %v161 = vadd.f32 %v42, %v160
  %v162 = vpop.f32.mrf.mxu0
  %163 = vmatprep.mubr.bf16.mxu0 %v121
  %164 = vmatmul.mubr.bf16.gmra.mxu0 %v58
  %v165 = vpop.f32.mrf.mxu0
  %v166 = vadd.f32 %v42, %v165
  %v167 = vpop.f32.mrf.mxu0
  %v168 = vpop.f32.mrf.mxu0
  %v169 = vadd.f32 %v42, %v168
  %v170 = vpop.f32.mrf.mxu0
  %171 = vdwg.mxu0
  %v172 = vmax.f32 %v158, 0.0
  %v173 = vmax.f32 %v161, 0.0
  %v174 = vmax.f32 %v166, 0.0
  %v175 = vmax.f32 %v169, 0.0
  %v176 = vpack.c.bf16 %v173, %v172
  %v177 = vpack.c.bf16 %v175, %v174
  %v180 = vunpack.c.l.b16 %v176
  %v181 = vunpack.c.h.b16 %v176
  %v182 = vunpack.c.l.b16 %v177
  %v183 = vunpack.c.h.b16 %v177
  %v184 = vpack.c.b16 %v180, %v180
  %v185 = vpack.c.b16 %v181, %v181
  %v186 = vpack.c.b16 %v182, %v182
  %v187 = vpack.c.b16 %v183, %v183
  %192 = vst [vmem:[%s3] sm:$0xf] %v184
  %193 = vst [vmem:[%s3 + $0x4] sm:$0xf] %v185
  %194 = vst [vmem:[%s3 + $0x8] sm:$0xf] %v186
  %195 = vst [vmem:[%s3 + $0xc] sm:$0xf] %v187
  // Predicated region
  $region14: #{faster_rcnn_forward.22} parent=0 // pred_check
    _
  $region15: #{faster_rcnn_forward.22} parent=0 // pred_check_branch
    %197 = sbr.rel (0) target = $region17
  $region16: #{faster_rcnn_forward.22} parent=0 // pred_region
    _
  $region17: #{faster_rcnn_forward.22} parent=0 // pred_fallthru
    _
  // Predicated region
  $region18: #{faster_rcnn_forward.22} parent=0 // pred_check
    _
  $region19: #{faster_rcnn_forward.22} parent=0 // pred_check_branch
    %199 = sbr.rel (0) target = $region21
  $region20: #{faster_rcnn_forward.22} parent=0 // pred_region
    _
  $region21: #{faster_rcnn_forward.22} parent=0 // pred_fallthru
    _

// kernel: faster_rcnn_forward.23
$region0: #{faster_rcnn_forward.23}
  #allocation0 [shape = 'u32[]', space=smem, size = 0x4, offset = 0x4, fixed_abs, tag = 'smem constant byte address 0x4 - core index']
  #allocation1 [shape = 'u32[144,128]{1,0:T(1,128)}', space=vmem, size = 0x12000, scoped, tag = 'internal scratch']
  %s0 = inlined_call_operand.vmem [shape: bf16[32,288], index: 0, kind: input, shape index: {}]
  %s1 = inlined_call_operand.vmem [shape: bf16[288,128], index: 1, kind: input, shape index: {}]
  %s2 = inlined_call_operand.vmem [shape: f32[1,128], index: 2, kind: input, shape index: {}]
  %s3 = inlined_call_operand.vmem [shape: bf16[32,128], index: 3, kind: output, shape index: {}]
  %s4 = sld [smem:[#allocation0]]
  $region22: #{faster_rcnn_forward.23} parent=0
    _
  %s6 = ssub.s32 1, %s4
  %s7 = scalar_select 0, %s6, %s4
  // Predicated region
  $region2: #{faster_rcnn_forward.23} parent=0 // pred_check
    _
  $region3: #{faster_rcnn_forward.23} parent=0 // pred_check_branch
    %9 = sbr.rel (0) target = $region5
  $region4: #{faster_rcnn_forward.23} parent=0 // pred_region
    _
  $region5: #{faster_rcnn_forward.23} parent=0 // pred_fallthru
    _
  // Predicated region
  $region6: #{faster_rcnn_forward.23} parent=0 // pred_check
    _
  $region7: #{faster_rcnn_forward.23} parent=0 // pred_check_branch
    %11 = sbr.rel (0) target = $region9
  $region8: #{faster_rcnn_forward.23} parent=0 // pred_region
    _
  $region9: #{faster_rcnn_forward.23} parent=0 // pred_fallthru
    _
  // Predicated region
  $region10: #{faster_rcnn_forward.23} parent=0 // pred_check
    _
  $region11: #{faster_rcnn_forward.23} parent=0 // pred_check_branch
    %13 = sbr.rel (0) target = $region13
  $region12: #{faster_rcnn_forward.23} parent=0 // pred_region
    _
  $region13: #{faster_rcnn_forward.23} parent=0 // pred_fallthru
    _
  %v15 = vld [vmem:[%s0] sm:$0xff]
  %v16 = vld [vmem:[%s0 + $0x8] sm:$0xf]
  %v17 = vld [vmem:[%s0 + $0xc] sm:$0xff]
  %v18 = vld [vmem:[%s0 + $0x14] sm:$0xf]
  %v19 = vld [vmem:[%s0 + $0x18] sm:$0xff]
  %v20 = vld [vmem:[%s0 + $0x20] sm:$0xf]
  %v21 = vld [vmem:[%s0 + $0x24] sm:$0xff]
  %v22 = vld [vmem:[%s0 + $0x2c] sm:$0xf]
  %v23 = vld [vmem:[%s1] sm:$0xf]
  %v24 = vld [vmem:[%s1 + $0x4] sm:$0xf]
  %v25 = vld [vmem:[%s1 + $0x8] sm:$0xf]
  %v26 = vld [vmem:[%s1 + $0xc] sm:$0xf]
  %v27 = vld [vmem:[%s1 + $0x10] sm:$0xf]
  %v28 = vld [vmem:[%s1 + $0x14] sm:$0xf]
  %v29 = vld [vmem:[%s1 + $0x18] sm:$0xf]
  %v30 = vld [vmem:[%s1 + $0x1c] sm:$0xf]
  %v31 = vld [vmem:[%s1 + $0x20] sm:$0xf]
  %v32 = vld [vmem:[%s1 + $0x24] sm:$0xf]
  %v33 = vld [vmem:[%s1 + $0x28] sm:$0xf]
  %v34 = vld [vmem:[%s1 + $0x2c] sm:$0xf]
  %v35 = vld [vmem:[%s1 + $0x30] sm:$0xf]
  %v36 = vld [vmem:[%s1 + $0x34] sm:$0xf]
  %v37 = vld [vmem:[%s1 + $0x38] sm:$0xf]
  %v38 = vld [vmem:[%s1 + $0x3c] sm:$0xf]
  %v39 = vld [vmem:[%s1 + $0x40] sm:$0xf]
  %v40 = vld [vmem:[%s1 + $0x44] sm:$0xf]
  %v41 = vld [vmem:[%s1 + $0x48] sm:$0xf]
  %v42 = vld [vmem:[%s1 + $0x4c] sm:$0xf]
  %v43 = vld [vmem:[%s1 + $0x50] sm:$0xf]
  %v44 = vld [vmem:[%s1 + $0x54] sm:$0xf]
  %v45 = vld [vmem:[%s1 + $0x58] sm:$0xf]
  %v46 = vld [vmem:[%s1 + $0x5c] sm:$0xf]
  %v47 = vld [vmem:[%s1 + $0x60] sm:$0xf]
  %v48 = vld [vmem:[%s1 + $0x64] sm:$0xf]
  %v49 = vld [vmem:[%s1 + $0x68] sm:$0xf]
  %v50 = vld [vmem:[%s1 + $0x6c] sm:$0xf]
  %v51 = vld [vmem:[%s1 + $0x70] sm:$0xf]
  %v52 = vld [vmem:[%s1 + $0x74] sm:$0xf]
  %v53 = vld [vmem:[%s1 + $0x78] sm:$0xf]
  %v54 = vld [vmem:[%s1 + $0x7c] sm:$0xf]
  %v55 = vld [vmem:[%s1 + $0x80] sm:$0xf]
  %v56 = vld [vmem:[%s1 + $0x84] sm:$0xf]
  %v57 = vld [vmem:[%s1 + $0x88] sm:$0xf]
  %v58 = vld [vmem:[%s1 + $0x8c] sm:$0xf]
  %v59 = vld [vmem:[%s2] sm:$0x1]
  %v61 = vlaneseq
  %v62 = vshrl.u32 %v61, 7
  %v63 = vsub.s32 0, %v62
  %v64 = vrot.slane %v59, %v63
  %v74 = vunpack.c.l.b16 %v15
  %v75 = vunpack.c.h.b16 %v15
  %v76 = vunpack.c.l.b16 %v16
  %v77 = vunpack.c.l.b16 %v17
  %v78 = vunpack.c.h.b16 %v17
  %v79 = vunpack.c.l.b16 %v18
  %v80 = vunpack.c.l.b16 %v19
  %v81 = vunpack.c.h.b16 %v19
  %v82 = vunpack.c.l.b16 %v20
  %v83 = vunpack.c.l.b16 %v21
  %v84 = vunpack.c.h.b16 %v21
  %v85 = vunpack.c.l.b16 %v22
  %v86 = vpack.c.b16 %v77, %v74
  %v87 = vpack.c.b16 %v78, %v75
  %v88 = vpack.c.b16 %v79, %v76
  %v89 = vpack.c.b16 %v83, %v80
  %v90 = vpack.c.b16 %v84, %v81
  %v91 = vpack.c.b16 %v85, %v82
  %v132 = vunpack.c.l.b16 %v23
  %v133 = vunpack.c.l.b16 %v24
  %v134 = vunpack.c.l.b16 %v25
  %v135 = vunpack.c.l.b16 %v26
  %v136 = vunpack.c.l.b16 %v27
  %v137 = vunpack.c.l.b16 %v28
  %v138 = vunpack.c.l.b16 %v29
  %v139 = vunpack.c.l.b16 %v30
  %v140 = vunpack.c.l.b16 %v31
  %v141 = vunpack.c.l.b16 %v32
  %v142 = vunpack.c.l.b16 %v33
  %v143 = vunpack.c.l.b16 %v34
  %v144 = vunpack.c.l.b16 %v35
  %v145 = vunpack.c.l.b16 %v36
  %v146 = vunpack.c.l.b16 %v37
  %v147 = vunpack.c.l.b16 %v38
  %v148 = vunpack.c.l.b16 %v39
  %v149 = vunpack.c.l.b16 %v40
  %v150 = vunpack.c.l.b16 %v41
  %v151 = vunpack.c.l.b16 %v42
  %v152 = vunpack.c.l.b16 %v43
  %v153 = vunpack.c.l.b16 %v44
  %v154 = vunpack.c.l.b16 %v45
  %v155 = vunpack.c.l.b16 %v46
  %v156 = vunpack.c.l.b16 %v47
  %v157 = vunpack.c.l.b16 %v48
  %v158 = vunpack.c.l.b16 %v49
  %v159 = vunpack.c.l.b16 %v50
  %v160 = vunpack.c.l.b16 %v51
  %v161 = vunpack.c.l.b16 %v52
  %v162 = vunpack.c.l.b16 %v53
  %v163 = vunpack.c.l.b16 %v54
  %v164 = vunpack.c.l.b16 %v55
  %v165 = vunpack.c.l.b16 %v56
  %v166 = vunpack.c.l.b16 %v57
  %v167 = vunpack.c.l.b16 %v58
  %v168 = vpack.c.b16 %v133, %v132
  %v169 = vpack.c.b16 %v135, %v134
  %v170 = vpack.c.b16 %v137, %v136
  %v171 = vpack.c.b16 %v139, %v138
  %v172 = vpack.c.b16 %v141, %v140
  %v173 = vpack.c.b16 %v143, %v142
  %v174 = vpack.c.b16 %v145, %v144
  %v175 = vpack.c.b16 %v147, %v146
  %v176 = vpack.c.b16 %v149, %v148
  %v177 = vpack.c.b16 %v151, %v150
  %v178 = vpack.c.b16 %v153, %v152
  %v179 = vpack.c.b16 %v155, %v154
  %v180 = vpack.c.b16 %v157, %v156
  %v181 = vpack.c.b16 %v159, %v158
  %v182 = vpack.c.b16 %v161, %v160
  %v183 = vpack.c.b16 %v163, %v162
  %v184 = vpack.c.b16 %v165, %v164
  %v185 = vpack.c.b16 %v167, %v166
  %vm204 = vcmask 261120
  %v206 = vsel %vm204, %v88, 0
  %v209 = vsel %vm204, %v91, 0
  %211 = vmatprep.subr.bf16.mxu0 0
  %212 = vmatpush1.bf16.msra.mxu0 %v175
  %213 = vmatprep.subr.bf16.mxu0 0
  %214 = vmatpush1.bf16.msra.mxu0 %v174
  %215 = vmatprep.subr.bf16.mxu0 0
  %216 = vmatpush1.bf16.msra.mxu0 %v173
  %217 = vmatprep.subr.bf16.mxu0 0
  %218 = vmatpush1.bf16.msra.mxu0 %v172
  %219 = vmatprep.subr.bf16.mxu0 0
  %220 = vmatpush1.bf16.msra.mxu0 %v171
  %221 = vmatprep.subr.bf16.mxu0 0
  %222 = vmatpush1.bf16.msra.mxu0 %v170
  %223 = vmatprep.subr.bf16.mxu0 0
  %224 = vmatpush1.bf16.msra.mxu0 %v169
  %225 = vmatprep.subr.bf16.mxu0 0
  %226 = vmatpush1.bf16.msra.mxu0 %v168
  %227 = vmatprep.subr.bf16.mxu0 0
  %228 = vmatpush2.bf16.msra.mxu0 %v183
  %229 = vmatprep.subr.bf16.mxu0 0
  %230 = vmatpush2.bf16.msra.mxu0 %v182
  %231 = vmatprep.subr.bf16.mxu0 0
  %232 = vmatpush2.bf16.msra.mxu0 %v181
  %233 = vmatprep.subr.bf16.mxu0 0
  %234 = vmatpush2.bf16.msra.mxu0 %v180
  %235 = vmatprep.subr.bf16.mxu0 0
  %236 = vmatpush2.bf16.msra.mxu0 %v179
  %237 = vmatprep.subr.bf16.mxu0 0
  %238 = vmatpush2.bf16.msra.mxu0 %v178
  %239 = vmatprep.subr.bf16.mxu0 0
  %240 = vmatpush2.bf16.msra.mxu0 %v177
  %241 = vmatprep.subr.bf16.mxu0 0
  %242 = vmatpush2.bf16.msra.mxu0 %v176
  %243 = vmatprep.mubr.bf16.mxu0 %v87
  %244 = vmatmul.mubr.bf16.gmra.mxu0 %v86
  %v245 = vpop.f32.mrf.mxu0
  %v246 = vadd.f32 %v64, %v245
  %v247 = vpop.f32.mrf.mxu0
  %v248 = vpop.f32.mrf.mxu0
  %v249 = vadd.f32 %v64, %v248
  %v250 = vpop.f32.mrf.mxu0
  %251 = vmatprep.mubr.bf16.mxu0 %v90
  %252 = vmatmul.mubr.bf16.gmra.mxu0 %v89
  %v253 = vpop.f32.mrf.mxu0
  %v254 = vadd.f32 %v64, %v253
  %v255 = vpop.f32.mrf.mxu0
  %v256 = vpop.f32.mrf.mxu0
  %v257 = vadd.f32 %v64, %v256
  %v258 = vpop.f32.mrf.mxu0
  %259 = vdwg.mxu0
  %260 = vmatprep.subr.bf16.mxu0 0
  %261 = vmatpush1.bf16.msra.mxu0 0
  %262 = vmatprep.subr.bf16.mxu0 0
  %263 = vmatpush1.bf16.msra.mxu0 0
  %264 = vmatprep.subr.bf16.mxu0 0
  %265 = vmatpush1.bf16.msra.mxu0 0
  %266 = vmatprep.subr.bf16.mxu0 0
  %267 = vmatpush1.bf16.msra.mxu0 0
  %268 = vmatprep.subr.bf16.mxu0 0
  %269 = vmatpush1.bf16.msra.mxu0 0
  %270 = vmatprep.subr.bf16.mxu0 0
  %271 = vmatpush1.bf16.msra.mxu0 0
  %272 = vmatprep.subr.bf16.mxu0 0
  %273 = vmatpush1.bf16.msra.mxu0 %v185
  %274 = vmatprep.subr.bf16.mxu0 0
  %275 = vmatpush1.bf16.msra.mxu0 %v184
  %276 = vmatprep.subr.bf16.mxu0 0
  %277 = vmatpush2.bf16.msra.mxu0 0
  %278 = vmatprep.subr.bf16.mxu0 0
  %279 = vmatpush2.bf16.msra.mxu0 0
  %280 = vmatprep.subr.bf16.mxu0 0
  %281 = vmatpush2.bf16.msra.mxu0 0
  %282 = vmatprep.subr.bf16.mxu0 0
  %283 = vmatpush2.bf16.msra.mxu0 0
  %284 = vmatprep.subr.bf16.mxu0 0
  %285 = vmatpush2.bf16.msra.mxu0 0
  %286 = vmatprep.subr.bf16.mxu0 0
  %287 = vmatpush2.bf16.msra.mxu0 0
  %288 = vmatprep.subr.bf16.mxu0 0
  %289 = vmatpush2.bf16.msra.mxu0 0
  %290 = vmatprep.subr.bf16.mxu0 0
  %291 = vmatpush2.bf16.msra.mxu0 0
  %292 = vmatprep.mubr.bf16.mxu0 0
  %293 = vmatmul.mubr.bf16.gmra.mxu0 %v206
  %v294 = vpop.f32.mrf.mxu0
  %v295 = vadd.f32 %v246, %v294
  %v296 = vpop.f32.mrf.mxu0
  %v297 = vpop.f32.mrf.mxu0
  %v298 = vadd.f32 %v249, %v297
  %v299 = vpop.f32.mrf.mxu0
  %300 = vmatprep.mubr.bf16.mxu0 0
  %301 = vmatmul.mubr.bf16.gmra.mxu0 %v209
  %v302 = vpop.f32.mrf.mxu0
  %v303 = vadd.f32 %v254, %v302
  %v304 = vpop.f32.mrf.mxu0
  %v305 = vpop.f32.mrf.mxu0
  %v306 = vadd.f32 %v257, %v305
  %v307 = vpop.f32.mrf.mxu0
  %308 = vdwg.mxu0
  %v309 = vmax.f32 %v295, 0.0
  %v310 = vmax.f32 %v298, 0.0
  %v311 = vmax.f32 %v303, 0.0
  %v312 = vmax.f32 %v306, 0.0
  %v313 = vpack.c.bf16 %v310, %v309
  %v314 = vpack.c.bf16 %v312, %v311
  %v317 = vunpack.c.l.b16 %v313
  %v318 = vunpack.c.h.b16 %v313
  %v319 = vunpack.c.l.b16 %v314
  %v320 = vunpack.c.h.b16 %v314
  %v321 = vpack.c.b16 %v317, %v317
  %v322 = vpack.c.b16 %v318, %v318
  %v323 = vpack.c.b16 %v319, %v319
  %v324 = vpack.c.b16 %v320, %v320
  %329 = vst [vmem:[%s3] sm:$0xf] %v321
  %330 = vst [vmem:[%s3 + $0x4] sm:$0xf] %v322
  %331 = vst [vmem:[%s3 + $0x8] sm:$0xf] %v323
  %332 = vst [vmem:[%s3 + $0xc] sm:$0xf] %v324
  // Predicated region
  $region14: #{faster_rcnn_forward.23} parent=0 // pred_check
    _
  $region15: #{faster_rcnn_forward.23} parent=0 // pred_check_branch
    %334 = sbr.rel (0) target = $region17
  $region16: #{faster_rcnn_forward.23} parent=0 // pred_region
    _
  $region17: #{faster_rcnn_forward.23} parent=0 // pred_fallthru
    _
  // Predicated region
  $region18: #{faster_rcnn_forward.23} parent=0 // pred_check
    _
  $region19: #{faster_rcnn_forward.23} parent=0 // pred_check_branch
    %336 = sbr.rel (0) target = $region21
  $region20: #{faster_rcnn_forward.23} parent=0 // pred_region
    _
  $region21: #{faster_rcnn_forward.23} parent=0 // pred_fallthru
    _

// kernel: faster_rcnn_forward.25
$region0: #{faster_rcnn_forward.25}
  #allocation0 [shape = 'u32[]', space=smem, size = 0x4, offset = 0x4, fixed_abs, tag = 'smem constant byte address 0x4 - core index']
  #allocation1 [shape = 'u32[144,128]{1,0:T(1,128)}', space=vmem, size = 0x12000, scoped, tag = 'internal scratch']
  %s0 = inlined_call_operand.vmem [shape: bf16[8,288], index: 0, kind: input, shape index: {}]
  %s1 = inlined_call_operand.vmem [shape: bf16[288,128], index: 1, kind: input, shape index: {}]
  %s2 = inlined_call_operand.vmem [shape: f32[1,128], index: 2, kind: input, shape index: {}]
  %s3 = inlined_call_operand.vmem [shape: bf16[8,128], index: 3, kind: output, shape index: {}]
  %s4 = sld [smem:[#allocation0]]
  $region22: #{faster_rcnn_forward.25} parent=0
    _
  %s6 = ssub.s32 1, %s4
  %s7 = scalar_select 0, %s6, %s4
  // Predicated region
  $region2: #{faster_rcnn_forward.25} parent=0 // pred_check
    _
  $region3: #{faster_rcnn_forward.25} parent=0 // pred_check_branch
    %9 = sbr.rel (0) target = $region5
  $region4: #{faster_rcnn_forward.25} parent=0 // pred_region
    _
  $region5: #{faster_rcnn_forward.25} parent=0 // pred_fallthru
    _
  // Predicated region
  $region6: #{faster_rcnn_forward.25} parent=0 // pred_check
    _
  $region7: #{faster_rcnn_forward.25} parent=0 // pred_check_branch
    %11 = sbr.rel (0) target = $region9
  $region8: #{faster_rcnn_forward.25} parent=0 // pred_region
    _
  $region9: #{faster_rcnn_forward.25} parent=0 // pred_fallthru
    _
  // Predicated region
  $region10: #{faster_rcnn_forward.25} parent=0 // pred_check
    _
  $region11: #{faster_rcnn_forward.25} parent=0 // pred_check_branch
    %13 = sbr.rel (0) target = $region13
  $region12: #{faster_rcnn_forward.25} parent=0 // pred_region
    _
  $region13: #{faster_rcnn_forward.25} parent=0 // pred_fallthru
    _
  %v15 = vld [vmem:[%s0] sm:$0xff]
  %v16 = vld [vmem:[%s0 + $0x8] sm:$0xf]
  %v17 = vld [vmem:[%s1] sm:$0xf]
  %v18 = vld [vmem:[%s1 + $0x4] sm:$0xf]
  %v19 = vld [vmem:[%s1 + $0x8] sm:$0xf]
  %v20 = vld [vmem:[%s1 + $0xc] sm:$0xf]
  %v21 = vld [vmem:[%s1 + $0x10] sm:$0xf]
  %v22 = vld [vmem:[%s1 + $0x14] sm:$0xf]
  %v23 = vld [vmem:[%s1 + $0x18] sm:$0xf]
  %v24 = vld [vmem:[%s1 + $0x1c] sm:$0xf]
  %v25 = vld [vmem:[%s1 + $0x20] sm:$0xf]
  %v26 = vld [vmem:[%s1 + $0x24] sm:$0xf]
  %v27 = vld [vmem:[%s1 + $0x28] sm:$0xf]
  %v28 = vld [vmem:[%s1 + $0x2c] sm:$0xf]
  %v29 = vld [vmem:[%s1 + $0x30] sm:$0xf]
  %v30 = vld [vmem:[%s1 + $0x34] sm:$0xf]
  %v31 = vld [vmem:[%s1 + $0x38] sm:$0xf]
  %v32 = vld [vmem:[%s1 + $0x3c] sm:$0xf]
  %v33 = vld [vmem:[%s1 + $0x40] sm:$0xf]
  %v34 = vld [vmem:[%s1 + $0x44] sm:$0xf]
  %v35 = vld [vmem:[%s1 + $0x48] sm:$0xf]
  %v36 = vld [vmem:[%s1 + $0x4c] sm:$0xf]
  %v37 = vld [vmem:[%s1 + $0x50] sm:$0xf]
  %v38 = vld [vmem:[%s1 + $0x54] sm:$0xf]
  %v39 = vld [vmem:[%s1 + $0x58] sm:$0xf]
  %v40 = vld [vmem:[%s1 + $0x5c] sm:$0xf]
  %v41 = vld [vmem:[%s1 + $0x60] sm:$0xf]
  %v42 = vld [vmem:[%s1 + $0x64] sm:$0xf]
  %v43 = vld [vmem:[%s1 + $0x68] sm:$0xf]
  %v44 = vld [vmem:[%s1 + $0x6c] sm:$0xf]
  %v45 = vld [vmem:[%s1 + $0x70] sm:$0xf]
  %v46 = vld [vmem:[%s1 + $0x74] sm:$0xf]
  %v47 = vld [vmem:[%s1 + $0x78] sm:$0xf]
  %v48 = vld [vmem:[%s1 + $0x7c] sm:$0xf]
  %v49 = vld [vmem:[%s1 + $0x80] sm:$0xf]
  %v50 = vld [vmem:[%s1 + $0x84] sm:$0xf]
  %v51 = vld [vmem:[%s1 + $0x88] sm:$0xf]
  %v52 = vld [vmem:[%s1 + $0x8c] sm:$0xf]
  %v53 = vld [vmem:[%s2] sm:$0x1]
  %v55 = vlaneseq
  %v56 = vshrl.u32 %v55, 7
  %v57 = vsub.s32 0, %v56
  %v58 = vrot.slane %v53, %v57
  %v62 = vunpack.c.l.b16 %v15
  %v63 = vunpack.c.h.b16 %v15
  %v64 = vunpack.c.l.b16 %v16
  %v65 = vpack.c.b16 %v62, %v62
  %v66 = vpack.c.b16 %v63, %v63
  %v67 = vpack.c.b16 %v64, %v64
  %v106 = vunpack.c.l.b16 %v17
  %v107 = vunpack.c.l.b16 %v18
  %v108 = vunpack.c.l.b16 %v19
  %v109 = vunpack.c.l.b16 %v20
  %v110 = vunpack.c.l.b16 %v21
  %v111 = vunpack.c.l.b16 %v22
  %v112 = vunpack.c.l.b16 %v23
  %v113 = vunpack.c.l.b16 %v24
  %v114 = vunpack.c.l.b16 %v25
  %v115 = vunpack.c.l.b16 %v26
  %v116 = vunpack.c.l.b16 %v27
  %v117 = vunpack.c.l.b16 %v28
  %v118 = vunpack.c.l.b16 %v29
  %v119 = vunpack.c.l.b16 %v30
  %v120 = vunpack.c.l.b16 %v31
  %v121 = vunpack.c.l.b16 %v32
  %v122 = vunpack.c.l.b16 %v33
  %v123 = vunpack.c.l.b16 %v34
  %v124 = vunpack.c.l.b16 %v35
  %v125 = vunpack.c.l.b16 %v36
  %v126 = vunpack.c.l.b16 %v37
  %v127 = vunpack.c.l.b16 %v38
  %v128 = vunpack.c.l.b16 %v39
  %v129 = vunpack.c.l.b16 %v40
  %v130 = vunpack.c.l.b16 %v41
  %v131 = vunpack.c.l.b16 %v42
  %v132 = vunpack.c.l.b16 %v43
  %v133 = vunpack.c.l.b16 %v44
  %v134 = vunpack.c.l.b16 %v45
  %v135 = vunpack.c.l.b16 %v46
  %v136 = vunpack.c.l.b16 %v47
  %v137 = vunpack.c.l.b16 %v48
  %v138 = vunpack.c.l.b16 %v49
  %v139 = vunpack.c.l.b16 %v50
  %v140 = vunpack.c.l.b16 %v51
  %v141 = vunpack.c.l.b16 %v52
  %v142 = vpack.c.b16 %v107, %v106
  %v143 = vpack.c.b16 %v109, %v108
  %v144 = vpack.c.b16 %v111, %v110
  %v145 = vpack.c.b16 %v113, %v112
  %v146 = vpack.c.b16 %v115, %v114
  %v147 = vpack.c.b16 %v117, %v116
  %v148 = vpack.c.b16 %v119, %v118
  %v149 = vpack.c.b16 %v121, %v120
  %v150 = vpack.c.b16 %v123, %v122
  %v151 = vpack.c.b16 %v125, %v124
  %v152 = vpack.c.b16 %v127, %v126
  %v153 = vpack.c.b16 %v129, %v128
  %v154 = vpack.c.b16 %v131, %v130
  %v155 = vpack.c.b16 %v133, %v132
  %v156 = vpack.c.b16 %v135, %v134
  %v157 = vpack.c.b16 %v137, %v136
  %v158 = vpack.c.b16 %v139, %v138
  %v159 = vpack.c.b16 %v141, %v140
  %vm178 = vcmask 261120
  %v180 = vsel %vm178, %v67, 0
  %182 = vmatprep.subr.bf16.mxu0 0
  %183 = vmatpush1.bf16.msra.mxu0 %v149
  %184 = vmatprep.subr.bf16.mxu0 0
  %185 = vmatpush1.bf16.msra.mxu0 %v148
  %186 = vmatprep.subr.bf16.mxu0 0
  %187 = vmatpush1.bf16.msra.mxu0 %v147
  %188 = vmatprep.subr.bf16.mxu0 0
  %189 = vmatpush1.bf16.msra.mxu0 %v146
  %190 = vmatprep.subr.bf16.mxu0 0
  %191 = vmatpush1.bf16.msra.mxu0 %v145
  %192 = vmatprep.subr.bf16.mxu0 0
  %193 = vmatpush1.bf16.msra.mxu0 %v144
  %194 = vmatprep.subr.bf16.mxu0 0
  %195 = vmatpush1.bf16.msra.mxu0 %v143
  %196 = vmatprep.subr.bf16.mxu0 0
  %197 = vmatpush1.bf16.msra.mxu0 %v142
  %198 = vmatprep.subr.bf16.mxu0 0
  %199 = vmatpush2.bf16.msra.mxu0 %v157
  %200 = vmatprep.subr.bf16.mxu0 0
  %201 = vmatpush2.bf16.msra.mxu0 %v156
  %202 = vmatprep.subr.bf16.mxu0 0
  %203 = vmatpush2.bf16.msra.mxu0 %v155
  %204 = vmatprep.subr.bf16.mxu0 0
  %205 = vmatpush2.bf16.msra.mxu0 %v154
  %206 = vmatprep.subr.bf16.mxu0 0
  %207 = vmatpush2.bf16.msra.mxu0 %v153
  %208 = vmatprep.subr.bf16.mxu0 0
  %209 = vmatpush2.bf16.msra.mxu0 %v152
  %210 = vmatprep.subr.bf16.mxu0 0
  %211 = vmatpush2.bf16.msra.mxu0 %v151
  %212 = vmatprep.subr.bf16.mxu0 0
  %213 = vmatpush2.bf16.msra.mxu0 %v150
  %214 = vmatprep.mubr.bf16.mxu0 %v66
  %215 = vmatmul.mubr.bf16.gmra.mxu0 %v65
  %v216 = vpop.f32.mrf.mxu0
  %v217 = vadd.f32 %v58, %v216
  %v218 = vpop.f32.mrf.mxu0
  %v219 = vpop.f32.mrf.mxu0
  %v220 = vpop.f32.mrf.mxu0
  %221 = vdwg.mxu0
  %222 = vmatprep.subr.bf16.mxu0 0
  %223 = vmatpush1.bf16.msra.mxu0 0
  %224 = vmatprep.subr.bf16.mxu0 0
  %225 = vmatpush1.bf16.msra.mxu0 0
  %226 = vmatprep.subr.bf16.mxu0 0
  %227 = vmatpush1.bf16.msra.mxu0 0
  %228 = vmatprep.subr.bf16.mxu0 0
  %229 = vmatpush1.bf16.msra.mxu0 0
  %230 = vmatprep.subr.bf16.mxu0 0
  %231 = vmatpush1.bf16.msra.mxu0 0
  %232 = vmatprep.subr.bf16.mxu0 0
  %233 = vmatpush1.bf16.msra.mxu0 0
  %234 = vmatprep.subr.bf16.mxu0 0
  %235 = vmatpush1.bf16.msra.mxu0 %v159
  %236 = vmatprep.subr.bf16.mxu0 0
  %237 = vmatpush1.bf16.msra.mxu0 %v158
  %238 = vmatprep.subr.bf16.mxu0 0
  %239 = vmatpush2.bf16.msra.mxu0 0
  %240 = vmatprep.subr.bf16.mxu0 0
  %241 = vmatpush2.bf16.msra.mxu0 0
  %242 = vmatprep.subr.bf16.mxu0 0
  %243 = vmatpush2.bf16.msra.mxu0 0
  %244 = vmatprep.subr.bf16.mxu0 0
  %245 = vmatpush2.bf16.msra.mxu0 0
  %246 = vmatprep.subr.bf16.mxu0 0
  %247 = vmatpush2.bf16.msra.mxu0 0
  %248 = vmatprep.subr.bf16.mxu0 0
  %249 = vmatpush2.bf16.msra.mxu0 0
  %250 = vmatprep.subr.bf16.mxu0 0
  %251 = vmatpush2.bf16.msra.mxu0 0
  %252 = vmatprep.subr.bf16.mxu0 0
  %253 = vmatpush2.bf16.msra.mxu0 0
  %254 = vmatprep.mubr.bf16.mxu0 0
  %255 = vmatmul.mubr.bf16.gmra.mxu0 %v180
  %v256 = vpop.f32.mrf.mxu0
  %v257 = vadd.f32 %v217, %v256
  %v258 = vpop.f32.mrf.mxu0
  %v259 = vpop.f32.mrf.mxu0
  %v260 = vpop.f32.mrf.mxu0
  %261 = vdwg.mxu0
  %v262 = vmax.f32 %v257, 0.0
  %v263 = vpack.c.bf16 %v262, %v262
  %264 = vst [vmem:[%s3] sm:$0xf] %v263
  // Predicated region
  $region14: #{faster_rcnn_forward.25} parent=0 // pred_check
    _
  $region15: #{faster_rcnn_forward.25} parent=0 // pred_check_branch
    %266 = sbr.rel (0) target = $region17
  $region16: #{faster_rcnn_forward.25} parent=0 // pred_region
    _
  $region17: #{faster_rcnn_forward.25} parent=0 // pred_fallthru
    _
  // Predicated region
  $region18: #{faster_rcnn_forward.25} parent=0 // pred_check
    _
  $region19: #{faster_rcnn_forward.25} parent=0 // pred_check_branch
    %268 = sbr.rel (0) target = $region21
  $region20: #{faster_rcnn_forward.25} parent=0 // pred_region
    _
  $region21: #{faster_rcnn_forward.25} parent=0 // pred_fallthru
    _

// kernel: squeeze.92
$region0: #{squeeze.92}
  %s0 = inlined_call_operand.vmem [shape: f32[4,36], index: 0, kind: input, shape index: {}]
  %s1 = inlined_call_operand.vmem [shape: f32[36,4], index: 1, kind: output, shape index: {}]
  $region1: #{squeeze.92} parent=0
    #allocation0 [shape = 'u8[4096]{0}', space=vmem, size = 0x1000, scoped, tag = 'scoped mem for input reshape']
    %s3 = sshll.u32 1, 4
    %s4 = ssub.s32 %s3, 1
    %v5 = vld [vmem:[%s0] sm:%s4]
    %6 = vst [vmem:[#allocation0] sm:%s4] %v5
    %v7 = vld [vmem:[#allocation0] sm:$0xf]
    %vm8 = vcmask 31744
    %9 = vst.msk [vmem:[%s1] ss:$9 sm:$0xf] %vm8, %v7
    %v10 = vld [vmem:[#allocation0] sm:$0xf]
    %11 = vrot.lane.b32.xlu0 %v10, 124
    %v12 = vpop.permute.xlu0 %11
    %vm13 = vcmask 31744
    %s14 = scalar_lea.vmem %s1, 1
    %15 = vst.msk [vmem:[%s14] ss:$9 sm:$0xf] %vm13, %v12
    %v16 = vld [vmem:[#allocation0] sm:$0xf]
    %17 = vrot.lane.b32.xlu0 %v16, 120
    %v18 = vpop.permute.xlu0 %17
    %vm19 = vcmask 31744
    %s20 = scalar_lea.vmem %s1, 2
    %21 = vst.msk [vmem:[%s20] ss:$9 sm:$0xf] %vm19, %v18
    %v22 = vld [vmem:[#allocation0] sm:$0xf]
    %23 = vrot.lane.b32.xlu0 %v22, 116
    %v24 = vpop.permute.xlu0 %23
    %vm25 = vcmask 31744
    %s26 = scalar_lea.vmem %s1, 3
    %27 = vst.msk [vmem:[%s26] ss:$9 sm:$0xf] %vm25, %v24
    %v28 = vld [vmem:[#allocation0] sm:$0xf]
    %29 = vrot.lane.b32.xlu0 %v28, 112
    %v30 = vpop.permute.xlu0 %29
    %vm31 = vcmask 31744
    %s32 = scalar_lea.vmem %s1, 4
    %33 = vst.msk [vmem:[%s32] ss:$9 sm:$0xf] %vm31, %v30
    %v34 = vld.sshfl [vmem:[#allocation0] sm:$0xff pattern:$0x22222103]
    %35 = vrot.lane.b32.xlu0 %v34, 108
    %v36 = vpop.permute.xlu0 %35
    %vm37 = vcmask 31744
    %s38 = scalar_lea.vmem %s1, 32
    %39 = vst.msk [vmem:[%s38] ss:$-27 sm:$0x3] %vm37, %v36
    %s40 = scalar_lea.vmem %s1, 4294967292
    %41 = vst.msk [vmem:[%s40] ss:$9 sm:$0xc] %vm37, %v36
    %v42 = vld.sshfl [vmem:[#allocation0] sm:$0xff pattern:$0x22222103]
    %43 = vrot.lane.b32.xlu0 %v42, 104
    %v44 = vpop.permute.xlu0 %43
    %vm45 = vcmask 31744
    %s46 = scalar_lea.vmem %s1, 33
    %47 = vst.msk [vmem:[%s46] ss:$-27 sm:$0x3] %vm45, %v44
    %s48 = scalar_lea.vmem %s1, 4294967293
    %49 = vst.msk [vmem:[%s48] ss:$9 sm:$0xc] %vm45, %v44
    %v50 = vld.sshfl [vmem:[#allocation0] sm:$0xff pattern:$0x22222103]
    %51 = vrot.lane.b32.xlu0 %v50, 100
    %v52 = vpop.permute.xlu0 %51
    %vm53 = vcmask 31744
    %s54 = scalar_lea.vmem %s1, 34
    %55 = vst.msk [vmem:[%s54] ss:$-27 sm:$0x3] %vm53, %v52
    %s56 = scalar_lea.vmem %s1, 4294967294
    %57 = vst.msk [vmem:[%s56] ss:$9 sm:$0xc] %vm53, %v52
    %v58 = vld.sshfl [vmem:[#allocation0] sm:$0xff pattern:$0x22222103]
    %59 = vrot.lane.b32.xlu0 %v58, 96
    %v60 = vpop.permute.xlu0 %59
    %vm61 = vcmask 31744
    %s62 = scalar_lea.vmem %s1, 35
    %63 = vst.msk [vmem:[%s62] ss:$-27 sm:$0x3] %vm61, %v60
    %s64 = scalar_lea.vmem %s1, 4294967295
    %65 = vst.msk [vmem:[%s64] ss:$9 sm:$0xc] %vm61, %v60

// kernel: faster_rcnn_forward.28
$region0: #{faster_rcnn_forward.28}
  #allocation0 [shape = 'u32[]', space=smem, size = 0x4, offset = 0x4, fixed_abs, tag = 'smem constant byte address 0x4 - core index']
  #allocation1 [shape = 'u32[144,128]{1,0:T(1,128)}', space=vmem, size = 0x12000, scoped, tag = 'internal scratch']
  %s0 = inlined_call_operand.vmem [shape: bf16[8,288], index: 0, kind: input, shape index: {}]
  %s1 = inlined_call_operand.vmem [shape: bf16[288,128], index: 1, kind: input, shape index: {}]
  %s2 = inlined_call_operand.vmem [shape: f32[1,128], index: 2, kind: input, shape index: {}]
  %s3 = inlined_call_operand.vmem [shape: bf16[128,128], index: 3, kind: input, shape index: {}]
  %s4 = inlined_call_operand.vmem [shape: f32[1,128], index: 4, kind: input, shape index: {}]
  %s5 = inlined_call_operand.vmem [shape: f32[8,128], index: 5, kind: output, shape index: {}]
  %s6 = sld [smem:[#allocation0]]
  $region30: #{faster_rcnn_forward.28} parent=0
    _
  %s8 = ssub.s32 1, %s6
  %s9 = scalar_select 0, %s8, %s6
  // Predicated region
  $region2: #{faster_rcnn_forward.28} parent=0 // pred_check
    _
  $region3: #{faster_rcnn_forward.28} parent=0 // pred_check_branch
    %11 = sbr.rel (0) target = $region5
  $region4: #{faster_rcnn_forward.28} parent=0 // pred_region
    _
  $region5: #{faster_rcnn_forward.28} parent=0 // pred_fallthru
    _
  // Predicated region
  $region6: #{faster_rcnn_forward.28} parent=0 // pred_check
    _
  $region7: #{faster_rcnn_forward.28} parent=0 // pred_check_branch
    %13 = sbr.rel (0) target = $region9
  $region8: #{faster_rcnn_forward.28} parent=0 // pred_region
    _
  $region9: #{faster_rcnn_forward.28} parent=0 // pred_fallthru
    _
  // Predicated region
  $region10: #{faster_rcnn_forward.28} parent=0 // pred_check
    _
  $region11: #{faster_rcnn_forward.28} parent=0 // pred_check_branch
    %15 = sbr.rel (0) target = $region13
  $region12: #{faster_rcnn_forward.28} parent=0 // pred_region
    _
  $region13: #{faster_rcnn_forward.28} parent=0 // pred_fallthru
    _
  // Predicated region
  $region14: #{faster_rcnn_forward.28} parent=0 // pred_check
    _
  $region15: #{faster_rcnn_forward.28} parent=0 // pred_check_branch
    %17 = sbr.rel (0) target = $region17
  $region16: #{faster_rcnn_forward.28} parent=0 // pred_region
    _
  $region17: #{faster_rcnn_forward.28} parent=0 // pred_fallthru
    _
  // Predicated region
  $region18: #{faster_rcnn_forward.28} parent=0 // pred_check
    _
  $region19: #{faster_rcnn_forward.28} parent=0 // pred_check_branch
    %19 = sbr.rel (0) target = $region21
  $region20: #{faster_rcnn_forward.28} parent=0 // pred_region
    _
  $region21: #{faster_rcnn_forward.28} parent=0 // pred_fallthru
    _
  %v21 = vld [vmem:[%s0] sm:$0xff]
  %v22 = vld [vmem:[%s0 + $0x8] sm:$0xf]
  %v23 = vld [vmem:[%s1] sm:$0xf]
  %v24 = vld [vmem:[%s1 + $0x4] sm:$0xf]
  %v25 = vld [vmem:[%s1 + $0x8] sm:$0xf]
  %v26 = vld [vmem:[%s1 + $0xc] sm:$0xf]
  %v27 = vld [vmem:[%s1 + $0x10] sm:$0xf]
  %v28 = vld [vmem:[%s1 + $0x14] sm:$0xf]
  %v29 = vld [vmem:[%s1 + $0x18] sm:$0xf]
  %v30 = vld [vmem:[%s1 + $0x1c] sm:$0xf]
  %v31 = vld [vmem:[%s1 + $0x20] sm:$0xf]
  %v32 = vld [vmem:[%s1 + $0x24] sm:$0xf]
  %v33 = vld [vmem:[%s1 + $0x28] sm:$0xf]
  %v34 = vld [vmem:[%s1 + $0x2c] sm:$0xf]
  %v35 = vld [vmem:[%s1 + $0x30] sm:$0xf]
  %v36 = vld [vmem:[%s1 + $0x34] sm:$0xf]
  %v37 = vld [vmem:[%s1 + $0x38] sm:$0xf]
  %v38 = vld [vmem:[%s1 + $0x3c] sm:$0xf]
  %v39 = vld [vmem:[%s1 + $0x40] sm:$0xf]
  %v40 = vld [vmem:[%s1 + $0x44] sm:$0xf]
  %v41 = vld [vmem:[%s1 + $0x48] sm:$0xf]
  %v42 = vld [vmem:[%s1 + $0x4c] sm:$0xf]
  %v43 = vld [vmem:[%s1 + $0x50] sm:$0xf]
  %v44 = vld [vmem:[%s1 + $0x54] sm:$0xf]
  %v45 = vld [vmem:[%s1 + $0x58] sm:$0xf]
  %v46 = vld [vmem:[%s1 + $0x5c] sm:$0xf]
  %v47 = vld [vmem:[%s1 + $0x60] sm:$0xf]
  %v48 = vld [vmem:[%s1 + $0x64] sm:$0xf]
  %v49 = vld [vmem:[%s1 + $0x68] sm:$0xf]
  %v50 = vld [vmem:[%s1 + $0x6c] sm:$0xf]
  %v51 = vld [vmem:[%s1 + $0x70] sm:$0xf]
  %v52 = vld [vmem:[%s1 + $0x74] sm:$0xf]
  %v53 = vld [vmem:[%s1 + $0x78] sm:$0xf]
  %v54 = vld [vmem:[%s1 + $0x7c] sm:$0xf]
  %v55 = vld [vmem:[%s1 + $0x80] sm:$0xf]
  %v56 = vld [vmem:[%s1 + $0x84] sm:$0xf]
  %v57 = vld [vmem:[%s1 + $0x88] sm:$0xf]
  %v58 = vld [vmem:[%s1 + $0x8c] sm:$0xf]
  %v59 = vld [vmem:[%s2] sm:$0x1]
  %v61 = vlaneseq
  %v62 = vshrl.u32 %v61, 7
  %v63 = vsub.s32 0, %v62
  %v64 = vrot.slane %v59, %v63
  %v68 = vunpack.c.l.b16 %v21
  %v69 = vunpack.c.h.b16 %v21
  %v70 = vunpack.c.l.b16 %v22
  %v71 = vpack.c.b16 %v68, %v68
  %v72 = vpack.c.b16 %v69, %v69
  %v73 = vpack.c.b16 %v70, %v70
  %v112 = vunpack.c.l.b16 %v23
  %v113 = vunpack.c.l.b16 %v24
  %v114 = vunpack.c.l.b16 %v25
  %v115 = vunpack.c.l.b16 %v26
  %v116 = vunpack.c.l.b16 %v27
  %v117 = vunpack.c.l.b16 %v28
  %v118 = vunpack.c.l.b16 %v29
  %v119 = vunpack.c.l.b16 %v30
  %v120 = vunpack.c.l.b16 %v31
  %v121 = vunpack.c.l.b16 %v32
  %v122 = vunpack.c.l.b16 %v33
  %v123 = vunpack.c.l.b16 %v34
  %v124 = vunpack.c.l.b16 %v35
  %v125 = vunpack.c.l.b16 %v36
  %v126 = vunpack.c.l.b16 %v37
  %v127 = vunpack.c.l.b16 %v38
  %v128 = vunpack.c.l.b16 %v39
  %v129 = vunpack.c.l.b16 %v40
  %v130 = vunpack.c.l.b16 %v41
  %v131 = vunpack.c.l.b16 %v42
  %v132 = vunpack.c.l.b16 %v43
  %v133 = vunpack.c.l.b16 %v44
  %v134 = vunpack.c.l.b16 %v45
  %v135 = vunpack.c.l.b16 %v46
  %v136 = vunpack.c.l.b16 %v47
  %v137 = vunpack.c.l.b16 %v48
  %v138 = vunpack.c.l.b16 %v49
  %v139 = vunpack.c.l.b16 %v50
  %v140 = vunpack.c.l.b16 %v51
  %v141 = vunpack.c.l.b16 %v52
  %v142 = vunpack.c.l.b16 %v53
  %v143 = vunpack.c.l.b16 %v54
  %v144 = vunpack.c.l.b16 %v55
  %v145 = vunpack.c.l.b16 %v56
  %v146 = vunpack.c.l.b16 %v57
  %v147 = vunpack.c.l.b16 %v58
  %v148 = vpack.c.b16 %v113, %v112
  %v149 = vpack.c.b16 %v115, %v114
  %v150 = vpack.c.b16 %v117, %v116
  %v151 = vpack.c.b16 %v119, %v118
  %v152 = vpack.c.b16 %v121, %v120
  %v153 = vpack.c.b16 %v123, %v122
  %v154 = vpack.c.b16 %v125, %v124
  %v155 = vpack.c.b16 %v127, %v126
  %v156 = vpack.c.b16 %v129, %v128
  %v157 = vpack.c.b16 %v131, %v130
  %v158 = vpack.c.b16 %v133, %v132
  %v159 = vpack.c.b16 %v135, %v134
  %v160 = vpack.c.b16 %v137, %v136
  %v161 = vpack.c.b16 %v139, %v138
  %v162 = vpack.c.b16 %v141, %v140
  %v163 = vpack.c.b16 %v143, %v142
  %v164 = vpack.c.b16 %v145, %v144
  %v165 = vpack.c.b16 %v147, %v146
  %vm184 = vcmask 261120
  %v186 = vsel %vm184, %v73, 0
  %188 = vmatprep.subr.bf16.mxu0 0
  %189 = vmatpush1.bf16.msra.mxu0 %v155
  %190 = vmatprep.subr.bf16.mxu0 0
  %191 = vmatpush1.bf16.msra.mxu0 %v154
  %192 = vmatprep.subr.bf16.mxu0 0
  %193 = vmatpush1.bf16.msra.mxu0 %v153
  %194 = vmatprep.subr.bf16.mxu0 0
  %195 = vmatpush1.bf16.msra.mxu0 %v152
  %196 = vmatprep.subr.bf16.mxu0 0
  %197 = vmatpush1.bf16.msra.mxu0 %v151
  %198 = vmatprep.subr.bf16.mxu0 0
  %199 = vmatpush1.bf16.msra.mxu0 %v150
  %200 = vmatprep.subr.bf16.mxu0 0
  %201 = vmatpush1.bf16.msra.mxu0 %v149
  %202 = vmatprep.subr.bf16.mxu0 0
  %203 = vmatpush1.bf16.msra.mxu0 %v148
  %204 = vmatprep.subr.bf16.mxu0 0
  %205 = vmatpush2.bf16.msra.mxu0 %v163
  %206 = vmatprep.subr.bf16.mxu0 0
  %207 = vmatpush2.bf16.msra.mxu0 %v162
  %208 = vmatprep.subr.bf16.mxu0 0
  %209 = vmatpush2.bf16.msra.mxu0 %v161
  %210 = vmatprep.subr.bf16.mxu0 0
  %211 = vmatpush2.bf16.msra.mxu0 %v160
  %212 = vmatprep.subr.bf16.mxu0 0
  %213 = vmatpush2.bf16.msra.mxu0 %v159
  %214 = vmatprep.subr.bf16.mxu0 0
  %215 = vmatpush2.bf16.msra.mxu0 %v158
  %216 = vmatprep.subr.bf16.mxu0 0
  %217 = vmatpush2.bf16.msra.mxu0 %v157
  %218 = vmatprep.subr.bf16.mxu0 0
  %219 = vmatpush2.bf16.msra.mxu0 %v156
  %220 = vmatprep.mubr.bf16.mxu0 %v72
  %221 = vmatmul.mubr.bf16.gmra.mxu0 %v71
  %v222 = vpop.f32.mrf.mxu0
  %v223 = vadd.f32 %v64, %v222
  %v224 = vpop.f32.mrf.mxu0
  %v225 = vpop.f32.mrf.mxu0
  %v226 = vpop.f32.mrf.mxu0
  %227 = vdwg.mxu0
  %228 = vmatprep.subr.bf16.mxu0 0
  %229 = vmatpush1.bf16.msra.mxu0 0
  %230 = vmatprep.subr.bf16.mxu0 0
  %231 = vmatpush1.bf16.msra.mxu0 0
  %232 = vmatprep.subr.bf16.mxu0 0
  %233 = vmatpush1.bf16.msra.mxu0 0
  %234 = vmatprep.subr.bf16.mxu0 0
  %235 = vmatpush1.bf16.msra.mxu0 0
  %236 = vmatprep.subr.bf16.mxu0 0
  %237 = vmatpush1.bf16.msra.mxu0 0
  %238 = vmatprep.subr.bf16.mxu0 0
  %239 = vmatpush1.bf16.msra.mxu0 0
  %240 = vmatprep.subr.bf16.mxu0 0
  %241 = vmatpush1.bf16.msra.mxu0 %v165
  %242 = vmatprep.subr.bf16.mxu0 0
  %243 = vmatpush1.bf16.msra.mxu0 %v164
  %244 = vmatprep.subr.bf16.mxu0 0
  %245 = vmatpush2.bf16.msra.mxu0 0
  %246 = vmatprep.subr.bf16.mxu0 0
  %247 = vmatpush2.bf16.msra.mxu0 0
  %248 = vmatprep.subr.bf16.mxu0 0
  %249 = vmatpush2.bf16.msra.mxu0 0
  %250 = vmatprep.subr.bf16.mxu0 0
  %251 = vmatpush2.bf16.msra.mxu0 0
  %252 = vmatprep.subr.bf16.mxu0 0
  %253 = vmatpush2.bf16.msra.mxu0 0
  %254 = vmatprep.subr.bf16.mxu0 0
  %255 = vmatpush2.bf16.msra.mxu0 0
  %256 = vmatprep.subr.bf16.mxu0 0
  %257 = vmatpush2.bf16.msra.mxu0 0
  %258 = vmatprep.subr.bf16.mxu0 0
  %259 = vmatpush2.bf16.msra.mxu0 0
  %260 = vmatprep.mubr.bf16.mxu0 0
  %261 = vmatmul.mubr.bf16.gmra.mxu0 %v186
  %v262 = vpop.f32.mrf.mxu0
  %v263 = vadd.f32 %v223, %v262
  %v264 = vpop.f32.mrf.mxu0
  %v265 = vpop.f32.mrf.mxu0
  %v266 = vpop.f32.mrf.mxu0
  %267 = vdwg.mxu0
  %v268 = vmax.f32 %v263, 0.0
  %v269 = vpack.c.bf16 %v268, %v268
  %v270 = vld [vmem:[%s3] sm:$0xf]
  %v271 = vld [vmem:[%s3 + $0x4] sm:$0xf]
  %v272 = vld [vmem:[%s3 + $0x8] sm:$0xf]
  %v273 = vld [vmem:[%s3 + $0xc] sm:$0xf]
  %v274 = vld [vmem:[%s3 + $0x10] sm:$0xf]
  %v275 = vld [vmem:[%s3 + $0x14] sm:$0xf]
  %v276 = vld [vmem:[%s3 + $0x18] sm:$0xf]
  %v277 = vld [vmem:[%s3 + $0x1c] sm:$0xf]
  %v278 = vld [vmem:[%s3 + $0x20] sm:$0xf]
  %v279 = vld [vmem:[%s3 + $0x24] sm:$0xf]
  %v280 = vld [vmem:[%s3 + $0x28] sm:$0xf]
  %v281 = vld [vmem:[%s3 + $0x2c] sm:$0xf]
  %v282 = vld [vmem:[%s3 + $0x30] sm:$0xf]
  %v283 = vld [vmem:[%s3 + $0x34] sm:$0xf]
  %v284 = vld [vmem:[%s3 + $0x38] sm:$0xf]
  %v285 = vld [vmem:[%s3 + $0x3c] sm:$0xf]
  %v286 = vld [vmem:[%s4] sm:$0x1]
  %v288 = vlaneseq
  %v289 = vshrl.u32 %v288, 7
  %v290 = vsub.s32 0, %v289
  %v291 = vrot.slane %v286, %v290
  %v309 = vunpack.c.l.b16 %v270
  %v310 = vunpack.c.l.b16 %v271
  %v311 = vunpack.c.l.b16 %v272
  %v312 = vunpack.c.l.b16 %v273
  %v313 = vunpack.c.l.b16 %v274
  %v314 = vunpack.c.l.b16 %v275
  %v315 = vunpack.c.l.b16 %v276
  %v316 = vunpack.c.l.b16 %v277
  %v317 = vunpack.c.l.b16 %v278
  %v318 = vunpack.c.l.b16 %v279
  %v319 = vunpack.c.l.b16 %v280
  %v320 = vunpack.c.l.b16 %v281
  %v321 = vunpack.c.l.b16 %v282
  %v322 = vunpack.c.l.b16 %v283
  %v323 = vunpack.c.l.b16 %v284
  %v324 = vunpack.c.l.b16 %v285
  %v325 = vpack.c.b16 %v310, %v309
  %v326 = vpack.c.b16 %v312, %v311
  %v327 = vpack.c.b16 %v314, %v313
  %v328 = vpack.c.b16 %v316, %v315
  %v329 = vpack.c.b16 %v318, %v317
  %v330 = vpack.c.b16 %v320, %v319
  %v331 = vpack.c.b16 %v322, %v321
  %v332 = vpack.c.b16 %v324, %v323
  %341 = vmatprep.subr.bf16.mxu0 0
  %342 = vmatpush1.bf16.msra.mxu0 %v332
  %343 = vmatprep.subr.bf16.mxu0 0
  %344 = vmatpush1.bf16.msra.mxu0 %v331
  %345 = vmatprep.subr.bf16.mxu0 0
  %346 = vmatpush1.bf16.msra.mxu0 %v330
  %347 = vmatprep.subr.bf16.mxu0 0
  %348 = vmatpush1.bf16.msra.mxu0 %v329
  %349 = vmatprep.subr.bf16.mxu0 0
  %350 = vmatpush1.bf16.msra.mxu0 %v328
  %351 = vmatprep.subr.bf16.mxu0 0
  %352 = vmatpush1.bf16.msra.mxu0 %v327
  %353 = vmatprep.subr.bf16.mxu0 0
  %354 = vmatpush1.bf16.msra.mxu0 %v326
  %355 = vmatprep.subr.bf16.mxu0 0
  %356 = vmatpush1.bf16.msra.mxu0 %v325
  %357 = vmatprep.subr.bf16.mxu0 0
  %358 = vmatpush2.bf16.msra.mxu0 0
  %359 = vmatprep.subr.bf16.mxu0 0
  %360 = vmatpush2.bf16.msra.mxu0 0
  %361 = vmatprep.subr.bf16.mxu0 0
  %362 = vmatpush2.bf16.msra.mxu0 0
  %363 = vmatprep.subr.bf16.mxu0 0
  %364 = vmatpush2.bf16.msra.mxu0 0
  %365 = vmatprep.subr.bf16.mxu0 0
  %366 = vmatpush2.bf16.msra.mxu0 0
  %367 = vmatprep.subr.bf16.mxu0 0
  %368 = vmatpush2.bf16.msra.mxu0 0
  %369 = vmatprep.subr.bf16.mxu0 0
  %370 = vmatpush2.bf16.msra.mxu0 0
  %371 = vmatprep.subr.bf16.mxu0 0
  %372 = vmatpush2.bf16.msra.mxu0 0
  %373 = vmatprep.mubr.bf16.mxu0 0
  %374 = vmatmul.mubr.bf16.gmra.mxu0 %v269
  %v375 = vpop.f32.mrf.mxu0
  %v376 = vadd.f32 %v291, %v375
  %v377 = vpop.f32.mrf.mxu0
  %v378 = vpop.f32.mrf.mxu0
  %v379 = vpop.f32.mrf.mxu0
  %380 = vdwg.mxu0
  %381 = vst [vmem:[%s5] sm:$0xff] %v376
  // Predicated region
  $region22: #{faster_rcnn_forward.28} parent=0 // pred_check
    _
  $region23: #{faster_rcnn_forward.28} parent=0 // pred_check_branch
    %383 = sbr.rel (0) target = $region25
  $region24: #{faster_rcnn_forward.28} parent=0 // pred_region
    _
  $region25: #{faster_rcnn_forward.28} parent=0 // pred_fallthru
    _
  // Predicated region
  $region26: #{faster_rcnn_forward.28} parent=0 // pred_check
    _
  $region27: #{faster_rcnn_forward.28} parent=0 // pred_check_branch
    %385 = sbr.rel (0) target = $region29
  $region28: #{faster_rcnn_forward.28} parent=0 // pred_region
    _
  $region29: #{faster_rcnn_forward.28} parent=0 // pred_fallthru
    _

// kernel: custom-call
$region0: #{custom-call}
  %s0 = inlined_call_operand.vmem [shape: pred[32], index: 0, kind: output, shape index: {}]

// kernel: faster_rcnn_forward.29
$region0: #{faster_rcnn_forward.29}
  #allocation0 [shape = 'u32[]', space=smem, size = 0x4, offset = 0x4, fixed_abs, tag = 'smem constant byte address 0x4 - core index']
  #allocation1 [shape = 'u32[144,128]{1,0:T(1,128)}', space=vmem, size = 0x12000, scoped, tag = 'internal scratch']
  %s0 = inlined_call_operand.vmem [shape: bf16[32,1568], index: 0, kind: input, shape index: {}]
  %s1 = inlined_call_operand.vmem [shape: bf16[1568,128], index: 1, kind: input, shape index: {}]
  %s2 = inlined_call_operand.vmem [shape: f32[1,128], index: 2, kind: input, shape index: {}]
  %s3 = inlined_call_operand.vmem [shape: bf16[128,128], index: 3, kind: input, shape index: {}]
  %s4 = inlined_call_operand.vmem [shape: f32[1,128], index: 4, kind: input, shape index: {}]
  %s5 = inlined_call_operand.vmem [shape: bf16[128,128], index: 5, kind: input, shape index: {}]
  %s6 = inlined_call_operand.vmem [shape: f32[1,128], index: 6, kind: input, shape index: {}]
  %s7 = inlined_call_operand.vmem [shape: f32[32,128], index: 7, kind: output, shape index: {}]
  %s8 = sld [smem:[#allocation0]]
  $region38: #{faster_rcnn_forward.29} parent=0
    _
  %s10 = ssub.s32 1, %s8
  %s11 = scalar_select 0, %s10, %s8
  // Predicated region
  $region2: #{faster_rcnn_forward.29} parent=0 // pred_check
    _
  $region3: #{faster_rcnn_forward.29} parent=0 // pred_check_branch
    %13 = sbr.rel (0) target = $region5
  $region4: #{faster_rcnn_forward.29} parent=0 // pred_region
    _
  $region5: #{faster_rcnn_forward.29} parent=0 // pred_fallthru
    _
  // Predicated region
  $region6: #{faster_rcnn_forward.29} parent=0 // pred_check
    _
  $region7: #{faster_rcnn_forward.29} parent=0 // pred_check_branch
    %15 = sbr.rel (0) target = $region9
  $region8: #{faster_rcnn_forward.29} parent=0 // pred_region
    _
  $region9: #{faster_rcnn_forward.29} parent=0 // pred_fallthru
    _
  // Predicated region
  $region10: #{faster_rcnn_forward.29} parent=0 // pred_check
    _
  $region11: #{faster_rcnn_forward.29} parent=0 // pred_check_branch
    %17 = sbr.rel (0) target = $region13
  $region12: #{faster_rcnn_forward.29} parent=0 // pred_region
    _
  $region13: #{faster_rcnn_forward.29} parent=0 // pred_fallthru
    _
  // Predicated region
  $region14: #{faster_rcnn_forward.29} parent=0 // pred_check
    _
  $region15: #{faster_rcnn_forward.29} parent=0 // pred_check_branch
    %19 = sbr.rel (0) target = $region17
  $region16: #{faster_rcnn_forward.29} parent=0 // pred_region
    _
  $region17: #{faster_rcnn_forward.29} parent=0 // pred_fallthru
    _
  // Predicated region
  $region18: #{faster_rcnn_forward.29} parent=0 // pred_check
    _
  $region19: #{faster_rcnn_forward.29} parent=0 // pred_check_branch
    %21 = sbr.rel (0) target = $region21
  $region20: #{faster_rcnn_forward.29} parent=0 // pred_region
    _
  $region21: #{faster_rcnn_forward.29} parent=0 // pred_fallthru
    _
  // Predicated region
  $region22: #{faster_rcnn_forward.29} parent=0 // pred_check
    _
  $region23: #{faster_rcnn_forward.29} parent=0 // pred_check_branch
    %23 = sbr.rel (0) target = $region25
  $region24: #{faster_rcnn_forward.29} parent=0 // pred_region
    _
  $region25: #{faster_rcnn_forward.29} parent=0 // pred_fallthru
    _
  // Predicated region
  $region26: #{faster_rcnn_forward.29} parent=0 // pred_check
    _
  $region27: #{faster_rcnn_forward.29} parent=0 // pred_check_branch
    %25 = sbr.rel (0) target = $region29
  $region28: #{faster_rcnn_forward.29} parent=0 // pred_region
    _
  $region29: #{faster_rcnn_forward.29} parent=0 // pred_fallthru
    _
  %v27 = vld [vmem:[%s0] sm:$0xff]
  %v28 = vld [vmem:[%s0 + $0x8] sm:$0xff]
  %v29 = vld [vmem:[%s0 + $0x10] sm:$0xff]
  %v30 = vld [vmem:[%s0 + $0x18] sm:$0xff]
  %v31 = vld [vmem:[%s0 + $0x20] sm:$0xff]
  %v32 = vld [vmem:[%s0 + $0x28] sm:$0xff]
  %v33 = vld [vmem:[%s0 + $0x30] sm:$0xf]
  %v34 = vld [vmem:[%s0 + $0x34] sm:$0xff]
  %v35 = vld [vmem:[%s0 + $0x3c] sm:$0xff]
  %v36 = vld [vmem:[%s0 + $0x44] sm:$0xff]
  %v37 = vld [vmem:[%s0 + $0x4c] sm:$0xff]
  %v38 = vld [vmem:[%s0 + $0x54] sm:$0xff]
  %v39 = vld [vmem:[%s0 + $0x5c] sm:$0xff]
  %v40 = vld [vmem:[%s0 + $0x64] sm:$0xf]
  %v41 = vld [vmem:[%s0 + $0x68] sm:$0xff]
  %v42 = vld [vmem:[%s0 + $0x70] sm:$0xff]
  %v43 = vld [vmem:[%s0 + $0x78] sm:$0xff]
  %v44 = vld [vmem:[%s0 + $0x80] sm:$0xff]
  %v45 = vld [vmem:[%s0 + $0x88] sm:$0xff]
  %v46 = vld [vmem:[%s0 + $0x90] sm:$0xff]
  %v47 = vld [vmem:[%s0 + $0x98] sm:$0xf]
  %v48 = vld [vmem:[%s0 + $0x9c] sm:$0xff]
  %v49 = vld [vmem:[%s0 + $0xa4] sm:$0xff]
  %v50 = vld [vmem:[%s0 + $0xac] sm:$0xff]
  %v51 = vld [vmem:[%s0 + $0xb4] sm:$0xff]
  %v52 = vld [vmem:[%s0 + $0xbc] sm:$0xff]
  %v53 = vld [vmem:[%s0 + $0xc4] sm:$0xff]
  %v54 = vld [vmem:[%s0 + $0xcc] sm:$0xf]
  %v55 = vld [vmem:[%s1] sm:$0xf]
  %v56 = vld [vmem:[%s1 + $0x4] sm:$0xf]
  %v57 = vld [vmem:[%s1 + $0x8] sm:$0xf]
  %v58 = vld [vmem:[%s1 + $0xc] sm:$0xf]
  %v59 = vld [vmem:[%s1 + $0x10] sm:$0xf]
  %v60 = vld [vmem:[%s1 + $0x14] sm:$0xf]
  %v61 = vld [vmem:[%s1 + $0x18] sm:$0xf]
  %v62 = vld [vmem:[%s1 + $0x1c] sm:$0xf]
  %v63 = vld [vmem:[%s1 + $0x20] sm:$0xf]
  %v64 = vld [vmem:[%s1 + $0x24] sm:$0xf]
  %v65 = vld [vmem:[%s1 + $0x28] sm:$0xf]
  %v66 = vld [vmem:[%s1 + $0x2c] sm:$0xf]
  %v67 = vld [vmem:[%s1 + $0x30] sm:$0xf]
  %v68 = vld [vmem:[%s1 + $0x34] sm:$0xf]
  %v69 = vld [vmem:[%s1 + $0x38] sm:$0xf]
  %v70 = vld [vmem:[%s1 + $0x3c] sm:$0xf]
  %v71 = vld [vmem:[%s1 + $0x40] sm:$0xf]
  %v72 = vld [vmem:[%s1 + $0x44] sm:$0xf]
  %v73 = vld [vmem:[%s1 + $0x48] sm:$0xf]
  %v74 = vld [vmem:[%s1 + $0x4c] sm:$0xf]
  %v75 = vld [vmem:[%s1 + $0x50] sm:$0xf]
  %v76 = vld [vmem:[%s1 + $0x54] sm:$0xf]
  %v77 = vld [vmem:[%s1 + $0x58] sm:$0xf]
  %v78 = vld [vmem:[%s1 + $0x5c] sm:$0xf]
  %v79 = vld [vmem:[%s1 + $0x60] sm:$0xf]
  %v80 = vld [vmem:[%s1 + $0x64] sm:$0xf]
  %v81 = vld [vmem:[%s1 + $0x68] sm:$0xf]
  %v82 = vld [vmem:[%s1 + $0x6c] sm:$0xf]
  %v83 = vld [vmem:[%s1 + $0x70] sm:$0xf]
  %v84 = vld [vmem:[%s1 + $0x74] sm:$0xf]
  %v85 = vld [vmem:[%s1 + $0x78] sm:$0xf]
  %v86 = vld [vmem:[%s1 + $0x7c] sm:$0xf]
  %v87 = vld [vmem:[%s1 + $0x80] sm:$0xf]
  %v88 = vld [vmem:[%s1 + $0x84] sm:$0xf]
  %v89 = vld [vmem:[%s1 + $0x88] sm:$0xf]
  %v90 = vld [vmem:[%s1 + $0x8c] sm:$0xf]
  %v91 = vld [vmem:[%s1 + $0x90] sm:$0xf]
  %v92 = vld [vmem:[%s1 + $0x94] sm:$0xf]
  %v93 = vld [vmem:[%s1 + $0x98] sm:$0xf]
  %v94 = vld [vmem:[%s1 + $0x9c] sm:$0xf]
  %v95 = vld [vmem:[%s1 + $0xa0] sm:$0xf]
  %v96 = vld [vmem:[%s1 + $0xa4] sm:$0xf]
  %v97 = vld [vmem:[%s1 + $0xa8] sm:$0xf]
  %v98 = vld [vmem:[%s1 + $0xac] sm:$0xf]
  %v99 = vld [vmem:[%s1 + $0xb0] sm:$0xf]
  %v100 = vld [vmem:[%s1 + $0xb4] sm:$0xf]
  %v101 = vld [vmem:[%s1 + $0xb8] sm:$0xf]
  %v102 = vld [vmem:[%s1 + $0xbc] sm:$0xf]
  %v103 = vld [vmem:[%s1 + $0xc0] sm:$0xf]
  %v104 = vld [vmem:[%s1 + $0xc4] sm:$0xf]
  %v105 = vld [vmem:[%s1 + $0xc8] sm:$0xf]
  %v106 = vld [vmem:[%s1 + $0xcc] sm:$0xf]
  %v107 = vld [vmem:[%s1 + $0xd0] sm:$0xf]
  %v108 = vld [vmem:[%s1 + $0xd4] sm:$0xf]
  %v109 = vld [vmem:[%s1 + $0xd8] sm:$0xf]
  %v110 = vld [vmem:[%s1 + $0xdc] sm:$0xf]
  %v111 = vld [vmem:[%s1 + $0xe0] sm:$0xf]
  %v112 = vld [vmem:[%s1 + $0xe4] sm:$0xf]
  %v113 = vld [vmem:[%s1 + $0xe8] sm:$0xf]
  %v114 = vld [vmem:[%s1 + $0xec] sm:$0xf]
  %v115 = vld [vmem:[%s1 + $0xf0] sm:$0xf]
  %v116 = vld [vmem:[%s1 + $0xf4] sm:$0xf]
  %v117 = vld [vmem:[%s1 + $0xf8] sm:$0xf]
  %v118 = vld [vmem:[%s1 + $0xfc] sm:$0xf]
  %v119 = vld [vmem:[%s1 + $0x100] sm:$0xf]
  %v120 = vld [vmem:[%s1 + $0x104] sm:$0xf]
  %v121 = vld [vmem:[%s1 + $0x108] sm:$0xf]
  %v122 = vld [vmem:[%s1 + $0x10c] sm:$0xf]
  %v123 = vld [vmem:[%s1 + $0x110] sm:$0xf]
  %v124 = vld [vmem:[%s1 + $0x114] sm:$0xf]
  %v125 = vld [vmem:[%s1 + $0x118] sm:$0xf]
  %v126 = vld [vmem:[%s1 + $0x11c] sm:$0xf]
  %v127 = vld [vmem:[%s1 + $0x120] sm:$0xf]
  %v128 = vld [vmem:[%s1 + $0x124] sm:$0xf]
  %v129 = vld [vmem:[%s1 + $0x128] sm:$0xf]
  %v130 = vld [vmem:[%s1 + $0x12c] sm:$0xf]
  %v131 = vld [vmem:[%s1 + $0x130] sm:$0xf]
  %v132 = vld [vmem:[%s1 + $0x134] sm:$0xf]
  %v133 = vld [vmem:[%s1 + $0x138] sm:$0xf]
  %v134 = vld [vmem:[%s1 + $0x13c] sm:$0xf]
  %v135 = vld [vmem:[%s1 + $0x140] sm:$0xf]
  %v136 = vld [vmem:[%s1 + $0x144] sm:$0xf]
  %v137 = vld [vmem:[%s1 + $0x148] sm:$0xf]
  %v138 = vld [vmem:[%s1 + $0x14c] sm:$0xf]
  %v139 = vld [vmem:[%s1 + $0x150] sm:$0xf]
  %v140 = vld [vmem:[%s1 + $0x154] sm:$0xf]
  %v141 = vld [vmem:[%s1 + $0x158] sm:$0xf]
  %v142 = vld [vmem:[%s1 + $0x15c] sm:$0xf]
  %v143 = vld [vmem:[%s1 + $0x160] sm:$0xf]
  %v144 = vld [vmem:[%s1 + $0x164] sm:$0xf]
  %v145 = vld [vmem:[%s1 + $0x168] sm:$0xf]
  %v146 = vld [vmem:[%s1 + $0x16c] sm:$0xf]
  %v147 = vld [vmem:[%s1 + $0x170] sm:$0xf]
  %v148 = vld [vmem:[%s1 + $0x174] sm:$0xf]
  %v149 = vld [vmem:[%s1 + $0x178] sm:$0xf]
  %v150 = vld [vmem:[%s1 + $0x17c] sm:$0xf]
  %v151 = vld [vmem:[%s1 + $0x180] sm:$0xf]
  %v152 = vld [vmem:[%s1 + $0x184] sm:$0xf]
  %v153 = vld [vmem:[%s1 + $0x188] sm:$0xf]
  %v154 = vld [vmem:[%s1 + $0x18c] sm:$0xf]
  %v155 = vld [vmem:[%s1 + $0x190] sm:$0xf]
  %v156 = vld [vmem:[%s1 + $0x194] sm:$0xf]
  %v157 = vld [vmem:[%s1 + $0x198] sm:$0xf]
  %v158 = vld [vmem:[%s1 + $0x19c] sm:$0xf]
  %v159 = vld [vmem:[%s1 + $0x1a0] sm:$0xf]
  %v160 = vld [vmem:[%s1 + $0x1a4] sm:$0xf]
  %v161 = vld [vmem:[%s1 + $0x1a8] sm:$0xf]
  %v162 = vld [vmem:[%s1 + $0x1ac] sm:$0xf]
  %v163 = vld [vmem:[%s1 + $0x1b0] sm:$0xf]
  %v164 = vld [vmem:[%s1 + $0x1b4] sm:$0xf]
  %v165 = vld [vmem:[%s1 + $0x1b8] sm:$0xf]
  %v166 = vld [vmem:[%s1 + $0x1bc] sm:$0xf]
  %v167 = vld [vmem:[%s1 + $0x1c0] sm:$0xf]
  %v168 = vld [vmem:[%s1 + $0x1c4] sm:$0xf]
  %v169 = vld [vmem:[%s1 + $0x1c8] sm:$0xf]
  %v170 = vld [vmem:[%s1 + $0x1cc] sm:$0xf]
  %v171 = vld [vmem:[%s1 + $0x1d0] sm:$0xf]
  %v172 = vld [vmem:[%s1 + $0x1d4] sm:$0xf]
  %v173 = vld [vmem:[%s1 + $0x1d8] sm:$0xf]
  %v174 = vld [vmem:[%s1 + $0x1dc] sm:$0xf]
  %v175 = vld [vmem:[%s1 + $0x1e0] sm:$0xf]
  %v176 = vld [vmem:[%s1 + $0x1e4] sm:$0xf]
  %v177 = vld [vmem:[%s1 + $0x1e8] sm:$0xf]
  %v178 = vld [vmem:[%s1 + $0x1ec] sm:$0xf]
  %v179 = vld [vmem:[%s1 + $0x1f0] sm:$0xf]
  %v180 = vld [vmem:[%s1 + $0x1f4] sm:$0xf]
  %v181 = vld [vmem:[%s1 + $0x1f8] sm:$0xf]
  %v182 = vld [vmem:[%s1 + $0x1fc] sm:$0xf]
  %v183 = vld [vmem:[%s1 + $0x200] sm:$0xf]
  %v184 = vld [vmem:[%s1 + $0x204] sm:$0xf]
  %v185 = vld [vmem:[%s1 + $0x208] sm:$0xf]
  %v186 = vld [vmem:[%s1 + $0x20c] sm:$0xf]
  %v187 = vld [vmem:[%s1 + $0x210] sm:$0xf]
  %v188 = vld [vmem:[%s1 + $0x214] sm:$0xf]
  %v189 = vld [vmem:[%s1 + $0x218] sm:$0xf]
  %v190 = vld [vmem:[%s1 + $0x21c] sm:$0xf]
  %v191 = vld [vmem:[%s1 + $0x220] sm:$0xf]
  %v192 = vld [vmem:[%s1 + $0x224] sm:$0xf]
  %v193 = vld [vmem:[%s1 + $0x228] sm:$0xf]
  %v194 = vld [vmem:[%s1 + $0x22c] sm:$0xf]
  %v195 = vld [vmem:[%s1 + $0x230] sm:$0xf]
  %v196 = vld [vmem:[%s1 + $0x234] sm:$0xf]
  %v197 = vld [vmem:[%s1 + $0x238] sm:$0xf]
  %v198 = vld [vmem:[%s1 + $0x23c] sm:$0xf]
  %v199 = vld [vmem:[%s1 + $0x240] sm:$0xf]
  %v200 = vld [vmem:[%s1 + $0x244] sm:$0xf]
  %v201 = vld [vmem:[%s1 + $0x248] sm:$0xf]
  %v202 = vld [vmem:[%s1 + $0x24c] sm:$0xf]
  %v203 = vld [vmem:[%s1 + $0x250] sm:$0xf]
  %v204 = vld [vmem:[%s1 + $0x254] sm:$0xf]
  %v205 = vld [vmem:[%s1 + $0x258] sm:$0xf]
  %v206 = vld [vmem:[%s1 + $0x25c] sm:$0xf]
  %v207 = vld [vmem:[%s1 + $0x260] sm:$0xf]
  %v208 = vld [vmem:[%s1 + $0x264] sm:$0xf]
  %v209 = vld [vmem:[%s1 + $0x268] sm:$0xf]
  %v210 = vld [vmem:[%s1 + $0x26c] sm:$0xf]
  %v211 = vld [vmem:[%s1 + $0x270] sm:$0xf]
  %v212 = vld [vmem:[%s1 + $0x274] sm:$0xf]
  %v213 = vld [vmem:[%s1 + $0x278] sm:$0xf]
  %v214 = vld [vmem:[%s1 + $0x27c] sm:$0xf]
  %v215 = vld [vmem:[%s1 + $0x280] sm:$0xf]
  %v216 = vld [vmem:[%s1 + $0x284] sm:$0xf]
  %v217 = vld [vmem:[%s1 + $0x288] sm:$0xf]
  %v218 = vld [vmem:[%s1 + $0x28c] sm:$0xf]
  %v219 = vld [vmem:[%s1 + $0x290] sm:$0xf]
  %v220 = vld [vmem:[%s1 + $0x294] sm:$0xf]
  %v221 = vld [vmem:[%s1 + $0x298] sm:$0xf]
  %v222 = vld [vmem:[%s1 + $0x29c] sm:$0xf]
  %v223 = vld [vmem:[%s1 + $0x2a0] sm:$0xf]
  %v224 = vld [vmem:[%s1 + $0x2a4] sm:$0xf]
  %v225 = vld [vmem:[%s1 + $0x2a8] sm:$0xf]
  %v226 = vld [vmem:[%s1 + $0x2ac] sm:$0xf]
  %v227 = vld [vmem:[%s1 + $0x2b0] sm:$0xf]
  %v228 = vld [vmem:[%s1 + $0x2b4] sm:$0xf]
  %v229 = vld [vmem:[%s1 + $0x2b8] sm:$0xf]
  %v230 = vld [vmem:[%s1 + $0x2bc] sm:$0xf]
  %v231 = vld [vmem:[%s1 + $0x2c0] sm:$0xf]
  %v232 = vld [vmem:[%s1 + $0x2c4] sm:$0xf]
  %v233 = vld [vmem:[%s1 + $0x2c8] sm:$0xf]
  %v234 = vld [vmem:[%s1 + $0x2cc] sm:$0xf]
  %v235 = vld [vmem:[%s1 + $0x2d0] sm:$0xf]
  %v236 = vld [vmem:[%s1 + $0x2d4] sm:$0xf]
  %v237 = vld [vmem:[%s1 + $0x2d8] sm:$0xf]
  %v238 = vld [vmem:[%s1 + $0x2dc] sm:$0xf]
  %v239 = vld [vmem:[%s1 + $0x2e0] sm:$0xf]
  %v240 = vld [vmem:[%s1 + $0x2e4] sm:$0xf]
  %v241 = vld [vmem:[%s1 + $0x2e8] sm:$0xf]
  %v242 = vld [vmem:[%s1 + $0x2ec] sm:$0xf]
  %v243 = vld [vmem:[%s1 + $0x2f0] sm:$0xf]
  %v244 = vld [vmem:[%s1 + $0x2f4] sm:$0xf]
  %v245 = vld [vmem:[%s1 + $0x2f8] sm:$0xf]
  %v246 = vld [vmem:[%s1 + $0x2fc] sm:$0xf]
  %v247 = vld [vmem:[%s1 + $0x300] sm:$0xf]
  %v248 = vld [vmem:[%s1 + $0x304] sm:$0xf]
  %v249 = vld [vmem:[%s1 + $0x308] sm:$0xf]
  %v250 = vld [vmem:[%s1 + $0x30c] sm:$0xf]
  %v251 = vld [vmem:[%s2] sm:$0x1]
  %v253 = vlaneseq
  %v254 = vshrl.u32 %v253, 7
  %v255 = vsub.s32 0, %v254
  %v256 = vrot.slane %v251, %v255
  %v286 = vunpack.c.l.b16 %v27
  %v287 = vunpack.c.h.b16 %v27
  %v288 = vunpack.c.l.b16 %v28
  %v289 = vunpack.c.h.b16 %v28
  %v290 = vunpack.c.l.b16 %v29
  %v291 = vunpack.c.h.b16 %v29
  %v292 = vunpack.c.l.b16 %v30
  %v293 = vunpack.c.h.b16 %v30
  %v294 = vunpack.c.l.b16 %v31
  %v295 = vunpack.c.h.b16 %v31
  %v296 = vunpack.c.l.b16 %v32
  %v297 = vunpack.c.h.b16 %v32
  %v298 = vunpack.c.l.b16 %v33
  %v299 = vunpack.c.l.b16 %v34
  %v300 = vunpack.c.h.b16 %v34
  %v301 = vunpack.c.l.b16 %v35
  %v302 = vunpack.c.h.b16 %v35
  %v303 = vunpack.c.l.b16 %v36
  %v304 = vunpack.c.h.b16 %v36
  %v305 = vunpack.c.l.b16 %v37
  %v306 = vunpack.c.h.b16 %v37
  %v307 = vunpack.c.l.b16 %v38
  %v308 = vunpack.c.h.b16 %v38
  %v309 = vunpack.c.l.b16 %v39
  %v310 = vunpack.c.h.b16 %v39
  %v311 = vunpack.c.l.b16 %v40
  %v312 = vunpack.c.l.b16 %v41
  %v313 = vunpack.c.h.b16 %v41
  %v314 = vunpack.c.l.b16 %v42
  %v315 = vunpack.c.h.b16 %v42
  %v316 = vunpack.c.l.b16 %v43
  %v317 = vunpack.c.h.b16 %v43
  %v318 = vunpack.c.l.b16 %v44
  %v319 = vunpack.c.h.b16 %v44
  %v320 = vunpack.c.l.b16 %v45
  %v321 = vunpack.c.h.b16 %v45
  %v322 = vunpack.c.l.b16 %v46
  %v323 = vunpack.c.h.b16 %v46
  %v324 = vunpack.c.l.b16 %v47
  %v325 = vunpack.c.l.b16 %v48
  %v326 = vunpack.c.h.b16 %v48
  %v327 = vunpack.c.l.b16 %v49
  %v328 = vunpack.c.h.b16 %v49
  %v329 = vunpack.c.l.b16 %v50
  %v330 = vunpack.c.h.b16 %v50
  %v331 = vunpack.c.l.b16 %v51
  %v332 = vunpack.c.h.b16 %v51
  %v333 = vunpack.c.l.b16 %v52
  %v334 = vunpack.c.h.b16 %v52
  %v335 = vunpack.c.l.b16 %v53
  %v336 = vunpack.c.h.b16 %v53
  %v337 = vunpack.c.l.b16 %v54
  %v338 = vpack.c.b16 %v299, %v286
  %v339 = vpack.c.b16 %v300, %v287
  %v340 = vpack.c.b16 %v301, %v288
  %v341 = vpack.c.b16 %v302, %v289
  %v342 = vpack.c.b16 %v303, %v290
  %v343 = vpack.c.b16 %v304, %v291
  %v344 = vpack.c.b16 %v305, %v292
  %v345 = vpack.c.b16 %v306, %v293
  %v346 = vpack.c.b16 %v307, %v294
  %v347 = vpack.c.b16 %v308, %v295
  %v348 = vpack.c.b16 %v309, %v296
  %v349 = vpack.c.b16 %v310, %v297
  %v350 = vpack.c.b16 %v311, %v298
  %v351 = vpack.c.b16 %v325, %v312
  %v352 = vpack.c.b16 %v326, %v313
  %v353 = vpack.c.b16 %v327, %v314
  %v354 = vpack.c.b16 %v328, %v315
  %v355 = vpack.c.b16 %v329, %v316
  %v356 = vpack.c.b16 %v330, %v317
  %v357 = vpack.c.b16 %v331, %v318
  %v358 = vpack.c.b16 %v332, %v319
  %v359 = vpack.c.b16 %v333, %v320
  %v360 = vpack.c.b16 %v334, %v321
  %v361 = vpack.c.b16 %v335, %v322
  %v362 = vpack.c.b16 %v336, %v323
  %v363 = vpack.c.b16 %v337, %v324
  %v584 = vunpack.c.l.b16 %v55
  %v585 = vunpack.c.l.b16 %v56
  %v586 = vunpack.c.l.b16 %v57
  %v587 = vunpack.c.l.b16 %v58
  %v588 = vunpack.c.l.b16 %v59
  %v589 = vunpack.c.l.b16 %v60
  %v590 = vunpack.c.l.b16 %v61
  %v591 = vunpack.c.l.b16 %v62
  %v592 = vunpack.c.l.b16 %v63
  %v593 = vunpack.c.l.b16 %v64
  %v594 = vunpack.c.l.b16 %v65
  %v595 = vunpack.c.l.b16 %v66
  %v596 = vunpack.c.l.b16 %v67
  %v597 = vunpack.c.l.b16 %v68
  %v598 = vunpack.c.l.b16 %v69
  %v599 = vunpack.c.l.b16 %v70
  %v600 = vunpack.c.l.b16 %v71
  %v601 = vunpack.c.l.b16 %v72
  %v602 = vunpack.c.l.b16 %v73
  %v603 = vunpack.c.l.b16 %v74
  %v604 = vunpack.c.l.b16 %v75
  %v605 = vunpack.c.l.b16 %v76
  %v606 = vunpack.c.l.b16 %v77
  %v607 = vunpack.c.l.b16 %v78
  %v608 = vunpack.c.l.b16 %v79
  %v609 = vunpack.c.l.b16 %v80
  %v610 = vunpack.c.l.b16 %v81
  %v611 = vunpack.c.l.b16 %v82
  %v612 = vunpack.c.l.b16 %v83
  %v613 = vunpack.c.l.b16 %v84
  %v614 = vunpack.c.l.b16 %v85
  %v615 = vunpack.c.l.b16 %v86
  %v616 = vunpack.c.l.b16 %v87
  %v617 = vunpack.c.l.b16 %v88
  %v618 = vunpack.c.l.b16 %v89
  %v619 = vunpack.c.l.b16 %v90
  %v620 = vunpack.c.l.b16 %v91
  %v621 = vunpack.c.l.b16 %v92
  %v622 = vunpack.c.l.b16 %v93
  %v623 = vunpack.c.l.b16 %v94
  %v624 = vunpack.c.l.b16 %v95
  %v625 = vunpack.c.l.b16 %v96
  %v626 = vunpack.c.l.b16 %v97
  %v627 = vunpack.c.l.b16 %v98
  %v628 = vunpack.c.l.b16 %v99
  %v629 = vunpack.c.l.b16 %v100
  %v630 = vunpack.c.l.b16 %v101
  %v631 = vunpack.c.l.b16 %v102
  %v632 = vunpack.c.l.b16 %v103
  %v633 = vunpack.c.l.b16 %v104
  %v634 = vunpack.c.l.b16 %v105
  %v635 = vunpack.c.l.b16 %v106
  %v636 = vunpack.c.l.b16 %v107
  %v637 = vunpack.c.l.b16 %v108
  %v638 = vunpack.c.l.b16 %v109
  %v639 = vunpack.c.l.b16 %v110
  %v640 = vunpack.c.l.b16 %v111
  %v641 = vunpack.c.l.b16 %v112
  %v642 = vunpack.c.l.b16 %v113
  %v643 = vunpack.c.l.b16 %v114
  %v644 = vunpack.c.l.b16 %v115
  %v645 = vunpack.c.l.b16 %v116
  %v646 = vunpack.c.l.b16 %v117
  %v647 = vunpack.c.l.b16 %v118
  %v648 = vunpack.c.l.b16 %v119
  %v649 = vunpack.c.l.b16 %v120
  %v650 = vunpack.c.l.b16 %v121
  %v651 = vunpack.c.l.b16 %v122
  %v652 = vunpack.c.l.b16 %v123
  %v653 = vunpack.c.l.b16 %v124
  %v654 = vunpack.c.l.b16 %v125
  %v655 = vunpack.c.l.b16 %v126
  %v656 = vunpack.c.l.b16 %v127
  %v657 = vunpack.c.l.b16 %v128
  %v658 = vunpack.c.l.b16 %v129
  %v659 = vunpack.c.l.b16 %v130
  %v660 = vunpack.c.l.b16 %v131
  %v661 = vunpack.c.l.b16 %v132
  %v662 = vunpack.c.l.b16 %v133
  %v663 = vunpack.c.l.b16 %v134
  %v664 = vunpack.c.l.b16 %v135
  %v665 = vunpack.c.l.b16 %v136
  %v666 = vunpack.c.l.b16 %v137
  %v667 = vunpack.c.l.b16 %v138
  %v668 = vunpack.c.l.b16 %v139
  %v669 = vunpack.c.l.b16 %v140
  %v670 = vunpack.c.l.b16 %v141
  %v671 = vunpack.c.l.b16 %v142
  %v672 = vunpack.c.l.b16 %v143
  %v673 = vunpack.c.l.b16 %v144
  %v674 = vunpack.c.l.b16 %v145
  %v675 = vunpack.c.l.b16 %v146
  %v676 = vunpack.c.l.b16 %v147
  %v677 = vunpack.c.l.b16 %v148
  %v678 = vunpack.c.l.b16 %v149
  %v679 = vunpack.c.l.b16 %v150
  %v680 = vunpack.c.l.b16 %v151
  %v681 = vunpack.c.l.b16 %v152
  %v682 = vunpack.c.l.b16 %v153
  %v683 = vunpack.c.l.b16 %v154
  %v684 = vunpack.c.l.b16 %v155
  %v685 = vunpack.c.l.b16 %v156
  %v686 = vunpack.c.l.b16 %v157
  %v687 = vunpack.c.l.b16 %v158
  %v688 = vunpack.c.l.b16 %v159
  %v689 = vunpack.c.l.b16 %v160
  %v690 = vunpack.c.l.b16 %v161
  %v691 = vunpack.c.l.b16 %v162
  %v692 = vunpack.c.l.b16 %v163
  %v693 = vunpack.c.l.b16 %v164
  %v694 = vunpack.c.l.b16 %v165
  %v695 = vunpack.c.l.b16 %v166
  %v696 = vunpack.c.l.b16 %v167
  %v697 = vunpack.c.l.b16 %v168
  %v698 = vunpack.c.l.b16 %v169
  %v699 = vunpack.c.l.b16 %v170
  %v700 = vunpack.c.l.b16 %v171
  %v701 = vunpack.c.l.b16 %v172
  %v702 = vunpack.c.l.b16 %v173
  %v703 = vunpack.c.l.b16 %v174
  %v704 = vunpack.c.l.b16 %v175
  %v705 = vunpack.c.l.b16 %v176
  %v706 = vunpack.c.l.b16 %v177
  %v707 = vunpack.c.l.b16 %v178
  %v708 = vunpack.c.l.b16 %v179
  %v709 = vunpack.c.l.b16 %v180
  %v710 = vunpack.c.l.b16 %v181
  %v711 = vunpack.c.l.b16 %v182
  %v712 = vunpack.c.l.b16 %v183
  %v713 = vunpack.c.l.b16 %v184
  %v714 = vunpack.c.l.b16 %v185
  %v715 = vunpack.c.l.b16 %v186
  %v716 = vunpack.c.l.b16 %v187
  %v717 = vunpack.c.l.b16 %v188
  %v718 = vunpack.c.l.b16 %v189
  %v719 = vunpack.c.l.b16 %v190
  %v720 = vunpack.c.l.b16 %v191
  %v721 = vunpack.c.l.b16 %v192
  %v722 = vunpack.c.l.b16 %v193
  %v723 = vunpack.c.l.b16 %v194
  %v724 = vunpack.c.l.b16 %v195
  %v725 = vunpack.c.l.b16 %v196
  %v726 = vunpack.c.l.b16 %v197
  %v727 = vunpack.c.l.b16 %v198
  %v728 = vunpack.c.l.b16 %v199
  %v729 = vunpack.c.l.b16 %v200
  %v730 = vunpack.c.l.b16 %v201
  %v731 = vunpack.c.l.b16 %v202
  %v732 = vunpack.c.l.b16 %v203
  %v733 = vunpack.c.l.b16 %v204
  %v734 = vunpack.c.l.b16 %v205
  %v735 = vunpack.c.l.b16 %v206
  %v736 = vunpack.c.l.b16 %v207
  %v737 = vunpack.c.l.b16 %v208
  %v738 = vunpack.c.l.b16 %v209
  %v739 = vunpack.c.l.b16 %v210
  %v740 = vunpack.c.l.b16 %v211
  %v741 = vunpack.c.l.b16 %v212
  %v742 = vunpack.c.l.b16 %v213
  %v743 = vunpack.c.l.b16 %v214
  %v744 = vunpack.c.l.b16 %v215
  %v745 = vunpack.c.l.b16 %v216
  %v746 = vunpack.c.l.b16 %v217
  %v747 = vunpack.c.l.b16 %v218
  %v748 = vunpack.c.l.b16 %v219
  %v749 = vunpack.c.l.b16 %v220
  %v750 = vunpack.c.l.b16 %v221
  %v751 = vunpack.c.l.b16 %v222
  %v752 = vunpack.c.l.b16 %v223
  %v753 = vunpack.c.l.b16 %v224
  %v754 = vunpack.c.l.b16 %v225
  %v755 = vunpack.c.l.b16 %v226
  %v756 = vunpack.c.l.b16 %v227
  %v757 = vunpack.c.l.b16 %v228
  %v758 = vunpack.c.l.b16 %v229
  %v759 = vunpack.c.l.b16 %v230
  %v760 = vunpack.c.l.b16 %v231
  %v761 = vunpack.c.l.b16 %v232
  %v762 = vunpack.c.l.b16 %v233
  %v763 = vunpack.c.l.b16 %v234
  %v764 = vunpack.c.l.b16 %v235
  %v765 = vunpack.c.l.b16 %v236
  %v766 = vunpack.c.l.b16 %v237
  %v767 = vunpack.c.l.b16 %v238
  %v768 = vunpack.c.l.b16 %v239
  %v769 = vunpack.c.l.b16 %v240
  %v770 = vunpack.c.l.b16 %v241
  %v771 = vunpack.c.l.b16 %v242
  %v772 = vunpack.c.l.b16 %v243
  %v773 = vunpack.c.l.b16 %v244
  %v774 = vunpack.c.l.b16 %v245
  %v775 = vunpack.c.l.b16 %v246
  %v776 = vunpack.c.l.b16 %v247
  %v777 = vunpack.c.l.b16 %v248
  %v778 = vunpack.c.l.b16 %v249
  %v779 = vunpack.c.l.b16 %v250
  %v780 = vpack.c.b16 %v585, %v584
  %v781 = vpack.c.b16 %v587, %v586
  %v782 = vpack.c.b16 %v589, %v588
  %v783 = vpack.c.b16 %v591, %v590
  %v784 = vpack.c.b16 %v593, %v592
  %v785 = vpack.c.b16 %v595, %v594
  %v786 = vpack.c.b16 %v597, %v596
  %v787 = vpack.c.b16 %v599, %v598
  %v788 = vpack.c.b16 %v601, %v600
  %v789 = vpack.c.b16 %v603, %v602
  %v790 = vpack.c.b16 %v605, %v604
  %v791 = vpack.c.b16 %v607, %v606
  %v792 = vpack.c.b16 %v609, %v608
  %v793 = vpack.c.b16 %v611, %v610
  %v794 = vpack.c.b16 %v613, %v612
  %v795 = vpack.c.b16 %v615, %v614
  %v796 = vpack.c.b16 %v617, %v616
  %v797 = vpack.c.b16 %v619, %v618
  %v798 = vpack.c.b16 %v621, %v620
  %v799 = vpack.c.b16 %v623, %v622
  %v800 = vpack.c.b16 %v625, %v624
  %v801 = vpack.c.b16 %v627, %v626
  %v802 = vpack.c.b16 %v629, %v628
  %v803 = vpack.c.b16 %v631, %v630
  %v804 = vpack.c.b16 %v633, %v632
  %v805 = vpack.c.b16 %v635, %v634
  %v806 = vpack.c.b16 %v637, %v636
  %v807 = vpack.c.b16 %v639, %v638
  %v808 = vpack.c.b16 %v641, %v640
  %v809 = vpack.c.b16 %v643, %v642
  %v810 = vpack.c.b16 %v645, %v644
  %v811 = vpack.c.b16 %v647, %v646
  %v812 = vpack.c.b16 %v649, %v648
  %v813 = vpack.c.b16 %v651, %v650
  %v814 = vpack.c.b16 %v653, %v652
  %v815 = vpack.c.b16 %v655, %v654
  %v816 = vpack.c.b16 %v657, %v656
  %v817 = vpack.c.b16 %v659, %v658
  %v818 = vpack.c.b16 %v661, %v660
  %v819 = vpack.c.b16 %v663, %v662
  %v820 = vpack.c.b16 %v665, %v664
  %v821 = vpack.c.b16 %v667, %v666
  %v822 = vpack.c.b16 %v669, %v668
  %v823 = vpack.c.b16 %v671, %v670
  %v824 = vpack.c.b16 %v673, %v672
  %v825 = vpack.c.b16 %v675, %v674
  %v826 = vpack.c.b16 %v677, %v676
  %v827 = vpack.c.b16 %v679, %v678
  %v828 = vpack.c.b16 %v681, %v680
  %v829 = vpack.c.b16 %v683, %v682
  %v830 = vpack.c.b16 %v685, %v684
  %v831 = vpack.c.b16 %v687, %v686
  %v832 = vpack.c.b16 %v689, %v688
  %v833 = vpack.c.b16 %v691, %v690
  %v834 = vpack.c.b16 %v693, %v692
  %v835 = vpack.c.b16 %v695, %v694
  %v836 = vpack.c.b16 %v697, %v696
  %v837 = vpack.c.b16 %v699, %v698
  %v838 = vpack.c.b16 %v701, %v700
  %v839 = vpack.c.b16 %v703, %v702
  %v840 = vpack.c.b16 %v705, %v704
  %v841 = vpack.c.b16 %v707, %v706
  %v842 = vpack.c.b16 %v709, %v708
  %v843 = vpack.c.b16 %v711, %v710
  %v844 = vpack.c.b16 %v713, %v712
  %v845 = vpack.c.b16 %v715, %v714
  %v846 = vpack.c.b16 %v717, %v716
  %v847 = vpack.c.b16 %v719, %v718
  %v848 = vpack.c.b16 %v721, %v720
  %v849 = vpack.c.b16 %v723, %v722
  %v850 = vpack.c.b16 %v725, %v724
  %v851 = vpack.c.b16 %v727, %v726
  %v852 = vpack.c.b16 %v729, %v728
  %v853 = vpack.c.b16 %v731, %v730
  %v854 = vpack.c.b16 %v733, %v732
  %v855 = vpack.c.b16 %v735, %v734
  %v856 = vpack.c.b16 %v737, %v736
  %v857 = vpack.c.b16 %v739, %v738
  %v858 = vpack.c.b16 %v741, %v740
  %v859 = vpack.c.b16 %v743, %v742
  %v860 = vpack.c.b16 %v745, %v744
  %v861 = vpack.c.b16 %v747, %v746
  %v862 = vpack.c.b16 %v749, %v748
  %v863 = vpack.c.b16 %v751, %v750
  %v864 = vpack.c.b16 %v753, %v752
  %v865 = vpack.c.b16 %v755, %v754
  %v866 = vpack.c.b16 %v757, %v756
  %v867 = vpack.c.b16 %v759, %v758
  %v868 = vpack.c.b16 %v761, %v760
  %v869 = vpack.c.b16 %v763, %v762
  %v870 = vpack.c.b16 %v765, %v764
  %v871 = vpack.c.b16 %v767, %v766
  %v872 = vpack.c.b16 %v769, %v768
  %v873 = vpack.c.b16 %v771, %v770
  %v874 = vpack.c.b16 %v773, %v772
  %v875 = vpack.c.b16 %v775, %v774
  %v876 = vpack.c.b16 %v777, %v776
  %v877 = vpack.c.b16 %v779, %v778
  %vm976 = vcmask 261120
  %v978 = vsel %vm976, %v350, 0
  %v981 = vsel %vm976, %v363, 0
  %983 = vmatprep.subr.bf16.mxu0 0
  %984 = vmatpush1.bf16.msra.mxu0 %v787
  %985 = vmatprep.subr.bf16.mxu0 0
  %986 = vmatpush1.bf16.msra.mxu0 %v786
  %987 = vmatprep.subr.bf16.mxu0 0
  %988 = vmatpush1.bf16.msra.mxu0 %v785
  %989 = vmatprep.subr.bf16.mxu0 0
  %990 = vmatpush1.bf16.msra.mxu0 %v784
  %991 = vmatprep.subr.bf16.mxu0 0
  %992 = vmatpush1.bf16.msra.mxu0 %v783
  %993 = vmatprep.subr.bf16.mxu0 0
  %994 = vmatpush1.bf16.msra.mxu0 %v782
  %995 = vmatprep.subr.bf16.mxu0 0
  %996 = vmatpush1.bf16.msra.mxu0 %v781
  %997 = vmatprep.subr.bf16.mxu0 0
  %998 = vmatpush1.bf16.msra.mxu0 %v780
  %999 = vmatprep.subr.bf16.mxu0 0
  %1000 = vmatpush2.bf16.msra.mxu0 %v795
  %1001 = vmatprep.subr.bf16.mxu0 0
  %1002 = vmatpush2.bf16.msra.mxu0 %v794
  %1003 = vmatprep.subr.bf16.mxu0 0
  %1004 = vmatpush2.bf16.msra.mxu0 %v793
  %1005 = vmatprep.subr.bf16.mxu0 0
  %1006 = vmatpush2.bf16.msra.mxu0 %v792
  %1007 = vmatprep.subr.bf16.mxu0 0
  %1008 = vmatpush2.bf16.msra.mxu0 %v791
  %1009 = vmatprep.subr.bf16.mxu0 0
  %1010 = vmatpush2.bf16.msra.mxu0 %v790
  %1011 = vmatprep.subr.bf16.mxu0 0
  %1012 = vmatpush2.bf16.msra.mxu0 %v789
  %1013 = vmatprep.subr.bf16.mxu0 0
  %1014 = vmatpush2.bf16.msra.mxu0 %v788
  %1015 = vmatprep.mubr.bf16.mxu0 %v339
  %1016 = vmatmul.mubr.bf16.gmra.mxu0 %v338
  %v1017 = vpop.f32.mrf.mxu0
  %v1018 = vadd.f32 %v256, %v1017
  %v1019 = vpop.f32.mrf.mxu0
  %v1020 = vpop.f32.mrf.mxu0
  %v1021 = vadd.f32 %v256, %v1020
  %v1022 = vpop.f32.mrf.mxu0
  %1023 = vmatprep.mubr.bf16.mxu0 %v352
  %1024 = vmatmul.mubr.bf16.gmra.mxu0 %v351
  %v1025 = vpop.f32.mrf.mxu0
  %v1026 = vadd.f32 %v256, %v1025
  %v1027 = vpop.f32.mrf.mxu0
  %v1028 = vpop.f32.mrf.mxu0
  %v1029 = vadd.f32 %v256, %v1028
  %v1030 = vpop.f32.mrf.mxu0
  %1031 = vdwg.mxu0
  %1032 = vmatprep.subr.bf16.mxu0 0
  %1033 = vmatpush1.bf16.msra.mxu0 %v803
  %1034 = vmatprep.subr.bf16.mxu0 0
  %1035 = vmatpush1.bf16.msra.mxu0 %v802
  %1036 = vmatprep.subr.bf16.mxu0 0
  %1037 = vmatpush1.bf16.msra.mxu0 %v801
  %1038 = vmatprep.subr.bf16.mxu0 0
  %1039 = vmatpush1.bf16.msra.mxu0 %v800
  %1040 = vmatprep.subr.bf16.mxu0 0
  %1041 = vmatpush1.bf16.msra.mxu0 %v799
  %1042 = vmatprep.subr.bf16.mxu0 0
  %1043 = vmatpush1.bf16.msra.mxu0 %v798
  %1044 = vmatprep.subr.bf16.mxu0 0
  %1045 = vmatpush1.bf16.msra.mxu0 %v797
  %1046 = vmatprep.subr.bf16.mxu0 0
  %1047 = vmatpush1.bf16.msra.mxu0 %v796
  %1048 = vmatprep.subr.bf16.mxu0 0
  %1049 = vmatpush2.bf16.msra.mxu0 %v811
  %1050 = vmatprep.subr.bf16.mxu0 0
  %1051 = vmatpush2.bf16.msra.mxu0 %v810
  %1052 = vmatprep.subr.bf16.mxu0 0
  %1053 = vmatpush2.bf16.msra.mxu0 %v809
  %1054 = vmatprep.subr.bf16.mxu0 0
  %1055 = vmatpush2.bf16.msra.mxu0 %v808
  %1056 = vmatprep.subr.bf16.mxu0 0
  %1057 = vmatpush2.bf16.msra.mxu0 %v807
  %1058 = vmatprep.subr.bf16.mxu0 0
  %1059 = vmatpush2.bf16.msra.mxu0 %v806
  %1060 = vmatprep.subr.bf16.mxu0 0
  %1061 = vmatpush2.bf16.msra.mxu0 %v805
  %1062 = vmatprep.subr.bf16.mxu0 0
  %1063 = vmatpush2.bf16.msra.mxu0 %v804
  %1064 = vmatprep.mubr.bf16.mxu0 %v341
  %1065 = vmatmul.mubr.bf16.gmra.mxu0 %v340
  %v1066 = vpop.f32.mrf.mxu0
  %v1067 = vadd.f32 %v1018, %v1066
  %v1068 = vpop.f32.mrf.mxu0
  %v1069 = vpop.f32.mrf.mxu0
  %v1070 = vadd.f32 %v1021, %v1069
  %v1071 = vpop.f32.mrf.mxu0
  %1072 = vmatprep.mubr.bf16.mxu0 %v354
  %1073 = vmatmul.mubr.bf16.gmra.mxu0 %v353
  %v1074 = vpop.f32.mrf.mxu0
  %v1075 = vadd.f32 %v1026, %v1074
  %v1076 = vpop.f32.mrf.mxu0
  %v1077 = vpop.f32.mrf.mxu0
  %v1078 = vadd.f32 %v1029, %v1077
  %v1079 = vpop.f32.mrf.mxu0
  %1080 = vdwg.mxu0
  %1081 = vmatprep.subr.bf16.mxu0 0
  %1082 = vmatpush1.bf16.msra.mxu0 %v819
  %1083 = vmatprep.subr.bf16.mxu0 0
  %1084 = vmatpush1.bf16.msra.mxu0 %v818
  %1085 = vmatprep.subr.bf16.mxu0 0
  %1086 = vmatpush1.bf16.msra.mxu0 %v817
  %1087 = vmatprep.subr.bf16.mxu0 0
  %1088 = vmatpush1.bf16.msra.mxu0 %v816
  %1089 = vmatprep.subr.bf16.mxu0 0
  %1090 = vmatpush1.bf16.msra.mxu0 %v815
  %1091 = vmatprep.subr.bf16.mxu0 0
  %1092 = vmatpush1.bf16.msra.mxu0 %v814
  %1093 = vmatprep.subr.bf16.mxu0 0
  %1094 = vmatpush1.bf16.msra.mxu0 %v813
  %1095 = vmatprep.subr.bf16.mxu0 0
  %1096 = vmatpush1.bf16.msra.mxu0 %v812
  %1097 = vmatprep.subr.bf16.mxu0 0
  %1098 = vmatpush2.bf16.msra.mxu0 %v827
  %1099 = vmatprep.subr.bf16.mxu0 0
  %1100 = vmatpush2.bf16.msra.mxu0 %v826
  %1101 = vmatprep.subr.bf16.mxu0 0
  %1102 = vmatpush2.bf16.msra.mxu0 %v825
  %1103 = vmatprep.subr.bf16.mxu0 0
  %1104 = vmatpush2.bf16.msra.mxu0 %v824
  %1105 = vmatprep.subr.bf16.mxu0 0
  %1106 = vmatpush2.bf16.msra.mxu0 %v823
  %1107 = vmatprep.subr.bf16.mxu0 0
  %1108 = vmatpush2.bf16.msra.mxu0 %v822
  %1109 = vmatprep.subr.bf16.mxu0 0
  %1110 = vmatpush2.bf16.msra.mxu0 %v821
  %1111 = vmatprep.subr.bf16.mxu0 0
  %1112 = vmatpush2.bf16.msra.mxu0 %v820
  %1113 = vmatprep.mubr.bf16.mxu0 %v343
  %1114 = vmatmul.mubr.bf16.gmra.mxu0 %v342
  %v1115 = vpop.f32.mrf.mxu0
  %v1116 = vadd.f32 %v1067, %v1115
  %v1117 = vpop.f32.mrf.mxu0
  %v1118 = vpop.f32.mrf.mxu0
  %v1119 = vadd.f32 %v1070, %v1118
  %v1120 = vpop.f32.mrf.mxu0
  %1121 = vmatprep.mubr.bf16.mxu0 %v356
  %1122 = vmatmul.mubr.bf16.gmra.mxu0 %v355
  %v1123 = vpop.f32.mrf.mxu0
  %v1124 = vadd.f32 %v1075, %v1123
  %v1125 = vpop.f32.mrf.mxu0
  %v1126 = vpop.f32.mrf.mxu0
  %v1127 = vadd.f32 %v1078, %v1126
  %v1128 = vpop.f32.mrf.mxu0
  %1129 = vdwg.mxu0
  %1130 = vmatprep.subr.bf16.mxu0 0
  %1131 = vmatpush1.bf16.msra.mxu0 %v835
  %1132 = vmatprep.subr.bf16.mxu0 0
  %1133 = vmatpush1.bf16.msra.mxu0 %v834
  %1134 = vmatprep.subr.bf16.mxu0 0
  %1135 = vmatpush1.bf16.msra.mxu0 %v833
  %1136 = vmatprep.subr.bf16.mxu0 0
  %1137 = vmatpush1.bf16.msra.mxu0 %v832
  %1138 = vmatprep.subr.bf16.mxu0 0
  %1139 = vmatpush1.bf16.msra.mxu0 %v831
  %1140 = vmatprep.subr.bf16.mxu0 0
  %1141 = vmatpush1.bf16.msra.mxu0 %v830
  %1142 = vmatprep.subr.bf16.mxu0 0
  %1143 = vmatpush1.bf16.msra.mxu0 %v829
  %1144 = vmatprep.subr.bf16.mxu0 0
  %1145 = vmatpush1.bf16.msra.mxu0 %v828
  %1146 = vmatprep.subr.bf16.mxu0 0
  %1147 = vmatpush2.bf16.msra.mxu0 %v843
  %1148 = vmatprep.subr.bf16.mxu0 0
  %1149 = vmatpush2.bf16.msra.mxu0 %v842
  %1150 = vmatprep.subr.bf16.mxu0 0
  %1151 = vmatpush2.bf16.msra.mxu0 %v841
  %1152 = vmatprep.subr.bf16.mxu0 0
  %1153 = vmatpush2.bf16.msra.mxu0 %v840
  %1154 = vmatprep.subr.bf16.mxu0 0
  %1155 = vmatpush2.bf16.msra.mxu0 %v839
  %1156 = vmatprep.subr.bf16.mxu0 0
  %1157 = vmatpush2.bf16.msra.mxu0 %v838
  %1158 = vmatprep.subr.bf16.mxu0 0
  %1159 = vmatpush2.bf16.msra.mxu0 %v837
  %1160 = vmatprep.subr.bf16.mxu0 0
  %1161 = vmatpush2.bf16.msra.mxu0 %v836
  %1162 = vmatprep.mubr.bf16.mxu0 %v345
  %1163 = vmatmul.mubr.bf16.gmra.mxu0 %v344
  %v1164 = vpop.f32.mrf.mxu0
  %v1165 = vadd.f32 %v1116, %v1164
  %v1166 = vpop.f32.mrf.mxu0
  %v1167 = vpop.f32.mrf.mxu0
  %v1168 = vadd.f32 %v1119, %v1167
  %v1169 = vpop.f32.mrf.mxu0
  %1170 = vmatprep.mubr.bf16.mxu0 %v358
  %1171 = vmatmul.mubr.bf16.gmra.mxu0 %v357
  %v1172 = vpop.f32.mrf.mxu0
  %v1173 = vadd.f32 %v1124, %v1172
  %v1174 = vpop.f32.mrf.mxu0
  %v1175 = vpop.f32.mrf.mxu0
  %v1176 = vadd.f32 %v1127, %v1175
  %v1177 = vpop.f32.mrf.mxu0
  %1178 = vdwg.mxu0
  %1179 = vmatprep.subr.bf16.mxu0 0
  %1180 = vmatpush1.bf16.msra.mxu0 %v851
  %1181 = vmatprep.subr.bf16.mxu0 0
  %1182 = vmatpush1.bf16.msra.mxu0 %v850
  %1183 = vmatprep.subr.bf16.mxu0 0
  %1184 = vmatpush1.bf16.msra.mxu0 %v849
  %1185 = vmatprep.subr.bf16.mxu0 0
  %1186 = vmatpush1.bf16.msra.mxu0 %v848
  %1187 = vmatprep.subr.bf16.mxu0 0
  %1188 = vmatpush1.bf16.msra.mxu0 %v847
  %1189 = vmatprep.subr.bf16.mxu0 0
  %1190 = vmatpush1.bf16.msra.mxu0 %v846
  %1191 = vmatprep.subr.bf16.mxu0 0
  %1192 = vmatpush1.bf16.msra.mxu0 %v845
  %1193 = vmatprep.subr.bf16.mxu0 0
  %1194 = vmatpush1.bf16.msra.mxu0 %v844
  %1195 = vmatprep.subr.bf16.mxu0 0
  %1196 = vmatpush2.bf16.msra.mxu0 %v859
  %1197 = vmatprep.subr.bf16.mxu0 0
  %1198 = vmatpush2.bf16.msra.mxu0 %v858
  %1199 = vmatprep.subr.bf16.mxu0 0
  %1200 = vmatpush2.bf16.msra.mxu0 %v857
  %1201 = vmatprep.subr.bf16.mxu0 0
  %1202 = vmatpush2.bf16.msra.mxu0 %v856
  %1203 = vmatprep.subr.bf16.mxu0 0
  %1204 = vmatpush2.bf16.msra.mxu0 %v855
  %1205 = vmatprep.subr.bf16.mxu0 0
  %1206 = vmatpush2.bf16.msra.mxu0 %v854
  %1207 = vmatprep.subr.bf16.mxu0 0
  %1208 = vmatpush2.bf16.msra.mxu0 %v853
  %1209 = vmatprep.subr.bf16.mxu0 0
  %1210 = vmatpush2.bf16.msra.mxu0 %v852
  %1211 = vmatprep.mubr.bf16.mxu0 %v347
  %1212 = vmatmul.mubr.bf16.gmra.mxu0 %v346
  %v1213 = vpop.f32.mrf.mxu0
  %v1214 = vadd.f32 %v1165, %v1213
  %v1215 = vpop.f32.mrf.mxu0
  %v1216 = vpop.f32.mrf.mxu0
  %v1217 = vadd.f32 %v1168, %v1216
  %v1218 = vpop.f32.mrf.mxu0
  %1219 = vmatprep.mubr.bf16.mxu0 %v360
  %1220 = vmatmul.mubr.bf16.gmra.mxu0 %v359
  %v1221 = vpop.f32.mrf.mxu0
  %v1222 = vadd.f32 %v1173, %v1221
  %v1223 = vpop.f32.mrf.mxu0
  %v1224 = vpop.f32.mrf.mxu0
  %v1225 = vadd.f32 %v1176, %v1224
  %v1226 = vpop.f32.mrf.mxu0
  %1227 = vdwg.mxu0
  %1228 = vmatprep.subr.bf16.mxu0 0
  %1229 = vmatpush1.bf16.msra.mxu0 %v867
  %1230 = vmatprep.subr.bf16.mxu0 0
  %1231 = vmatpush1.bf16.msra.mxu0 %v866
  %1232 = vmatprep.subr.bf16.mxu0 0
  %1233 = vmatpush1.bf16.msra.mxu0 %v865
  %1234 = vmatprep.subr.bf16.mxu0 0
  %1235 = vmatpush1.bf16.msra.mxu0 %v864
  %1236 = vmatprep.subr.bf16.mxu0 0
  %1237 = vmatpush1.bf16.msra.mxu0 %v863
  %1238 = vmatprep.subr.bf16.mxu0 0
  %1239 = vmatpush1.bf16.msra.mxu0 %v862
  %1240 = vmatprep.subr.bf16.mxu0 0
  %1241 = vmatpush1.bf16.msra.mxu0 %v861
  %1242 = vmatprep.subr.bf16.mxu0 0
  %1243 = vmatpush1.bf16.msra.mxu0 %v860
  %1244 = vmatprep.subr.bf16.mxu0 0
  %1245 = vmatpush2.bf16.msra.mxu0 %v875
  %1246 = vmatprep.subr.bf16.mxu0 0
  %1247 = vmatpush2.bf16.msra.mxu0 %v874
  %1248 = vmatprep.subr.bf16.mxu0 0
  %1249 = vmatpush2.bf16.msra.mxu0 %v873
  %1250 = vmatprep.subr.bf16.mxu0 0
  %1251 = vmatpush2.bf16.msra.mxu0 %v872
  %1252 = vmatprep.subr.bf16.mxu0 0
  %1253 = vmatpush2.bf16.msra.mxu0 %v871
  %1254 = vmatprep.subr.bf16.mxu0 0
  %1255 = vmatpush2.bf16.msra.mxu0 %v870
  %1256 = vmatprep.subr.bf16.mxu0 0
  %1257 = vmatpush2.bf16.msra.mxu0 %v869
  %1258 = vmatprep.subr.bf16.mxu0 0
  %1259 = vmatpush2.bf16.msra.mxu0 %v868
  %1260 = vmatprep.mubr.bf16.mxu0 %v349
  %1261 = vmatmul.mubr.bf16.gmra.mxu0 %v348
  %v1262 = vpop.f32.mrf.mxu0
  %v1263 = vadd.f32 %v1214, %v1262
  %v1264 = vpop.f32.mrf.mxu0
  %v1265 = vpop.f32.mrf.mxu0
  %v1266 = vadd.f32 %v1217, %v1265
  %v1267 = vpop.f32.mrf.mxu0
  %1268 = vmatprep.mubr.bf16.mxu0 %v362
  %1269 = vmatmul.mubr.bf16.gmra.mxu0 %v361
  %v1270 = vpop.f32.mrf.mxu0
  %v1271 = vadd.f32 %v1222, %v1270
  %v1272 = vpop.f32.mrf.mxu0
  %v1273 = vpop.f32.mrf.mxu0
  %v1274 = vadd.f32 %v1225, %v1273
  %v1275 = vpop.f32.mrf.mxu0
  %1276 = vdwg.mxu0
  %1277 = vmatprep.subr.bf16.mxu0 0
  %1278 = vmatpush1.bf16.msra.mxu0 0
  %1279 = vmatprep.subr.bf16.mxu0 0
  %1280 = vmatpush1.bf16.msra.mxu0 0
  %1281 = vmatprep.subr.bf16.mxu0 0
  %1282 = vmatpush1.bf16.msra.mxu0 0
  %1283 = vmatprep.subr.bf16.mxu0 0
  %1284 = vmatpush1.bf16.msra.mxu0 0
  %1285 = vmatprep.subr.bf16.mxu0 0
  %1286 = vmatpush1.bf16.msra.mxu0 0
  %1287 = vmatprep.subr.bf16.mxu0 0
  %1288 = vmatpush1.bf16.msra.mxu0 0
  %1289 = vmatprep.subr.bf16.mxu0 0
  %1290 = vmatpush1.bf16.msra.mxu0 %v877
  %1291 = vmatprep.subr.bf16.mxu0 0
  %1292 = vmatpush1.bf16.msra.mxu0 %v876
  %1293 = vmatprep.subr.bf16.mxu0 0
  %1294 = vmatpush2.bf16.msra.mxu0 0
  %1295 = vmatprep.subr.bf16.mxu0 0
  %1296 = vmatpush2.bf16.msra.mxu0 0
  %1297 = vmatprep.subr.bf16.mxu0 0
  %1298 = vmatpush2.bf16.msra.mxu0 0
  %1299 = vmatprep.subr.bf16.mxu0 0
  %1300 = vmatpush2.bf16.msra.mxu0 0
  %1301 = vmatprep.subr.bf16.mxu0 0
  %1302 = vmatpush2.bf16.msra.mxu0 0
  %1303 = vmatprep.subr.bf16.mxu0 0
  %1304 = vmatpush2.bf16.msra.mxu0 0
  %1305 = vmatprep.subr.bf16.mxu0 0
  %1306 = vmatpush2.bf16.msra.mxu0 0
  %1307 = vmatprep.subr.bf16.mxu0 0
  %1308 = vmatpush2.bf16.msra.mxu0 0
  %1309 = vmatprep.mubr.bf16.mxu0 0
  %1310 = vmatmul.mubr.bf16.gmra.mxu0 %v978
  %v1311 = vpop.f32.mrf.mxu0
  %v1312 = vadd.f32 %v1263, %v1311
  %v1313 = vpop.f32.mrf.mxu0
  %v1314 = vpop.f32.mrf.mxu0
  %v1315 = vadd.f32 %v1266, %v1314
  %v1316 = vpop.f32.mrf.mxu0
  %1317 = vmatprep.mubr.bf16.mxu0 0
  %1318 = vmatmul.mubr.bf16.gmra.mxu0 %v981
  %v1319 = vpop.f32.mrf.mxu0
  %v1320 = vadd.f32 %v1271, %v1319
  %v1321 = vpop.f32.mrf.mxu0
  %v1322 = vpop.f32.mrf.mxu0
  %v1323 = vadd.f32 %v1274, %v1322
  %v1324 = vpop.f32.mrf.mxu0
  %1325 = vdwg.mxu0
  %v1326 = vmax.f32 %v1312, 0.0
  %v1327 = vmax.f32 %v1315, 0.0
  %v1328 = vmax.f32 %v1320, 0.0
  %v1329 = vmax.f32 %v1323, 0.0
  %v1330 = vpack.c.bf16 %v1327, %v1326
  %v1331 = vpack.c.bf16 %v1329, %v1328
  %v1332 = vld [vmem:[%s3] sm:$0xf]
  %v1333 = vld [vmem:[%s3 + $0x4] sm:$0xf]
  %v1334 = vld [vmem:[%s3 + $0x8] sm:$0xf]
  %v1335 = vld [vmem:[%s3 + $0xc] sm:$0xf]
  %v1336 = vld [vmem:[%s3 + $0x10] sm:$0xf]
  %v1337 = vld [vmem:[%s3 + $0x14] sm:$0xf]
  %v1338 = vld [vmem:[%s3 + $0x18] sm:$0xf]
  %v1339 = vld [vmem:[%s3 + $0x1c] sm:$0xf]
  %v1340 = vld [vmem:[%s3 + $0x20] sm:$0xf]
  %v1341 = vld [vmem:[%s3 + $0x24] sm:$0xf]
  %v1342 = vld [vmem:[%s3 + $0x28] sm:$0xf]
  %v1343 = vld [vmem:[%s3 + $0x2c] sm:$0xf]
  %v1344 = vld [vmem:[%s3 + $0x30] sm:$0xf]
  %v1345 = vld [vmem:[%s3 + $0x34] sm:$0xf]
  %v1346 = vld [vmem:[%s3 + $0x38] sm:$0xf]
  %v1347 = vld [vmem:[%s3 + $0x3c] sm:$0xf]
  %v1348 = vld [vmem:[%s4] sm:$0x1]
  %v1350 = vlaneseq
  %v1351 = vshrl.u32 %v1350, 7
  %v1352 = vsub.s32 0, %v1351
  %v1353 = vrot.slane %v1348, %v1352
  %v1371 = vunpack.c.l.b16 %v1332
  %v1372 = vunpack.c.l.b16 %v1333
  %v1373 = vunpack.c.l.b16 %v1334
  %v1374 = vunpack.c.l.b16 %v1335
  %v1375 = vunpack.c.l.b16 %v1336
  %v1376 = vunpack.c.l.b16 %v1337
  %v1377 = vunpack.c.l.b16 %v1338
  %v1378 = vunpack.c.l.b16 %v1339
  %v1379 = vunpack.c.l.b16 %v1340
  %v1380 = vunpack.c.l.b16 %v1341
  %v1381 = vunpack.c.l.b16 %v1342
  %v1382 = vunpack.c.l.b16 %v1343
  %v1383 = vunpack.c.l.b16 %v1344
  %v1384 = vunpack.c.l.b16 %v1345
  %v1385 = vunpack.c.l.b16 %v1346
  %v1386 = vunpack.c.l.b16 %v1347
  %v1387 = vpack.c.b16 %v1372, %v1371
  %v1388 = vpack.c.b16 %v1374, %v1373
  %v1389 = vpack.c.b16 %v1376, %v1375
  %v1390 = vpack.c.b16 %v1378, %v1377
  %v1391 = vpack.c.b16 %v1380, %v1379
  %v1392 = vpack.c.b16 %v1382, %v1381
  %v1393 = vpack.c.b16 %v1384, %v1383
  %v1394 = vpack.c.b16 %v1386, %v1385
  %1403 = vmatprep.subr.bf16.mxu0 0
  %1404 = vmatpush1.bf16.msra.mxu0 %v1394
  %1405 = vmatprep.subr.bf16.mxu0 0
  %1406 = vmatpush1.bf16.msra.mxu0 %v1393
  %1407 = vmatprep.subr.bf16.mxu0 0
  %1408 = vmatpush1.bf16.msra.mxu0 %v1392
  %1409 = vmatprep.subr.bf16.mxu0 0
  %1410 = vmatpush1.bf16.msra.mxu0 %v1391
  %1411 = vmatprep.subr.bf16.mxu0 0
  %1412 = vmatpush1.bf16.msra.mxu0 %v1390
  %1413 = vmatprep.subr.bf16.mxu0 0
  %1414 = vmatpush1.bf16.msra.mxu0 %v1389
  %1415 = vmatprep.subr.bf16.mxu0 0
  %1416 = vmatpush1.bf16.msra.mxu0 %v1388
  %1417 = vmatprep.subr.bf16.mxu0 0
  %1418 = vmatpush1.bf16.msra.mxu0 %v1387
  %1419 = vmatprep.subr.bf16.mxu0 0
  %1420 = vmatpush2.bf16.msra.mxu0 0
  %1421 = vmatprep.subr.bf16.mxu0 0
  %1422 = vmatpush2.bf16.msra.mxu0 0
  %1423 = vmatprep.subr.bf16.mxu0 0
  %1424 = vmatpush2.bf16.msra.mxu0 0
  %1425 = vmatprep.subr.bf16.mxu0 0
  %1426 = vmatpush2.bf16.msra.mxu0 0
  %1427 = vmatprep.subr.bf16.mxu0 0
  %1428 = vmatpush2.bf16.msra.mxu0 0
  %1429 = vmatprep.subr.bf16.mxu0 0
  %1430 = vmatpush2.bf16.msra.mxu0 0
  %1431 = vmatprep.subr.bf16.mxu0 0
  %1432 = vmatpush2.bf16.msra.mxu0 0
  %1433 = vmatprep.subr.bf16.mxu0 0
  %1434 = vmatpush2.bf16.msra.mxu0 0
  %1435 = vmatprep.mubr.bf16.mxu0 0
  %1436 = vmatmul.mubr.bf16.gmra.mxu0 %v1330
  %v1437 = vpop.f32.mrf.mxu0
  %v1438 = vadd.f32 %v1353, %v1437
  %v1439 = vpop.f32.mrf.mxu0
  %v1440 = vpop.f32.mrf.mxu0
  %v1441 = vadd.f32 %v1353, %v1440
  %v1442 = vpop.f32.mrf.mxu0
  %1443 = vmatprep.mubr.bf16.mxu0 0
  %1444 = vmatmul.mubr.bf16.gmra.mxu0 %v1331
  %v1445 = vpop.f32.mrf.mxu0
  %v1446 = vadd.f32 %v1353, %v1445
  %v1447 = vpop.f32.mrf.mxu0
  %v1448 = vpop.f32.mrf.mxu0
  %v1449 = vadd.f32 %v1353, %v1448
  %v1450 = vpop.f32.mrf.mxu0
  %1451 = vdwg.mxu0
  %v1452 = vmax.f32 %v1438, 0.0
  %v1453 = vmax.f32 %v1441, 0.0
  %v1454 = vmax.f32 %v1446, 0.0
  %v1455 = vmax.f32 %v1449, 0.0
  %v1456 = vpack.c.bf16 %v1453, %v1452
  %v1457 = vpack.c.bf16 %v1455, %v1454
  %v1458 = vld [vmem:[%s5] sm:$0xf]
  %v1459 = vld [vmem:[%s5 + $0x4] sm:$0xf]
  %v1460 = vld [vmem:[%s5 + $0x8] sm:$0xf]
  %v1461 = vld [vmem:[%s5 + $0xc] sm:$0xf]
  %v1462 = vld [vmem:[%s5 + $0x10] sm:$0xf]
  %v1463 = vld [vmem:[%s5 + $0x14] sm:$0xf]
  %v1464 = vld [vmem:[%s5 + $0x18] sm:$0xf]
  %v1465 = vld [vmem:[%s5 + $0x1c] sm:$0xf]
  %v1466 = vld [vmem:[%s5 + $0x20] sm:$0xf]
  %v1467 = vld [vmem:[%s5 + $0x24] sm:$0xf]
  %v1468 = vld [vmem:[%s5 + $0x28] sm:$0xf]
  %v1469 = vld [vmem:[%s5 + $0x2c] sm:$0xf]
  %v1470 = vld [vmem:[%s5 + $0x30] sm:$0xf]
  %v1471 = vld [vmem:[%s5 + $0x34] sm:$0xf]
  %v1472 = vld [vmem:[%s5 + $0x38] sm:$0xf]
  %v1473 = vld [vmem:[%s5 + $0x3c] sm:$0xf]
  %v1474 = vld [vmem:[%s6] sm:$0x1]
  %v1476 = vlaneseq
  %v1477 = vshrl.u32 %v1476, 7
  %v1478 = vsub.s32 0, %v1477
  %v1479 = vrot.slane %v1474, %v1478
  %v1497 = vunpack.c.l.b16 %v1458
  %v1498 = vunpack.c.l.b16 %v1459
  %v1499 = vunpack.c.l.b16 %v1460
  %v1500 = vunpack.c.l.b16 %v1461
  %v1501 = vunpack.c.l.b16 %v1462
  %v1502 = vunpack.c.l.b16 %v1463
  %v1503 = vunpack.c.l.b16 %v1464
  %v1504 = vunpack.c.l.b16 %v1465
  %v1505 = vunpack.c.l.b16 %v1466
  %v1506 = vunpack.c.l.b16 %v1467
  %v1507 = vunpack.c.l.b16 %v1468
  %v1508 = vunpack.c.l.b16 %v1469
  %v1509 = vunpack.c.l.b16 %v1470
  %v1510 = vunpack.c.l.b16 %v1471
  %v1511 = vunpack.c.l.b16 %v1472
  %v1512 = vunpack.c.l.b16 %v1473
  %v1513 = vpack.c.b16 %v1498, %v1497
  %v1514 = vpack.c.b16 %v1500, %v1499
  %v1515 = vpack.c.b16 %v1502, %v1501
  %v1516 = vpack.c.b16 %v1504, %v1503
  %v1517 = vpack.c.b16 %v1506, %v1505
  %v1518 = vpack.c.b16 %v1508, %v1507
  %v1519 = vpack.c.b16 %v1510, %v1509
  %v1520 = vpack.c.b16 %v1512, %v1511
  %1529 = vmatprep.subr.bf16.mxu0 0
  %1530 = vmatpush1.bf16.msra.mxu0 %v1520
  %1531 = vmatprep.subr.bf16.mxu0 0
  %1532 = vmatpush1.bf16.msra.mxu0 %v1519
  %1533 = vmatprep.subr.bf16.mxu0 0
  %1534 = vmatpush1.bf16.msra.mxu0 %v1518
  %1535 = vmatprep.subr.bf16.mxu0 0
  %1536 = vmatpush1.bf16.msra.mxu0 %v1517
  %1537 = vmatprep.subr.bf16.mxu0 0
  %1538 = vmatpush1.bf16.msra.mxu0 %v1516
  %1539 = vmatprep.subr.bf16.mxu0 0
  %1540 = vmatpush1.bf16.msra.mxu0 %v1515
  %1541 = vmatprep.subr.bf16.mxu0 0
  %1542 = vmatpush1.bf16.msra.mxu0 %v1514
  %1543 = vmatprep.subr.bf16.mxu0 0
  %1544 = vmatpush1.bf16.msra.mxu0 %v1513
  %1545 = vmatprep.subr.bf16.mxu0 0
  %1546 = vmatpush2.bf16.msra.mxu0 0
  %1547 = vmatprep.subr.bf16.mxu0 0
  %1548 = vmatpush2.bf16.msra.mxu0 0
  %1549 = vmatprep.subr.bf16.mxu0 0
  %1550 = vmatpush2.bf16.msra.mxu0 0
  %1551 = vmatprep.subr.bf16.mxu0 0
  %1552 = vmatpush2.bf16.msra.mxu0 0
  %1553 = vmatprep.subr.bf16.mxu0 0
  %1554 = vmatpush2.bf16.msra.mxu0 0
  %1555 = vmatprep.subr.bf16.mxu0 0
  %1556 = vmatpush2.bf16.msra.mxu0 0
  %1557 = vmatprep.subr.bf16.mxu0 0
  %1558 = vmatpush2.bf16.msra.mxu0 0
  %1559 = vmatprep.subr.bf16.mxu0 0
  %1560 = vmatpush2.bf16.msra.mxu0 0
  %1561 = vmatprep.mubr.bf16.mxu0 0
  %1562 = vmatmul.mubr.bf16.gmra.mxu0 %v1456
  %v1563 = vpop.f32.mrf.mxu0
  %v1564 = vadd.f32 %v1479, %v1563
  %v1565 = vpop.f32.mrf.mxu0
  %v1566 = vpop.f32.mrf.mxu0
  %v1567 = vadd.f32 %v1479, %v1566
  %v1568 = vpop.f32.mrf.mxu0
  %1569 = vmatprep.mubr.bf16.mxu0 0
  %1570 = vmatmul.mubr.bf16.gmra.mxu0 %v1457
  %v1571 = vpop.f32.mrf.mxu0
  %v1572 = vadd.f32 %v1479, %v1571
  %v1573 = vpop.f32.mrf.mxu0
  %v1574 = vpop.f32.mrf.mxu0
  %v1575 = vadd.f32 %v1479, %v1574
  %v1576 = vpop.f32.mrf.mxu0
  %1577 = vdwg.mxu0
  %1578 = vst [vmem:[%s7] sm:$0xff] %v1564
  %1579 = vst [vmem:[%s7 + $0x8] sm:$0xff] %v1567
  %1580 = vst [vmem:[%s7 + $0x10] sm:$0xff] %v1572
  %1581 = vst [vmem:[%s7 + $0x18] sm:$0xff] %v1575
  // Predicated region
  $region30: #{faster_rcnn_forward.29} parent=0 // pred_check
    _
  $region31: #{faster_rcnn_forward.29} parent=0 // pred_check_branch
    %1583 = sbr.rel (0) target = $region33
  $region32: #{faster_rcnn_forward.29} parent=0 // pred_region
    _
  $region33: #{faster_rcnn_forward.29} parent=0 // pred_fallthru
    _
  // Predicated region
  $region34: #{faster_rcnn_forward.29} parent=0 // pred_check
    _
  $region35: #{faster_rcnn_forward.29} parent=0 // pred_check_branch
    %1585 = sbr.rel (0) target = $region37
  $region36: #{faster_rcnn_forward.29} parent=0 // pred_region
    _
  $region37: #{faster_rcnn_forward.29} parent=0 // pred_fallthru
    _

</llo_original>
